<compile_context>
chip_gen: v7x
topology: tpu7x:2x2x1
jax: 0.10.0
libtpu: 0.0.40
codegen_flags: <defaults>
</compile_context>

<pallas_src>
import functools

import jax
import jax.numpy as jnp
from jax.experimental import pallas as pl
from jax.experimental.pallas import tpu as pltpu

EPS = 1e-5  # torch.nn.InstanceNorm2d default eps


def _resnet_block_kernel(x_ref, w1_ref, w2_ref, o_ref, xp_ref, patch_ref, *,
                         H, W, C, Cp, compute_dtype):
    """Fused (pad -> conv3x3 -> IN -> ReLU -> pad -> conv3x3 -> IN) for one image.

    x_ref     : (1, H, W, C)        input tile (channels-last, unpadded channels)
    w1_ref    : (9*Cp, Cp)          conv1 weights, row = (dh*3+dw)*Cp + cin
    w2_ref    : (9*Cp, Cp)          conv2 weights
    o_ref     : (1, C, H*W)         channel-major output tile (lane axis = H*W)
    xp_ref    : (H+2, W+2, Cp)      VMEM scratch: reflect-padded image
    patch_ref : (H*W, 9*Cp)         VMEM scratch: im2col patch matrix
    """
    HW = H * W

    # The padded channel tail must be zero so that padded channels contribute
    # nothing to the matmul (stage 2 re-writes the interior with full width).
    if C != Cp:
        xp_ref[...] = jnp.zeros_like(xp_ref)

    def fill_reflect(v):
        """Write v (H, W, vc) into xp_ref with ReflectionPad2d(1) borders."""
        vc = v.shape[-1]
        xp_ref[1:H + 1, 1:W + 1, :vc] = v                     # interior
        xp_ref[0:1, 1:W + 1, :vc] = v[1:2]                    # top    (row 1)
        xp_ref[H + 1:H + 2, 1:W + 1, :vc] = v[H - 2:H - 1]    # bottom (row H-2)
        xp_ref[:, 0:1, :] = xp_ref[:, 2:3, :]                 # left  (+corners)
        xp_ref[:, W + 1:W + 2, :] = xp_ref[:, W - 1:W, :]     # right (+corners)

    def conv3x3_instance_norm(v, w, relu):
        """valid 3x3 conv (via one im2col matmul) + InstanceNorm (+ReLU)."""
        fill_reflect(v)
        # Build the (HW, 9*Cp) patch once; 9 lane-aligned slab stores.
        for dh in range(3):
            for dw in range(3):
                k = dh * 3 + dw
                tap = xp_ref[dh:dh + H, dw:dw + W, :]          # (H, W, Cp)
                patch_ref[:, k * Cp:(k + 1) * Cp] = tap.reshape(HW, Cp)
        # Single MXU matmul, contraction K = 9*Cp, f32 accumulation.
        acc = jnp.dot(patch_ref[...], w,
                      preferred_element_type=jnp.float32)     # (HW, Cp) f32
        # InstanceNorm2d(affine=False): per-channel stats over H*W, one sweep.
        inv_hw = 1.0 / HW
        mean = jnp.sum(acc, axis=0, keepdims=True) * inv_hw
        var = jnp.sum(acc * acc, axis=0, keepdims=True) * inv_hw - mean * mean
        y = (acc - mean) * jax.lax.rsqrt(var + EPS)
        if relu:
            y = jnp.maximum(y, 0.0)
        return y                                               # (HW, Cp) f32

    h = conv3x3_instance_norm(x_ref[0], w1_ref[...], relu=True)
    h = h.reshape(H, W, Cp).astype(compute_dtype)
    y = conv3x3_instance_norm(h, w2_ref[...], relu=False)

    # Lane-dense store: channel-major (C, H*W) with H*W on the 128-lane axis;
    # the zero-padded channels are dropped here so HBM traffic stays minimal.
    o_ref[0] = y.T[:C, :].astype(o_ref.dtype)


def resnet_block_forward(x_nchw, params, *, compute_dtype=jnp.float32):
    """Forward pass of ResnetBlock (NCHW in, NCHW out).

    Matches the PyTorch Sequential:
        ReflectionPad2d(1) -> Conv2d(C,C,3) -> InstanceNorm2d -> ReLU
        -> ReflectionPad2d(1) -> Conv2d(C,C,3) -> InstanceNorm2d
    (the module returns the sequential output directly; no residual add).
    The conv biases are intentionally not applied: InstanceNorm(affine=False)
    cancels any per-channel bias exactly.
    """
    N, C, H, W = x_nchw.shape
    HW = H * W
    Cp = ((C + 127) // 128) * 128          # channel dim padded to 128 lanes

    # NCHW -> NHWC so channels sit on the (minor) lane axis inside the kernel.
    x = jnp.transpose(x_nchw, (0, 2, 3, 1)).astype(compute_dtype)

    def pack_w(w_hwio):
        wp = jnp.pad(w_hwio, ((0, 0), (0, 0), (0, Cp - C), (0, Cp - C)))
        return wp.reshape(9 * Cp, Cp).astype(compute_dtype)    # row=(tap, cin)

    w1 = pack_w(params["w1"])
    w2 = pack_w(params["w2"])

    kernel = functools.partial(_resnet_block_kernel, H=H, W=W, C=C, Cp=Cp,
                               compute_dtype=compute_dtype)
    out = pl.pallas_call(
        kernel,
        out_shape=jax.ShapeDtypeStruct((N, C, HW), jnp.float32),
        grid=(N,),
        in_specs=[
            pl.BlockSpec((1, H, W, C), lambda n: (n, 0, 0, 0)),
            pl.BlockSpec((9 * Cp, Cp), lambda n: (0, 0)),
            pl.BlockSpec((9 * Cp, Cp), lambda n: (0, 0)),
        ],
        out_specs=pl.BlockSpec((1, C, HW), lambda n: (n, 0, 0)),
        scratch_shapes=[
            pltpu.VMEM((H + 2, W + 2, Cp), compute_dtype),     # padded image
            pltpu.VMEM((HW, 9 * Cp), compute_dtype),           # im2col patch
        ],
        compiler_params=pltpu.CompilerParams(
            dimension_semantics=("parallel",),
            vmem_limit_bytes=48 * 1024 * 1024,
        ),
    )(x, w1, w2)

    return out.reshape(N, C, H, W)


def init_params(key, num_filter):
    """Deterministic Conv2d-style init (uniform(-k, k), k = 1/sqrt(fan_in))."""
    k1, k2, k3, k4 = jax.random.split(key, 4)
    fan_in = num_filter * 3 * 3
    bound = 1.0 / jnp.sqrt(fan_in)
    w_shape = (3, 3, num_filter, num_filter)                   # HWIO
    return {
        "w1": jax.random.uniform(k1, w_shape, jnp.float32, -bound, bound),
        "b1": jax.random.uniform(k2, (num_filter,), jnp.float32, -bound, bound),
        "w2": jax.random.uniform(k3, w_shape, jnp.float32, -bound, bound),
        "b2": jax.random.uniform(k4, (num_filter,), jnp.float32, -bound, bound),
    }


# ---------------------------------------------------------------------------
# Pure-JAX reference (with biases; they cancel under InstanceNorm).
# ---------------------------------------------------------------------------
def _reference_forward(x_nchw, params):
    x = jnp.transpose(x_nchw, (0, 2, 3, 1)).astype(jnp.float32)

    def stage(xin, w, b, relu):
        xp = jnp.pad(xin, ((0, 0), (1, 1), (1, 1), (0, 0)), mode="reflect")
        y = jax.lax.conv_general_dilated(
            xp, w, window_strides=(1, 1), padding="VALID",
            dimension_numbers=("NHWC", "HWIO", "NHWC"))
        y = y + b[None, None, None, :]
        mean = jnp.mean(y, axis=(1, 2), keepdims=True)
        var = jnp.mean((y - mean) ** 2, axis=(1, 2), keepdims=True)
        y = (y - mean) * jax.lax.rsqrt(var + EPS)
        return jnp.maximum(y, 0.0) if relu else y

    h = stage(x, params["w1"], params["b1"], True)
    y = stage(h, params["w2"], params["b2"], False)
    return jnp.transpose(y, (0, 3, 1, 2))


if __name__ == "__main__":
    key = jax.random.PRNGKey(0)
    k_x, k_p = jax.random.split(key)

    N, C, H, W = 2, 4, 16, 16                  # num_filter = 4
    x = jax.random.normal(k_x, (N, C, H, W), jnp.float32)
    params = init_params(k_p, C)

    out = jax.block_until_ready(resnet_block_forward(x, params))
    ref = jax.block_until_ready(_reference_forward(x, params))

    assert out.shape == (N, C, H, W)
    assert bool(jnp.all(jnp.isfinite(out)))
    assert jnp.allclose(out, ref, atol=1e-3, rtol=1e-3), (
        "mismatch vs reference, max abs diff = %f"
        % float(jnp.max(jnp.abs(out - ref))))

    print("KERNEL_OK")
</pallas_src>

<mosaic_0001>
module attributes {stable_mosaic.version = 11 : i64} {
  func.func @_resnet_block_kernel(%arg0: i32, %arg1: memref<1x16x16x4xf32, #tpu.memory_space<vmem>>, %arg2: memref<1152x128xf32, #tpu.memory_space<vmem>>, %arg3: memref<1152x128xf32, #tpu.memory_space<vmem>>, %arg4: memref<1x4x256xf32, #tpu.memory_space<vmem>>, %arg5: memref<18x18x128xf32, #tpu.memory_space<vmem>>, %arg6: memref<256x1152xf32, #tpu.memory_space<vmem>>) attributes {dimension_semantics = [#tpu.dimension_semantics<parallel>], iteration_bounds = array<i64: 2>, scalar_prefetch = 0 : i64, scratch_operands = 2 : i64, tpu.core_type = #tpu.core_type<tc>, window_params = [{transform_indices = @transform_0, window_bounds = array<i64: 1, 16, 16, 4>}, {pipeline_mode = #tpu.pipeline_mode<synchronous>, transform_indices = @transform_1, window_bounds = array<i64: 1152, 128>}, {pipeline_mode = #tpu.pipeline_mode<synchronous>, transform_indices = @transform_2, window_bounds = array<i64: 1152, 128>}, {transform_indices = @transform_3, window_bounds = array<i64: 1, 4, 256>}]} {
    %cst = arith.constant 0.000000e+00 : f32
    %0 = vector.broadcast %cst : f32 to vector<18x18x128xf32>
    %c0 = arith.constant 0 : index
    %c0_0 = arith.constant 0 : index
    %c0_1 = arith.constant 0 : index
    %1 = vector.load %arg5[%c0, %c0_0, %c0_1] : memref<18x18x128xf32, #tpu.memory_space<vmem>>, vector<18x18x128xf32>
    tpu.vector_store %arg5[%c0, %c0_0, %c0_1], %0 {strides = array<i32>} : memref<18x18x128xf32, #tpu.memory_space<vmem>>, vector<18x18x128xf32>,
    %c0_2 = arith.constant 0 : index
    %c0_3 = arith.constant 0 : index
    %c0_4 = arith.constant 0 : index
    %c0_5 = arith.constant 0 : index
    %2 = vector.load %arg1[%c0_2, %c0_3, %c0_4, %c0_5] : memref<1x16x16x4xf32, #tpu.memory_space<vmem>>, vector<1x16x16x4xf32>
    %3 = vector.shape_cast %2 : vector<1x16x16x4xf32> to vector<16x16x4xf32>
    %c0_6 = arith.constant 0 : index
    %c0_7 = arith.constant 0 : index
    %4 = vector.load %arg2[%c0_6, %c0_7] : memref<1152x128xf32, #tpu.memory_space<vmem>>, vector<1152x128xf32>
    %c1 = arith.constant 1 : index
    %c1_8 = arith.constant 1 : index
    %c0_9 = arith.constant 0 : index
    %5 = vector.load %arg5[%c1, %c1_8, %c0_9] : memref<18x18x128xf32, #tpu.memory_space<vmem>>, vector<16x16x4xf32>
    tpu.vector_store %arg5[%c1, %c1_8, %c0_9], %3 {strides = array<i32>} : memref<18x18x128xf32, #tpu.memory_space<vmem>>, vector<16x16x4xf32>,
    %6 = vector.extract_strided_slice %3 {offsets = [1, 0, 0], sizes = [1, 16, 4], strides = [1, 1, 1]} : vector<16x16x4xf32> to vector<1x16x4xf32>
    %c0_10 = arith.constant 0 : index
    %c1_11 = arith.constant 1 : index
    %c0_12 = arith.constant 0 : index
    %7 = vector.load %arg5[%c0_10, %c1_11, %c0_12] : memref<18x18x128xf32, #tpu.memory_space<vmem>>, vector<1x16x4xf32>
    tpu.vector_store %arg5[%c0_10, %c1_11, %c0_12], %6 {strides = array<i32>} : memref<18x18x128xf32, #tpu.memory_space<vmem>>, vector<1x16x4xf32>,
    %8 = vector.extract_strided_slice %3 {offsets = [14, 0, 0], sizes = [1, 16, 4], strides = [1, 1, 1]} : vector<16x16x4xf32> to vector<1x16x4xf32>
    %c17 = arith.constant 17 : index
    %c1_13 = arith.constant 1 : index
    %c0_14 = arith.constant 0 : index
    %9 = vector.load %arg5[%c17, %c1_13, %c0_14] : memref<18x18x128xf32, #tpu.memory_space<vmem>>, vector<1x16x4xf32>
    tpu.vector_store %arg5[%c17, %c1_13, %c0_14], %8 {strides = array<i32>} : memref<18x18x128xf32, #tpu.memory_space<vmem>>, vector<1x16x4xf32>,
    %c0_15 = arith.constant 0 : index
    %c2 = arith.constant 2 : index
    %c0_16 = arith.constant 0 : index
    %10 = vector.load %arg5[%c0_15, %c2, %c0_16] : memref<18x18x128xf32, #tpu.memory_space<vmem>>, vector<18x1x128xf32>
    %c0_17 = arith.constant 0 : index
    %c0_18 = arith.constant 0 : index
    %c0_19 = arith.constant 0 : index
    %11 = vector.load %arg5[%c0_17, %c0_18, %c0_19] : memref<18x18x128xf32, #tpu.memory_space<vmem>>, vector<18x1x128xf32>
    tpu.vector_store %arg5[%c0_17, %c0_18, %c0_19], %10 {strides = array<i32>} : memref<18x18x128xf32, #tpu.memory_space<vmem>>, vector<18x1x128xf32>,
    %c0_20 = arith.constant 0 : index
    %c15 = arith.constant 15 : index
    %c0_21 = arith.constant 0 : index
    %12 = vector.load %arg5[%c0_20, %c15, %c0_21] : memref<18x18x128xf32, #tpu.memory_space<vmem>>, vector<18x1x128xf32>
    %c0_22 = arith.constant 0 : index
    %c17_23 = arith.constant 17 : index
    %c0_24 = arith.constant 0 : index
    %13 = vector.load %arg5[%c0_22, %c17_23, %c0_24] : memref<18x18x128xf32, #tpu.memory_space<vmem>>, vector<18x1x128xf32>
    tpu.vector_store %arg5[%c0_22, %c17_23, %c0_24], %12 {strides = array<i32>} : memref<18x18x128xf32, #tpu.memory_space<vmem>>, vector<18x1x128xf32>,
    %c0_25 = arith.constant 0 : index
    %c0_26 = arith.constant 0 : index
    %c0_27 = arith.constant 0 : index
    %14 = vector.load %arg5[%c0_25, %c0_26, %c0_27] : memref<18x18x128xf32, #tpu.memory_space<vmem>>, vector<16x16x128xf32>
    %15 = vector.shape_cast %14 : vector<16x16x128xf32> to vector<256x128xf32>
    %c0_28 = arith.constant 0 : index
    %c0_29 = arith.constant 0 : index
    %16 = vector.load %arg6[%c0_28, %c0_29] : memref<256x1152xf32, #tpu.memory_space<vmem>>, vector<256x128xf32>
    tpu.vector_store %arg6[%c0_28, %c0_29], %15 {strides = array<i32>} : memref<256x1152xf32, #tpu.memory_space<vmem>>, vector<256x128xf32>,
    %c0_30 = arith.constant 0 : index
    %c1_31 = arith.constant 1 : index
    %c0_32 = arith.constant 0 : index
    %17 = vector.load %arg5[%c0_30, %c1_31, %c0_32] : memref<18x18x128xf32, #tpu.memory_space<vmem>>, vector<16x16x128xf32>
    %18 = vector.shape_cast %17 : vector<16x16x128xf32> to vector<256x128xf32>
    %c0_33 = arith.constant 0 : index
    %c128 = arith.constant 128 : index
    %19 = vector.load %arg6[%c0_33, %c128] : memref<256x1152xf32, #tpu.memory_space<vmem>>, vector<256x128xf32>
    tpu.vector_store %arg6[%c0_33, %c128], %18 {strides = array<i32>} : memref<256x1152xf32, #tpu.memory_space<vmem>>, vector<256x128xf32>,
    %c0_34 = arith.constant 0 : index
    %c2_35 = arith.constant 2 : index
    %c0_36 = arith.constant 0 : index
    %20 = vector.load %arg5[%c0_34, %c2_35, %c0_36] : memref<18x18x128xf32, #tpu.memory_space<vmem>>, vector<16x16x128xf32>
    %21 = vector.shape_cast %20 : vector<16x16x128xf32> to vector<256x128xf32>
    %c0_37 = arith.constant 0 : index
    %c256 = arith.constant 256 : index
    %22 = vector.load %arg6[%c0_37, %c256] : memref<256x1152xf32, #tpu.memory_space<vmem>>, vector<256x128xf32>
    tpu.vector_store %arg6[%c0_37, %c256], %21 {strides = array<i32>} : memref<256x1152xf32, #tpu.memory_space<vmem>>, vector<256x128xf32>,
    %c1_38 = arith.constant 1 : index
    %c0_39 = arith.constant 0 : index
    %c0_40 = arith.constant 0 : index
    %23 = vector.load %arg5[%c1_38, %c0_39, %c0_40] : memref<18x18x128xf32, #tpu.memory_space<vmem>>, vector<16x16x128xf32>
    %24 = vector.shape_cast %23 : vector<16x16x128xf32> to vector<256x128xf32>
    %c0_41 = arith.constant 0 : index
    %c384 = arith.constant 384 : index
    %25 = vector.load %arg6[%c0_41, %c384] : memref<256x1152xf32, #tpu.memory_space<vmem>>, vector<256x128xf32>
    tpu.vector_store %arg6[%c0_41, %c384], %24 {strides = array<i32>} : memref<256x1152xf32, #tpu.memory_space<vmem>>, vector<256x128xf32>,
    %c1_42 = arith.constant 1 : index
    %c1_43 = arith.constant 1 : index
    %c0_44 = arith.constant 0 : index
    %26 = vector.load %arg5[%c1_42, %c1_43, %c0_44] : memref<18x18x128xf32, #tpu.memory_space<vmem>>, vector<16x16x128xf32>
    %27 = vector.shape_cast %26 : vector<16x16x128xf32> to vector<256x128xf32>
    %c0_45 = arith.constant 0 : index
    %c512 = arith.constant 512 : index
    %28 = vector.load %arg6[%c0_45, %c512] : memref<256x1152xf32, #tpu.memory_space<vmem>>, vector<256x128xf32>
    tpu.vector_store %arg6[%c0_45, %c512], %27 {strides = array<i32>} : memref<256x1152xf32, #tpu.memory_space<vmem>>, vector<256x128xf32>,
    %c1_46 = arith.constant 1 : index
    %c2_47 = arith.constant 2 : index
    %c0_48 = arith.constant 0 : index
    %29 = vector.load %arg5[%c1_46, %c2_47, %c0_48] : memref<18x18x128xf32, #tpu.memory_space<vmem>>, vector<16x16x128xf32>
    %30 = vector.shape_cast %29 : vector<16x16x128xf32> to vector<256x128xf32>
    %c0_49 = arith.constant 0 : index
    %c640 = arith.constant 640 : index
    %31 = vector.load %arg6[%c0_49, %c640] : memref<256x1152xf32, #tpu.memory_space<vmem>>, vector<256x128xf32>
    tpu.vector_store %arg6[%c0_49, %c640], %30 {strides = array<i32>} : memref<256x1152xf32, #tpu.memory_space<vmem>>, vector<256x128xf32>,
    %c2_50 = arith.constant 2 : index
    %c0_51 = arith.constant 0 : index
    %c0_52 = arith.constant 0 : index
    %32 = vector.load %arg5[%c2_50, %c0_51, %c0_52] : memref<18x18x128xf32, #tpu.memory_space<vmem>>, vector<16x16x128xf32>
    %33 = vector.shape_cast %32 : vector<16x16x128xf32> to vector<256x128xf32>
    %c0_53 = arith.constant 0 : index
    %c768 = arith.constant 768 : index
    %34 = vector.load %arg6[%c0_53, %c768] : memref<256x1152xf32, #tpu.memory_space<vmem>>, vector<256x128xf32>
    tpu.vector_store %arg6[%c0_53, %c768], %33 {strides = array<i32>} : memref<256x1152xf32, #tpu.memory_space<vmem>>, vector<256x128xf32>,
    %c2_54 = arith.constant 2 : index
    %c1_55 = arith.constant 1 : index
    %c0_56 = arith.constant 0 : index
    %35 = vector.load %arg5[%c2_54, %c1_55, %c0_56] : memref<18x18x128xf32, #tpu.memory_space<vmem>>, vector<16x16x128xf32>
    %36 = vector.shape_cast %35 : vector<16x16x128xf32> to vector<256x128xf32>
    %c0_57 = arith.constant 0 : index
    %c896 = arith.constant 896 : index
    %37 = vector.load %arg6[%c0_57, %c896] : memref<256x1152xf32, #tpu.memory_space<vmem>>, vector<256x128xf32>
    tpu.vector_store %arg6[%c0_57, %c896], %36 {strides = array<i32>} : memref<256x1152xf32, #tpu.memory_space<vmem>>, vector<256x128xf32>,
    %c2_58 = arith.constant 2 : index
    %c2_59 = arith.constant 2 : index
    %c0_60 = arith.constant 0 : index
    %38 = vector.load %arg5[%c2_58, %c2_59, %c0_60] : memref<18x18x128xf32, #tpu.memory_space<vmem>>, vector<16x16x128xf32>
    %39 = vector.shape_cast %38 : vector<16x16x128xf32> to vector<256x128xf32>
    %c0_61 = arith.constant 0 : index
    %c1024 = arith.constant 1024 : index
    %40 = vector.load %arg6[%c0_61, %c1024] : memref<256x1152xf32, #tpu.memory_space<vmem>>, vector<256x128xf32>
    tpu.vector_store %arg6[%c0_61, %c1024], %39 {strides = array<i32>} : memref<256x1152xf32, #tpu.memory_space<vmem>>, vector<256x128xf32>,
    %c0_62 = arith.constant 0 : index
    %c0_63 = arith.constant 0 : index
    %41 = vector.load %arg6[%c0_62, %c0_63] : memref<256x1152xf32, #tpu.memory_space<vmem>>, vector<256x1152xf32>
    %cst_64 = arith.constant dense<0.000000e+00> : vector<256x128xf32>
    %42 = tpu.matmul %41, %4, %cst_64 {dimension_numbers = #tpu.dot_dimension_numbers<[1], [0], [0], [1], [0, 0, 1, 1], [], []>} : vector<256x1152xf32>, vector<1152x128xf32>, vector<256x128xf32> -> vector<256x128xf32>
    %cst_65 = arith.constant dense<0.000000e+00> : vector<128xf32>
    %43 = vector.multi_reduction <add>, %42, %cst_65 [0] : vector<256x128xf32> to vector<128xf32>
    %44 = vector.shape_cast %43 : vector<128xf32> to vector<1x128xf32>
    %cst_66 = arith.constant 3.906250e-03 : f32
    %45 = vector.broadcast %cst_66 : f32 to vector<1x128xf32>
    %46 = arith.mulf %44, %45 : vector<1x128xf32>
    %47 = arith.mulf %42, %42 : vector<256x128xf32>
    %cst_67 = arith.constant dense<0.000000e+00> : vector<128xf32>
    %48 = vector.multi_reduction <add>, %47, %cst_67 [0] : vector<256x128xf32> to vector<128xf32>
    %49 = vector.shape_cast %48 : vector<128xf32> to vector<1x128xf32>
    %cst_68 = arith.constant 3.906250e-03 : f32
    %50 = vector.broadcast %cst_68 : f32 to vector<1x128xf32>
    %51 = arith.mulf %49, %50 : vector<1x128xf32>
    %52 = arith.mulf %46, %46 : vector<1x128xf32>
    %53 = arith.subf %51, %52 : vector<1x128xf32>
    %54 = vector.broadcast %46 : vector<1x128xf32> to vector<256x128xf32>
    %55 = arith.subf %42, %54 : vector<256x128xf32>
    %cst_69 = arith.constant 9.99999974E-6 : f32
    %56 = vector.broadcast %cst_69 : f32 to vector<1x128xf32>
    %57 = arith.addf %53, %56 : vector<1x128xf32>
    %58 = math.rsqrt %57 : vector<1x128xf32>
    %59 = vector.broadcast %58 : vector<1x128xf32> to vector<256x128xf32>
    %60 = arith.mulf %55, %59 : vector<256x128xf32>
    %cst_70 = arith.constant 0.000000e+00 : f32
    %61 = vector.broadcast %cst_70 : f32 to vector<256x128xf32>
    %62 = arith.maximumf %60, %61 : vector<256x128xf32>
    %63 = vector.shape_cast %62 : vector<256x128xf32> to vector<16x16x128xf32>
    %c0_71 = arith.constant 0 : index
    %c0_72 = arith.constant 0 : index
    %64 = vector.load %arg3[%c0_71, %c0_72] : memref<1152x128xf32, #tpu.memory_space<vmem>>, vector<1152x128xf32>
    %c1_73 = arith.constant 1 : index
    %c1_74 = arith.constant 1 : index
    %c0_75 = arith.constant 0 : index
    %65 = vector.load %arg5[%c1_73, %c1_74, %c0_75] : memref<18x18x128xf32, #tpu.memory_space<vmem>>, vector<16x16x128xf32>
    tpu.vector_store %arg5[%c1_73, %c1_74, %c0_75], %63 {strides = array<i32>} : memref<18x18x128xf32, #tpu.memory_space<vmem>>, vector<16x16x128xf32>,
    %66 = vector.extract_strided_slice %63 {offsets = [1, 0, 0], sizes = [1, 16, 128], strides = [1, 1, 1]} : vector<16x16x128xf32> to vector<1x16x128xf32>
    %c0_76 = arith.constant 0 : index
    %c1_77 = arith.constant 1 : index
    %c0_78 = arith.constant 0 : index
    %67 = vector.load %arg5[%c0_76, %c1_77, %c0_78] : memref<18x18x128xf32, #tpu.memory_space<vmem>>, vector<1x16x128xf32>
    tpu.vector_store %arg5[%c0_76, %c1_77, %c0_78], %66 {strides = array<i32>} : memref<18x18x128xf32, #tpu.memory_space<vmem>>, vector<1x16x128xf32>,
    %68 = vector.extract_strided_slice %63 {offsets = [14, 0, 0], sizes = [1, 16, 128], strides = [1, 1, 1]} : vector<16x16x128xf32> to vector<1x16x128xf32>
    %c17_79 = arith.constant 17 : index
    %c1_80 = arith.constant 1 : index
    %c0_81 = arith.constant 0 : index
    %69 = vector.load %arg5[%c17_79, %c1_80, %c0_81] : memref<18x18x128xf32, #tpu.memory_space<vmem>>, vector<1x16x128xf32>
    tpu.vector_store %arg5[%c17_79, %c1_80, %c0_81], %68 {strides = array<i32>} : memref<18x18x128xf32, #tpu.memory_space<vmem>>, vector<1x16x128xf32>,
    %c0_82 = arith.constant 0 : index
    %c2_83 = arith.constant 2 : index
    %c0_84 = arith.constant 0 : index
    %70 = vector.load %arg5[%c0_82, %c2_83, %c0_84] : memref<18x18x128xf32, #tpu.memory_space<vmem>>, vector<18x1x128xf32>
    %c0_85 = arith.constant 0 : index
    %c0_86 = arith.constant 0 : index
    %c0_87 = arith.constant 0 : index
    %71 = vector.load %arg5[%c0_85, %c0_86, %c0_87] : memref<18x18x128xf32, #tpu.memory_space<vmem>>, vector<18x1x128xf32>
    tpu.vector_store %arg5[%c0_85, %c0_86, %c0_87], %70 {strides = array<i32>} : memref<18x18x128xf32, #tpu.memory_space<vmem>>, vector<18x1x128xf32>,
    %c0_88 = arith.constant 0 : index
    %c15_89 = arith.constant 15 : index
    %c0_90 = arith.constant 0 : index
    %72 = vector.load %arg5[%c0_88, %c15_89, %c0_90] : memref<18x18x128xf32, #tpu.memory_space<vmem>>, vector<18x1x128xf32>
    %c0_91 = arith.constant 0 : index
    %c17_92 = arith.constant 17 : index
    %c0_93 = arith.constant 0 : index
    %73 = vector.load %arg5[%c0_91, %c17_92, %c0_93] : memref<18x18x128xf32, #tpu.memory_space<vmem>>, vector<18x1x128xf32>
    tpu.vector_store %arg5[%c0_91, %c17_92, %c0_93], %72 {strides = array<i32>} : memref<18x18x128xf32, #tpu.memory_space<vmem>>, vector<18x1x128xf32>,
    %c0_94 = arith.constant 0 : index
    %c0_95 = arith.constant 0 : index
    %c0_96 = arith.constant 0 : index
    %74 = vector.load %arg5[%c0_94, %c0_95, %c0_96] : memref<18x18x128xf32, #tpu.memory_space<vmem>>, vector<16x16x128xf32>
    %75 = vector.shape_cast %74 : vector<16x16x128xf32> to vector<256x128xf32>
    %c0_97 = arith.constant 0 : index
    %c0_98 = arith.constant 0 : index
    %76 = vector.load %arg6[%c0_97, %c0_98] : memref<256x1152xf32, #tpu.memory_space<vmem>>, vector<256x128xf32>
    tpu.vector_store %arg6[%c0_97, %c0_98], %75 {strides = array<i32>} : memref<256x1152xf32, #tpu.memory_space<vmem>>, vector<256x128xf32>,
    %c0_99 = arith.constant 0 : index
    %c1_100 = arith.constant 1 : index
    %c0_101 = arith.constant 0 : index
    %77 = vector.load %arg5[%c0_99, %c1_100, %c0_101] : memref<18x18x128xf32, #tpu.memory_space<vmem>>, vector<16x16x128xf32>
    %78 = vector.shape_cast %77 : vector<16x16x128xf32> to vector<256x128xf32>
    %c0_102 = arith.constant 0 : index
    %c128_103 = arith.constant 128 : index
    %79 = vector.load %arg6[%c0_102, %c128_103] : memref<256x1152xf32, #tpu.memory_space<vmem>>, vector<256x128xf32>
    tpu.vector_store %arg6[%c0_102, %c128_103], %78 {strides = array<i32>} : memref<256x1152xf32, #tpu.memory_space<vmem>>, vector<256x128xf32>,
    %c0_104 = arith.constant 0 : index
    %c2_105 = arith.constant 2 : index
    %c0_106 = arith.constant 0 : index
    %80 = vector.load %arg5[%c0_104, %c2_105, %c0_106] : memref<18x18x128xf32, #tpu.memory_space<vmem>>, vector<16x16x128xf32>
    %81 = vector.shape_cast %80 : vector<16x16x128xf32> to vector<256x128xf32>
    %c0_107 = arith.constant 0 : index
    %c256_108 = arith.constant 256 : index
    %82 = vector.load %arg6[%c0_107, %c256_108] : memref<256x1152xf32, #tpu.memory_space<vmem>>, vector<256x128xf32>
    tpu.vector_store %arg6[%c0_107, %c256_108], %81 {strides = array<i32>} : memref<256x1152xf32, #tpu.memory_space<vmem>>, vector<256x128xf32>,
    %c1_109 = arith.constant 1 : index
    %c0_110 = arith.constant 0 : index
    %c0_111 = arith.constant 0 : index
    %83 = vector.load %arg5[%c1_109, %c0_110, %c0_111] : memref<18x18x128xf32, #tpu.memory_space<vmem>>, vector<16x16x128xf32>
    %84 = vector.shape_cast %83 : vector<16x16x128xf32> to vector<256x128xf32>
    %c0_112 = arith.constant 0 : index
    %c384_113 = arith.constant 384 : index
    %85 = vector.load %arg6[%c0_112, %c384_113] : memref<256x1152xf32, #tpu.memory_space<vmem>>, vector<256x128xf32>
    tpu.vector_store %arg6[%c0_112, %c384_113], %84 {strides = array<i32>} : memref<256x1152xf32, #tpu.memory_space<vmem>>, vector<256x128xf32>,
    %c1_114 = arith.constant 1 : index
    %c1_115 = arith.constant 1 : index
    %c0_116 = arith.constant 0 : index
    %86 = vector.load %arg5[%c1_114, %c1_115, %c0_116] : memref<18x18x128xf32, #tpu.memory_space<vmem>>, vector<16x16x128xf32>
    %87 = vector.shape_cast %86 : vector<16x16x128xf32> to vector<256x128xf32>
    %c0_117 = arith.constant 0 : index
    %c512_118 = arith.constant 512 : index
    %88 = vector.load %arg6[%c0_117, %c512_118] : memref<256x1152xf32, #tpu.memory_space<vmem>>, vector<256x128xf32>
    tpu.vector_store %arg6[%c0_117, %c512_118], %87 {strides = array<i32>} : memref<256x1152xf32, #tpu.memory_space<vmem>>, vector<256x128xf32>,
    %c1_119 = arith.constant 1 : index
    %c2_120 = arith.constant 2 : index
    %c0_121 = arith.constant 0 : index
    %89 = vector.load %arg5[%c1_119, %c2_120, %c0_121] : memref<18x18x128xf32, #tpu.memory_space<vmem>>, vector<16x16x128xf32>
    %90 = vector.shape_cast %89 : vector<16x16x128xf32> to vector<256x128xf32>
    %c0_122 = arith.constant 0 : index
    %c640_123 = arith.constant 640 : index
    %91 = vector.load %arg6[%c0_122, %c640_123] : memref<256x1152xf32, #tpu.memory_space<vmem>>, vector<256x128xf32>
    tpu.vector_store %arg6[%c0_122, %c640_123], %90 {strides = array<i32>} : memref<256x1152xf32, #tpu.memory_space<vmem>>, vector<256x128xf32>,
    %c2_124 = arith.constant 2 : index
    %c0_125 = arith.constant 0 : index
    %c0_126 = arith.constant 0 : index
    %92 = vector.load %arg5[%c2_124, %c0_125, %c0_126] : memref<18x18x128xf32, #tpu.memory_space<vmem>>, vector<16x16x128xf32>
    %93 = vector.shape_cast %92 : vector<16x16x128xf32> to vector<256x128xf32>
    %c0_127 = arith.constant 0 : index
    %c768_128 = arith.constant 768 : index
    %94 = vector.load %arg6[%c0_127, %c768_128] : memref<256x1152xf32, #tpu.memory_space<vmem>>, vector<256x128xf32>
    tpu.vector_store %arg6[%c0_127, %c768_128], %93 {strides = array<i32>} : memref<256x1152xf32, #tpu.memory_space<vmem>>, vector<256x128xf32>,
    %c2_129 = arith.constant 2 : index
    %c1_130 = arith.constant 1 : index
    %c0_131 = arith.constant 0 : index
    %95 = vector.load %arg5[%c2_129, %c1_130, %c0_131] : memref<18x18x128xf32, #tpu.memory_space<vmem>>, vector<16x16x128xf32>
    %96 = vector.shape_cast %95 : vector<16x16x128xf32> to vector<256x128xf32>
    %c0_132 = arith.constant 0 : index
    %c896_133 = arith.constant 896 : index
    %97 = vector.load %arg6[%c0_132, %c896_133] : memref<256x1152xf32, #tpu.memory_space<vmem>>, vector<256x128xf32>
    tpu.vector_store %arg6[%c0_132, %c896_133], %96 {strides = array<i32>} : memref<256x1152xf32, #tpu.memory_space<vmem>>, vector<256x128xf32>,
    %c2_134 = arith.constant 2 : index
    %c2_135 = arith.constant 2 : index
    %c0_136 = arith.constant 0 : index
    %98 = vector.load %arg5[%c2_134, %c2_135, %c0_136] : memref<18x18x128xf32, #tpu.memory_space<vmem>>, vector<16x16x128xf32>
    %99 = vector.shape_cast %98 : vector<16x16x128xf32> to vector<256x128xf32>
    %c0_137 = arith.constant 0 : index
    %c1024_138 = arith.constant 1024 : index
    %100 = vector.load %arg6[%c0_137, %c1024_138] : memref<256x1152xf32, #tpu.memory_space<vmem>>, vector<256x128xf32>
    tpu.vector_store %arg6[%c0_137, %c1024_138], %99 {strides = array<i32>} : memref<256x1152xf32, #tpu.memory_space<vmem>>, vector<256x128xf32>,
    %c0_139 = arith.constant 0 : index
    %c0_140 = arith.constant 0 : index
    %101 = vector.load %arg6[%c0_139, %c0_140] : memref<256x1152xf32, #tpu.memory_space<vmem>>, vector<256x1152xf32>
    %cst_141 = arith.constant dense<0.000000e+00> : vector<256x128xf32>
    %102 = tpu.matmul %101, %64, %cst_141 {dimension_numbers = #tpu.dot_dimension_numbers<[1], [0], [0], [1], [0, 0, 1, 1], [], []>} : vector<256x1152xf32>, vector<1152x128xf32>, vector<256x128xf32> -> vector<256x128xf32>
    %cst_142 = arith.constant dense<0.000000e+00> : vector<128xf32>
    %103 = vector.multi_reduction <add>, %102, %cst_142 [0] : vector<256x128xf32> to vector<128xf32>
    %104 = vector.shape_cast %103 : vector<128xf32> to vector<1x128xf32>
    %cst_143 = arith.constant 3.906250e-03 : f32
    %105 = vector.broadcast %cst_143 : f32 to vector<1x128xf32>
    %106 = arith.mulf %104, %105 : vector<1x128xf32>
    %107 = arith.mulf %102, %102 : vector<256x128xf32>
    %cst_144 = arith.constant dense<0.000000e+00> : vector<128xf32>
    %108 = vector.multi_reduction <add>, %107, %cst_144 [0] : vector<256x128xf32> to vector<128xf32>
    %109 = vector.shape_cast %108 : vector<128xf32> to vector<1x128xf32>
    %cst_145 = arith.constant 3.906250e-03 : f32
    %110 = vector.broadcast %cst_145 : f32 to vector<1x128xf32>
    %111 = arith.mulf %109, %110 : vector<1x128xf32>
    %112 = arith.mulf %106, %106 : vector<1x128xf32>
    %113 = arith.subf %111, %112 : vector<1x128xf32>
    %114 = vector.broadcast %106 : vector<1x128xf32> to vector<256x128xf32>
    %115 = arith.subf %102, %114 : vector<256x128xf32>
    %cst_146 = arith.constant 9.99999974E-6 : f32
    %116 = vector.broadcast %cst_146 : f32 to vector<1x128xf32>
    %117 = arith.addf %113, %116 : vector<1x128xf32>
    %118 = math.rsqrt %117 : vector<1x128xf32>
    %119 = vector.broadcast %118 : vector<1x128xf32> to vector<256x128xf32>
    %120 = arith.mulf %115, %119 : vector<256x128xf32>
    %121 = tpu.transpose %120, [1, 0] : vector<256x128xf32> -> vector<128x256xf32>
    %122 = vector.extract_strided_slice %121 {offsets = [0, 0], sizes = [4, 256], strides = [1, 1]} : vector<128x256xf32> to vector<4x256xf32>
    %c0_147 = arith.constant 0 : index
    %c0_148 = arith.constant 0 : index
    %c0_149 = arith.constant 0 : index
    %123 = vector.load %arg4[%c0_147, %c0_148, %c0_149] : memref<1x4x256xf32, #tpu.memory_space<vmem>>, vector<1x4x256xf32>
    %124 = vector.shape_cast %123 : vector<1x4x256xf32> to vector<4x256xf32>
    %125 = vector.shape_cast %122 : vector<4x256xf32> to vector<1x4x256xf32>
    tpu.vector_store %arg4[%c0_147, %c0_148, %c0_149], %125 {strides = array<i32>} : memref<1x4x256xf32, #tpu.memory_space<vmem>>, vector<1x4x256xf32>,
    return
  }
  func.func @transform_0(%arg0: i32) -> (i32, i32, i32, i32) {
    %c0_i32 = arith.constant 0 : i32
    %c0_i32_0 = arith.constant 0 : i32
    %c0_i32_1 = arith.constant 0 : i32
    %c0_i32_2 = arith.constant 0 : i32
    return %arg0, %c0_i32, %c0_i32_0, %c0_i32_1 : i32, i32, i32, i32
  }
  func.func @transform_1(%arg0: i32) -> (i32, i32) {
    %c0_i32 = arith.constant 0 : i32
    %c0_i32_0 = arith.constant 0 : i32
    %c0_i32_1 = arith.constant 0 : i32
    return %c0_i32, %c0_i32_0 : i32, i32
  }
  func.func @transform_2(%arg0: i32) -> (i32, i32) {
    %c0_i32 = arith.constant 0 : i32
    %c0_i32_0 = arith.constant 0 : i32
    %c0_i32_1 = arith.constant 0 : i32
    return %c0_i32, %c0_i32_0 : i32, i32
  }
  func.func @transform_3(%arg0: i32) -> (i32, i32, i32) {
    %c0_i32 = arith.constant 0 : i32
    %c0_i32_0 = arith.constant 0 : i32
    %c0_i32_1 = arith.constant 0 : i32
    return %arg0, %c0_i32, %c0_i32_0 : i32, i32, i32
  }
}

</mosaic_0001>

<llo_original>
// kernel: tpu_custom_call.1
$region0: #{tpu_custom_call.1}
  #allocation0 [shape = 'u32[]', space=smem, size = 0x4, offset = 0x4, fixed_abs, tag = 'smem constant byte address 0x4 - core index']
  #allocation1 [shape = 'u32[144,128]{1,0:T(1,128)}', space=vmem, size = 0x12000, scoped, tag = 'internal scratch']
  #allocation2 [shape = 'f32[18,18,128]{2,1,0:T(8,128)}', space=vmem, size = 0x36000, scoped, tag = 'scratch operand']
  #allocation3 [shape = 'f32[256,1152]{1,0:T(8,128)}', space=vmem, size = 0x120000, scoped, tag = 'scratch operand']
  %s0 = inlined_call_operand.vmem [shape: f32[2,16,16,4], index: 0, kind: input, shape index: {}]
  %s1 = inlined_call_operand.hbm [shape: f32[1152,128], index: 1, kind: input, shape index: {}]
  %s2 = inlined_call_operand.hbm [shape: f32[1152,128], index: 2, kind: input, shape index: {}]
  %s3 = inlined_call_operand.hbm [shape: f32[2,4,256], index: 3, kind: output, shape index: {}]
  %s4 = sld [smem:[#allocation0]]
  $region53: #{tpu_custom_call.1} parent=0
    _
  %s6 = ssub.s32 1, %s4
  %s7 = scalar_select 0, %s6, %s4
  $region1: #{tpu_custom_call.1} parent=0
    #allocation4 [shape = 'u8[589824]{0}', space=vmem, size = 0x90000, scoped, tag = 'input window, operand 1, single buffered']
    #allocation5 [shape = 's32[2]{0}', space=sflag, size = 0x8, scoped, tag = 'scoped memory for tpu_custom_call.1']
    #allocation6 [shape = 's32[2]{0}', space=sflag, size = 0x8, scoped, tag = 'scoped memory for tpu_custom_call.1']
    #allocation7 [shape = 'u8[589824]{0}', space=vmem, size = 0x90000, scoped, tag = 'input window, operand 2, single buffered']
    #allocation8 [shape = 's32[1]{0}', space=sflag, size = 0x4, scoped, tag = 'scoped memory for tpu_custom_call.1']
    #allocation9 [shape = 'u8[8192]{0}', space=vmem, size = 0x2000, scoped, tag = 'output window, operand 0']
    %8 = vsyncpa [#allocation5], 0
    %9 = vsyncpa [#allocation8], 0
    %10 = vsyncpa [#allocation6], 0
    %s11 = scalar_lea.sflag [#allocation6], 1
    %12 = vsyncpa %s11, 0
    loop: start=0, step=1, limit=4
    $region2: #{tpu_custom_call.1} parent=1 // loop_pre_header
      _
    $region3: #{tpu_custom_call.1} parent=1 // loop_header
      %s14 = sphi 0, %s18
      %p15 = scmp.ge.s32.totalorder %s14, 4
      %s24 = sphi 0, %s26
      %s27 = sphi 0, %s24
      %s28 = sphi 0, %s27
      %s44 = sphi 0, %s28
      %s48 = sphi 0, %s48
      %s50 = sphi 0, %s48
      %s51 = sphi 0, %s50
      %s65 = sphi 0, %s51
      %s69 = sphi 0, %s69
      %s71 = sphi 0, %s69
      %s72 = sphi 0, %s71
      %s86 = sphi 0, %s72
      %s92 = sphi 0, %s94
      %s95 = sphi 0, %s92
      %s96 = sphi 0, %s95
      %s112 = sphi 0, %s96
    $region4: #{tpu_custom_call.1} parent=1 // loop_header_branch
      %17 = sbr.rel (%p15) target = $region8
    $region5: #{tpu_custom_call.1} parent=1 // loop_body
      %s19 = ssub.s32 %s14, 1
      %s20 = ssub.s32 %s14, 2
      %s21 = sadd.s32 %s14, 1
      %s22 = ssub.s32 %s14, %s21
      %p23 = scmp.eq.s32.totalorder %s22, 0
      %s25 = sadd.s32 %s24, 1
      %s26 = scalar_select %p23, %s24, %s25
      %p29 = pneg %p23
      %p30 = scmp.eq.s32.totalorder %s14, 1
      %p31 = por %p29, %p30
      %p32 = scmp.ne.s32.totalorder %s24, %s27
      %p33 = scmp.eq.s32.totalorder %s14, 0
      %p34 = por %p32, %p33
      %p35 = scmp.ne.s32.totalorder %s24, %s27
      %p36 = scmp.eq.s32.totalorder %s19, 1
      %p37 = por %p35, %p36
      %p38 = scmp.ne.s32.totalorder %s27, %s28
      %p39 = scmp.eq.s32.totalorder %s19, 0
      %p40 = por %p38, %p39
      %p41 = scmp.ne.s32.totalorder %s27, %s28
      %p42 = scmp.eq.s32.totalorder %s20, 1
      %p43 = por %p41, %p42
      %p45 = scmp.ne.s32.totalorder %s28, %s44
      %p46 = scmp.eq.s32.totalorder %s20, 0
      %p47 = por %p45, %p46
      %s49 = sadd.s32 %s48, 1
      %p52 = scmp.eq.s32.totalorder %s14, 1
      %p53 = scmp.ne.s32.totalorder %s48, %s50
      %p54 = scmp.eq.s32.totalorder %s14, 0
      %p55 = por %p53, %p54
      %p56 = scmp.ne.s32.totalorder %s48, %s50
      %p57 = scmp.eq.s32.totalorder %s19, 1
      %p58 = por %p56, %p57
      %p59 = scmp.ne.s32.totalorder %s50, %s51
      %p60 = scmp.eq.s32.totalorder %s19, 0
      %p61 = por %p59, %p60
      %p62 = scmp.ne.s32.totalorder %s50, %s51
      %p63 = scmp.eq.s32.totalorder %s20, 1
      %p64 = por %p62, %p63
      %p66 = scmp.ne.s32.totalorder %s51, %s65
      %p67 = scmp.eq.s32.totalorder %s20, 0
      %p68 = por %p66, %p67
      %s70 = sadd.s32 %s69, 1
      %p73 = scmp.eq.s32.totalorder %s14, 1
      %p74 = scmp.ne.s32.totalorder %s69, %s71
      %p75 = scmp.eq.s32.totalorder %s14, 0
      %p76 = por %p74, %p75
      %p77 = scmp.ne.s32.totalorder %s69, %s71
      %p78 = scmp.eq.s32.totalorder %s19, 1
      %p79 = por %p77, %p78
      %p80 = scmp.ne.s32.totalorder %s71, %s72
      %p81 = scmp.eq.s32.totalorder %s19, 0
      %p82 = por %p80, %p81
      %p83 = scmp.ne.s32.totalorder %s71, %s72
      %p84 = scmp.eq.s32.totalorder %s20, 1
      %p85 = por %p83, %p84
      %p87 = scmp.ne.s32.totalorder %s72, %s86
      %p88 = scmp.eq.s32.totalorder %s20, 0
      %p89 = por %p87, %p88
      %s90 = ssub.s32 %s14, %s21
      %p91 = scmp.eq.s32.totalorder %s90, 0
      %s93 = sadd.s32 %s92, 1
      %s94 = scalar_select %p91, %s92, %s93
      %p97 = pneg %p91
      %p98 = scmp.eq.s32.totalorder %s14, 1
      %p99 = por %p97, %p98
      %p100 = scmp.ne.s32.totalorder %s92, %s95
      %p101 = scmp.eq.s32.totalorder %s14, 0
      %p102 = por %p100, %p101
      %p103 = scmp.ne.s32.totalorder %s92, %s95
      %p104 = scmp.eq.s32.totalorder %s19, 1
      %p105 = por %p103, %p104
      %p106 = scmp.ne.s32.totalorder %s95, %s96
      %p107 = scmp.eq.s32.totalorder %s19, 0
      %p108 = por %p106, %p107
      %p109 = scmp.ne.s32.totalorder %s95, %s96
      %p110 = scmp.eq.s32.totalorder %s20, 1
      %p111 = por %p109, %p110
      %p113 = scmp.ne.s32.totalorder %s96, %s112
      %p114 = scmp.eq.s32.totalorder %s20, 0
      %p115 = por %p113, %p114
      %p116 = scmp.le.s32.totalorder 1, %s14
      %p117 = scmp.lt.s32.totalorder %s14, 3
      %p118 = pnand %p116, %p117
      %p119 = pneg %p118
      // Predicated region
      $region9: #{tpu_custom_call.1} parent=5 // pred_check
        _
      $region10: #{tpu_custom_call.1} parent=5 // pred_check_branch
        %121 = sbr.rel (%p118) target = $region12
      $region11: #{tpu_custom_call.1} parent=5 // pred_region
        %s122 = ssub.s32 %s14, 1
        // Predicated region
        $region13: #{tpu_custom_call.1} parent=11 // pred_check
          %p123 = pneg %p61
        $region14: #{tpu_custom_call.1} parent=11 // pred_check_branch
          %125 = sbr.rel (%p123) target = $region16
        $region15: #{tpu_custom_call.1} parent=11 // pred_region
          %s127 = ssub.s32 18432, 18432
          %128 = vsyncadd [#allocation5], %s127
          %s129 = sshll.u32 [#allocation4], 4
          %s130 = int_to_ptr.vmem [resolvable:$true] %s129
          %135 = dma.hbm_to_vmem [thread:$0]  %s1, 18432, %s130, [#allocation5], 128, 128, 8
        $region16: #{tpu_custom_call.1} parent=11 // pred_fallthru
          _
        // Predicated region
        $region17: #{tpu_custom_call.1} parent=11 // pred_check
          %p136 = pneg %p82
        $region18: #{tpu_custom_call.1} parent=11 // pred_check_branch
          %138 = sbr.rel (%p136) target = $region20
        $region19: #{tpu_custom_call.1} parent=11 // pred_region
          %s140 = ssub.s32 18432, 18432
          %141 = vsyncadd [#allocation8], %s140
          %s142 = sshll.u32 [#allocation7], 4
          %s143 = int_to_ptr.vmem [resolvable:$true] %s142
          %148 = dma.hbm_to_vmem [thread:$0]  %s2, 18432, %s143, [#allocation8], 128, 128, 8
        $region20: #{tpu_custom_call.1} parent=11 // pred_fallthru
          _
      $region12: #{tpu_custom_call.1} parent=5 // pred_fallthru
        _
      %p149 = scmp.lt.s32.totalorder %s14, 2
      // Predicated region
      $region21: #{tpu_custom_call.1} parent=5 // pred_check
        %p150 = pneg %p149
      $region22: #{tpu_custom_call.1} parent=5 // pred_check_branch
        %152 = sbr.rel (%p150) target = $region24
      $region23: #{tpu_custom_call.1} parent=5 // pred_region
        // Predicated region
        $region25: #{tpu_custom_call.1} parent=23 // pred_check
          %p153 = pneg %p34
        $region26: #{tpu_custom_call.1} parent=23 // pred_check_branch
          %155 = sbr.rel (%p153) target = $region28
        $region27: #{tpu_custom_call.1} parent=23 // pred_region
          %p156 = scmp.lt.s32.totalorder %s14, 1
          %s157 = scalar_select %p156, %s14, 1
          %s158 = smul.addr %s157, 32
          %s159 = smul.addr %s158, 8
          %s160 = scalar_lea.vmem %s0, %s159
        $region28: #{tpu_custom_call.1} parent=23 // pred_fallthru
          _
      $region24: #{tpu_custom_call.1} parent=5 // pred_fallthru
        _
      %p161 = scmp.le.s32.totalorder 1, %s14
      %p162 = scmp.lt.s32.totalorder %s14, 3
      %p163 = pnand %p161, %p162
      %p164 = pneg %p163
      // Predicated region
      $region29: #{tpu_custom_call.1} parent=5 // pred_check
        _
      $region30: #{tpu_custom_call.1} parent=5 // pred_check_branch
        %166 = sbr.rel (%p163) target = $region32
      $region31: #{tpu_custom_call.1} parent=5 // pred_region
        %s167 = ssub.s32 %s14, 1
        // Predicated region
        $region33: #{tpu_custom_call.1} parent=31 // pred_check
          %p168 = pneg %p61
        $region34: #{tpu_custom_call.1} parent=31 // pred_check_branch
          %170 = sbr.rel (%p168) target = $region36
        $region35: #{tpu_custom_call.1} parent=31 // pred_region
          %171 = dma.done [#allocation5], 18432
        $region36: #{tpu_custom_call.1} parent=31 // pred_fallthru
          _
        // Predicated region
        $region37: #{tpu_custom_call.1} parent=31 // pred_check
          %p172 = pneg %p82
        $region38: #{tpu_custom_call.1} parent=31 // pred_check_branch
          %174 = sbr.rel (%p172) target = $region40
        $region39: #{tpu_custom_call.1} parent=31 // pred_region
          %175 = dma.done [#allocation8], 18432
        $region40: #{tpu_custom_call.1} parent=31 // pred_fallthru
          _
        %p176 = scmp.lt.s32.totalorder %s19, 1
        %s177 = scalar_select %p176, %s19, 1
        %s178 = smul.addr %s177, 32
        %s179 = smul.addr %s178, 8
        %s180 = scalar_lea.vmem %s0, %s179
        %p181 = pneg %p40
        %p182 = pneg %p37
        %p183 = pneg %p61
        %p184 = pneg %p58
        %p185 = pneg %p82
        %p186 = pneg %p79
        %p187 = pneg %p108
        %p188 = pneg %p105
        %s189 = sand.u32 %s95, 1
        %s190 = scalar_lea.sflag [#allocation6], %s189
        %s191 = sand.u32 %s95, 1
        %s192 = smul.addr %s191, 8
        %s193 = scalar_lea.vmem [#allocation9], %s192
        %p194 = scmp.lt.s32.totalorder %s19, 1
        %s195 = scalar_select %p194, %s19, 1
        %s196 = smul.addr %s195, 32
        %s197 = smul.addr %s196, 8
        %s198 = scalar_lea.vmem %s0, %s197
        %199 = vst [vmem:[#allocation2] sm:$0xff] 0.0
        %200 = vst [vmem:[#allocation2 + $0x8] sm:$0xff] 0.0
        %201 = vst [vmem:[#allocation2 + $0x10] sm:$0x3] 0.0
        %202 = vst [vmem:[#allocation2 + $0x18] sm:$0xff] 0.0
        %203 = vst [vmem:[#allocation2 + $0x20] sm:$0xff] 0.0
        %204 = vst [vmem:[#allocation2 + $0x28] sm:$0x3] 0.0
        %205 = vst [vmem:[#allocation2 + $0x30] sm:$0xff] 0.0
        %206 = vst [vmem:[#allocation2 + $0x38] sm:$0xff] 0.0
        %207 = vst [vmem:[#allocation2 + $0x40] sm:$0x3] 0.0
        %208 = vst [vmem:[#allocation2 + $0x48] sm:$0xff] 0.0
        %209 = vst [vmem:[#allocation2 + $0x50] sm:$0xff] 0.0
        %210 = vst [vmem:[#allocation2 + $0x58] sm:$0x3] 0.0
        %211 = vst [vmem:[#allocation2 + $0x60] sm:$0xff] 0.0
        %212 = vst [vmem:[#allocation2 + $0x68] sm:$0xff] 0.0
        %213 = vst [vmem:[#allocation2 + $0x70] sm:$0x3] 0.0
        %214 = vst [vmem:[#allocation2 + $0x78] sm:$0xff] 0.0
        %215 = vst [vmem:[#allocation2 + $0x80] sm:$0xff] 0.0
        %216 = vst [vmem:[#allocation2 + $0x88] sm:$0x3] 0.0
        %217 = vst [vmem:[#allocation2 + $0x90] sm:$0xff] 0.0
        %218 = vst [vmem:[#allocation2 + $0x98] sm:$0xff] 0.0
        %219 = vst [vmem:[#allocation2 + $0xa0] sm:$0x3] 0.0
        %220 = vst [vmem:[#allocation2 + $0xa8] sm:$0xff] 0.0
        %221 = vst [vmem:[#allocation2 + $0xb0] sm:$0xff] 0.0
        %222 = vst [vmem:[#allocation2 + $0xb8] sm:$0x3] 0.0
        %223 = vst [vmem:[#allocation2 + $0xc0] sm:$0xff] 0.0
        %224 = vst [vmem:[#allocation2 + $0xc8] sm:$0xff] 0.0
        %225 = vst [vmem:[#allocation2 + $0xd0] sm:$0x3] 0.0
        %226 = vst [vmem:[#allocation2 + $0xd8] sm:$0xff] 0.0
        %227 = vst [vmem:[#allocation2 + $0xe0] sm:$0xff] 0.0
        %228 = vst [vmem:[#allocation2 + $0xe8] sm:$0x3] 0.0
        %229 = vst [vmem:[#allocation2 + $0xf0] sm:$0xff] 0.0
        %230 = vst [vmem:[#allocation2 + $0xf8] sm:$0xff] 0.0
        %231 = vst [vmem:[#allocation2 + $0x100] sm:$0x3] 0.0
        %232 = vst [vmem:[#allocation2 + $0x108] sm:$0xff] 0.0
        %233 = vst [vmem:[#allocation2 + $0x110] sm:$0xff] 0.0
        %234 = vst [vmem:[#allocation2 + $0x118] sm:$0x3] 0.0
        %235 = vst [vmem:[#allocation2 + $0x120] sm:$0xff] 0.0
        %236 = vst [vmem:[#allocation2 + $0x128] sm:$0xff] 0.0
        %237 = vst [vmem:[#allocation2 + $0x130] sm:$0x3] 0.0
        %238 = vst [vmem:[#allocation2 + $0x138] sm:$0xff] 0.0
        %239 = vst [vmem:[#allocation2 + $0x140] sm:$0xff] 0.0
        %240 = vst [vmem:[#allocation2 + $0x148] sm:$0x3] 0.0
        %241 = vst [vmem:[#allocation2 + $0x150] sm:$0xff] 0.0
        %242 = vst [vmem:[#allocation2 + $0x158] sm:$0xff] 0.0
        %243 = vst [vmem:[#allocation2 + $0x160] sm:$0x3] 0.0
        %244 = vst [vmem:[#allocation2 + $0x168] sm:$0xff] 0.0
        %245 = vst [vmem:[#allocation2 + $0x170] sm:$0xff] 0.0
        %246 = vst [vmem:[#allocation2 + $0x178] sm:$0x3] 0.0
        %247 = vst [vmem:[#allocation2 + $0x180] sm:$0xff] 0.0
        %248 = vst [vmem:[#allocation2 + $0x188] sm:$0xff] 0.0
        %249 = vst [vmem:[#allocation2 + $0x190] sm:$0x3] 0.0
        %250 = vst [vmem:[#allocation2 + $0x198] sm:$0xff] 0.0
        %251 = vst [vmem:[#allocation2 + $0x1a0] sm:$0xff] 0.0
        %252 = vst [vmem:[#allocation2 + $0x1a8] sm:$0x3] 0.0
        %v253 = vld [vmem:[%s198] sm:$0xff]
        %v254 = vld [vmem:[%s198 + $0x8] sm:$0xff]
        %v255 = vld [vmem:[%s198 + $0x10] sm:$0xff]
        %v256 = vld [vmem:[%s198 + $0x18] sm:$0xff]
        %v257 = vld [vmem:[%s198 + $0x20] sm:$0xff]
        %v258 = vld [vmem:[%s198 + $0x28] sm:$0xff]
        %v259 = vld [vmem:[%s198 + $0x30] sm:$0xff]
        %v260 = vld [vmem:[%s198 + $0x38] sm:$0xff]
        %v261 = vld [vmem:[%s198 + $0x40] sm:$0xff]
        %v262 = vld [vmem:[%s198 + $0x48] sm:$0xff]
        %v263 = vld [vmem:[%s198 + $0x50] sm:$0xff]
        %v264 = vld [vmem:[%s198 + $0x58] sm:$0xff]
        %v265 = vld [vmem:[%s198 + $0x60] sm:$0xff]
        %v266 = vld [vmem:[%s198 + $0x68] sm:$0xff]
        %v267 = vld [vmem:[%s198 + $0x70] sm:$0xff]
        %v268 = vld [vmem:[%s198 + $0x78] sm:$0xff]
        %v269 = vld [vmem:[%s198 + $0x80] sm:$0xff]
        %v270 = vld [vmem:[%s198 + $0x88] sm:$0xff]
        %v271 = vld [vmem:[%s198 + $0x90] sm:$0xff]
        %v272 = vld [vmem:[%s198 + $0x98] sm:$0xff]
        %v273 = vld [vmem:[%s198 + $0xa0] sm:$0xff]
        %v274 = vld [vmem:[%s198 + $0xa8] sm:$0xff]
        %v275 = vld [vmem:[%s198 + $0xb0] sm:$0xff]
        %v276 = vld [vmem:[%s198 + $0xb8] sm:$0xff]
        %v277 = vld [vmem:[%s198 + $0xc0] sm:$0xff]
        %v278 = vld [vmem:[%s198 + $0xc8] sm:$0xff]
        %v279 = vld [vmem:[%s198 + $0xd0] sm:$0xff]
        %v280 = vld [vmem:[%s198 + $0xd8] sm:$0xff]
        %v281 = vld [vmem:[%s198 + $0xe0] sm:$0xff]
        %v282 = vld [vmem:[%s198 + $0xe8] sm:$0xff]
        %v283 = vld [vmem:[%s198 + $0xf0] sm:$0xff]
        %v284 = vld [vmem:[%s198 + $0xf8] sm:$0xff]
        %v285 = vld [vmem:[#allocation4] sm:$0xff]
        %v286 = vld [vmem:[#allocation4 + $0x8] sm:$0xff]
        %v287 = vld [vmem:[#allocation4 + $0x10] sm:$0xff]
        %v288 = vld [vmem:[#allocation4 + $0x18] sm:$0xff]
        %v289 = vld [vmem:[#allocation4 + $0x20] sm:$0xff]
        %v290 = vld [vmem:[#allocation4 + $0x28] sm:$0xff]
        %v291 = vld [vmem:[#allocation4 + $0x30] sm:$0xff]
        %v292 = vld [vmem:[#allocation4 + $0x38] sm:$0xff]
        %v293 = vld [vmem:[#allocation4 + $0x40] sm:$0xff]
        %v294 = vld [vmem:[#allocation4 + $0x48] sm:$0xff]
        %v295 = vld [vmem:[#allocation4 + $0x50] sm:$0xff]
        %v296 = vld [vmem:[#allocation4 + $0x58] sm:$0xff]
        %v297 = vld [vmem:[#allocation4 + $0x60] sm:$0xff]
        %v298 = vld [vmem:[#allocation4 + $0x68] sm:$0xff]
        %v299 = vld [vmem:[#allocation4 + $0x70] sm:$0xff]
        %v300 = vld [vmem:[#allocation4 + $0x78] sm:$0xff]
        %v301 = vld [vmem:[#allocation4 + $0x80] sm:$0xff]
        %v302 = vld [vmem:[#allocation4 + $0x88] sm:$0xff]
        %v303 = vld [vmem:[#allocation4 + $0x90] sm:$0xff]
        %v304 = vld [vmem:[#allocation4 + $0x98] sm:$0xff]
        %v305 = vld [vmem:[#allocation4 + $0xa0] sm:$0xff]
        %v306 = vld [vmem:[#allocation4 + $0xa8] sm:$0xff]
        %v307 = vld [vmem:[#allocation4 + $0xb0] sm:$0xff]
        %v308 = vld [vmem:[#allocation4 + $0xb8] sm:$0xff]
        %v309 = vld [vmem:[#allocation4 + $0xc0] sm:$0xff]
        %v310 = vld [vmem:[#allocation4 + $0xc8] sm:$0xff]
        %v311 = vld [vmem:[#allocation4 + $0xd0] sm:$0xff]
        %v312 = vld [vmem:[#allocation4 + $0xd8] sm:$0xff]
        %v313 = vld [vmem:[#allocation4 + $0xe0] sm:$0xff]
        %v314 = vld [vmem:[#allocation4 + $0xe8] sm:$0xff]
        %v315 = vld [vmem:[#allocation4 + $0xf0] sm:$0xff]
        %v316 = vld [vmem:[#allocation4 + $0xf8] sm:$0xff]
        %v317 = vld [vmem:[#allocation4 + $0x100] sm:$0xff]
        %v318 = vld [vmem:[#allocation4 + $0x108] sm:$0xff]
        %v319 = vld [vmem:[#allocation4 + $0x110] sm:$0xff]
        %v320 = vld [vmem:[#allocation4 + $0x118] sm:$0xff]
        %v321 = vld [vmem:[#allocation4 + $0x120] sm:$0xff]
        %v322 = vld [vmem:[#allocation4 + $0x128] sm:$0xff]
        %v323 = vld [vmem:[#allocation4 + $0x130] sm:$0xff]
        %v324 = vld [vmem:[#allocation4 + $0x138] sm:$0xff]
        %v325 = vld [vmem:[#allocation4 + $0x140] sm:$0xff]
        %v326 = vld [vmem:[#allocation4 + $0x148] sm:$0xff]
        %v327 = vld [vmem:[#allocation4 + $0x150] sm:$0xff]
        %v328 = vld [vmem:[#allocation4 + $0x158] sm:$0xff]
        %v329 = vld [vmem:[#allocation4 + $0x160] sm:$0xff]
        %v330 = vld [vmem:[#allocation4 + $0x168] sm:$0xff]
        %v331 = vld [vmem:[#allocation4 + $0x170] sm:$0xff]
        %v332 = vld [vmem:[#allocation4 + $0x178] sm:$0xff]
        %v333 = vld [vmem:[#allocation4 + $0x180] sm:$0xff]
        %v334 = vld [vmem:[#allocation4 + $0x188] sm:$0xff]
        %v335 = vld [vmem:[#allocation4 + $0x190] sm:$0xff]
        %v336 = vld [vmem:[#allocation4 + $0x198] sm:$0xff]
        %v337 = vld [vmem:[#allocation4 + $0x1a0] sm:$0xff]
        %v338 = vld [vmem:[#allocation4 + $0x1a8] sm:$0xff]
        %v339 = vld [vmem:[#allocation4 + $0x1b0] sm:$0xff]
        %v340 = vld [vmem:[#allocation4 + $0x1b8] sm:$0xff]
        %v341 = vld [vmem:[#allocation4 + $0x1c0] sm:$0xff]
        %v342 = vld [vmem:[#allocation4 + $0x1c8] sm:$0xff]
        %v343 = vld [vmem:[#allocation4 + $0x1d0] sm:$0xff]
        %v344 = vld [vmem:[#allocation4 + $0x1d8] sm:$0xff]
        %v345 = vld [vmem:[#allocation4 + $0x1e0] sm:$0xff]
        %v346 = vld [vmem:[#allocation4 + $0x1e8] sm:$0xff]
        %v347 = vld [vmem:[#allocation4 + $0x1f0] sm:$0xff]
        %v348 = vld [vmem:[#allocation4 + $0x1f8] sm:$0xff]
        %v349 = vld [vmem:[#allocation4 + $0x200] sm:$0xff]
        %v350 = vld [vmem:[#allocation4 + $0x208] sm:$0xff]
        %v351 = vld [vmem:[#allocation4 + $0x210] sm:$0xff]
        %v352 = vld [vmem:[#allocation4 + $0x218] sm:$0xff]
        %v353 = vld [vmem:[#allocation4 + $0x220] sm:$0xff]
        %v354 = vld [vmem:[#allocation4 + $0x228] sm:$0xff]
        %v355 = vld [vmem:[#allocation4 + $0x230] sm:$0xff]
        %v356 = vld [vmem:[#allocation4 + $0x238] sm:$0xff]
        %v357 = vld [vmem:[#allocation4 + $0x240] sm:$0xff]
        %v358 = vld [vmem:[#allocation4 + $0x248] sm:$0xff]
        %v359 = vld [vmem:[#allocation4 + $0x250] sm:$0xff]
        %v360 = vld [vmem:[#allocation4 + $0x258] sm:$0xff]
        %v361 = vld [vmem:[#allocation4 + $0x260] sm:$0xff]
        %v362 = vld [vmem:[#allocation4 + $0x268] sm:$0xff]
        %v363 = vld [vmem:[#allocation4 + $0x270] sm:$0xff]
        %v364 = vld [vmem:[#allocation4 + $0x278] sm:$0xff]
        %v365 = vld [vmem:[#allocation4 + $0x280] sm:$0xff]
        %v366 = vld [vmem:[#allocation4 + $0x288] sm:$0xff]
        %v367 = vld [vmem:[#allocation4 + $0x290] sm:$0xff]
        %v368 = vld [vmem:[#allocation4 + $0x298] sm:$0xff]
        %v369 = vld [vmem:[#allocation4 + $0x2a0] sm:$0xff]
        %v370 = vld [vmem:[#allocation4 + $0x2a8] sm:$0xff]
        %v371 = vld [vmem:[#allocation4 + $0x2b0] sm:$0xff]
        %v372 = vld [vmem:[#allocation4 + $0x2b8] sm:$0xff]
        %v373 = vld [vmem:[#allocation4 + $0x2c0] sm:$0xff]
        %v374 = vld [vmem:[#allocation4 + $0x2c8] sm:$0xff]
        %v375 = vld [vmem:[#allocation4 + $0x2d0] sm:$0xff]
        %v376 = vld [vmem:[#allocation4 + $0x2d8] sm:$0xff]
        %v377 = vld [vmem:[#allocation4 + $0x2e0] sm:$0xff]
        %v378 = vld [vmem:[#allocation4 + $0x2e8] sm:$0xff]
        %v379 = vld [vmem:[#allocation4 + $0x2f0] sm:$0xff]
        %v380 = vld [vmem:[#allocation4 + $0x2f8] sm:$0xff]
        %v381 = vld [vmem:[#allocation4 + $0x300] sm:$0xff]
        %v382 = vld [vmem:[#allocation4 + $0x308] sm:$0xff]
        %v383 = vld [vmem:[#allocation4 + $0x310] sm:$0xff]
        %v384 = vld [vmem:[#allocation4 + $0x318] sm:$0xff]
        %v385 = vld [vmem:[#allocation4 + $0x320] sm:$0xff]
        %v386 = vld [vmem:[#allocation4 + $0x328] sm:$0xff]
        %v387 = vld [vmem:[#allocation4 + $0x330] sm:$0xff]
        %v388 = vld [vmem:[#allocation4 + $0x338] sm:$0xff]
        %v389 = vld [vmem:[#allocation4 + $0x340] sm:$0xff]
        %v390 = vld [vmem:[#allocation4 + $0x348] sm:$0xff]
        %v391 = vld [vmem:[#allocation4 + $0x350] sm:$0xff]
        %v392 = vld [vmem:[#allocation4 + $0x358] sm:$0xff]
        %v393 = vld [vmem:[#allocation4 + $0x360] sm:$0xff]
        %v394 = vld [vmem:[#allocation4 + $0x368] sm:$0xff]
        %v395 = vld [vmem:[#allocation4 + $0x370] sm:$0xff]
        %v396 = vld [vmem:[#allocation4 + $0x378] sm:$0xff]
        %v397 = vld [vmem:[#allocation4 + $0x380] sm:$0xff]
        %v398 = vld [vmem:[#allocation4 + $0x388] sm:$0xff]
        %v399 = vld [vmem:[#allocation4 + $0x390] sm:$0xff]
        %v400 = vld [vmem:[#allocation4 + $0x398] sm:$0xff]
        %v401 = vld [vmem:[#allocation4 + $0x3a0] sm:$0xff]
        %v402 = vld [vmem:[#allocation4 + $0x3a8] sm:$0xff]
        %v403 = vld [vmem:[#allocation4 + $0x3b0] sm:$0xff]
        %v404 = vld [vmem:[#allocation4 + $0x3b8] sm:$0xff]
        %v405 = vld [vmem:[#allocation4 + $0x3c0] sm:$0xff]
        %v406 = vld [vmem:[#allocation4 + $0x3c8] sm:$0xff]
        %v407 = vld [vmem:[#allocation4 + $0x3d0] sm:$0xff]
        %v408 = vld [vmem:[#allocation4 + $0x3d8] sm:$0xff]
        %v409 = vld [vmem:[#allocation4 + $0x3e0] sm:$0xff]
        %v410 = vld [vmem:[#allocation4 + $0x3e8] sm:$0xff]
        %v411 = vld [vmem:[#allocation4 + $0x3f0] sm:$0xff]
        %v412 = vld [vmem:[#allocation4 + $0x3f8] sm:$0xff]
        %v413 = vld [vmem:[#allocation4 + $0x400] sm:$0xff]
        %v414 = vld [vmem:[#allocation4 + $0x408] sm:$0xff]
        %v415 = vld [vmem:[#allocation4 + $0x410] sm:$0xff]
        %v416 = vld [vmem:[#allocation4 + $0x418] sm:$0xff]
        %v417 = vld [vmem:[#allocation4 + $0x420] sm:$0xff]
        %v418 = vld [vmem:[#allocation4 + $0x428] sm:$0xff]
        %v419 = vld [vmem:[#allocation4 + $0x430] sm:$0xff]
        %v420 = vld [vmem:[#allocation4 + $0x438] sm:$0xff]
        %v421 = vld [vmem:[#allocation4 + $0x440] sm:$0xff]
        %v422 = vld [vmem:[#allocation4 + $0x448] sm:$0xff]
        %v423 = vld [vmem:[#allocation4 + $0x450] sm:$0xff]
        %v424 = vld [vmem:[#allocation4 + $0x458] sm:$0xff]
        %v425 = vld [vmem:[#allocation4 + $0x460] sm:$0xff]
        %v426 = vld [vmem:[#allocation4 + $0x468] sm:$0xff]
        %v427 = vld [vmem:[#allocation4 + $0x470] sm:$0xff]
        %v428 = vld [vmem:[#allocation4 + $0x478] sm:$0xff]
        %s429 = scalar_lea.vmem [#allocation2], 24
        %vm430 = vcmask 31744
        %431 = vst.msk [vmem:[%s429 + $0x1] sm:$0xff] %vm430, %v253
        %432 = vst.msk [vmem:[%s429 + $0x9] sm:$0xff] %vm430, %v254
        %433 = vst.msk [vmem:[%s429 + $0x19] sm:$0xff] %vm430, %v255
        %434 = vst.msk [vmem:[%s429 + $0x21] sm:$0xff] %vm430, %v256
        %435 = vst.msk [vmem:[%s429 + $0x31] sm:$0xff] %vm430, %v257
        %436 = vst.msk [vmem:[%s429 + $0x39] sm:$0xff] %vm430, %v258
        %437 = vst.msk [vmem:[%s429 + $0x49] sm:$0xff] %vm430, %v259
        %438 = vst.msk [vmem:[%s429 + $0x51] sm:$0xff] %vm430, %v260
        %439 = vst.msk [vmem:[%s429 + $0x61] sm:$0xff] %vm430, %v261
        %440 = vst.msk [vmem:[%s429 + $0x69] sm:$0xff] %vm430, %v262
        %441 = vst.msk [vmem:[%s429 + $0x79] sm:$0xff] %vm430, %v263
        %442 = vst.msk [vmem:[%s429 + $0x81] sm:$0xff] %vm430, %v264
        %443 = vst.msk [vmem:[%s429 + $0x91] sm:$0xff] %vm430, %v265
        %444 = vst.msk [vmem:[%s429 + $0x99] sm:$0xff] %vm430, %v266
        %445 = vst.msk [vmem:[%s429 + $0xa9] sm:$0xff] %vm430, %v267
        %446 = vst.msk [vmem:[%s429 + $0xb1] sm:$0xff] %vm430, %v268
        %447 = vst.msk [vmem:[%s429 + $0xc1] sm:$0xff] %vm430, %v269
        %448 = vst.msk [vmem:[%s429 + $0xc9] sm:$0xff] %vm430, %v270
        %449 = vst.msk [vmem:[%s429 + $0xd9] sm:$0xff] %vm430, %v271
        %450 = vst.msk [vmem:[%s429 + $0xe1] sm:$0xff] %vm430, %v272
        %451 = vst.msk [vmem:[%s429 + $0xf1] sm:$0xff] %vm430, %v273
        %452 = vst.msk [vmem:[%s429 + $0xf9] sm:$0xff] %vm430, %v274
        %453 = vst.msk [vmem:[%s429 + $0x109] sm:$0xff] %vm430, %v275
        %454 = vst.msk [vmem:[%s429 + $0x111] sm:$0xff] %vm430, %v276
        %455 = vst.msk [vmem:[%s429 + $0x121] sm:$0xff] %vm430, %v277
        %456 = vst.msk [vmem:[%s429 + $0x129] sm:$0xff] %vm430, %v278
        %457 = vst.msk [vmem:[%s429 + $0x139] sm:$0xff] %vm430, %v279
        %458 = vst.msk [vmem:[%s429 + $0x141] sm:$0xff] %vm430, %v280
        %459 = vst.msk [vmem:[%s429 + $0x151] sm:$0xff] %vm430, %v281
        %460 = vst.msk [vmem:[%s429 + $0x159] sm:$0xff] %vm430, %v282
        %461 = vst.msk [vmem:[%s429 + $0x169] sm:$0xff] %vm430, %v283
        %462 = vst.msk [vmem:[%s429 + $0x171] sm:$0xff] %vm430, %v284
        %463 = vst.msk [vmem:[#allocation2 + $0x1] sm:$0xff] %vm430, %v255
        %464 = vst.msk [vmem:[#allocation2 + $0x9] sm:$0xff] %vm430, %v256
        %s465 = scalar_lea.vmem [#allocation2], 408
        %466 = vst.msk [vmem:[%s465 + $0x1] sm:$0xff] %vm430, %v281
        %467 = vst.msk [vmem:[%s465 + $0x9] sm:$0xff] %vm430, %v282
        %v468 = vld [vmem:[#allocation2 + $0x2] sm:$0x1]
        %v469 = vld [vmem:[#allocation2 + $0x1a] sm:$0x1]
        %v470 = vld [vmem:[#allocation2 + $0x32] sm:$0x1]
        %v471 = vld [vmem:[#allocation2 + $0x4a] sm:$0x1]
        %v472 = vld [vmem:[#allocation2 + $0x62] sm:$0x1]
        %v473 = vld [vmem:[#allocation2 + $0x7a] sm:$0x1]
        %v474 = vld [vmem:[#allocation2 + $0x92] sm:$0x1]
        %v475 = vld [vmem:[#allocation2 + $0xaa] sm:$0x1]
        %v476 = vld [vmem:[#allocation2 + $0xc2] sm:$0x1]
        %v477 = vld [vmem:[#allocation2 + $0xda] sm:$0x1]
        %v478 = vld [vmem:[#allocation2 + $0xf2] sm:$0x1]
        %v479 = vld [vmem:[#allocation2 + $0x10a] sm:$0x1]
        %v480 = vld [vmem:[#allocation2 + $0x122] sm:$0x1]
        %v481 = vld [vmem:[#allocation2 + $0x13a] sm:$0x1]
        %v482 = vld [vmem:[#allocation2 + $0x152] sm:$0x1]
        %v483 = vld [vmem:[#allocation2 + $0x16a] sm:$0x1]
        %v484 = vld [vmem:[#allocation2 + $0x182] sm:$0x1]
        %v485 = vld [vmem:[#allocation2 + $0x19a] sm:$0x1]
        %486 = vst [vmem:[#allocation2] sm:$0x1] %v468
        %487 = vst [vmem:[#allocation2 + $0x18] sm:$0x1] %v469
        %488 = vst [vmem:[#allocation2 + $0x30] sm:$0x1] %v470
        %489 = vst [vmem:[#allocation2 + $0x48] sm:$0x1] %v471
        %490 = vst [vmem:[#allocation2 + $0x60] sm:$0x1] %v472
        %491 = vst [vmem:[#allocation2 + $0x78] sm:$0x1] %v473
        %492 = vst [vmem:[#allocation2 + $0x90] sm:$0x1] %v474
        %493 = vst [vmem:[#allocation2 + $0xa8] sm:$0x1] %v475
        %494 = vst [vmem:[#allocation2 + $0xc0] sm:$0x1] %v476
        %495 = vst [vmem:[#allocation2 + $0xd8] sm:$0x1] %v477
        %496 = vst [vmem:[#allocation2 + $0xf0] sm:$0x1] %v478
        %497 = vst [vmem:[#allocation2 + $0x108] sm:$0x1] %v479
        %498 = vst [vmem:[#allocation2 + $0x120] sm:$0x1] %v480
        %499 = vst [vmem:[#allocation2 + $0x138] sm:$0x1] %v481
        %500 = vst [vmem:[#allocation2 + $0x150] sm:$0x1] %v482
        %501 = vst [vmem:[#allocation2 + $0x168] sm:$0x1] %v483
        %502 = vst [vmem:[#allocation2 + $0x180] sm:$0x1] %v484
        %503 = vst [vmem:[#allocation2 + $0x198] sm:$0x1] %v485
        %v504 = vld [vmem:[#allocation2 + $0xf] sm:$0x1]
        %v505 = vld [vmem:[#allocation2 + $0x27] sm:$0x1]
        %v506 = vld [vmem:[#allocation2 + $0x3f] sm:$0x1]
        %v507 = vld [vmem:[#allocation2 + $0x57] sm:$0x1]
        %v508 = vld [vmem:[#allocation2 + $0x6f] sm:$0x1]
        %v509 = vld [vmem:[#allocation2 + $0x87] sm:$0x1]
        %v510 = vld [vmem:[#allocation2 + $0x9f] sm:$0x1]
        %v511 = vld [vmem:[#allocation2 + $0xb7] sm:$0x1]
        %v512 = vld [vmem:[#allocation2 + $0xcf] sm:$0x1]
        %v513 = vld [vmem:[#allocation2 + $0xe7] sm:$0x1]
        %v514 = vld [vmem:[#allocation2 + $0xff] sm:$0x1]
        %v515 = vld [vmem:[#allocation2 + $0x117] sm:$0x1]
        %v516 = vld [vmem:[#allocation2 + $0x12f] sm:$0x1]
        %v517 = vld [vmem:[#allocation2 + $0x147] sm:$0x1]
        %v518 = vld [vmem:[#allocation2 + $0x15f] sm:$0x1]
        %v519 = vld [vmem:[#allocation2 + $0x177] sm:$0x1]
        %v520 = vld [vmem:[#allocation2 + $0x18f] sm:$0x1]
        %v521 = vld [vmem:[#allocation2 + $0x1a7] sm:$0x1]
        %522 = vst [vmem:[#allocation2 + $0x11] sm:$0x1] %v504
        %523 = vst [vmem:[#allocation2 + $0x29] sm:$0x1] %v505
        %524 = vst [vmem:[#allocation2 + $0x41] sm:$0x1] %v506
        %525 = vst [vmem:[#allocation2 + $0x59] sm:$0x1] %v507
        %526 = vst [vmem:[#allocation2 + $0x71] sm:$0x1] %v508
        %527 = vst [vmem:[#allocation2 + $0x89] sm:$0x1] %v509
        %528 = vst [vmem:[#allocation2 + $0xa1] sm:$0x1] %v510
        %529 = vst [vmem:[#allocation2 + $0xb9] sm:$0x1] %v511
        %530 = vst [vmem:[#allocation2 + $0xd1] sm:$0x1] %v512
        %531 = vst [vmem:[#allocation2 + $0xe9] sm:$0x1] %v513
        %532 = vst [vmem:[#allocation2 + $0x101] sm:$0x1] %v514
        %533 = vst [vmem:[#allocation2 + $0x119] sm:$0x1] %v515
        %534 = vst [vmem:[#allocation2 + $0x131] sm:$0x1] %v516
        %535 = vst [vmem:[#allocation2 + $0x149] sm:$0x1] %v517
        %536 = vst [vmem:[#allocation2 + $0x161] sm:$0x1] %v518
        %537 = vst [vmem:[#allocation2 + $0x179] sm:$0x1] %v519
        %538 = vst [vmem:[#allocation2 + $0x191] sm:$0x1] %v520
        %539 = vst [vmem:[#allocation2 + $0x1a9] sm:$0x1] %v521
        %v540 = vld [vmem:[#allocation2] sm:$0xff]
        %v541 = vld [vmem:[#allocation2 + $0x8] sm:$0xff]
        %v542 = vld [vmem:[#allocation2 + $0x18] sm:$0xff]
        %v543 = vld [vmem:[#allocation2 + $0x20] sm:$0xff]
        %v544 = vld [vmem:[#allocation2 + $0x30] sm:$0xff]
        %v545 = vld [vmem:[#allocation2 + $0x38] sm:$0xff]
        %v546 = vld [vmem:[#allocation2 + $0x48] sm:$0xff]
        %v547 = vld [vmem:[#allocation2 + $0x50] sm:$0xff]
        %v548 = vld [vmem:[#allocation2 + $0x60] sm:$0xff]
        %v549 = vld [vmem:[#allocation2 + $0x68] sm:$0xff]
        %v550 = vld [vmem:[#allocation2 + $0x78] sm:$0xff]
        %v551 = vld [vmem:[#allocation2 + $0x80] sm:$0xff]
        %v552 = vld [vmem:[#allocation2 + $0x90] sm:$0xff]
        %v553 = vld [vmem:[#allocation2 + $0x98] sm:$0xff]
        %v554 = vld [vmem:[#allocation2 + $0xa8] sm:$0xff]
        %v555 = vld [vmem:[#allocation2 + $0xb0] sm:$0xff]
        %v556 = vld [vmem:[#allocation2 + $0xc0] sm:$0xff]
        %v557 = vld [vmem:[#allocation2 + $0xc8] sm:$0xff]
        %v558 = vld [vmem:[#allocation2 + $0xd8] sm:$0xff]
        %v559 = vld [vmem:[#allocation2 + $0xe0] sm:$0xff]
        %v560 = vld [vmem:[#allocation2 + $0xf0] sm:$0xff]
        %v561 = vld [vmem:[#allocation2 + $0xf8] sm:$0xff]
        %v562 = vld [vmem:[#allocation2 + $0x108] sm:$0xff]
        %v563 = vld [vmem:[#allocation2 + $0x110] sm:$0xff]
        %v564 = vld [vmem:[#allocation2 + $0x120] sm:$0xff]
        %v565 = vld [vmem:[#allocation2 + $0x128] sm:$0xff]
        %v566 = vld [vmem:[#allocation2 + $0x138] sm:$0xff]
        %v567 = vld [vmem:[#allocation2 + $0x140] sm:$0xff]
        %v568 = vld [vmem:[#allocation2 + $0x150] sm:$0xff]
        %v569 = vld [vmem:[#allocation2 + $0x158] sm:$0xff]
        %v570 = vld [vmem:[#allocation2 + $0x168] sm:$0xff]
        %v571 = vld [vmem:[#allocation2 + $0x170] sm:$0xff]
        %572 = vst [vmem:[#allocation3] sm:$0xff] %v540
        %573 = vst [vmem:[#allocation3 + $0x48] sm:$0xff] %v541
        %574 = vst [vmem:[#allocation3 + $0x90] sm:$0xff] %v542
        %575 = vst [vmem:[#allocation3 + $0xd8] sm:$0xff] %v543
        %576 = vst [vmem:[#allocation3 + $0x120] sm:$0xff] %v544
        %577 = vst [vmem:[#allocation3 + $0x168] sm:$0xff] %v545
        %578 = vst [vmem:[#allocation3 + $0x1b0] sm:$0xff] %v546
        %579 = vst [vmem:[#allocation3 + $0x1f8] sm:$0xff] %v547
        %580 = vst [vmem:[#allocation3 + $0x240] sm:$0xff] %v548
        %581 = vst [vmem:[#allocation3 + $0x288] sm:$0xff] %v549
        %582 = vst [vmem:[#allocation3 + $0x2d0] sm:$0xff] %v550
        %583 = vst [vmem:[#allocation3 + $0x318] sm:$0xff] %v551
        %584 = vst [vmem:[#allocation3 + $0x360] sm:$0xff] %v552
        %585 = vst [vmem:[#allocation3 + $0x3a8] sm:$0xff] %v553
        %586 = vst [vmem:[#allocation3 + $0x3f0] sm:$0xff] %v554
        %587 = vst [vmem:[#allocation3 + $0x438] sm:$0xff] %v555
        %588 = vst [vmem:[#allocation3 + $0x480] sm:$0xff] %v556
        %589 = vst [vmem:[#allocation3 + $0x4c8] sm:$0xff] %v557
        %590 = vst [vmem:[#allocation3 + $0x510] sm:$0xff] %v558
        %591 = vst [vmem:[#allocation3 + $0x558] sm:$0xff] %v559
        %592 = vst [vmem:[#allocation3 + $0x5a0] sm:$0xff] %v560
        %593 = vst [vmem:[#allocation3 + $0x5e8] sm:$0xff] %v561
        %594 = vst [vmem:[#allocation3 + $0x630] sm:$0xff] %v562
        %595 = vst [vmem:[#allocation3 + $0x678] sm:$0xff] %v563
        %596 = vst [vmem:[#allocation3 + $0x6c0] sm:$0xff] %v564
        %597 = vst [vmem:[#allocation3 + $0x708] sm:$0xff] %v565
        %598 = vst [vmem:[#allocation3 + $0x750] sm:$0xff] %v566
        %599 = vst [vmem:[#allocation3 + $0x798] sm:$0xff] %v567
        %600 = vst [vmem:[#allocation3 + $0x7e0] sm:$0xff] %v568
        %601 = vst [vmem:[#allocation3 + $0x828] sm:$0xff] %v569
        %602 = vst [vmem:[#allocation3 + $0x870] sm:$0xff] %v570
        %603 = vst [vmem:[#allocation3 + $0x8b8] sm:$0xff] %v571
        %v604 = vld [vmem:[#allocation2 + $0x1] sm:$0xff]
        %v605 = vld [vmem:[#allocation2 + $0x9] sm:$0xff]
        %v606 = vld [vmem:[#allocation2 + $0x19] sm:$0xff]
        %v607 = vld [vmem:[#allocation2 + $0x21] sm:$0xff]
        %v608 = vld [vmem:[#allocation2 + $0x31] sm:$0xff]
        %v609 = vld [vmem:[#allocation2 + $0x39] sm:$0xff]
        %v610 = vld [vmem:[#allocation2 + $0x49] sm:$0xff]
        %v611 = vld [vmem:[#allocation2 + $0x51] sm:$0xff]
        %v612 = vld [vmem:[#allocation2 + $0x61] sm:$0xff]
        %v613 = vld [vmem:[#allocation2 + $0x69] sm:$0xff]
        %v614 = vld [vmem:[#allocation2 + $0x79] sm:$0xff]
        %v615 = vld [vmem:[#allocation2 + $0x81] sm:$0xff]
        %v616 = vld [vmem:[#allocation2 + $0x91] sm:$0xff]
        %v617 = vld [vmem:[#allocation2 + $0x99] sm:$0xff]
        %v618 = vld [vmem:[#allocation2 + $0xa9] sm:$0xff]
        %v619 = vld [vmem:[#allocation2 + $0xb1] sm:$0xff]
        %v620 = vld [vmem:[#allocation2 + $0xc1] sm:$0xff]
        %v621 = vld [vmem:[#allocation2 + $0xc9] sm:$0xff]
        %v622 = vld [vmem:[#allocation2 + $0xd9] sm:$0xff]
        %v623 = vld [vmem:[#allocation2 + $0xe1] sm:$0xff]
        %v624 = vld [vmem:[#allocation2 + $0xf1] sm:$0xff]
        %v625 = vld [vmem:[#allocation2 + $0xf9] sm:$0xff]
        %v626 = vld [vmem:[#allocation2 + $0x109] sm:$0xff]
        %v627 = vld [vmem:[#allocation2 + $0x111] sm:$0xff]
        %v628 = vld [vmem:[#allocation2 + $0x121] sm:$0xff]
        %v629 = vld [vmem:[#allocation2 + $0x129] sm:$0xff]
        %v630 = vld [vmem:[#allocation2 + $0x139] sm:$0xff]
        %v631 = vld [vmem:[#allocation2 + $0x141] sm:$0xff]
        %v632 = vld [vmem:[#allocation2 + $0x151] sm:$0xff]
        %v633 = vld [vmem:[#allocation2 + $0x159] sm:$0xff]
        %v634 = vld [vmem:[#allocation2 + $0x169] sm:$0xff]
        %v635 = vld [vmem:[#allocation2 + $0x171] sm:$0xff]
        %636 = vst [vmem:[#allocation3 + $0x8] sm:$0xff] %v604
        %637 = vst [vmem:[#allocation3 + $0x50] sm:$0xff] %v605
        %638 = vst [vmem:[#allocation3 + $0x98] sm:$0xff] %v606
        %639 = vst [vmem:[#allocation3 + $0xe0] sm:$0xff] %v607
        %640 = vst [vmem:[#allocation3 + $0x128] sm:$0xff] %v608
        %641 = vst [vmem:[#allocation3 + $0x170] sm:$0xff] %v609
        %642 = vst [vmem:[#allocation3 + $0x1b8] sm:$0xff] %v610
        %643 = vst [vmem:[#allocation3 + $0x200] sm:$0xff] %v611
        %644 = vst [vmem:[#allocation3 + $0x248] sm:$0xff] %v612
        %645 = vst [vmem:[#allocation3 + $0x290] sm:$0xff] %v613
        %646 = vst [vmem:[#allocation3 + $0x2d8] sm:$0xff] %v614
        %647 = vst [vmem:[#allocation3 + $0x320] sm:$0xff] %v615
        %648 = vst [vmem:[#allocation3 + $0x368] sm:$0xff] %v616
        %649 = vst [vmem:[#allocation3 + $0x3b0] sm:$0xff] %v617
        %650 = vst [vmem:[#allocation3 + $0x3f8] sm:$0xff] %v618
        %651 = vst [vmem:[#allocation3 + $0x440] sm:$0xff] %v619
        %652 = vst [vmem:[#allocation3 + $0x488] sm:$0xff] %v620
        %653 = vst [vmem:[#allocation3 + $0x4d0] sm:$0xff] %v621
        %654 = vst [vmem:[#allocation3 + $0x518] sm:$0xff] %v622
        %655 = vst [vmem:[#allocation3 + $0x560] sm:$0xff] %v623
        %656 = vst [vmem:[#allocation3 + $0x5a8] sm:$0xff] %v624
        %657 = vst [vmem:[#allocation3 + $0x5f0] sm:$0xff] %v625
        %658 = vst [vmem:[#allocation3 + $0x638] sm:$0xff] %v626
        %659 = vst [vmem:[#allocation3 + $0x680] sm:$0xff] %v627
        %660 = vst [vmem:[#allocation3 + $0x6c8] sm:$0xff] %v628
        %661 = vst [vmem:[#allocation3 + $0x710] sm:$0xff] %v629
        %662 = vst [vmem:[#allocation3 + $0x758] sm:$0xff] %v630
        %663 = vst [vmem:[#allocation3 + $0x7a0] sm:$0xff] %v631
        %664 = vst [vmem:[#allocation3 + $0x7e8] sm:$0xff] %v632
        %665 = vst [vmem:[#allocation3 + $0x830] sm:$0xff] %v633
        %666 = vst [vmem:[#allocation3 + $0x878] sm:$0xff] %v634
        %667 = vst [vmem:[#allocation3 + $0x8c0] sm:$0xff] %v635
        %v668 = vld [vmem:[#allocation2 + $0x2] sm:$0xff]
        %v669 = vld [vmem:[#allocation2 + $0xa] sm:$0xff]
        %v670 = vld [vmem:[#allocation2 + $0x1a] sm:$0xff]
        %v671 = vld [vmem:[#allocation2 + $0x22] sm:$0xff]
        %v672 = vld [vmem:[#allocation2 + $0x32] sm:$0xff]
        %v673 = vld [vmem:[#allocation2 + $0x3a] sm:$0xff]
        %v674 = vld [vmem:[#allocation2 + $0x4a] sm:$0xff]
        %v675 = vld [vmem:[#allocation2 + $0x52] sm:$0xff]
        %v676 = vld [vmem:[#allocation2 + $0x62] sm:$0xff]
        %v677 = vld [vmem:[#allocation2 + $0x6a] sm:$0xff]
        %v678 = vld [vmem:[#allocation2 + $0x7a] sm:$0xff]
        %v679 = vld [vmem:[#allocation2 + $0x82] sm:$0xff]
        %v680 = vld [vmem:[#allocation2 + $0x92] sm:$0xff]
        %v681 = vld [vmem:[#allocation2 + $0x9a] sm:$0xff]
        %v682 = vld [vmem:[#allocation2 + $0xaa] sm:$0xff]
        %v683 = vld [vmem:[#allocation2 + $0xb2] sm:$0xff]
        %v684 = vld [vmem:[#allocation2 + $0xc2] sm:$0xff]
        %v685 = vld [vmem:[#allocation2 + $0xca] sm:$0xff]
        %v686 = vld [vmem:[#allocation2 + $0xda] sm:$0xff]
        %v687 = vld [vmem:[#allocation2 + $0xe2] sm:$0xff]
        %v688 = vld [vmem:[#allocation2 + $0xf2] sm:$0xff]
        %v689 = vld [vmem:[#allocation2 + $0xfa] sm:$0xff]
        %v690 = vld [vmem:[#allocation2 + $0x10a] sm:$0xff]
        %v691 = vld [vmem:[#allocation2 + $0x112] sm:$0xff]
        %v692 = vld [vmem:[#allocation2 + $0x122] sm:$0xff]
        %v693 = vld [vmem:[#allocation2 + $0x12a] sm:$0xff]
        %v694 = vld [vmem:[#allocation2 + $0x13a] sm:$0xff]
        %v695 = vld [vmem:[#allocation2 + $0x142] sm:$0xff]
        %v696 = vld [vmem:[#allocation2 + $0x152] sm:$0xff]
        %v697 = vld [vmem:[#allocation2 + $0x15a] sm:$0xff]
        %v698 = vld [vmem:[#allocation2 + $0x16a] sm:$0xff]
        %v699 = vld [vmem:[#allocation2 + $0x172] sm:$0xff]
        %700 = vst [vmem:[#allocation3 + $0x10] sm:$0xff] %v668
        %701 = vst [vmem:[#allocation3 + $0x58] sm:$0xff] %v669
        %702 = vst [vmem:[#allocation3 + $0xa0] sm:$0xff] %v670
        %703 = vst [vmem:[#allocation3 + $0xe8] sm:$0xff] %v671
        %704 = vst [vmem:[#allocation3 + $0x130] sm:$0xff] %v672
        %705 = vst [vmem:[#allocation3 + $0x178] sm:$0xff] %v673
        %706 = vst [vmem:[#allocation3 + $0x1c0] sm:$0xff] %v674
        %707 = vst [vmem:[#allocation3 + $0x208] sm:$0xff] %v675
        %708 = vst [vmem:[#allocation3 + $0x250] sm:$0xff] %v676
        %709 = vst [vmem:[#allocation3 + $0x298] sm:$0xff] %v677
        %710 = vst [vmem:[#allocation3 + $0x2e0] sm:$0xff] %v678
        %711 = vst [vmem:[#allocation3 + $0x328] sm:$0xff] %v679
        %712 = vst [vmem:[#allocation3 + $0x370] sm:$0xff] %v680
        %713 = vst [vmem:[#allocation3 + $0x3b8] sm:$0xff] %v681
        %714 = vst [vmem:[#allocation3 + $0x400] sm:$0xff] %v682
        %715 = vst [vmem:[#allocation3 + $0x448] sm:$0xff] %v683
        %716 = vst [vmem:[#allocation3 + $0x490] sm:$0xff] %v684
        %717 = vst [vmem:[#allocation3 + $0x4d8] sm:$0xff] %v685
        %718 = vst [vmem:[#allocation3 + $0x520] sm:$0xff] %v686
        %719 = vst [vmem:[#allocation3 + $0x568] sm:$0xff] %v687
        %720 = vst [vmem:[#allocation3 + $0x5b0] sm:$0xff] %v688
        %721 = vst [vmem:[#allocation3 + $0x5f8] sm:$0xff] %v689
        %722 = vst [vmem:[#allocation3 + $0x640] sm:$0xff] %v690
        %723 = vst [vmem:[#allocation3 + $0x688] sm:$0xff] %v691
        %724 = vst [vmem:[#allocation3 + $0x6d0] sm:$0xff] %v692
        %725 = vst [vmem:[#allocation3 + $0x718] sm:$0xff] %v693
        %726 = vst [vmem:[#allocation3 + $0x760] sm:$0xff] %v694
        %727 = vst [vmem:[#allocation3 + $0x7a8] sm:$0xff] %v695
        %728 = vst [vmem:[#allocation3 + $0x7f0] sm:$0xff] %v696
        %729 = vst [vmem:[#allocation3 + $0x838] sm:$0xff] %v697
        %730 = vst [vmem:[#allocation3 + $0x880] sm:$0xff] %v698
        %731 = vst [vmem:[#allocation3 + $0x8c8] sm:$0xff] %v699
        %v732 = vld [vmem:[%s429] sm:$0xff]
        %v733 = vld [vmem:[%s429 + $0x8] sm:$0xff]
        %v734 = vld [vmem:[%s429 + $0x18] sm:$0xff]
        %v735 = vld [vmem:[%s429 + $0x20] sm:$0xff]
        %v736 = vld [vmem:[%s429 + $0x30] sm:$0xff]
        %v737 = vld [vmem:[%s429 + $0x38] sm:$0xff]
        %v738 = vld [vmem:[%s429 + $0x48] sm:$0xff]
        %v739 = vld [vmem:[%s429 + $0x50] sm:$0xff]
        %v740 = vld [vmem:[%s429 + $0x60] sm:$0xff]
        %v741 = vld [vmem:[%s429 + $0x68] sm:$0xff]
        %v742 = vld [vmem:[%s429 + $0x78] sm:$0xff]
        %v743 = vld [vmem:[%s429 + $0x80] sm:$0xff]
        %v744 = vld [vmem:[%s429 + $0x90] sm:$0xff]
        %v745 = vld [vmem:[%s429 + $0x98] sm:$0xff]
        %v746 = vld [vmem:[%s429 + $0xa8] sm:$0xff]
        %v747 = vld [vmem:[%s429 + $0xb0] sm:$0xff]
        %v748 = vld [vmem:[%s429 + $0xc0] sm:$0xff]
        %v749 = vld [vmem:[%s429 + $0xc8] sm:$0xff]
        %v750 = vld [vmem:[%s429 + $0xd8] sm:$0xff]
        %v751 = vld [vmem:[%s429 + $0xe0] sm:$0xff]
        %v752 = vld [vmem:[%s429 + $0xf0] sm:$0xff]
        %v753 = vld [vmem:[%s429 + $0xf8] sm:$0xff]
        %v754 = vld [vmem:[%s429 + $0x108] sm:$0xff]
        %v755 = vld [vmem:[%s429 + $0x110] sm:$0xff]
        %v756 = vld [vmem:[%s429 + $0x120] sm:$0xff]
        %v757 = vld [vmem:[%s429 + $0x128] sm:$0xff]
        %v758 = vld [vmem:[%s429 + $0x138] sm:$0xff]
        %v759 = vld [vmem:[%s429 + $0x140] sm:$0xff]
        %v760 = vld [vmem:[%s429 + $0x150] sm:$0xff]
        %v761 = vld [vmem:[%s429 + $0x158] sm:$0xff]
        %v762 = vld [vmem:[%s429 + $0x168] sm:$0xff]
        %v763 = vld [vmem:[%s429 + $0x170] sm:$0xff]
        %764 = vst [vmem:[#allocation3 + $0x18] sm:$0xff] %v732
        %765 = vst [vmem:[#allocation3 + $0x60] sm:$0xff] %v733
        %766 = vst [vmem:[#allocation3 + $0xa8] sm:$0xff] %v734
        %767 = vst [vmem:[#allocation3 + $0xf0] sm:$0xff] %v735
        %768 = vst [vmem:[#allocation3 + $0x138] sm:$0xff] %v736
        %769 = vst [vmem:[#allocation3 + $0x180] sm:$0xff] %v737
        %770 = vst [vmem:[#allocation3 + $0x1c8] sm:$0xff] %v738
        %771 = vst [vmem:[#allocation3 + $0x210] sm:$0xff] %v739
        %772 = vst [vmem:[#allocation3 + $0x258] sm:$0xff] %v740
        %773 = vst [vmem:[#allocation3 + $0x2a0] sm:$0xff] %v741
        %774 = vst [vmem:[#allocation3 + $0x2e8] sm:$0xff] %v742
        %775 = vst [vmem:[#allocation3 + $0x330] sm:$0xff] %v743
        %776 = vst [vmem:[#allocation3 + $0x378] sm:$0xff] %v744
        %777 = vst [vmem:[#allocation3 + $0x3c0] sm:$0xff] %v745
        %778 = vst [vmem:[#allocation3 + $0x408] sm:$0xff] %v746
        %779 = vst [vmem:[#allocation3 + $0x450] sm:$0xff] %v747
        %780 = vst [vmem:[#allocation3 + $0x498] sm:$0xff] %v748
        %781 = vst [vmem:[#allocation3 + $0x4e0] sm:$0xff] %v749
        %782 = vst [vmem:[#allocation3 + $0x528] sm:$0xff] %v750
        %783 = vst [vmem:[#allocation3 + $0x570] sm:$0xff] %v751
        %784 = vst [vmem:[#allocation3 + $0x5b8] sm:$0xff] %v752
        %785 = vst [vmem:[#allocation3 + $0x600] sm:$0xff] %v753
        %786 = vst [vmem:[#allocation3 + $0x648] sm:$0xff] %v754
        %787 = vst [vmem:[#allocation3 + $0x690] sm:$0xff] %v755
        %788 = vst [vmem:[#allocation3 + $0x6d8] sm:$0xff] %v756
        %789 = vst [vmem:[#allocation3 + $0x720] sm:$0xff] %v757
        %790 = vst [vmem:[#allocation3 + $0x768] sm:$0xff] %v758
        %791 = vst [vmem:[#allocation3 + $0x7b0] sm:$0xff] %v759
        %792 = vst [vmem:[#allocation3 + $0x7f8] sm:$0xff] %v760
        %793 = vst [vmem:[#allocation3 + $0x840] sm:$0xff] %v761
        %794 = vst [vmem:[#allocation3 + $0x888] sm:$0xff] %v762
        %795 = vst [vmem:[#allocation3 + $0x8d0] sm:$0xff] %v763
        %v796 = vld [vmem:[%s429 + $0x1] sm:$0xff]
        %v797 = vld [vmem:[%s429 + $0x9] sm:$0xff]
        %v798 = vld [vmem:[%s429 + $0x19] sm:$0xff]
        %v799 = vld [vmem:[%s429 + $0x21] sm:$0xff]
        %v800 = vld [vmem:[%s429 + $0x31] sm:$0xff]
        %v801 = vld [vmem:[%s429 + $0x39] sm:$0xff]
        %v802 = vld [vmem:[%s429 + $0x49] sm:$0xff]
        %v803 = vld [vmem:[%s429 + $0x51] sm:$0xff]
        %v804 = vld [vmem:[%s429 + $0x61] sm:$0xff]
        %v805 = vld [vmem:[%s429 + $0x69] sm:$0xff]
        %v806 = vld [vmem:[%s429 + $0x79] sm:$0xff]
        %v807 = vld [vmem:[%s429 + $0x81] sm:$0xff]
        %v808 = vld [vmem:[%s429 + $0x91] sm:$0xff]
        %v809 = vld [vmem:[%s429 + $0x99] sm:$0xff]
        %v810 = vld [vmem:[%s429 + $0xa9] sm:$0xff]
        %v811 = vld [vmem:[%s429 + $0xb1] sm:$0xff]
        %v812 = vld [vmem:[%s429 + $0xc1] sm:$0xff]
        %v813 = vld [vmem:[%s429 + $0xc9] sm:$0xff]
        %v814 = vld [vmem:[%s429 + $0xd9] sm:$0xff]
        %v815 = vld [vmem:[%s429 + $0xe1] sm:$0xff]
        %v816 = vld [vmem:[%s429 + $0xf1] sm:$0xff]
        %v817 = vld [vmem:[%s429 + $0xf9] sm:$0xff]
        %v818 = vld [vmem:[%s429 + $0x109] sm:$0xff]
        %v819 = vld [vmem:[%s429 + $0x111] sm:$0xff]
        %v820 = vld [vmem:[%s429 + $0x121] sm:$0xff]
        %v821 = vld [vmem:[%s429 + $0x129] sm:$0xff]
        %v822 = vld [vmem:[%s429 + $0x139] sm:$0xff]
        %v823 = vld [vmem:[%s429 + $0x141] sm:$0xff]
        %v824 = vld [vmem:[%s429 + $0x151] sm:$0xff]
        %v825 = vld [vmem:[%s429 + $0x159] sm:$0xff]
        %v826 = vld [vmem:[%s429 + $0x169] sm:$0xff]
        %v827 = vld [vmem:[%s429 + $0x171] sm:$0xff]
        %828 = vst [vmem:[#allocation3 + $0x20] sm:$0xff] %v796
        %829 = vst [vmem:[#allocation3 + $0x68] sm:$0xff] %v797
        %830 = vst [vmem:[#allocation3 + $0xb0] sm:$0xff] %v798
        %831 = vst [vmem:[#allocation3 + $0xf8] sm:$0xff] %v799
        %832 = vst [vmem:[#allocation3 + $0x140] sm:$0xff] %v800
        %833 = vst [vmem:[#allocation3 + $0x188] sm:$0xff] %v801
        %834 = vst [vmem:[#allocation3 + $0x1d0] sm:$0xff] %v802
        %835 = vst [vmem:[#allocation3 + $0x218] sm:$0xff] %v803
        %836 = vst [vmem:[#allocation3 + $0x260] sm:$0xff] %v804
        %837 = vst [vmem:[#allocation3 + $0x2a8] sm:$0xff] %v805
        %838 = vst [vmem:[#allocation3 + $0x2f0] sm:$0xff] %v806
        %839 = vst [vmem:[#allocation3 + $0x338] sm:$0xff] %v807
        %840 = vst [vmem:[#allocation3 + $0x380] sm:$0xff] %v808
        %841 = vst [vmem:[#allocation3 + $0x3c8] sm:$0xff] %v809
        %842 = vst [vmem:[#allocation3 + $0x410] sm:$0xff] %v810
        %843 = vst [vmem:[#allocation3 + $0x458] sm:$0xff] %v811
        %844 = vst [vmem:[#allocation3 + $0x4a0] sm:$0xff] %v812
        %845 = vst [vmem:[#allocation3 + $0x4e8] sm:$0xff] %v813
        %846 = vst [vmem:[#allocation3 + $0x530] sm:$0xff] %v814
        %847 = vst [vmem:[#allocation3 + $0x578] sm:$0xff] %v815
        %848 = vst [vmem:[#allocation3 + $0x5c0] sm:$0xff] %v816
        %849 = vst [vmem:[#allocation3 + $0x608] sm:$0xff] %v817
        %850 = vst [vmem:[#allocation3 + $0x650] sm:$0xff] %v818
        %851 = vst [vmem:[#allocation3 + $0x698] sm:$0xff] %v819
        %852 = vst [vmem:[#allocation3 + $0x6e0] sm:$0xff] %v820
        %853 = vst [vmem:[#allocation3 + $0x728] sm:$0xff] %v821
        %854 = vst [vmem:[#allocation3 + $0x770] sm:$0xff] %v822
        %855 = vst [vmem:[#allocation3 + $0x7b8] sm:$0xff] %v823
        %856 = vst [vmem:[#allocation3 + $0x800] sm:$0xff] %v824
        %857 = vst [vmem:[#allocation3 + $0x848] sm:$0xff] %v825
        %858 = vst [vmem:[#allocation3 + $0x890] sm:$0xff] %v826
        %859 = vst [vmem:[#allocation3 + $0x8d8] sm:$0xff] %v827
        %v860 = vld [vmem:[%s429 + $0x2] sm:$0xff]
        %v861 = vld [vmem:[%s429 + $0xa] sm:$0xff]
        %v862 = vld [vmem:[%s429 + $0x1a] sm:$0xff]
        %v863 = vld [vmem:[%s429 + $0x22] sm:$0xff]
        %v864 = vld [vmem:[%s429 + $0x32] sm:$0xff]
        %v865 = vld [vmem:[%s429 + $0x3a] sm:$0xff]
        %v866 = vld [vmem:[%s429 + $0x4a] sm:$0xff]
        %v867 = vld [vmem:[%s429 + $0x52] sm:$0xff]
        %v868 = vld [vmem:[%s429 + $0x62] sm:$0xff]
        %v869 = vld [vmem:[%s429 + $0x6a] sm:$0xff]
        %v870 = vld [vmem:[%s429 + $0x7a] sm:$0xff]
        %v871 = vld [vmem:[%s429 + $0x82] sm:$0xff]
        %v872 = vld [vmem:[%s429 + $0x92] sm:$0xff]
        %v873 = vld [vmem:[%s429 + $0x9a] sm:$0xff]
        %v874 = vld [vmem:[%s429 + $0xaa] sm:$0xff]
        %v875 = vld [vmem:[%s429 + $0xb2] sm:$0xff]
        %v876 = vld [vmem:[%s429 + $0xc2] sm:$0xff]
        %v877 = vld [vmem:[%s429 + $0xca] sm:$0xff]
        %v878 = vld [vmem:[%s429 + $0xda] sm:$0xff]
        %v879 = vld [vmem:[%s429 + $0xe2] sm:$0xff]
        %v880 = vld [vmem:[%s429 + $0xf2] sm:$0xff]
        %v881 = vld [vmem:[%s429 + $0xfa] sm:$0xff]
        %v882 = vld [vmem:[%s429 + $0x10a] sm:$0xff]
        %v883 = vld [vmem:[%s429 + $0x112] sm:$0xff]
        %v884 = vld [vmem:[%s429 + $0x122] sm:$0xff]
        %v885 = vld [vmem:[%s429 + $0x12a] sm:$0xff]
        %v886 = vld [vmem:[%s429 + $0x13a] sm:$0xff]
        %v887 = vld [vmem:[%s429 + $0x142] sm:$0xff]
        %v888 = vld [vmem:[%s429 + $0x152] sm:$0xff]
        %v889 = vld [vmem:[%s429 + $0x15a] sm:$0xff]
        %v890 = vld [vmem:[%s429 + $0x16a] sm:$0xff]
        %v891 = vld [vmem:[%s429 + $0x172] sm:$0xff]
        %892 = vst [vmem:[#allocation3 + $0x28] sm:$0xff] %v860
        %893 = vst [vmem:[#allocation3 + $0x70] sm:$0xff] %v861
        %894 = vst [vmem:[#allocation3 + $0xb8] sm:$0xff] %v862
        %895 = vst [vmem:[#allocation3 + $0x100] sm:$0xff] %v863
        %896 = vst [vmem:[#allocation3 + $0x148] sm:$0xff] %v864
        %897 = vst [vmem:[#allocation3 + $0x190] sm:$0xff] %v865
        %898 = vst [vmem:[#allocation3 + $0x1d8] sm:$0xff] %v866
        %899 = vst [vmem:[#allocation3 + $0x220] sm:$0xff] %v867
        %900 = vst [vmem:[#allocation3 + $0x268] sm:$0xff] %v868
        %901 = vst [vmem:[#allocation3 + $0x2b0] sm:$0xff] %v869
        %902 = vst [vmem:[#allocation3 + $0x2f8] sm:$0xff] %v870
        %903 = vst [vmem:[#allocation3 + $0x340] sm:$0xff] %v871
        %904 = vst [vmem:[#allocation3 + $0x388] sm:$0xff] %v872
        %905 = vst [vmem:[#allocation3 + $0x3d0] sm:$0xff] %v873
        %906 = vst [vmem:[#allocation3 + $0x418] sm:$0xff] %v874
        %907 = vst [vmem:[#allocation3 + $0x460] sm:$0xff] %v875
        %908 = vst [vmem:[#allocation3 + $0x4a8] sm:$0xff] %v876
        %909 = vst [vmem:[#allocation3 + $0x4f0] sm:$0xff] %v877
        %910 = vst [vmem:[#allocation3 + $0x538] sm:$0xff] %v878
        %911 = vst [vmem:[#allocation3 + $0x580] sm:$0xff] %v879
        %912 = vst [vmem:[#allocation3 + $0x5c8] sm:$0xff] %v880
        %913 = vst [vmem:[#allocation3 + $0x610] sm:$0xff] %v881
        %914 = vst [vmem:[#allocation3 + $0x658] sm:$0xff] %v882
        %915 = vst [vmem:[#allocation3 + $0x6a0] sm:$0xff] %v883
        %916 = vst [vmem:[#allocation3 + $0x6e8] sm:$0xff] %v884
        %917 = vst [vmem:[#allocation3 + $0x730] sm:$0xff] %v885
        %918 = vst [vmem:[#allocation3 + $0x778] sm:$0xff] %v886
        %919 = vst [vmem:[#allocation3 + $0x7c0] sm:$0xff] %v887
        %920 = vst [vmem:[#allocation3 + $0x808] sm:$0xff] %v888
        %921 = vst [vmem:[#allocation3 + $0x850] sm:$0xff] %v889
        %922 = vst [vmem:[#allocation3 + $0x898] sm:$0xff] %v890
        %923 = vst [vmem:[#allocation3 + $0x8e0] sm:$0xff] %v891
        %s924 = scalar_lea.vmem [#allocation2], 48
        %v925 = vld [vmem:[%s924] sm:$0xff]
        %v926 = vld [vmem:[%s924 + $0x8] sm:$0xff]
        %v927 = vld [vmem:[%s924 + $0x18] sm:$0xff]
        %v928 = vld [vmem:[%s924 + $0x20] sm:$0xff]
        %v929 = vld [vmem:[%s924 + $0x30] sm:$0xff]
        %v930 = vld [vmem:[%s924 + $0x38] sm:$0xff]
        %v931 = vld [vmem:[%s924 + $0x48] sm:$0xff]
        %v932 = vld [vmem:[%s924 + $0x50] sm:$0xff]
        %v933 = vld [vmem:[%s924 + $0x60] sm:$0xff]
        %v934 = vld [vmem:[%s924 + $0x68] sm:$0xff]
        %v935 = vld [vmem:[%s924 + $0x78] sm:$0xff]
        %v936 = vld [vmem:[%s924 + $0x80] sm:$0xff]
        %v937 = vld [vmem:[%s924 + $0x90] sm:$0xff]
        %v938 = vld [vmem:[%s924 + $0x98] sm:$0xff]
        %v939 = vld [vmem:[%s924 + $0xa8] sm:$0xff]
        %v940 = vld [vmem:[%s924 + $0xb0] sm:$0xff]
        %v941 = vld [vmem:[%s924 + $0xc0] sm:$0xff]
        %v942 = vld [vmem:[%s924 + $0xc8] sm:$0xff]
        %v943 = vld [vmem:[%s924 + $0xd8] sm:$0xff]
        %v944 = vld [vmem:[%s924 + $0xe0] sm:$0xff]
        %v945 = vld [vmem:[%s924 + $0xf0] sm:$0xff]
        %v946 = vld [vmem:[%s924 + $0xf8] sm:$0xff]
        %v947 = vld [vmem:[%s924 + $0x108] sm:$0xff]
        %v948 = vld [vmem:[%s924 + $0x110] sm:$0xff]
        %v949 = vld [vmem:[%s924 + $0x120] sm:$0xff]
        %v950 = vld [vmem:[%s924 + $0x128] sm:$0xff]
        %v951 = vld [vmem:[%s924 + $0x138] sm:$0xff]
        %v952 = vld [vmem:[%s924 + $0x140] sm:$0xff]
        %v953 = vld [vmem:[%s924 + $0x150] sm:$0xff]
        %v954 = vld [vmem:[%s924 + $0x158] sm:$0xff]
        %v955 = vld [vmem:[%s924 + $0x168] sm:$0xff]
        %v956 = vld [vmem:[%s924 + $0x170] sm:$0xff]
        %957 = vst [vmem:[#allocation3 + $0x30] sm:$0xff] %v925
        %958 = vst [vmem:[#allocation3 + $0x78] sm:$0xff] %v926
        %959 = vst [vmem:[#allocation3 + $0xc0] sm:$0xff] %v927
        %960 = vst [vmem:[#allocation3 + $0x108] sm:$0xff] %v928
        %961 = vst [vmem:[#allocation3 + $0x150] sm:$0xff] %v929
        %962 = vst [vmem:[#allocation3 + $0x198] sm:$0xff] %v930
        %963 = vst [vmem:[#allocation3 + $0x1e0] sm:$0xff] %v931
        %964 = vst [vmem:[#allocation3 + $0x228] sm:$0xff] %v932
        %965 = vst [vmem:[#allocation3 + $0x270] sm:$0xff] %v933
        %966 = vst [vmem:[#allocation3 + $0x2b8] sm:$0xff] %v934
        %967 = vst [vmem:[#allocation3 + $0x300] sm:$0xff] %v935
        %968 = vst [vmem:[#allocation3 + $0x348] sm:$0xff] %v936
        %969 = vst [vmem:[#allocation3 + $0x390] sm:$0xff] %v937
        %970 = vst [vmem:[#allocation3 + $0x3d8] sm:$0xff] %v938
        %971 = vst [vmem:[#allocation3 + $0x420] sm:$0xff] %v939
        %972 = vst [vmem:[#allocation3 + $0x468] sm:$0xff] %v940
        %973 = vst [vmem:[#allocation3 + $0x4b0] sm:$0xff] %v941
        %974 = vst [vmem:[#allocation3 + $0x4f8] sm:$0xff] %v942
        %975 = vst [vmem:[#allocation3 + $0x540] sm:$0xff] %v943
        %976 = vst [vmem:[#allocation3 + $0x588] sm:$0xff] %v944
        %977 = vst [vmem:[#allocation3 + $0x5d0] sm:$0xff] %v945
        %978 = vst [vmem:[#allocation3 + $0x618] sm:$0xff] %v946
        %979 = vst [vmem:[#allocation3 + $0x660] sm:$0xff] %v947
        %980 = vst [vmem:[#allocation3 + $0x6a8] sm:$0xff] %v948
        %981 = vst [vmem:[#allocation3 + $0x6f0] sm:$0xff] %v949
        %982 = vst [vmem:[#allocation3 + $0x738] sm:$0xff] %v950
        %983 = vst [vmem:[#allocation3 + $0x780] sm:$0xff] %v951
        %984 = vst [vmem:[#allocation3 + $0x7c8] sm:$0xff] %v952
        %985 = vst [vmem:[#allocation3 + $0x810] sm:$0xff] %v953
        %986 = vst [vmem:[#allocation3 + $0x858] sm:$0xff] %v954
        %987 = vst [vmem:[#allocation3 + $0x8a0] sm:$0xff] %v955
        %988 = vst [vmem:[#allocation3 + $0x8e8] sm:$0xff] %v956
        %v989 = vld [vmem:[%s924 + $0x1] sm:$0xff]
        %v990 = vld [vmem:[%s924 + $0x9] sm:$0xff]
        %v991 = vld [vmem:[%s924 + $0x19] sm:$0xff]
        %v992 = vld [vmem:[%s924 + $0x21] sm:$0xff]
        %v993 = vld [vmem:[%s924 + $0x31] sm:$0xff]
        %v994 = vld [vmem:[%s924 + $0x39] sm:$0xff]
        %v995 = vld [vmem:[%s924 + $0x49] sm:$0xff]
        %v996 = vld [vmem:[%s924 + $0x51] sm:$0xff]
        %v997 = vld [vmem:[%s924 + $0x61] sm:$0xff]
        %v998 = vld [vmem:[%s924 + $0x69] sm:$0xff]
        %v999 = vld [vmem:[%s924 + $0x79] sm:$0xff]
        %v1000 = vld [vmem:[%s924 + $0x81] sm:$0xff]
        %v1001 = vld [vmem:[%s924 + $0x91] sm:$0xff]
        %v1002 = vld [vmem:[%s924 + $0x99] sm:$0xff]
        %v1003 = vld [vmem:[%s924 + $0xa9] sm:$0xff]
        %v1004 = vld [vmem:[%s924 + $0xb1] sm:$0xff]
        %v1005 = vld [vmem:[%s924 + $0xc1] sm:$0xff]
        %v1006 = vld [vmem:[%s924 + $0xc9] sm:$0xff]
        %v1007 = vld [vmem:[%s924 + $0xd9] sm:$0xff]
        %v1008 = vld [vmem:[%s924 + $0xe1] sm:$0xff]
        %v1009 = vld [vmem:[%s924 + $0xf1] sm:$0xff]
        %v1010 = vld [vmem:[%s924 + $0xf9] sm:$0xff]
        %v1011 = vld [vmem:[%s924 + $0x109] sm:$0xff]
        %v1012 = vld [vmem:[%s924 + $0x111] sm:$0xff]
        %v1013 = vld [vmem:[%s924 + $0x121] sm:$0xff]
        %v1014 = vld [vmem:[%s924 + $0x129] sm:$0xff]
        %v1015 = vld [vmem:[%s924 + $0x139] sm:$0xff]
        %v1016 = vld [vmem:[%s924 + $0x141] sm:$0xff]
        %v1017 = vld [vmem:[%s924 + $0x151] sm:$0xff]
        %v1018 = vld [vmem:[%s924 + $0x159] sm:$0xff]
        %v1019 = vld [vmem:[%s924 + $0x169] sm:$0xff]
        %v1020 = vld [vmem:[%s924 + $0x171] sm:$0xff]
        %1021 = vst [vmem:[#allocation3 + $0x38] sm:$0xff] %v989
        %1022 = vst [vmem:[#allocation3 + $0x80] sm:$0xff] %v990
        %1023 = vst [vmem:[#allocation3 + $0xc8] sm:$0xff] %v991
        %1024 = vst [vmem:[#allocation3 + $0x110] sm:$0xff] %v992
        %1025 = vst [vmem:[#allocation3 + $0x158] sm:$0xff] %v993
        %1026 = vst [vmem:[#allocation3 + $0x1a0] sm:$0xff] %v994
        %1027 = vst [vmem:[#allocation3 + $0x1e8] sm:$0xff] %v995
        %1028 = vst [vmem:[#allocation3 + $0x230] sm:$0xff] %v996
        %1029 = vst [vmem:[#allocation3 + $0x278] sm:$0xff] %v997
        %1030 = vst [vmem:[#allocation3 + $0x2c0] sm:$0xff] %v998
        %1031 = vst [vmem:[#allocation3 + $0x308] sm:$0xff] %v999
        %1032 = vst [vmem:[#allocation3 + $0x350] sm:$0xff] %v1000
        %1033 = vst [vmem:[#allocation3 + $0x398] sm:$0xff] %v1001
        %1034 = vst [vmem:[#allocation3 + $0x3e0] sm:$0xff] %v1002
        %1035 = vst [vmem:[#allocation3 + $0x428] sm:$0xff] %v1003
        %1036 = vst [vmem:[#allocation3 + $0x470] sm:$0xff] %v1004
        %1037 = vst [vmem:[#allocation3 + $0x4b8] sm:$0xff] %v1005
        %1038 = vst [vmem:[#allocation3 + $0x500] sm:$0xff] %v1006
        %1039 = vst [vmem:[#allocation3 + $0x548] sm:$0xff] %v1007
        %1040 = vst [vmem:[#allocation3 + $0x590] sm:$0xff] %v1008
        %1041 = vst [vmem:[#allocation3 + $0x5d8] sm:$0xff] %v1009
        %1042 = vst [vmem:[#allocation3 + $0x620] sm:$0xff] %v1010
        %1043 = vst [vmem:[#allocation3 + $0x668] sm:$0xff] %v1011
        %1044 = vst [vmem:[#allocation3 + $0x6b0] sm:$0xff] %v1012
        %1045 = vst [vmem:[#allocation3 + $0x6f8] sm:$0xff] %v1013
        %1046 = vst [vmem:[#allocation3 + $0x740] sm:$0xff] %v1014
        %1047 = vst [vmem:[#allocation3 + $0x788] sm:$0xff] %v1015
        %1048 = vst [vmem:[#allocation3 + $0x7d0] sm:$0xff] %v1016
        %1049 = vst [vmem:[#allocation3 + $0x818] sm:$0xff] %v1017
        %1050 = vst [vmem:[#allocation3 + $0x860] sm:$0xff] %v1018
        %1051 = vst [vmem:[#allocation3 + $0x8a8] sm:$0xff] %v1019
        %1052 = vst [vmem:[#allocation3 + $0x8f0] sm:$0xff] %v1020
        %v1053 = vld [vmem:[%s924 + $0x2] sm:$0xff]
        %v1054 = vld [vmem:[%s924 + $0xa] sm:$0xff]
        %v1055 = vld [vmem:[%s924 + $0x1a] sm:$0xff]
        %v1056 = vld [vmem:[%s924 + $0x22] sm:$0xff]
        %v1057 = vld [vmem:[%s924 + $0x32] sm:$0xff]
        %v1058 = vld [vmem:[%s924 + $0x3a] sm:$0xff]
        %v1059 = vld [vmem:[%s924 + $0x4a] sm:$0xff]
        %v1060 = vld [vmem:[%s924 + $0x52] sm:$0xff]
        %v1061 = vld [vmem:[%s924 + $0x62] sm:$0xff]
        %v1062 = vld [vmem:[%s924 + $0x6a] sm:$0xff]
        %v1063 = vld [vmem:[%s924 + $0x7a] sm:$0xff]
        %v1064 = vld [vmem:[%s924 + $0x82] sm:$0xff]
        %v1065 = vld [vmem:[%s924 + $0x92] sm:$0xff]
        %v1066 = vld [vmem:[%s924 + $0x9a] sm:$0xff]
        %v1067 = vld [vmem:[%s924 + $0xaa] sm:$0xff]
        %v1068 = vld [vmem:[%s924 + $0xb2] sm:$0xff]
        %v1069 = vld [vmem:[%s924 + $0xc2] sm:$0xff]
        %v1070 = vld [vmem:[%s924 + $0xca] sm:$0xff]
        %v1071 = vld [vmem:[%s924 + $0xda] sm:$0xff]
        %v1072 = vld [vmem:[%s924 + $0xe2] sm:$0xff]
        %v1073 = vld [vmem:[%s924 + $0xf2] sm:$0xff]
        %v1074 = vld [vmem:[%s924 + $0xfa] sm:$0xff]
        %v1075 = vld [vmem:[%s924 + $0x10a] sm:$0xff]
        %v1076 = vld [vmem:[%s924 + $0x112] sm:$0xff]
        %v1077 = vld [vmem:[%s924 + $0x122] sm:$0xff]
        %v1078 = vld [vmem:[%s924 + $0x12a] sm:$0xff]
        %v1079 = vld [vmem:[%s924 + $0x13a] sm:$0xff]
        %v1080 = vld [vmem:[%s924 + $0x142] sm:$0xff]
        %v1081 = vld [vmem:[%s924 + $0x152] sm:$0xff]
        %v1082 = vld [vmem:[%s924 + $0x15a] sm:$0xff]
        %v1083 = vld [vmem:[%s924 + $0x16a] sm:$0xff]
        %v1084 = vld [vmem:[%s924 + $0x172] sm:$0xff]
        %1085 = vst [vmem:[#allocation3 + $0x40] sm:$0xff] %v1053
        %1086 = vst [vmem:[#allocation3 + $0x88] sm:$0xff] %v1054
        %1087 = vst [vmem:[#allocation3 + $0xd0] sm:$0xff] %v1055
        %1088 = vst [vmem:[#allocation3 + $0x118] sm:$0xff] %v1056
        %1089 = vst [vmem:[#allocation3 + $0x160] sm:$0xff] %v1057
        %1090 = vst [vmem:[#allocation3 + $0x1a8] sm:$0xff] %v1058
        %1091 = vst [vmem:[#allocation3 + $0x1f0] sm:$0xff] %v1059
        %1092 = vst [vmem:[#allocation3 + $0x238] sm:$0xff] %v1060
        %1093 = vst [vmem:[#allocation3 + $0x280] sm:$0xff] %v1061
        %1094 = vst [vmem:[#allocation3 + $0x2c8] sm:$0xff] %v1062
        %1095 = vst [vmem:[#allocation3 + $0x310] sm:$0xff] %v1063
        %1096 = vst [vmem:[#allocation3 + $0x358] sm:$0xff] %v1064
        %1097 = vst [vmem:[#allocation3 + $0x3a0] sm:$0xff] %v1065
        %1098 = vst [vmem:[#allocation3 + $0x3e8] sm:$0xff] %v1066
        %1099 = vst [vmem:[#allocation3 + $0x430] sm:$0xff] %v1067
        %1100 = vst [vmem:[#allocation3 + $0x478] sm:$0xff] %v1068
        %1101 = vst [vmem:[#allocation3 + $0x4c0] sm:$0xff] %v1069
        %1102 = vst [vmem:[#allocation3 + $0x508] sm:$0xff] %v1070
        %1103 = vst [vmem:[#allocation3 + $0x550] sm:$0xff] %v1071
        %1104 = vst [vmem:[#allocation3 + $0x598] sm:$0xff] %v1072
        %1105 = vst [vmem:[#allocation3 + $0x5e0] sm:$0xff] %v1073
        %1106 = vst [vmem:[#allocation3 + $0x628] sm:$0xff] %v1074
        %1107 = vst [vmem:[#allocation3 + $0x670] sm:$0xff] %v1075
        %1108 = vst [vmem:[#allocation3 + $0x6b8] sm:$0xff] %v1076
        %1109 = vst [vmem:[#allocation3 + $0x700] sm:$0xff] %v1077
        %1110 = vst [vmem:[#allocation3 + $0x748] sm:$0xff] %v1078
        %1111 = vst [vmem:[#allocation3 + $0x790] sm:$0xff] %v1079
        %1112 = vst [vmem:[#allocation3 + $0x7d8] sm:$0xff] %v1080
        %1113 = vst [vmem:[#allocation3 + $0x820] sm:$0xff] %v1081
        %1114 = vst [vmem:[#allocation3 + $0x868] sm:$0xff] %v1082
        %1115 = vst [vmem:[#allocation3 + $0x8b0] sm:$0xff] %v1083
        %1116 = vst [vmem:[#allocation3 + $0x8f8] sm:$0xff] %v1084
        %v1117 = vld [vmem:[#allocation3] sm:$0xff]
        %v1118 = vld [vmem:[#allocation3 + $0x8] sm:$0xff]
        %v1119 = vld [vmem:[#allocation3 + $0x10] sm:$0xff]
        %v1120 = vld [vmem:[#allocation3 + $0x18] sm:$0xff]
        %v1121 = vld [vmem:[#allocation3 + $0x20] sm:$0xff]
        %v1122 = vld [vmem:[#allocation3 + $0x28] sm:$0xff]
        %v1123 = vld [vmem:[#allocation3 + $0x30] sm:$0xff]
        %v1124 = vld [vmem:[#allocation3 + $0x38] sm:$0xff]
        %v1125 = vld [vmem:[#allocation3 + $0x40] sm:$0xff]
        %v1126 = vld [vmem:[#allocation3 + $0x48] sm:$0xff]
        %v1127 = vld [vmem:[#allocation3 + $0x50] sm:$0xff]
        %v1128 = vld [vmem:[#allocation3 + $0x58] sm:$0xff]
        %v1129 = vld [vmem:[#allocation3 + $0x60] sm:$0xff]
        %v1130 = vld [vmem:[#allocation3 + $0x68] sm:$0xff]
        %v1131 = vld [vmem:[#allocation3 + $0x70] sm:$0xff]
        %v1132 = vld [vmem:[#allocation3 + $0x78] sm:$0xff]
        %v1133 = vld [vmem:[#allocation3 + $0x80] sm:$0xff]
        %v1134 = vld [vmem:[#allocation3 + $0x88] sm:$0xff]
        %v1135 = vld [vmem:[#allocation3 + $0x90] sm:$0xff]
        %v1136 = vld [vmem:[#allocation3 + $0x98] sm:$0xff]
        %v1137 = vld [vmem:[#allocation3 + $0xa0] sm:$0xff]
        %v1138 = vld [vmem:[#allocation3 + $0xa8] sm:$0xff]
        %v1139 = vld [vmem:[#allocation3 + $0xb0] sm:$0xff]
        %v1140 = vld [vmem:[#allocation3 + $0xb8] sm:$0xff]
        %v1141 = vld [vmem:[#allocation3 + $0xc0] sm:$0xff]
        %v1142 = vld [vmem:[#allocation3 + $0xc8] sm:$0xff]
        %v1143 = vld [vmem:[#allocation3 + $0xd0] sm:$0xff]
        %v1144 = vld [vmem:[#allocation3 + $0xd8] sm:$0xff]
        %v1145 = vld [vmem:[#allocation3 + $0xe0] sm:$0xff]
        %v1146 = vld [vmem:[#allocation3 + $0xe8] sm:$0xff]
        %v1147 = vld [vmem:[#allocation3 + $0xf0] sm:$0xff]
        %v1148 = vld [vmem:[#allocation3 + $0xf8] sm:$0xff]
        %v1149 = vld [vmem:[#allocation3 + $0x100] sm:$0xff]
        %v1150 = vld [vmem:[#allocation3 + $0x108] sm:$0xff]
        %v1151 = vld [vmem:[#allocation3 + $0x110] sm:$0xff]
        %v1152 = vld [vmem:[#allocation3 + $0x118] sm:$0xff]
        %v1153 = vld [vmem:[#allocation3 + $0x120] sm:$0xff]
        %v1154 = vld [vmem:[#allocation3 + $0x128] sm:$0xff]
        %v1155 = vld [vmem:[#allocation3 + $0x130] sm:$0xff]
        %v1156 = vld [vmem:[#allocation3 + $0x138] sm:$0xff]
        %v1157 = vld [vmem:[#allocation3 + $0x140] sm:$0xff]
        %v1158 = vld [vmem:[#allocation3 + $0x148] sm:$0xff]
        %v1159 = vld [vmem:[#allocation3 + $0x150] sm:$0xff]
        %v1160 = vld [vmem:[#allocation3 + $0x158] sm:$0xff]
        %v1161 = vld [vmem:[#allocation3 + $0x160] sm:$0xff]
        %v1162 = vld [vmem:[#allocation3 + $0x168] sm:$0xff]
        %v1163 = vld [vmem:[#allocation3 + $0x170] sm:$0xff]
        %v1164 = vld [vmem:[#allocation3 + $0x178] sm:$0xff]
        %v1165 = vld [vmem:[#allocation3 + $0x180] sm:$0xff]
        %v1166 = vld [vmem:[#allocation3 + $0x188] sm:$0xff]
        %v1167 = vld [vmem:[#allocation3 + $0x190] sm:$0xff]
        %v1168 = vld [vmem:[#allocation3 + $0x198] sm:$0xff]
        %v1169 = vld [vmem:[#allocation3 + $0x1a0] sm:$0xff]
        %v1170 = vld [vmem:[#allocation3 + $0x1a8] sm:$0xff]
        %v1171 = vld [vmem:[#allocation3 + $0x1b0] sm:$0xff]
        %v1172 = vld [vmem:[#allocation3 + $0x1b8] sm:$0xff]
        %v1173 = vld [vmem:[#allocation3 + $0x1c0] sm:$0xff]
        %v1174 = vld [vmem:[#allocation3 + $0x1c8] sm:$0xff]
        %v1175 = vld [vmem:[#allocation3 + $0x1d0] sm:$0xff]
        %v1176 = vld [vmem:[#allocation3 + $0x1d8] sm:$0xff]
        %v1177 = vld [vmem:[#allocation3 + $0x1e0] sm:$0xff]
        %v1178 = vld [vmem:[#allocation3 + $0x1e8] sm:$0xff]
        %v1179 = vld [vmem:[#allocation3 + $0x1f0] sm:$0xff]
        %v1180 = vld [vmem:[#allocation3 + $0x1f8] sm:$0xff]
        %v1181 = vld [vmem:[#allocation3 + $0x200] sm:$0xff]
        %v1182 = vld [vmem:[#allocation3 + $0x208] sm:$0xff]
        %v1183 = vld [vmem:[#allocation3 + $0x210] sm:$0xff]
        %v1184 = vld [vmem:[#allocation3 + $0x218] sm:$0xff]
        %v1185 = vld [vmem:[#allocation3 + $0x220] sm:$0xff]
        %v1186 = vld [vmem:[#allocation3 + $0x228] sm:$0xff]
        %v1187 = vld [vmem:[#allocation3 + $0x230] sm:$0xff]
        %v1188 = vld [vmem:[#allocation3 + $0x238] sm:$0xff]
        %v1189 = vld [vmem:[#allocation3 + $0x240] sm:$0xff]
        %v1190 = vld [vmem:[#allocation3 + $0x248] sm:$0xff]
        %v1191 = vld [vmem:[#allocation3 + $0x250] sm:$0xff]
        %v1192 = vld [vmem:[#allocation3 + $0x258] sm:$0xff]
        %v1193 = vld [vmem:[#allocation3 + $0x260] sm:$0xff]
        %v1194 = vld [vmem:[#allocation3 + $0x268] sm:$0xff]
        %v1195 = vld [vmem:[#allocation3 + $0x270] sm:$0xff]
        %v1196 = vld [vmem:[#allocation3 + $0x278] sm:$0xff]
        %v1197 = vld [vmem:[#allocation3 + $0x280] sm:$0xff]
        %v1198 = vld [vmem:[#allocation3 + $0x288] sm:$0xff]
        %v1199 = vld [vmem:[#allocation3 + $0x290] sm:$0xff]
        %v1200 = vld [vmem:[#allocation3 + $0x298] sm:$0xff]
        %v1201 = vld [vmem:[#allocation3 + $0x2a0] sm:$0xff]
        %v1202 = vld [vmem:[#allocation3 + $0x2a8] sm:$0xff]
        %v1203 = vld [vmem:[#allocation3 + $0x2b0] sm:$0xff]
        %v1204 = vld [vmem:[#allocation3 + $0x2b8] sm:$0xff]
        %v1205 = vld [vmem:[#allocation3 + $0x2c0] sm:$0xff]
        %v1206 = vld [vmem:[#allocation3 + $0x2c8] sm:$0xff]
        %v1207 = vld [vmem:[#allocation3 + $0x2d0] sm:$0xff]
        %v1208 = vld [vmem:[#allocation3 + $0x2d8] sm:$0xff]
        %v1209 = vld [vmem:[#allocation3 + $0x2e0] sm:$0xff]
        %v1210 = vld [vmem:[#allocation3 + $0x2e8] sm:$0xff]
        %v1211 = vld [vmem:[#allocation3 + $0x2f0] sm:$0xff]
        %v1212 = vld [vmem:[#allocation3 + $0x2f8] sm:$0xff]
        %v1213 = vld [vmem:[#allocation3 + $0x300] sm:$0xff]
        %v1214 = vld [vmem:[#allocation3 + $0x308] sm:$0xff]
        %v1215 = vld [vmem:[#allocation3 + $0x310] sm:$0xff]
        %v1216 = vld [vmem:[#allocation3 + $0x318] sm:$0xff]
        %v1217 = vld [vmem:[#allocation3 + $0x320] sm:$0xff]
        %v1218 = vld [vmem:[#allocation3 + $0x328] sm:$0xff]
        %v1219 = vld [vmem:[#allocation3 + $0x330] sm:$0xff]
        %v1220 = vld [vmem:[#allocation3 + $0x338] sm:$0xff]
        %v1221 = vld [vmem:[#allocation3 + $0x340] sm:$0xff]
        %v1222 = vld [vmem:[#allocation3 + $0x348] sm:$0xff]
        %v1223 = vld [vmem:[#allocation3 + $0x350] sm:$0xff]
        %v1224 = vld [vmem:[#allocation3 + $0x358] sm:$0xff]
        %v1225 = vld [vmem:[#allocation3 + $0x360] sm:$0xff]
        %v1226 = vld [vmem:[#allocation3 + $0x368] sm:$0xff]
        %v1227 = vld [vmem:[#allocation3 + $0x370] sm:$0xff]
        %v1228 = vld [vmem:[#allocation3 + $0x378] sm:$0xff]
        %v1229 = vld [vmem:[#allocation3 + $0x380] sm:$0xff]
        %v1230 = vld [vmem:[#allocation3 + $0x388] sm:$0xff]
        %v1231 = vld [vmem:[#allocation3 + $0x390] sm:$0xff]
        %v1232 = vld [vmem:[#allocation3 + $0x398] sm:$0xff]
        %v1233 = vld [vmem:[#allocation3 + $0x3a0] sm:$0xff]
        %v1234 = vld [vmem:[#allocation3 + $0x3a8] sm:$0xff]
        %v1235 = vld [vmem:[#allocation3 + $0x3b0] sm:$0xff]
        %v1236 = vld [vmem:[#allocation3 + $0x3b8] sm:$0xff]
        %v1237 = vld [vmem:[#allocation3 + $0x3c0] sm:$0xff]
        %v1238 = vld [vmem:[#allocation3 + $0x3c8] sm:$0xff]
        %v1239 = vld [vmem:[#allocation3 + $0x3d0] sm:$0xff]
        %v1240 = vld [vmem:[#allocation3 + $0x3d8] sm:$0xff]
        %v1241 = vld [vmem:[#allocation3 + $0x3e0] sm:$0xff]
        %v1242 = vld [vmem:[#allocation3 + $0x3e8] sm:$0xff]
        %v1243 = vld [vmem:[#allocation3 + $0x3f0] sm:$0xff]
        %v1244 = vld [vmem:[#allocation3 + $0x3f8] sm:$0xff]
        %v1245 = vld [vmem:[#allocation3 + $0x400] sm:$0xff]
        %v1246 = vld [vmem:[#allocation3 + $0x408] sm:$0xff]
        %v1247 = vld [vmem:[#allocation3 + $0x410] sm:$0xff]
        %v1248 = vld [vmem:[#allocation3 + $0x418] sm:$0xff]
        %v1249 = vld [vmem:[#allocation3 + $0x420] sm:$0xff]
        %v1250 = vld [vmem:[#allocation3 + $0x428] sm:$0xff]
        %v1251 = vld [vmem:[#allocation3 + $0x430] sm:$0xff]
        %v1252 = vld [vmem:[#allocation3 + $0x438] sm:$0xff]
        %v1253 = vld [vmem:[#allocation3 + $0x440] sm:$0xff]
        %v1254 = vld [vmem:[#allocation3 + $0x448] sm:$0xff]
        %v1255 = vld [vmem:[#allocation3 + $0x450] sm:$0xff]
        %v1256 = vld [vmem:[#allocation3 + $0x458] sm:$0xff]
        %v1257 = vld [vmem:[#allocation3 + $0x460] sm:$0xff]
        %v1258 = vld [vmem:[#allocation3 + $0x468] sm:$0xff]
        %v1259 = vld [vmem:[#allocation3 + $0x470] sm:$0xff]
        %v1260 = vld [vmem:[#allocation3 + $0x478] sm:$0xff]
        %v1261 = vld [vmem:[#allocation3 + $0x480] sm:$0xff]
        %v1262 = vld [vmem:[#allocation3 + $0x488] sm:$0xff]
        %v1263 = vld [vmem:[#allocation3 + $0x490] sm:$0xff]
        %v1264 = vld [vmem:[#allocation3 + $0x498] sm:$0xff]
        %v1265 = vld [vmem:[#allocation3 + $0x4a0] sm:$0xff]
        %v1266 = vld [vmem:[#allocation3 + $0x4a8] sm:$0xff]
        %v1267 = vld [vmem:[#allocation3 + $0x4b0] sm:$0xff]
        %v1268 = vld [vmem:[#allocation3 + $0x4b8] sm:$0xff]
        %v1269 = vld [vmem:[#allocation3 + $0x4c0] sm:$0xff]
        %v1270 = vld [vmem:[#allocation3 + $0x4c8] sm:$0xff]
        %v1271 = vld [vmem:[#allocation3 + $0x4d0] sm:$0xff]
        %v1272 = vld [vmem:[#allocation3 + $0x4d8] sm:$0xff]
        %v1273 = vld [vmem:[#allocation3 + $0x4e0] sm:$0xff]
        %v1274 = vld [vmem:[#allocation3 + $0x4e8] sm:$0xff]
        %v1275 = vld [vmem:[#allocation3 + $0x4f0] sm:$0xff]
        %v1276 = vld [vmem:[#allocation3 + $0x4f8] sm:$0xff]
        %v1277 = vld [vmem:[#allocation3 + $0x500] sm:$0xff]
        %v1278 = vld [vmem:[#allocation3 + $0x508] sm:$0xff]
        %v1279 = vld [vmem:[#allocation3 + $0x510] sm:$0xff]
        %v1280 = vld [vmem:[#allocation3 + $0x518] sm:$0xff]
        %v1281 = vld [vmem:[#allocation3 + $0x520] sm:$0xff]
        %v1282 = vld [vmem:[#allocation3 + $0x528] sm:$0xff]
        %v1283 = vld [vmem:[#allocation3 + $0x530] sm:$0xff]
        %v1284 = vld [vmem:[#allocation3 + $0x538] sm:$0xff]
        %v1285 = vld [vmem:[#allocation3 + $0x540] sm:$0xff]
        %v1286 = vld [vmem:[#allocation3 + $0x548] sm:$0xff]
        %v1287 = vld [vmem:[#allocation3 + $0x550] sm:$0xff]
        %v1288 = vld [vmem:[#allocation3 + $0x558] sm:$0xff]
        %v1289 = vld [vmem:[#allocation3 + $0x560] sm:$0xff]
        %v1290 = vld [vmem:[#allocation3 + $0x568] sm:$0xff]
        %v1291 = vld [vmem:[#allocation3 + $0x570] sm:$0xff]
        %v1292 = vld [vmem:[#allocation3 + $0x578] sm:$0xff]
        %v1293 = vld [vmem:[#allocation3 + $0x580] sm:$0xff]
        %v1294 = vld [vmem:[#allocation3 + $0x588] sm:$0xff]
        %v1295 = vld [vmem:[#allocation3 + $0x590] sm:$0xff]
        %v1296 = vld [vmem:[#allocation3 + $0x598] sm:$0xff]
        %v1297 = vld [vmem:[#allocation3 + $0x5a0] sm:$0xff]
        %v1298 = vld [vmem:[#allocation3 + $0x5a8] sm:$0xff]
        %v1299 = vld [vmem:[#allocation3 + $0x5b0] sm:$0xff]
        %v1300 = vld [vmem:[#allocation3 + $0x5b8] sm:$0xff]
        %v1301 = vld [vmem:[#allocation3 + $0x5c0] sm:$0xff]
        %v1302 = vld [vmem:[#allocation3 + $0x5c8] sm:$0xff]
        %v1303 = vld [vmem:[#allocation3 + $0x5d0] sm:$0xff]
        %v1304 = vld [vmem:[#allocation3 + $0x5d8] sm:$0xff]
        %v1305 = vld [vmem:[#allocation3 + $0x5e0] sm:$0xff]
        %v1306 = vld [vmem:[#allocation3 + $0x5e8] sm:$0xff]
        %v1307 = vld [vmem:[#allocation3 + $0x5f0] sm:$0xff]
        %v1308 = vld [vmem:[#allocation3 + $0x5f8] sm:$0xff]
        %v1309 = vld [vmem:[#allocation3 + $0x600] sm:$0xff]
        %v1310 = vld [vmem:[#allocation3 + $0x608] sm:$0xff]
        %v1311 = vld [vmem:[#allocation3 + $0x610] sm:$0xff]
        %v1312 = vld [vmem:[#allocation3 + $0x618] sm:$0xff]
        %v1313 = vld [vmem:[#allocation3 + $0x620] sm:$0xff]
        %v1314 = vld [vmem:[#allocation3 + $0x628] sm:$0xff]
        %v1315 = vld [vmem:[#allocation3 + $0x630] sm:$0xff]
        %v1316 = vld [vmem:[#allocation3 + $0x638] sm:$0xff]
        %v1317 = vld [vmem:[#allocation3 + $0x640] sm:$0xff]
        %v1318 = vld [vmem:[#allocation3 + $0x648] sm:$0xff]
        %v1319 = vld [vmem:[#allocation3 + $0x650] sm:$0xff]
        %v1320 = vld [vmem:[#allocation3 + $0x658] sm:$0xff]
        %v1321 = vld [vmem:[#allocation3 + $0x660] sm:$0xff]
        %v1322 = vld [vmem:[#allocation3 + $0x668] sm:$0xff]
        %v1323 = vld [vmem:[#allocation3 + $0x670] sm:$0xff]
        %v1324 = vld [vmem:[#allocation3 + $0x678] sm:$0xff]
        %v1325 = vld [vmem:[#allocation3 + $0x680] sm:$0xff]
        %v1326 = vld [vmem:[#allocation3 + $0x688] sm:$0xff]
        %v1327 = vld [vmem:[#allocation3 + $0x690] sm:$0xff]
        %v1328 = vld [vmem:[#allocation3 + $0x698] sm:$0xff]
        %v1329 = vld [vmem:[#allocation3 + $0x6a0] sm:$0xff]
        %v1330 = vld [vmem:[#allocation3 + $0x6a8] sm:$0xff]
        %v1331 = vld [vmem:[#allocation3 + $0x6b0] sm:$0xff]
        %v1332 = vld [vmem:[#allocation3 + $0x6b8] sm:$0xff]
        %v1333 = vld [vmem:[#allocation3 + $0x6c0] sm:$0xff]
        %v1334 = vld [vmem:[#allocation3 + $0x6c8] sm:$0xff]
        %v1335 = vld [vmem:[#allocation3 + $0x6d0] sm:$0xff]
        %v1336 = vld [vmem:[#allocation3 + $0x6d8] sm:$0xff]
        %v1337 = vld [vmem:[#allocation3 + $0x6e0] sm:$0xff]
        %v1338 = vld [vmem:[#allocation3 + $0x6e8] sm:$0xff]
        %v1339 = vld [vmem:[#allocation3 + $0x6f0] sm:$0xff]
        %v1340 = vld [vmem:[#allocation3 + $0x6f8] sm:$0xff]
        %v1341 = vld [vmem:[#allocation3 + $0x700] sm:$0xff]
        %v1342 = vld [vmem:[#allocation3 + $0x708] sm:$0xff]
        %v1343 = vld [vmem:[#allocation3 + $0x710] sm:$0xff]
        %v1344 = vld [vmem:[#allocation3 + $0x718] sm:$0xff]
        %v1345 = vld [vmem:[#allocation3 + $0x720] sm:$0xff]
        %v1346 = vld [vmem:[#allocation3 + $0x728] sm:$0xff]
        %v1347 = vld [vmem:[#allocation3 + $0x730] sm:$0xff]
        %v1348 = vld [vmem:[#allocation3 + $0x738] sm:$0xff]
        %v1349 = vld [vmem:[#allocation3 + $0x740] sm:$0xff]
        %v1350 = vld [vmem:[#allocation3 + $0x748] sm:$0xff]
        %v1351 = vld [vmem:[#allocation3 + $0x750] sm:$0xff]
        %v1352 = vld [vmem:[#allocation3 + $0x758] sm:$0xff]
        %v1353 = vld [vmem:[#allocation3 + $0x760] sm:$0xff]
        %v1354 = vld [vmem:[#allocation3 + $0x768] sm:$0xff]
        %v1355 = vld [vmem:[#allocation3 + $0x770] sm:$0xff]
        %v1356 = vld [vmem:[#allocation3 + $0x778] sm:$0xff]
        %v1357 = vld [vmem:[#allocation3 + $0x780] sm:$0xff]
        %v1358 = vld [vmem:[#allocation3 + $0x788] sm:$0xff]
        %v1359 = vld [vmem:[#allocation3 + $0x790] sm:$0xff]
        %v1360 = vld [vmem:[#allocation3 + $0x798] sm:$0xff]
        %v1361 = vld [vmem:[#allocation3 + $0x7a0] sm:$0xff]
        %v1362 = vld [vmem:[#allocation3 + $0x7a8] sm:$0xff]
        %v1363 = vld [vmem:[#allocation3 + $0x7b0] sm:$0xff]
        %v1364 = vld [vmem:[#allocation3 + $0x7b8] sm:$0xff]
        %v1365 = vld [vmem:[#allocation3 + $0x7c0] sm:$0xff]
        %v1366 = vld [vmem:[#allocation3 + $0x7c8] sm:$0xff]
        %v1367 = vld [vmem:[#allocation3 + $0x7d0] sm:$0xff]
        %v1368 = vld [vmem:[#allocation3 + $0x7d8] sm:$0xff]
        %v1369 = vld [vmem:[#allocation3 + $0x7e0] sm:$0xff]
        %v1370 = vld [vmem:[#allocation3 + $0x7e8] sm:$0xff]
        %v1371 = vld [vmem:[#allocation3 + $0x7f0] sm:$0xff]
        %v1372 = vld [vmem:[#allocation3 + $0x7f8] sm:$0xff]
        %v1373 = vld [vmem:[#allocation3 + $0x800] sm:$0xff]
        %v1374 = vld [vmem:[#allocation3 + $0x808] sm:$0xff]
        %v1375 = vld [vmem:[#allocation3 + $0x810] sm:$0xff]
        %v1376 = vld [vmem:[#allocation3 + $0x818] sm:$0xff]
        %v1377 = vld [vmem:[#allocation3 + $0x820] sm:$0xff]
        %v1378 = vld [vmem:[#allocation3 + $0x828] sm:$0xff]
        %v1379 = vld [vmem:[#allocation3 + $0x830] sm:$0xff]
        %v1380 = vld [vmem:[#allocation3 + $0x838] sm:$0xff]
        %v1381 = vld [vmem:[#allocation3 + $0x840] sm:$0xff]
        %v1382 = vld [vmem:[#allocation3 + $0x848] sm:$0xff]
        %v1383 = vld [vmem:[#allocation3 + $0x850] sm:$0xff]
        %v1384 = vld [vmem:[#allocation3 + $0x858] sm:$0xff]
        %v1385 = vld [vmem:[#allocation3 + $0x860] sm:$0xff]
        %v1386 = vld [vmem:[#allocation3 + $0x868] sm:$0xff]
        %v1387 = vld [vmem:[#allocation3 + $0x870] sm:$0xff]
        %v1388 = vld [vmem:[#allocation3 + $0x878] sm:$0xff]
        %v1389 = vld [vmem:[#allocation3 + $0x880] sm:$0xff]
        %v1390 = vld [vmem:[#allocation3 + $0x888] sm:$0xff]
        %v1391 = vld [vmem:[#allocation3 + $0x890] sm:$0xff]
        %v1392 = vld [vmem:[#allocation3 + $0x898] sm:$0xff]
        %v1393 = vld [vmem:[#allocation3 + $0x8a0] sm:$0xff]
        %v1394 = vld [vmem:[#allocation3 + $0x8a8] sm:$0xff]
        %v1395 = vld [vmem:[#allocation3 + $0x8b0] sm:$0xff]
        %v1396 = vld [vmem:[#allocation3 + $0x8b8] sm:$0xff]
        %v1397 = vld [vmem:[#allocation3 + $0x8c0] sm:$0xff]
        %v1398 = vld [vmem:[#allocation3 + $0x8c8] sm:$0xff]
        %v1399 = vld [vmem:[#allocation3 + $0x8d0] sm:$0xff]
        %v1400 = vld [vmem:[#allocation3 + $0x8d8] sm:$0xff]
        %v1401 = vld [vmem:[#allocation3 + $0x8e0] sm:$0xff]
        %v1402 = vld [vmem:[#allocation3 + $0x8e8] sm:$0xff]
        %v1403 = vld [vmem:[#allocation3 + $0x8f0] sm:$0xff]
        %v1404 = vld [vmem:[#allocation3 + $0x8f8] sm:$0xff]
        %1405 = vmatprep.subr.mxu0 0.0
        %1406 = vmatpush1.msra.mxu0 %v285
        %1407 = vmatprep.subr.mxu0 0.0
        %1408 = vmatpush1.msra.mxu0 %v286
        %1409 = vmatprep.subr.mxu0 0.0
        %1410 = vmatpush1.msra.mxu0 %v287
        %1411 = vmatprep.subr.mxu0 0.0
        %1412 = vmatpush1.msra.mxu0 %v288
        %1413 = vmatprep.subr.mxu0 0.0
        %1414 = vmatpush1.msra.mxu0 %v289
        %1415 = vmatprep.subr.mxu0 0.0
        %1416 = vmatpush1.msra.mxu0 %v290
        %1417 = vmatprep.subr.mxu0 0.0
        %1418 = vmatpush1.msra.mxu0 %v291
        %1419 = vmatprep.subr.mxu0 0.0
        %1420 = vmatpush1.msra.mxu0 %v292
        %1421 = vmatprep.subr.mxu0 0.0
        %1422 = vmatpush1.msra.mxu0 %v293
        %1423 = vmatprep.subr.mxu0 0.0
        %1424 = vmatpush1.msra.mxu0 %v294
        %1425 = vmatprep.subr.mxu0 0.0
        %1426 = vmatpush1.msra.mxu0 %v295
        %1427 = vmatprep.subr.mxu0 0.0
        %1428 = vmatpush1.msra.mxu0 %v296
        %1429 = vmatprep.subr.mxu0 0.0
        %1430 = vmatpush1.msra.mxu0 %v297
        %1431 = vmatprep.subr.mxu0 0.0
        %1432 = vmatpush1.msra.mxu0 %v298
        %1433 = vmatprep.subr.mxu0 0.0
        %1434 = vmatpush1.msra.mxu0 %v299
        %1435 = vmatprep.subr.mxu0 0.0
        %1436 = vmatpush1.msra.mxu0 %v300
        %1437 = vmatprep.subr.mxu0 0.0
        %1438 = vmatpush1.msra.mxu0 %v301
        %1439 = vmatprep.subr.mxu0 0.0
        %1440 = vmatpush1.msra.mxu0 %v302
        %1441 = vmatprep.subr.mxu0 0.0
        %1442 = vmatpush1.msra.mxu0 %v303
        %1443 = vmatprep.subr.mxu0 0.0
        %1444 = vmatpush1.msra.mxu0 %v304
        %1445 = vmatprep.subr.mxu0 0.0
        %1446 = vmatpush1.msra.mxu0 %v305
        %1447 = vmatprep.subr.mxu0 0.0
        %1448 = vmatpush1.msra.mxu0 %v306
        %1449 = vmatprep.subr.mxu0 0.0
        %1450 = vmatpush1.msra.mxu0 %v307
        %1451 = vmatprep.subr.mxu0 0.0
        %1452 = vmatpush1.msra.mxu0 %v308
        %1453 = vmatprep.subr.mxu0 0.0
        %1454 = vmatpush1.msra.mxu0 %v309
        %1455 = vmatprep.subr.mxu0 0.0
        %1456 = vmatpush1.msra.mxu0 %v310
        %1457 = vmatprep.subr.mxu0 0.0
        %1458 = vmatpush1.msra.mxu0 %v311
        %1459 = vmatprep.subr.mxu0 0.0
        %1460 = vmatpush1.msra.mxu0 %v312
        %1461 = vmatprep.subr.mxu0 0.0
        %1462 = vmatpush1.msra.mxu0 %v313
        %1463 = vmatprep.subr.mxu0 0.0
        %1464 = vmatpush1.msra.mxu0 %v314
        %1465 = vmatprep.subr.mxu0 0.0
        %1466 = vmatpush1.msra.mxu0 %v315
        %1467 = vmatprep.subr.mxu0 0.0
        %1468 = vmatpush1.msra.mxu0 %v316
        %1469 = vmatprep.mubr.f32.mxu0 %v1118
        %1470 = vmatmul.mubr.f32.gmra.mrb[0].mxu0 %v1117
        %v1471 = vpop.f32.mrb[0].mxu0
        %v1472 = vadd.f32 0.0, %v1471
        %v1473 = vpop.f32.mrb[0].mxu0
        %1474 = vmatprep.mubr.f32.mxu0 %v1127
        %1475 = vmatmul.mubr.f32.gmra.mrb[0].mxu0 %v1126
        %v1476 = vpop.f32.mrb[0].mxu0
        %v1477 = vadd.f32 0.0, %v1476
        %v1478 = vpop.f32.mrb[0].mxu0
        %1479 = vmatprep.mubr.f32.mxu0 %v1136
        %1480 = vmatmul.mubr.f32.gmra.mrb[0].mxu0 %v1135
        %v1481 = vpop.f32.mrb[0].mxu0
        %v1482 = vadd.f32 0.0, %v1481
        %v1483 = vpop.f32.mrb[0].mxu0
        %1484 = vmatprep.mubr.f32.mxu0 %v1145
        %1485 = vmatmul.mubr.f32.gmra.mrb[0].mxu0 %v1144
        %v1486 = vpop.f32.mrb[0].mxu0
        %v1487 = vadd.f32 0.0, %v1486
        %v1488 = vpop.f32.mrb[0].mxu0
        %1489 = vmatprep.mubr.f32.mxu0 %v1154
        %1490 = vmatmul.mubr.f32.gmra.mrb[0].mxu0 %v1153
        %v1491 = vpop.f32.mrb[0].mxu0
        %v1492 = vadd.f32 0.0, %v1491
        %v1493 = vpop.f32.mrb[0].mxu0
        %1494 = vmatprep.mubr.f32.mxu0 %v1163
        %1495 = vmatmul.mubr.f32.gmra.mrb[0].mxu0 %v1162
        %v1496 = vpop.f32.mrb[0].mxu0
        %v1497 = vadd.f32 0.0, %v1496
        %v1498 = vpop.f32.mrb[0].mxu0
        %1499 = vmatprep.mubr.f32.mxu0 %v1172
        %1500 = vmatmul.mubr.f32.gmra.mrb[0].mxu0 %v1171
        %v1501 = vpop.f32.mrb[0].mxu0
        %v1502 = vadd.f32 0.0, %v1501
        %v1503 = vpop.f32.mrb[0].mxu0
        %1504 = vmatprep.mubr.f32.mxu0 %v1181
        %1505 = vmatmul.mubr.f32.gmra.mrb[0].mxu0 %v1180
        %v1506 = vpop.f32.mrb[0].mxu0
        %v1507 = vadd.f32 0.0, %v1506
        %v1508 = vpop.f32.mrb[0].mxu0
        %1509 = vmatprep.mubr.f32.mxu0 %v1190
        %1510 = vmatmul.mubr.f32.gmra.mrb[0].mxu0 %v1189
        %v1511 = vpop.f32.mrb[0].mxu0
        %v1512 = vadd.f32 0.0, %v1511
        %v1513 = vpop.f32.mrb[0].mxu0
        %1514 = vmatprep.mubr.f32.mxu0 %v1199
        %1515 = vmatmul.mubr.f32.gmra.mrb[0].mxu0 %v1198
        %v1516 = vpop.f32.mrb[0].mxu0
        %v1517 = vadd.f32 0.0, %v1516
        %v1518 = vpop.f32.mrb[0].mxu0
        %1519 = vmatprep.mubr.f32.mxu0 %v1208
        %1520 = vmatmul.mubr.f32.gmra.mrb[0].mxu0 %v1207
        %v1521 = vpop.f32.mrb[0].mxu0
        %v1522 = vadd.f32 0.0, %v1521
        %v1523 = vpop.f32.mrb[0].mxu0
        %1524 = vmatprep.mubr.f32.mxu0 %v1217
        %1525 = vmatmul.mubr.f32.gmra.mrb[0].mxu0 %v1216
        %v1526 = vpop.f32.mrb[0].mxu0
        %v1527 = vadd.f32 0.0, %v1526
        %v1528 = vpop.f32.mrb[0].mxu0
        %1529 = vmatprep.mubr.f32.mxu0 %v1226
        %1530 = vmatmul.mubr.f32.gmra.mrb[0].mxu0 %v1225
        %v1531 = vpop.f32.mrb[0].mxu0
        %v1532 = vadd.f32 0.0, %v1531
        %v1533 = vpop.f32.mrb[0].mxu0
        %1534 = vmatprep.mubr.f32.mxu0 %v1235
        %1535 = vmatmul.mubr.f32.gmra.mrb[0].mxu0 %v1234
        %v1536 = vpop.f32.mrb[0].mxu0
        %v1537 = vadd.f32 0.0, %v1536
        %v1538 = vpop.f32.mrb[0].mxu0
        %1539 = vmatprep.mubr.f32.mxu0 %v1244
        %1540 = vmatmul.mubr.f32.gmra.mrb[0].mxu0 %v1243
        %v1541 = vpop.f32.mrb[0].mxu0
        %v1542 = vadd.f32 0.0, %v1541
        %v1543 = vpop.f32.mrb[0].mxu0
        %1544 = vmatprep.mubr.f32.mxu0 %v1253
        %1545 = vmatmul.mubr.f32.gmra.mrb[0].mxu0 %v1252
        %v1546 = vpop.f32.mrb[0].mxu0
        %v1547 = vadd.f32 0.0, %v1546
        %v1548 = vpop.f32.mrb[0].mxu0
        %1549 = vmatprep.mubr.f32.mxu0 %v1262
        %1550 = vmatmul.mubr.f32.gmra.mrb[0].mxu0 %v1261
        %v1551 = vpop.f32.mrb[0].mxu0
        %v1552 = vadd.f32 0.0, %v1551
        %v1553 = vpop.f32.mrb[0].mxu0
        %1554 = vmatprep.mubr.f32.mxu0 %v1271
        %1555 = vmatmul.mubr.f32.gmra.mrb[0].mxu0 %v1270
        %v1556 = vpop.f32.mrb[0].mxu0
        %v1557 = vadd.f32 0.0, %v1556
        %v1558 = vpop.f32.mrb[0].mxu0
        %1559 = vmatprep.mubr.f32.mxu0 %v1280
        %1560 = vmatmul.mubr.f32.gmra.mrb[0].mxu0 %v1279
        %v1561 = vpop.f32.mrb[0].mxu0
        %v1562 = vadd.f32 0.0, %v1561
        %v1563 = vpop.f32.mrb[0].mxu0
        %1564 = vmatprep.mubr.f32.mxu0 %v1289
        %1565 = vmatmul.mubr.f32.gmra.mrb[0].mxu0 %v1288
        %v1566 = vpop.f32.mrb[0].mxu0
        %v1567 = vadd.f32 0.0, %v1566
        %v1568 = vpop.f32.mrb[0].mxu0
        %1569 = vmatprep.mubr.f32.mxu0 %v1298
        %1570 = vmatmul.mubr.f32.gmra.mrb[0].mxu0 %v1297
        %v1571 = vpop.f32.mrb[0].mxu0
        %v1572 = vadd.f32 0.0, %v1571
        %v1573 = vpop.f32.mrb[0].mxu0
        %1574 = vmatprep.mubr.f32.mxu0 %v1307
        %1575 = vmatmul.mubr.f32.gmra.mrb[0].mxu0 %v1306
        %v1576 = vpop.f32.mrb[0].mxu0
        %v1577 = vadd.f32 0.0, %v1576
        %v1578 = vpop.f32.mrb[0].mxu0
        %1579 = vmatprep.mubr.f32.mxu0 %v1316
        %1580 = vmatmul.mubr.f32.gmra.mrb[0].mxu0 %v1315
        %v1581 = vpop.f32.mrb[0].mxu0
        %v1582 = vadd.f32 0.0, %v1581
        %v1583 = vpop.f32.mrb[0].mxu0
        %1584 = vmatprep.mubr.f32.mxu0 %v1325
        %1585 = vmatmul.mubr.f32.gmra.mrb[0].mxu0 %v1324
        %v1586 = vpop.f32.mrb[0].mxu0
        %v1587 = vadd.f32 0.0, %v1586
        %v1588 = vpop.f32.mrb[0].mxu0
        %1589 = vmatprep.mubr.f32.mxu0 %v1334
        %1590 = vmatmul.mubr.f32.gmra.mrb[0].mxu0 %v1333
        %v1591 = vpop.f32.mrb[0].mxu0
        %v1592 = vadd.f32 0.0, %v1591
        %v1593 = vpop.f32.mrb[0].mxu0
        %1594 = vmatprep.mubr.f32.mxu0 %v1343
        %1595 = vmatmul.mubr.f32.gmra.mrb[0].mxu0 %v1342
        %v1596 = vpop.f32.mrb[0].mxu0
        %v1597 = vadd.f32 0.0, %v1596
        %v1598 = vpop.f32.mrb[0].mxu0
        %1599 = vmatprep.mubr.f32.mxu0 %v1352
        %1600 = vmatmul.mubr.f32.gmra.mrb[0].mxu0 %v1351
        %v1601 = vpop.f32.mrb[0].mxu0
        %v1602 = vadd.f32 0.0, %v1601
        %v1603 = vpop.f32.mrb[0].mxu0
        %1604 = vmatprep.mubr.f32.mxu0 %v1361
        %1605 = vmatmul.mubr.f32.gmra.mrb[0].mxu0 %v1360
        %v1606 = vpop.f32.mrb[0].mxu0
        %v1607 = vadd.f32 0.0, %v1606
        %v1608 = vpop.f32.mrb[0].mxu0
        %1609 = vmatprep.mubr.f32.mxu0 %v1370
        %1610 = vmatmul.mubr.f32.gmra.mrb[0].mxu0 %v1369
        %v1611 = vpop.f32.mrb[0].mxu0
        %v1612 = vadd.f32 0.0, %v1611
        %v1613 = vpop.f32.mrb[0].mxu0
        %1614 = vmatprep.mubr.f32.mxu0 %v1379
        %1615 = vmatmul.mubr.f32.gmra.mrb[0].mxu0 %v1378
        %v1616 = vpop.f32.mrb[0].mxu0
        %v1617 = vadd.f32 0.0, %v1616
        %v1618 = vpop.f32.mrb[0].mxu0
        %1619 = vmatprep.mubr.f32.mxu0 %v1388
        %1620 = vmatmul.mubr.f32.gmra.mrb[0].mxu0 %v1387
        %v1621 = vpop.f32.mrb[0].mxu0
        %v1622 = vadd.f32 0.0, %v1621
        %v1623 = vpop.f32.mrb[0].mxu0
        %1624 = vmatprep.mubr.f32.mxu0 %v1397
        %1625 = vmatmul.mubr.f32.gmra.mrb[0].mxu0 %v1396
        %v1626 = vpop.f32.mrb[0].mxu0
        %v1627 = vadd.f32 0.0, %v1626
        %v1628 = vpop.f32.mrb[0].mxu0
        %1629 = vdwg.mxu0
        %1630 = vmatprep.subr.mxu0 0.0
        %1631 = vmatpush1.msra.mxu0 %v317
        %1632 = vmatprep.subr.mxu0 0.0
        %1633 = vmatpush1.msra.mxu0 %v318
        %1634 = vmatprep.subr.mxu0 0.0
        %1635 = vmatpush1.msra.mxu0 %v319
        %1636 = vmatprep.subr.mxu0 0.0
        %1637 = vmatpush1.msra.mxu0 %v320
        %1638 = vmatprep.subr.mxu0 0.0
        %1639 = vmatpush1.msra.mxu0 %v321
        %1640 = vmatprep.subr.mxu0 0.0
        %1641 = vmatpush1.msra.mxu0 %v322
        %1642 = vmatprep.subr.mxu0 0.0
        %1643 = vmatpush1.msra.mxu0 %v323
        %1644 = vmatprep.subr.mxu0 0.0
        %1645 = vmatpush1.msra.mxu0 %v324
        %1646 = vmatprep.subr.mxu0 0.0
        %1647 = vmatpush1.msra.mxu0 %v325
        %1648 = vmatprep.subr.mxu0 0.0
        %1649 = vmatpush1.msra.mxu0 %v326
        %1650 = vmatprep.subr.mxu0 0.0
        %1651 = vmatpush1.msra.mxu0 %v327
        %1652 = vmatprep.subr.mxu0 0.0
        %1653 = vmatpush1.msra.mxu0 %v328
        %1654 = vmatprep.subr.mxu0 0.0
        %1655 = vmatpush1.msra.mxu0 %v329
        %1656 = vmatprep.subr.mxu0 0.0
        %1657 = vmatpush1.msra.mxu0 %v330
        %1658 = vmatprep.subr.mxu0 0.0
        %1659 = vmatpush1.msra.mxu0 %v331
        %1660 = vmatprep.subr.mxu0 0.0
        %1661 = vmatpush1.msra.mxu0 %v332
        %1662 = vmatprep.subr.mxu0 0.0
        %1663 = vmatpush1.msra.mxu0 %v333
        %1664 = vmatprep.subr.mxu0 0.0
        %1665 = vmatpush1.msra.mxu0 %v334
        %1666 = vmatprep.subr.mxu0 0.0
        %1667 = vmatpush1.msra.mxu0 %v335
        %1668 = vmatprep.subr.mxu0 0.0
        %1669 = vmatpush1.msra.mxu0 %v336
        %1670 = vmatprep.subr.mxu0 0.0
        %1671 = vmatpush1.msra.mxu0 %v337
        %1672 = vmatprep.subr.mxu0 0.0
        %1673 = vmatpush1.msra.mxu0 %v338
        %1674 = vmatprep.subr.mxu0 0.0
        %1675 = vmatpush1.msra.mxu0 %v339
        %1676 = vmatprep.subr.mxu0 0.0
        %1677 = vmatpush1.msra.mxu0 %v340
        %1678 = vmatprep.subr.mxu0 0.0
        %1679 = vmatpush1.msra.mxu0 %v341
        %1680 = vmatprep.subr.mxu0 0.0
        %1681 = vmatpush1.msra.mxu0 %v342
        %1682 = vmatprep.subr.mxu0 0.0
        %1683 = vmatpush1.msra.mxu0 %v343
        %1684 = vmatprep.subr.mxu0 0.0
        %1685 = vmatpush1.msra.mxu0 %v344
        %1686 = vmatprep.subr.mxu0 0.0
        %1687 = vmatpush1.msra.mxu0 %v345
        %1688 = vmatprep.subr.mxu0 0.0
        %1689 = vmatpush1.msra.mxu0 %v346
        %1690 = vmatprep.subr.mxu0 0.0
        %1691 = vmatpush1.msra.mxu0 %v347
        %1692 = vmatprep.subr.mxu0 0.0
        %1693 = vmatpush1.msra.mxu0 %v348
        %1694 = vmatprep.mubr.f32.mxu0 %v1120
        %1695 = vmatmul.mubr.f32.gmra.mrb[0].mxu0 %v1119
        %v1696 = vpop.f32.mrb[0].mxu0
        %v1697 = vadd.f32 %v1472, %v1696
        %v1698 = vpop.f32.mrb[0].mxu0
        %1699 = vmatprep.mubr.f32.mxu0 %v1129
        %1700 = vmatmul.mubr.f32.gmra.mrb[0].mxu0 %v1128
        %v1701 = vpop.f32.mrb[0].mxu0
        %v1702 = vadd.f32 %v1477, %v1701
        %v1703 = vpop.f32.mrb[0].mxu0
        %1704 = vmatprep.mubr.f32.mxu0 %v1138
        %1705 = vmatmul.mubr.f32.gmra.mrb[0].mxu0 %v1137
        %v1706 = vpop.f32.mrb[0].mxu0
        %v1707 = vadd.f32 %v1482, %v1706
        %v1708 = vpop.f32.mrb[0].mxu0
        %1709 = vmatprep.mubr.f32.mxu0 %v1147
        %1710 = vmatmul.mubr.f32.gmra.mrb[0].mxu0 %v1146
        %v1711 = vpop.f32.mrb[0].mxu0
        %v1712 = vadd.f32 %v1487, %v1711
        %v1713 = vpop.f32.mrb[0].mxu0
        %1714 = vmatprep.mubr.f32.mxu0 %v1156
        %1715 = vmatmul.mubr.f32.gmra.mrb[0].mxu0 %v1155
        %v1716 = vpop.f32.mrb[0].mxu0
        %v1717 = vadd.f32 %v1492, %v1716
        %v1718 = vpop.f32.mrb[0].mxu0
        %1719 = vmatprep.mubr.f32.mxu0 %v1165
        %1720 = vmatmul.mubr.f32.gmra.mrb[0].mxu0 %v1164
        %v1721 = vpop.f32.mrb[0].mxu0
        %v1722 = vadd.f32 %v1497, %v1721
        %v1723 = vpop.f32.mrb[0].mxu0
        %1724 = vmatprep.mubr.f32.mxu0 %v1174
        %1725 = vmatmul.mubr.f32.gmra.mrb[0].mxu0 %v1173
        %v1726 = vpop.f32.mrb[0].mxu0
        %v1727 = vadd.f32 %v1502, %v1726
        %v1728 = vpop.f32.mrb[0].mxu0
        %1729 = vmatprep.mubr.f32.mxu0 %v1183
        %1730 = vmatmul.mubr.f32.gmra.mrb[0].mxu0 %v1182
        %v1731 = vpop.f32.mrb[0].mxu0
        %v1732 = vadd.f32 %v1507, %v1731
        %v1733 = vpop.f32.mrb[0].mxu0
        %1734 = vmatprep.mubr.f32.mxu0 %v1192
        %1735 = vmatmul.mubr.f32.gmra.mrb[0].mxu0 %v1191
        %v1736 = vpop.f32.mrb[0].mxu0
        %v1737 = vadd.f32 %v1512, %v1736
        %v1738 = vpop.f32.mrb[0].mxu0
        %1739 = vmatprep.mubr.f32.mxu0 %v1201
        %1740 = vmatmul.mubr.f32.gmra.mrb[0].mxu0 %v1200
        %v1741 = vpop.f32.mrb[0].mxu0
        %v1742 = vadd.f32 %v1517, %v1741
        %v1743 = vpop.f32.mrb[0].mxu0
        %1744 = vmatprep.mubr.f32.mxu0 %v1210
        %1745 = vmatmul.mubr.f32.gmra.mrb[0].mxu0 %v1209
        %v1746 = vpop.f32.mrb[0].mxu0
        %v1747 = vadd.f32 %v1522, %v1746
        %v1748 = vpop.f32.mrb[0].mxu0
        %1749 = vmatprep.mubr.f32.mxu0 %v1219
        %1750 = vmatmul.mubr.f32.gmra.mrb[0].mxu0 %v1218
        %v1751 = vpop.f32.mrb[0].mxu0
        %v1752 = vadd.f32 %v1527, %v1751
        %v1753 = vpop.f32.mrb[0].mxu0
        %1754 = vmatprep.mubr.f32.mxu0 %v1228
        %1755 = vmatmul.mubr.f32.gmra.mrb[0].mxu0 %v1227
        %v1756 = vpop.f32.mrb[0].mxu0
        %v1757 = vadd.f32 %v1532, %v1756
        %v1758 = vpop.f32.mrb[0].mxu0
        %1759 = vmatprep.mubr.f32.mxu0 %v1237
        %1760 = vmatmul.mubr.f32.gmra.mrb[0].mxu0 %v1236
        %v1761 = vpop.f32.mrb[0].mxu0
        %v1762 = vadd.f32 %v1537, %v1761
        %v1763 = vpop.f32.mrb[0].mxu0
        %1764 = vmatprep.mubr.f32.mxu0 %v1246
        %1765 = vmatmul.mubr.f32.gmra.mrb[0].mxu0 %v1245
        %v1766 = vpop.f32.mrb[0].mxu0
        %v1767 = vadd.f32 %v1542, %v1766
        %v1768 = vpop.f32.mrb[0].mxu0
        %1769 = vmatprep.mubr.f32.mxu0 %v1255
        %1770 = vmatmul.mubr.f32.gmra.mrb[0].mxu0 %v1254
        %v1771 = vpop.f32.mrb[0].mxu0
        %v1772 = vadd.f32 %v1547, %v1771
        %v1773 = vpop.f32.mrb[0].mxu0
        %1774 = vmatprep.mubr.f32.mxu0 %v1264
        %1775 = vmatmul.mubr.f32.gmra.mrb[0].mxu0 %v1263
        %v1776 = vpop.f32.mrb[0].mxu0
        %v1777 = vadd.f32 %v1552, %v1776
        %v1778 = vpop.f32.mrb[0].mxu0
        %1779 = vmatprep.mubr.f32.mxu0 %v1273
        %1780 = vmatmul.mubr.f32.gmra.mrb[0].mxu0 %v1272
        %v1781 = vpop.f32.mrb[0].mxu0
        %v1782 = vadd.f32 %v1557, %v1781
        %v1783 = vpop.f32.mrb[0].mxu0
        %1784 = vmatprep.mubr.f32.mxu0 %v1282
        %1785 = vmatmul.mubr.f32.gmra.mrb[0].mxu0 %v1281
        %v1786 = vpop.f32.mrb[0].mxu0
        %v1787 = vadd.f32 %v1562, %v1786
        %v1788 = vpop.f32.mrb[0].mxu0
        %1789 = vmatprep.mubr.f32.mxu0 %v1291
        %1790 = vmatmul.mubr.f32.gmra.mrb[0].mxu0 %v1290
        %v1791 = vpop.f32.mrb[0].mxu0
        %v1792 = vadd.f32 %v1567, %v1791
        %v1793 = vpop.f32.mrb[0].mxu0
        %1794 = vmatprep.mubr.f32.mxu0 %v1300
        %1795 = vmatmul.mubr.f32.gmra.mrb[0].mxu0 %v1299
        %v1796 = vpop.f32.mrb[0].mxu0
        %v1797 = vadd.f32 %v1572, %v1796
        %v1798 = vpop.f32.mrb[0].mxu0
        %1799 = vmatprep.mubr.f32.mxu0 %v1309
        %1800 = vmatmul.mubr.f32.gmra.mrb[0].mxu0 %v1308
        %v1801 = vpop.f32.mrb[0].mxu0
        %v1802 = vadd.f32 %v1577, %v1801
        %v1803 = vpop.f32.mrb[0].mxu0
        %1804 = vmatprep.mubr.f32.mxu0 %v1318
        %1805 = vmatmul.mubr.f32.gmra.mrb[0].mxu0 %v1317
        %v1806 = vpop.f32.mrb[0].mxu0
        %v1807 = vadd.f32 %v1582, %v1806
        %v1808 = vpop.f32.mrb[0].mxu0
        %1809 = vmatprep.mubr.f32.mxu0 %v1327
        %1810 = vmatmul.mubr.f32.gmra.mrb[0].mxu0 %v1326
        %v1811 = vpop.f32.mrb[0].mxu0
        %v1812 = vadd.f32 %v1587, %v1811
        %v1813 = vpop.f32.mrb[0].mxu0
        %1814 = vmatprep.mubr.f32.mxu0 %v1336
        %1815 = vmatmul.mubr.f32.gmra.mrb[0].mxu0 %v1335
        %v1816 = vpop.f32.mrb[0].mxu0
        %v1817 = vadd.f32 %v1592, %v1816
        %v1818 = vpop.f32.mrb[0].mxu0
        %1819 = vmatprep.mubr.f32.mxu0 %v1345
        %1820 = vmatmul.mubr.f32.gmra.mrb[0].mxu0 %v1344
        %v1821 = vpop.f32.mrb[0].mxu0
        %v1822 = vadd.f32 %v1597, %v1821
        %v1823 = vpop.f32.mrb[0].mxu0
        %1824 = vmatprep.mubr.f32.mxu0 %v1354
        %1825 = vmatmul.mubr.f32.gmra.mrb[0].mxu0 %v1353
        %v1826 = vpop.f32.mrb[0].mxu0
        %v1827 = vadd.f32 %v1602, %v1826
        %v1828 = vpop.f32.mrb[0].mxu0
        %1829 = vmatprep.mubr.f32.mxu0 %v1363
        %1830 = vmatmul.mubr.f32.gmra.mrb[0].mxu0 %v1362
        %v1831 = vpop.f32.mrb[0].mxu0
        %v1832 = vadd.f32 %v1607, %v1831
        %v1833 = vpop.f32.mrb[0].mxu0
        %1834 = vmatprep.mubr.f32.mxu0 %v1372
        %1835 = vmatmul.mubr.f32.gmra.mrb[0].mxu0 %v1371
        %v1836 = vpop.f32.mrb[0].mxu0
        %v1837 = vadd.f32 %v1612, %v1836
        %v1838 = vpop.f32.mrb[0].mxu0
        %1839 = vmatprep.mubr.f32.mxu0 %v1381
        %1840 = vmatmul.mubr.f32.gmra.mrb[0].mxu0 %v1380
        %v1841 = vpop.f32.mrb[0].mxu0
        %v1842 = vadd.f32 %v1617, %v1841
        %v1843 = vpop.f32.mrb[0].mxu0
        %1844 = vmatprep.mubr.f32.mxu0 %v1390
        %1845 = vmatmul.mubr.f32.gmra.mrb[0].mxu0 %v1389
        %v1846 = vpop.f32.mrb[0].mxu0
        %v1847 = vadd.f32 %v1622, %v1846
        %v1848 = vpop.f32.mrb[0].mxu0
        %1849 = vmatprep.mubr.f32.mxu0 %v1399
        %1850 = vmatmul.mubr.f32.gmra.mrb[0].mxu0 %v1398
        %v1851 = vpop.f32.mrb[0].mxu0
        %v1852 = vadd.f32 %v1627, %v1851
        %v1853 = vpop.f32.mrb[0].mxu0
        %1854 = vdwg.mxu0
        %1855 = vmatprep.subr.mxu0 0.0
        %1856 = vmatpush1.msra.mxu0 %v349
        %1857 = vmatprep.subr.mxu0 0.0
        %1858 = vmatpush1.msra.mxu0 %v350
        %1859 = vmatprep.subr.mxu0 0.0
        %1860 = vmatpush1.msra.mxu0 %v351
        %1861 = vmatprep.subr.mxu0 0.0
        %1862 = vmatpush1.msra.mxu0 %v352
        %1863 = vmatprep.subr.mxu0 0.0
        %1864 = vmatpush1.msra.mxu0 %v353
        %1865 = vmatprep.subr.mxu0 0.0
        %1866 = vmatpush1.msra.mxu0 %v354
        %1867 = vmatprep.subr.mxu0 0.0
        %1868 = vmatpush1.msra.mxu0 %v355
        %1869 = vmatprep.subr.mxu0 0.0
        %1870 = vmatpush1.msra.mxu0 %v356
        %1871 = vmatprep.subr.mxu0 0.0
        %1872 = vmatpush1.msra.mxu0 %v357
        %1873 = vmatprep.subr.mxu0 0.0
        %1874 = vmatpush1.msra.mxu0 %v358
        %1875 = vmatprep.subr.mxu0 0.0
        %1876 = vmatpush1.msra.mxu0 %v359
        %1877 = vmatprep.subr.mxu0 0.0
        %1878 = vmatpush1.msra.mxu0 %v360
        %1879 = vmatprep.subr.mxu0 0.0
        %1880 = vmatpush1.msra.mxu0 %v361
        %1881 = vmatprep.subr.mxu0 0.0
        %1882 = vmatpush1.msra.mxu0 %v362
        %1883 = vmatprep.subr.mxu0 0.0
        %1884 = vmatpush1.msra.mxu0 %v363
        %1885 = vmatprep.subr.mxu0 0.0
        %1886 = vmatpush1.msra.mxu0 %v364
        %1887 = vmatprep.subr.mxu0 0.0
        %1888 = vmatpush1.msra.mxu0 %v365
        %1889 = vmatprep.subr.mxu0 0.0
        %1890 = vmatpush1.msra.mxu0 %v366
        %1891 = vmatprep.subr.mxu0 0.0
        %1892 = vmatpush1.msra.mxu0 %v367
        %1893 = vmatprep.subr.mxu0 0.0
        %1894 = vmatpush1.msra.mxu0 %v368
        %1895 = vmatprep.subr.mxu0 0.0
        %1896 = vmatpush1.msra.mxu0 %v369
        %1897 = vmatprep.subr.mxu0 0.0
        %1898 = vmatpush1.msra.mxu0 %v370
        %1899 = vmatprep.subr.mxu0 0.0
        %1900 = vmatpush1.msra.mxu0 %v371
        %1901 = vmatprep.subr.mxu0 0.0
        %1902 = vmatpush1.msra.mxu0 %v372
        %1903 = vmatprep.subr.mxu0 0.0
        %1904 = vmatpush1.msra.mxu0 %v373
        %1905 = vmatprep.subr.mxu0 0.0
        %1906 = vmatpush1.msra.mxu0 %v374
        %1907 = vmatprep.subr.mxu0 0.0
        %1908 = vmatpush1.msra.mxu0 %v375
        %1909 = vmatprep.subr.mxu0 0.0
        %1910 = vmatpush1.msra.mxu0 %v376
        %1911 = vmatprep.subr.mxu0 0.0
        %1912 = vmatpush1.msra.mxu0 %v377
        %1913 = vmatprep.subr.mxu0 0.0
        %1914 = vmatpush1.msra.mxu0 %v378
        %1915 = vmatprep.subr.mxu0 0.0
        %1916 = vmatpush1.msra.mxu0 %v379
        %1917 = vmatprep.subr.mxu0 0.0
        %1918 = vmatpush1.msra.mxu0 %v380
        %1919 = vmatprep.mubr.f32.mxu0 %v1122
        %1920 = vmatmul.mubr.f32.gmra.mrb[0].mxu0 %v1121
        %v1921 = vpop.f32.mrb[0].mxu0
        %v1922 = vadd.f32 %v1697, %v1921
        %v1923 = vpop.f32.mrb[0].mxu0
        %1924 = vmatprep.mubr.f32.mxu0 %v1131
        %1925 = vmatmul.mubr.f32.gmra.mrb[0].mxu0 %v1130
        %v1926 = vpop.f32.mrb[0].mxu0
        %v1927 = vadd.f32 %v1702, %v1926
        %v1928 = vpop.f32.mrb[0].mxu0
        %1929 = vmatprep.mubr.f32.mxu0 %v1140
        %1930 = vmatmul.mubr.f32.gmra.mrb[0].mxu0 %v1139
        %v1931 = vpop.f32.mrb[0].mxu0
        %v1932 = vadd.f32 %v1707, %v1931
        %v1933 = vpop.f32.mrb[0].mxu0
        %1934 = vmatprep.mubr.f32.mxu0 %v1149
        %1935 = vmatmul.mubr.f32.gmra.mrb[0].mxu0 %v1148
        %v1936 = vpop.f32.mrb[0].mxu0
        %v1937 = vadd.f32 %v1712, %v1936
        %v1938 = vpop.f32.mrb[0].mxu0
        %1939 = vmatprep.mubr.f32.mxu0 %v1158
        %1940 = vmatmul.mubr.f32.gmra.mrb[0].mxu0 %v1157
        %v1941 = vpop.f32.mrb[0].mxu0
        %v1942 = vadd.f32 %v1717, %v1941
        %v1943 = vpop.f32.mrb[0].mxu0
        %1944 = vmatprep.mubr.f32.mxu0 %v1167
        %1945 = vmatmul.mubr.f32.gmra.mrb[0].mxu0 %v1166
        %v1946 = vpop.f32.mrb[0].mxu0
        %v1947 = vadd.f32 %v1722, %v1946
        %v1948 = vpop.f32.mrb[0].mxu0
        %1949 = vmatprep.mubr.f32.mxu0 %v1176
        %1950 = vmatmul.mubr.f32.gmra.mrb[0].mxu0 %v1175
        %v1951 = vpop.f32.mrb[0].mxu0
        %v1952 = vadd.f32 %v1727, %v1951
        %v1953 = vpop.f32.mrb[0].mxu0
        %1954 = vmatprep.mubr.f32.mxu0 %v1185
        %1955 = vmatmul.mubr.f32.gmra.mrb[0].mxu0 %v1184
        %v1956 = vpop.f32.mrb[0].mxu0
        %v1957 = vadd.f32 %v1732, %v1956
        %v1958 = vpop.f32.mrb[0].mxu0
        %1959 = vmatprep.mubr.f32.mxu0 %v1194
        %1960 = vmatmul.mubr.f32.gmra.mrb[0].mxu0 %v1193
        %v1961 = vpop.f32.mrb[0].mxu0
        %v1962 = vadd.f32 %v1737, %v1961
        %v1963 = vpop.f32.mrb[0].mxu0
        %1964 = vmatprep.mubr.f32.mxu0 %v1203
        %1965 = vmatmul.mubr.f32.gmra.mrb[0].mxu0 %v1202
        %v1966 = vpop.f32.mrb[0].mxu0
        %v1967 = vadd.f32 %v1742, %v1966
        %v1968 = vpop.f32.mrb[0].mxu0
        %1969 = vmatprep.mubr.f32.mxu0 %v1212
        %1970 = vmatmul.mubr.f32.gmra.mrb[0].mxu0 %v1211
        %v1971 = vpop.f32.mrb[0].mxu0
        %v1972 = vadd.f32 %v1747, %v1971
        %v1973 = vpop.f32.mrb[0].mxu0
        %1974 = vmatprep.mubr.f32.mxu0 %v1221
        %1975 = vmatmul.mubr.f32.gmra.mrb[0].mxu0 %v1220
        %v1976 = vpop.f32.mrb[0].mxu0
        %v1977 = vadd.f32 %v1752, %v1976
        %v1978 = vpop.f32.mrb[0].mxu0
        %1979 = vmatprep.mubr.f32.mxu0 %v1230
        %1980 = vmatmul.mubr.f32.gmra.mrb[0].mxu0 %v1229
        %v1981 = vpop.f32.mrb[0].mxu0
        %v1982 = vadd.f32 %v1757, %v1981
        %v1983 = vpop.f32.mrb[0].mxu0
        %1984 = vmatprep.mubr.f32.mxu0 %v1239
        %1985 = vmatmul.mubr.f32.gmra.mrb[0].mxu0 %v1238
        %v1986 = vpop.f32.mrb[0].mxu0
        %v1987 = vadd.f32 %v1762, %v1986
        %v1988 = vpop.f32.mrb[0].mxu0
        %1989 = vmatprep.mubr.f32.mxu0 %v1248
        %1990 = vmatmul.mubr.f32.gmra.mrb[0].mxu0 %v1247
        %v1991 = vpop.f32.mrb[0].mxu0
        %v1992 = vadd.f32 %v1767, %v1991
        %v1993 = vpop.f32.mrb[0].mxu0
        %1994 = vmatprep.mubr.f32.mxu0 %v1257
        %1995 = vmatmul.mubr.f32.gmra.mrb[0].mxu0 %v1256
        %v1996 = vpop.f32.mrb[0].mxu0
        %v1997 = vadd.f32 %v1772, %v1996
        %v1998 = vpop.f32.mrb[0].mxu0
        %1999 = vmatprep.mubr.f32.mxu0 %v1266
        %2000 = vmatmul.mubr.f32.gmra.mrb[0].mxu0 %v1265
        %v2001 = vpop.f32.mrb[0].mxu0
        %v2002 = vadd.f32 %v1777, %v2001
        %v2003 = vpop.f32.mrb[0].mxu0
        %2004 = vmatprep.mubr.f32.mxu0 %v1275
        %2005 = vmatmul.mubr.f32.gmra.mrb[0].mxu0 %v1274
        %v2006 = vpop.f32.mrb[0].mxu0
        %v2007 = vadd.f32 %v1782, %v2006
        %v2008 = vpop.f32.mrb[0].mxu0
        %2009 = vmatprep.mubr.f32.mxu0 %v1284
        %2010 = vmatmul.mubr.f32.gmra.mrb[0].mxu0 %v1283
        %v2011 = vpop.f32.mrb[0].mxu0
        %v2012 = vadd.f32 %v1787, %v2011
        %v2013 = vpop.f32.mrb[0].mxu0
        %2014 = vmatprep.mubr.f32.mxu0 %v1293
        %2015 = vmatmul.mubr.f32.gmra.mrb[0].mxu0 %v1292
        %v2016 = vpop.f32.mrb[0].mxu0
        %v2017 = vadd.f32 %v1792, %v2016
        %v2018 = vpop.f32.mrb[0].mxu0
        %2019 = vmatprep.mubr.f32.mxu0 %v1302
        %2020 = vmatmul.mubr.f32.gmra.mrb[0].mxu0 %v1301
        %v2021 = vpop.f32.mrb[0].mxu0
        %v2022 = vadd.f32 %v1797, %v2021
        %v2023 = vpop.f32.mrb[0].mxu0
        %2024 = vmatprep.mubr.f32.mxu0 %v1311
        %2025 = vmatmul.mubr.f32.gmra.mrb[0].mxu0 %v1310
        %v2026 = vpop.f32.mrb[0].mxu0
        %v2027 = vadd.f32 %v1802, %v2026
        %v2028 = vpop.f32.mrb[0].mxu0
        %2029 = vmatprep.mubr.f32.mxu0 %v1320
        %2030 = vmatmul.mubr.f32.gmra.mrb[0].mxu0 %v1319
        %v2031 = vpop.f32.mrb[0].mxu0
        %v2032 = vadd.f32 %v1807, %v2031
        %v2033 = vpop.f32.mrb[0].mxu0
        %2034 = vmatprep.mubr.f32.mxu0 %v1329
        %2035 = vmatmul.mubr.f32.gmra.mrb[0].mxu0 %v1328
        %v2036 = vpop.f32.mrb[0].mxu0
        %v2037 = vadd.f32 %v1812, %v2036
        %v2038 = vpop.f32.mrb[0].mxu0
        %2039 = vmatprep.mubr.f32.mxu0 %v1338
        %2040 = vmatmul.mubr.f32.gmra.mrb[0].mxu0 %v1337
        %v2041 = vpop.f32.mrb[0].mxu0
        %v2042 = vadd.f32 %v1817, %v2041
        %v2043 = vpop.f32.mrb[0].mxu0
        %2044 = vmatprep.mubr.f32.mxu0 %v1347
        %2045 = vmatmul.mubr.f32.gmra.mrb[0].mxu0 %v1346
        %v2046 = vpop.f32.mrb[0].mxu0
        %v2047 = vadd.f32 %v1822, %v2046
        %v2048 = vpop.f32.mrb[0].mxu0
        %2049 = vmatprep.mubr.f32.mxu0 %v1356
        %2050 = vmatmul.mubr.f32.gmra.mrb[0].mxu0 %v1355
        %v2051 = vpop.f32.mrb[0].mxu0
        %v2052 = vadd.f32 %v1827, %v2051
        %v2053 = vpop.f32.mrb[0].mxu0
        %2054 = vmatprep.mubr.f32.mxu0 %v1365
        %2055 = vmatmul.mubr.f32.gmra.mrb[0].mxu0 %v1364
        %v2056 = vpop.f32.mrb[0].mxu0
        %v2057 = vadd.f32 %v1832, %v2056
        %v2058 = vpop.f32.mrb[0].mxu0
        %2059 = vmatprep.mubr.f32.mxu0 %v1374
        %2060 = vmatmul.mubr.f32.gmra.mrb[0].mxu0 %v1373
        %v2061 = vpop.f32.mrb[0].mxu0
        %v2062 = vadd.f32 %v1837, %v2061
        %v2063 = vpop.f32.mrb[0].mxu0
        %2064 = vmatprep.mubr.f32.mxu0 %v1383
        %2065 = vmatmul.mubr.f32.gmra.mrb[0].mxu0 %v1382
        %v2066 = vpop.f32.mrb[0].mxu0
        %v2067 = vadd.f32 %v1842, %v2066
        %v2068 = vpop.f32.mrb[0].mxu0
        %2069 = vmatprep.mubr.f32.mxu0 %v1392
        %2070 = vmatmul.mubr.f32.gmra.mrb[0].mxu0 %v1391
        %v2071 = vpop.f32.mrb[0].mxu0
        %v2072 = vadd.f32 %v1847, %v2071
        %v2073 = vpop.f32.mrb[0].mxu0
        %2074 = vmatprep.mubr.f32.mxu0 %v1401
        %2075 = vmatmul.mubr.f32.gmra.mrb[0].mxu0 %v1400
        %v2076 = vpop.f32.mrb[0].mxu0
        %v2077 = vadd.f32 %v1852, %v2076
        %v2078 = vpop.f32.mrb[0].mxu0
        %2079 = vdwg.mxu0
        %2080 = vmatprep.subr.mxu0 0.0
        %2081 = vmatpush1.msra.mxu0 %v381
        %2082 = vmatprep.subr.mxu0 0.0
        %2083 = vmatpush1.msra.mxu0 %v382
        %2084 = vmatprep.subr.mxu0 0.0
        %2085 = vmatpush1.msra.mxu0 %v383
        %2086 = vmatprep.subr.mxu0 0.0
        %2087 = vmatpush1.msra.mxu0 %v384
        %2088 = vmatprep.subr.mxu0 0.0
        %2089 = vmatpush1.msra.mxu0 %v385
        %2090 = vmatprep.subr.mxu0 0.0
        %2091 = vmatpush1.msra.mxu0 %v386
        %2092 = vmatprep.subr.mxu0 0.0
        %2093 = vmatpush1.msra.mxu0 %v387
        %2094 = vmatprep.subr.mxu0 0.0
        %2095 = vmatpush1.msra.mxu0 %v388
        %2096 = vmatprep.subr.mxu0 0.0
        %2097 = vmatpush1.msra.mxu0 %v389
        %2098 = vmatprep.subr.mxu0 0.0
        %2099 = vmatpush1.msra.mxu0 %v390
        %2100 = vmatprep.subr.mxu0 0.0
        %2101 = vmatpush1.msra.mxu0 %v391
        %2102 = vmatprep.subr.mxu0 0.0
        %2103 = vmatpush1.msra.mxu0 %v392
        %2104 = vmatprep.subr.mxu0 0.0
        %2105 = vmatpush1.msra.mxu0 %v393
        %2106 = vmatprep.subr.mxu0 0.0
        %2107 = vmatpush1.msra.mxu0 %v394
        %2108 = vmatprep.subr.mxu0 0.0
        %2109 = vmatpush1.msra.mxu0 %v395
        %2110 = vmatprep.subr.mxu0 0.0
        %2111 = vmatpush1.msra.mxu0 %v396
        %2112 = vmatprep.subr.mxu0 0.0
        %2113 = vmatpush1.msra.mxu0 %v397
        %2114 = vmatprep.subr.mxu0 0.0
        %2115 = vmatpush1.msra.mxu0 %v398
        %2116 = vmatprep.subr.mxu0 0.0
        %2117 = vmatpush1.msra.mxu0 %v399
        %2118 = vmatprep.subr.mxu0 0.0
        %2119 = vmatpush1.msra.mxu0 %v400
        %2120 = vmatprep.subr.mxu0 0.0
        %2121 = vmatpush1.msra.mxu0 %v401
        %2122 = vmatprep.subr.mxu0 0.0
        %2123 = vmatpush1.msra.mxu0 %v402
        %2124 = vmatprep.subr.mxu0 0.0
        %2125 = vmatpush1.msra.mxu0 %v403
        %2126 = vmatprep.subr.mxu0 0.0
        %2127 = vmatpush1.msra.mxu0 %v404
        %2128 = vmatprep.subr.mxu0 0.0
        %2129 = vmatpush1.msra.mxu0 %v405
        %2130 = vmatprep.subr.mxu0 0.0
        %2131 = vmatpush1.msra.mxu0 %v406
        %2132 = vmatprep.subr.mxu0 0.0
        %2133 = vmatpush1.msra.mxu0 %v407
        %2134 = vmatprep.subr.mxu0 0.0
        %2135 = vmatpush1.msra.mxu0 %v408
        %2136 = vmatprep.subr.mxu0 0.0
        %2137 = vmatpush1.msra.mxu0 %v409
        %2138 = vmatprep.subr.mxu0 0.0
        %2139 = vmatpush1.msra.mxu0 %v410
        %2140 = vmatprep.subr.mxu0 0.0
        %2141 = vmatpush1.msra.mxu0 %v411
        %2142 = vmatprep.subr.mxu0 0.0
        %2143 = vmatpush1.msra.mxu0 %v412
        %2144 = vmatprep.mubr.f32.mxu0 %v1124
        %2145 = vmatmul.mubr.f32.gmra.mrb[0].mxu0 %v1123
        %v2146 = vpop.f32.mrb[0].mxu0
        %v2147 = vadd.f32 %v1922, %v2146
        %v2148 = vpop.f32.mrb[0].mxu0
        %2149 = vmatprep.mubr.f32.mxu0 %v1133
        %2150 = vmatmul.mubr.f32.gmra.mrb[0].mxu0 %v1132
        %v2151 = vpop.f32.mrb[0].mxu0
        %v2152 = vadd.f32 %v1927, %v2151
        %v2153 = vpop.f32.mrb[0].mxu0
        %2154 = vmatprep.mubr.f32.mxu0 %v1142
        %2155 = vmatmul.mubr.f32.gmra.mrb[0].mxu0 %v1141
        %v2156 = vpop.f32.mrb[0].mxu0
        %v2157 = vadd.f32 %v1932, %v2156
        %v2158 = vpop.f32.mrb[0].mxu0
        %2159 = vmatprep.mubr.f32.mxu0 %v1151
        %2160 = vmatmul.mubr.f32.gmra.mrb[0].mxu0 %v1150
        %v2161 = vpop.f32.mrb[0].mxu0
        %v2162 = vadd.f32 %v1937, %v2161
        %v2163 = vpop.f32.mrb[0].mxu0
        %2164 = vmatprep.mubr.f32.mxu0 %v1160
        %2165 = vmatmul.mubr.f32.gmra.mrb[0].mxu0 %v1159
        %v2166 = vpop.f32.mrb[0].mxu0
        %v2167 = vadd.f32 %v1942, %v2166
        %v2168 = vpop.f32.mrb[0].mxu0
        %2169 = vmatprep.mubr.f32.mxu0 %v1169
        %2170 = vmatmul.mubr.f32.gmra.mrb[0].mxu0 %v1168
        %v2171 = vpop.f32.mrb[0].mxu0
        %v2172 = vadd.f32 %v1947, %v2171
        %v2173 = vpop.f32.mrb[0].mxu0
        %2174 = vmatprep.mubr.f32.mxu0 %v1178
        %2175 = vmatmul.mubr.f32.gmra.mrb[0].mxu0 %v1177
        %v2176 = vpop.f32.mrb[0].mxu0
        %v2177 = vadd.f32 %v1952, %v2176
        %v2178 = vpop.f32.mrb[0].mxu0
        %2179 = vmatprep.mubr.f32.mxu0 %v1187
        %2180 = vmatmul.mubr.f32.gmra.mrb[0].mxu0 %v1186
        %v2181 = vpop.f32.mrb[0].mxu0
        %v2182 = vadd.f32 %v1957, %v2181
        %v2183 = vpop.f32.mrb[0].mxu0
        %2184 = vmatprep.mubr.f32.mxu0 %v1196
        %2185 = vmatmul.mubr.f32.gmra.mrb[0].mxu0 %v1195
        %v2186 = vpop.f32.mrb[0].mxu0
        %v2187 = vadd.f32 %v1962, %v2186
        %v2188 = vpop.f32.mrb[0].mxu0
        %2189 = vmatprep.mubr.f32.mxu0 %v1205
        %2190 = vmatmul.mubr.f32.gmra.mrb[0].mxu0 %v1204
        %v2191 = vpop.f32.mrb[0].mxu0
        %v2192 = vadd.f32 %v1967, %v2191
        %v2193 = vpop.f32.mrb[0].mxu0
        %2194 = vmatprep.mubr.f32.mxu0 %v1214
        %2195 = vmatmul.mubr.f32.gmra.mrb[0].mxu0 %v1213
        %v2196 = vpop.f32.mrb[0].mxu0
        %v2197 = vadd.f32 %v1972, %v2196
        %v2198 = vpop.f32.mrb[0].mxu0
        %2199 = vmatprep.mubr.f32.mxu0 %v1223
        %2200 = vmatmul.mubr.f32.gmra.mrb[0].mxu0 %v1222
        %v2201 = vpop.f32.mrb[0].mxu0
        %v2202 = vadd.f32 %v1977, %v2201
        %v2203 = vpop.f32.mrb[0].mxu0
        %2204 = vmatprep.mubr.f32.mxu0 %v1232
        %2205 = vmatmul.mubr.f32.gmra.mrb[0].mxu0 %v1231
        %v2206 = vpop.f32.mrb[0].mxu0
        %v2207 = vadd.f32 %v1982, %v2206
        %v2208 = vpop.f32.mrb[0].mxu0
        %2209 = vmatprep.mubr.f32.mxu0 %v1241
        %2210 = vmatmul.mubr.f32.gmra.mrb[0].mxu0 %v1240
        %v2211 = vpop.f32.mrb[0].mxu0
        %v2212 = vadd.f32 %v1987, %v2211
        %v2213 = vpop.f32.mrb[0].mxu0
        %2214 = vmatprep.mubr.f32.mxu0 %v1250
        %2215 = vmatmul.mubr.f32.gmra.mrb[0].mxu0 %v1249
        %v2216 = vpop.f32.mrb[0].mxu0
        %v2217 = vadd.f32 %v1992, %v2216
        %v2218 = vpop.f32.mrb[0].mxu0
        %2219 = vmatprep.mubr.f32.mxu0 %v1259
        %2220 = vmatmul.mubr.f32.gmra.mrb[0].mxu0 %v1258
        %v2221 = vpop.f32.mrb[0].mxu0
        %v2222 = vadd.f32 %v1997, %v2221
        %v2223 = vpop.f32.mrb[0].mxu0
        %2224 = vmatprep.mubr.f32.mxu0 %v1268
        %2225 = vmatmul.mubr.f32.gmra.mrb[0].mxu0 %v1267
        %v2226 = vpop.f32.mrb[0].mxu0
        %v2227 = vadd.f32 %v2002, %v2226
        %v2228 = vpop.f32.mrb[0].mxu0
        %2229 = vmatprep.mubr.f32.mxu0 %v1277
        %2230 = vmatmul.mubr.f32.gmra.mrb[0].mxu0 %v1276
        %v2231 = vpop.f32.mrb[0].mxu0
        %v2232 = vadd.f32 %v2007, %v2231
        %v2233 = vpop.f32.mrb[0].mxu0
        %2234 = vmatprep.mubr.f32.mxu0 %v1286
        %2235 = vmatmul.mubr.f32.gmra.mrb[0].mxu0 %v1285
        %v2236 = vpop.f32.mrb[0].mxu0
        %v2237 = vadd.f32 %v2012, %v2236
        %v2238 = vpop.f32.mrb[0].mxu0
        %2239 = vmatprep.mubr.f32.mxu0 %v1295
        %2240 = vmatmul.mubr.f32.gmra.mrb[0].mxu0 %v1294
        %v2241 = vpop.f32.mrb[0].mxu0
        %v2242 = vadd.f32 %v2017, %v2241
        %v2243 = vpop.f32.mrb[0].mxu0
        %2244 = vmatprep.mubr.f32.mxu0 %v1304
        %2245 = vmatmul.mubr.f32.gmra.mrb[0].mxu0 %v1303
        %v2246 = vpop.f32.mrb[0].mxu0
        %v2247 = vadd.f32 %v2022, %v2246
        %v2248 = vpop.f32.mrb[0].mxu0
        %2249 = vmatprep.mubr.f32.mxu0 %v1313
        %2250 = vmatmul.mubr.f32.gmra.mrb[0].mxu0 %v1312
        %v2251 = vpop.f32.mrb[0].mxu0
        %v2252 = vadd.f32 %v2027, %v2251
        %v2253 = vpop.f32.mrb[0].mxu0
        %2254 = vmatprep.mubr.f32.mxu0 %v1322
        %2255 = vmatmul.mubr.f32.gmra.mrb[0].mxu0 %v1321
        %v2256 = vpop.f32.mrb[0].mxu0
        %v2257 = vadd.f32 %v2032, %v2256
        %v2258 = vpop.f32.mrb[0].mxu0
        %2259 = vmatprep.mubr.f32.mxu0 %v1331
        %2260 = vmatmul.mubr.f32.gmra.mrb[0].mxu0 %v1330
        %v2261 = vpop.f32.mrb[0].mxu0
        %v2262 = vadd.f32 %v2037, %v2261
        %v2263 = vpop.f32.mrb[0].mxu0
        %2264 = vmatprep.mubr.f32.mxu0 %v1340
        %2265 = vmatmul.mubr.f32.gmra.mrb[0].mxu0 %v1339
        %v2266 = vpop.f32.mrb[0].mxu0
        %v2267 = vadd.f32 %v2042, %v2266
        %v2268 = vpop.f32.mrb[0].mxu0
        %2269 = vmatprep.mubr.f32.mxu0 %v1349
        %2270 = vmatmul.mubr.f32.gmra.mrb[0].mxu0 %v1348
        %v2271 = vpop.f32.mrb[0].mxu0
        %v2272 = vadd.f32 %v2047, %v2271
        %v2273 = vpop.f32.mrb[0].mxu0
        %2274 = vmatprep.mubr.f32.mxu0 %v1358
        %2275 = vmatmul.mubr.f32.gmra.mrb[0].mxu0 %v1357
        %v2276 = vpop.f32.mrb[0].mxu0
        %v2277 = vadd.f32 %v2052, %v2276
        %v2278 = vpop.f32.mrb[0].mxu0
        %2279 = vmatprep.mubr.f32.mxu0 %v1367
        %2280 = vmatmul.mubr.f32.gmra.mrb[0].mxu0 %v1366
        %v2281 = vpop.f32.mrb[0].mxu0
        %v2282 = vadd.f32 %v2057, %v2281
        %v2283 = vpop.f32.mrb[0].mxu0
        %2284 = vmatprep.mubr.f32.mxu0 %v1376
        %2285 = vmatmul.mubr.f32.gmra.mrb[0].mxu0 %v1375
        %v2286 = vpop.f32.mrb[0].mxu0
        %v2287 = vadd.f32 %v2062, %v2286
        %v2288 = vpop.f32.mrb[0].mxu0
        %2289 = vmatprep.mubr.f32.mxu0 %v1385
        %2290 = vmatmul.mubr.f32.gmra.mrb[0].mxu0 %v1384
        %v2291 = vpop.f32.mrb[0].mxu0
        %v2292 = vadd.f32 %v2067, %v2291
        %v2293 = vpop.f32.mrb[0].mxu0
        %2294 = vmatprep.mubr.f32.mxu0 %v1394
        %2295 = vmatmul.mubr.f32.gmra.mrb[0].mxu0 %v1393
        %v2296 = vpop.f32.mrb[0].mxu0
        %v2297 = vadd.f32 %v2072, %v2296
        %v2298 = vpop.f32.mrb[0].mxu0
        %2299 = vmatprep.mubr.f32.mxu0 %v1403
        %2300 = vmatmul.mubr.f32.gmra.mrb[0].mxu0 %v1402
        %v2301 = vpop.f32.mrb[0].mxu0
        %v2302 = vadd.f32 %v2077, %v2301
        %v2303 = vpop.f32.mrb[0].mxu0
        %2304 = vdwg.mxu0
        %2305 = vmatprep.subr.mxu0 0.0
        %2306 = vmatpush1.msra.mxu0 %v413
        %2307 = vmatprep.subr.mxu0 0.0
        %2308 = vmatpush1.msra.mxu0 %v414
        %2309 = vmatprep.subr.mxu0 0.0
        %2310 = vmatpush1.msra.mxu0 %v415
        %2311 = vmatprep.subr.mxu0 0.0
        %2312 = vmatpush1.msra.mxu0 %v416
        %2313 = vmatprep.subr.mxu0 0.0
        %2314 = vmatpush1.msra.mxu0 %v417
        %2315 = vmatprep.subr.mxu0 0.0
        %2316 = vmatpush1.msra.mxu0 %v418
        %2317 = vmatprep.subr.mxu0 0.0
        %2318 = vmatpush1.msra.mxu0 %v419
        %2319 = vmatprep.subr.mxu0 0.0
        %2320 = vmatpush1.msra.mxu0 %v420
        %2321 = vmatprep.subr.mxu0 0.0
        %2322 = vmatpush1.msra.mxu0 %v421
        %2323 = vmatprep.subr.mxu0 0.0
        %2324 = vmatpush1.msra.mxu0 %v422
        %2325 = vmatprep.subr.mxu0 0.0
        %2326 = vmatpush1.msra.mxu0 %v423
        %2327 = vmatprep.subr.mxu0 0.0
        %2328 = vmatpush1.msra.mxu0 %v424
        %2329 = vmatprep.subr.mxu0 0.0
        %2330 = vmatpush1.msra.mxu0 %v425
        %2331 = vmatprep.subr.mxu0 0.0
        %2332 = vmatpush1.msra.mxu0 %v426
        %2333 = vmatprep.subr.mxu0 0.0
        %2334 = vmatpush1.msra.mxu0 %v427
        %2335 = vmatprep.subr.mxu0 0.0
        %2336 = vmatpush1.msra.mxu0 %v428
        %2337 = vmatprep.subr.mxu0 0.0
        %2338 = vmatpush1.msra.mxu0 0.0
        %2339 = vmatprep.subr.mxu0 0.0
        %2340 = vmatpush1.msra.mxu0 0.0
        %2341 = vmatprep.subr.mxu0 0.0
        %2342 = vmatpush1.msra.mxu0 0.0
        %2343 = vmatprep.subr.mxu0 0.0
        %2344 = vmatpush1.msra.mxu0 0.0
        %2345 = vmatprep.subr.mxu0 0.0
        %2346 = vmatpush1.msra.mxu0 0.0
        %2347 = vmatprep.subr.mxu0 0.0
        %2348 = vmatpush1.msra.mxu0 0.0
        %2349 = vmatprep.subr.mxu0 0.0
        %2350 = vmatpush1.msra.mxu0 0.0
        %2351 = vmatprep.subr.mxu0 0.0
        %2352 = vmatpush1.msra.mxu0 0.0
        %2353 = vmatprep.subr.mxu0 0.0
        %2354 = vmatpush1.msra.mxu0 0.0
        %2355 = vmatprep.subr.mxu0 0.0
        %2356 = vmatpush1.msra.mxu0 0.0
        %2357 = vmatprep.subr.mxu0 0.0
        %2358 = vmatpush1.msra.mxu0 0.0
        %2359 = vmatprep.subr.mxu0 0.0
        %2360 = vmatpush1.msra.mxu0 0.0
        %2361 = vmatprep.subr.mxu0 0.0
        %2362 = vmatpush1.msra.mxu0 0.0
        %2363 = vmatprep.subr.mxu0 0.0
        %2364 = vmatpush1.msra.mxu0 0.0
        %2365 = vmatprep.subr.mxu0 0.0
        %2366 = vmatpush1.msra.mxu0 0.0
        %2367 = vmatprep.subr.mxu0 0.0
        %2368 = vmatpush1.msra.mxu0 0.0
        %2369 = vmatprep.mubr.f32.mxu0 0.0
        %2370 = vmatmul.mubr.f32.gmra.mrb[0].mxu0 %v1125
        %v2371 = vpop.f32.mrb[0].mxu0
        %v2372 = vadd.f32 %v2147, %v2371
        %v2373 = vpop.f32.mrb[0].mxu0
        %2374 = vmatprep.mubr.f32.mxu0 0.0
        %2375 = vmatmul.mubr.f32.gmra.mrb[0].mxu0 %v1134
        %v2376 = vpop.f32.mrb[0].mxu0
        %v2377 = vadd.f32 %v2152, %v2376
        %v2378 = vpop.f32.mrb[0].mxu0
        %2379 = vmatprep.mubr.f32.mxu0 0.0
        %2380 = vmatmul.mubr.f32.gmra.mrb[0].mxu0 %v1143
        %v2381 = vpop.f32.mrb[0].mxu0
        %v2382 = vadd.f32 %v2157, %v2381
        %v2383 = vpop.f32.mrb[0].mxu0
        %2384 = vmatprep.mubr.f32.mxu0 0.0
        %2385 = vmatmul.mubr.f32.gmra.mrb[0].mxu0 %v1152
        %v2386 = vpop.f32.mrb[0].mxu0
        %v2387 = vadd.f32 %v2162, %v2386
        %v2388 = vpop.f32.mrb[0].mxu0
        %2389 = vmatprep.mubr.f32.mxu0 0.0
        %2390 = vmatmul.mubr.f32.gmra.mrb[0].mxu0 %v1161
        %v2391 = vpop.f32.mrb[0].mxu0
        %v2392 = vadd.f32 %v2167, %v2391
        %v2393 = vpop.f32.mrb[0].mxu0
        %2394 = vmatprep.mubr.f32.mxu0 0.0
        %2395 = vmatmul.mubr.f32.gmra.mrb[0].mxu0 %v1170
        %v2396 = vpop.f32.mrb[0].mxu0
        %v2397 = vadd.f32 %v2172, %v2396
        %v2398 = vpop.f32.mrb[0].mxu0
        %2399 = vmatprep.mubr.f32.mxu0 0.0
        %2400 = vmatmul.mubr.f32.gmra.mrb[0].mxu0 %v1179
        %v2401 = vpop.f32.mrb[0].mxu0
        %v2402 = vadd.f32 %v2177, %v2401
        %v2403 = vpop.f32.mrb[0].mxu0
        %2404 = vmatprep.mubr.f32.mxu0 0.0
        %2405 = vmatmul.mubr.f32.gmra.mrb[0].mxu0 %v1188
        %v2406 = vpop.f32.mrb[0].mxu0
        %v2407 = vadd.f32 %v2182, %v2406
        %v2408 = vpop.f32.mrb[0].mxu0
        %2409 = vmatprep.mubr.f32.mxu0 0.0
        %2410 = vmatmul.mubr.f32.gmra.mrb[0].mxu0 %v1197
        %v2411 = vpop.f32.mrb[0].mxu0
        %v2412 = vadd.f32 %v2187, %v2411
        %v2413 = vpop.f32.mrb[0].mxu0
        %2414 = vmatprep.mubr.f32.mxu0 0.0
        %2415 = vmatmul.mubr.f32.gmra.mrb[0].mxu0 %v1206
        %v2416 = vpop.f32.mrb[0].mxu0
        %v2417 = vadd.f32 %v2192, %v2416
        %v2418 = vpop.f32.mrb[0].mxu0
        %2419 = vmatprep.mubr.f32.mxu0 0.0
        %2420 = vmatmul.mubr.f32.gmra.mrb[0].mxu0 %v1215
        %v2421 = vpop.f32.mrb[0].mxu0
        %v2422 = vadd.f32 %v2197, %v2421
        %v2423 = vpop.f32.mrb[0].mxu0
        %2424 = vmatprep.mubr.f32.mxu0 0.0
        %2425 = vmatmul.mubr.f32.gmra.mrb[0].mxu0 %v1224
        %v2426 = vpop.f32.mrb[0].mxu0
        %v2427 = vadd.f32 %v2202, %v2426
        %v2428 = vpop.f32.mrb[0].mxu0
        %2429 = vmatprep.mubr.f32.mxu0 0.0
        %2430 = vmatmul.mubr.f32.gmra.mrb[0].mxu0 %v1233
        %v2431 = vpop.f32.mrb[0].mxu0
        %v2432 = vadd.f32 %v2207, %v2431
        %v2433 = vpop.f32.mrb[0].mxu0
        %2434 = vmatprep.mubr.f32.mxu0 0.0
        %2435 = vmatmul.mubr.f32.gmra.mrb[0].mxu0 %v1242
        %v2436 = vpop.f32.mrb[0].mxu0
        %v2437 = vadd.f32 %v2212, %v2436
        %v2438 = vpop.f32.mrb[0].mxu0
        %2439 = vmatprep.mubr.f32.mxu0 0.0
        %2440 = vmatmul.mubr.f32.gmra.mrb[0].mxu0 %v1251
        %v2441 = vpop.f32.mrb[0].mxu0
        %v2442 = vadd.f32 %v2217, %v2441
        %v2443 = vpop.f32.mrb[0].mxu0
        %2444 = vmatprep.mubr.f32.mxu0 0.0
        %2445 = vmatmul.mubr.f32.gmra.mrb[0].mxu0 %v1260
        %v2446 = vpop.f32.mrb[0].mxu0
        %v2447 = vadd.f32 %v2222, %v2446
        %v2448 = vpop.f32.mrb[0].mxu0
        %2449 = vmatprep.mubr.f32.mxu0 0.0
        %2450 = vmatmul.mubr.f32.gmra.mrb[0].mxu0 %v1269
        %v2451 = vpop.f32.mrb[0].mxu0
        %v2452 = vadd.f32 %v2227, %v2451
        %v2453 = vpop.f32.mrb[0].mxu0
        %2454 = vmatprep.mubr.f32.mxu0 0.0
        %2455 = vmatmul.mubr.f32.gmra.mrb[0].mxu0 %v1278
        %v2456 = vpop.f32.mrb[0].mxu0
        %v2457 = vadd.f32 %v2232, %v2456
        %v2458 = vpop.f32.mrb[0].mxu0
        %2459 = vmatprep.mubr.f32.mxu0 0.0
        %2460 = vmatmul.mubr.f32.gmra.mrb[0].mxu0 %v1287
        %v2461 = vpop.f32.mrb[0].mxu0
        %v2462 = vadd.f32 %v2237, %v2461
        %v2463 = vpop.f32.mrb[0].mxu0
        %2464 = vmatprep.mubr.f32.mxu0 0.0
        %2465 = vmatmul.mubr.f32.gmra.mrb[0].mxu0 %v1296
        %v2466 = vpop.f32.mrb[0].mxu0
        %v2467 = vadd.f32 %v2242, %v2466
        %v2468 = vpop.f32.mrb[0].mxu0
        %2469 = vmatprep.mubr.f32.mxu0 0.0
        %2470 = vmatmul.mubr.f32.gmra.mrb[0].mxu0 %v1305
        %v2471 = vpop.f32.mrb[0].mxu0
        %v2472 = vadd.f32 %v2247, %v2471
        %v2473 = vpop.f32.mrb[0].mxu0
        %2474 = vmatprep.mubr.f32.mxu0 0.0
        %2475 = vmatmul.mubr.f32.gmra.mrb[0].mxu0 %v1314
        %v2476 = vpop.f32.mrb[0].mxu0
        %v2477 = vadd.f32 %v2252, %v2476
        %v2478 = vpop.f32.mrb[0].mxu0
        %2479 = vmatprep.mubr.f32.mxu0 0.0
        %2480 = vmatmul.mubr.f32.gmra.mrb[0].mxu0 %v1323
        %v2481 = vpop.f32.mrb[0].mxu0
        %v2482 = vadd.f32 %v2257, %v2481
        %v2483 = vpop.f32.mrb[0].mxu0
        %2484 = vmatprep.mubr.f32.mxu0 0.0
        %2485 = vmatmul.mubr.f32.gmra.mrb[0].mxu0 %v1332
        %v2486 = vpop.f32.mrb[0].mxu0
        %v2487 = vadd.f32 %v2262, %v2486
        %v2488 = vpop.f32.mrb[0].mxu0
        %2489 = vmatprep.mubr.f32.mxu0 0.0
        %2490 = vmatmul.mubr.f32.gmra.mrb[0].mxu0 %v1341
        %v2491 = vpop.f32.mrb[0].mxu0
        %v2492 = vadd.f32 %v2267, %v2491
        %v2493 = vpop.f32.mrb[0].mxu0
        %2494 = vmatprep.mubr.f32.mxu0 0.0
        %2495 = vmatmul.mubr.f32.gmra.mrb[0].mxu0 %v1350
        %v2496 = vpop.f32.mrb[0].mxu0
        %v2497 = vadd.f32 %v2272, %v2496
        %v2498 = vpop.f32.mrb[0].mxu0
        %2499 = vmatprep.mubr.f32.mxu0 0.0
        %2500 = vmatmul.mubr.f32.gmra.mrb[0].mxu0 %v1359
        %v2501 = vpop.f32.mrb[0].mxu0
        %v2502 = vadd.f32 %v2277, %v2501
        %v2503 = vpop.f32.mrb[0].mxu0
        %2504 = vmatprep.mubr.f32.mxu0 0.0
        %2505 = vmatmul.mubr.f32.gmra.mrb[0].mxu0 %v1368
        %v2506 = vpop.f32.mrb[0].mxu0
        %v2507 = vadd.f32 %v2282, %v2506
        %v2508 = vpop.f32.mrb[0].mxu0
        %2509 = vmatprep.mubr.f32.mxu0 0.0
        %2510 = vmatmul.mubr.f32.gmra.mrb[0].mxu0 %v1377
        %v2511 = vpop.f32.mrb[0].mxu0
        %v2512 = vadd.f32 %v2287, %v2511
        %v2513 = vpop.f32.mrb[0].mxu0
        %2514 = vmatprep.mubr.f32.mxu0 0.0
        %2515 = vmatmul.mubr.f32.gmra.mrb[0].mxu0 %v1386
        %v2516 = vpop.f32.mrb[0].mxu0
        %v2517 = vadd.f32 %v2292, %v2516
        %v2518 = vpop.f32.mrb[0].mxu0
        %2519 = vmatprep.mubr.f32.mxu0 0.0
        %2520 = vmatmul.mubr.f32.gmra.mrb[0].mxu0 %v1395
        %v2521 = vpop.f32.mrb[0].mxu0
        %v2522 = vadd.f32 %v2297, %v2521
        %v2523 = vpop.f32.mrb[0].mxu0
        %2524 = vmatprep.mubr.f32.mxu0 0.0
        %2525 = vmatmul.mubr.f32.gmra.mrb[0].mxu0 %v1404
        %v2526 = vpop.f32.mrb[0].mxu0
        %v2527 = vadd.f32 %v2302, %v2526
        %v2528 = vpop.f32.mrb[0].mxu0
        %2529 = vdwg.mxu0
        %v2530 = vadd.f32 %v2372, %v2377
        %v2531 = vadd.f32 %v2530, %v2382
        %v2532 = vadd.f32 %v2531, %v2387
        %v2533 = vadd.f32 %v2532, %v2392
        %v2534 = vadd.f32 %v2533, %v2397
        %v2535 = vadd.f32 %v2534, %v2402
        %v2536 = vadd.f32 %v2535, %v2407
        %v2537 = vadd.f32 %v2536, %v2412
        %v2538 = vadd.f32 %v2537, %v2417
        %v2539 = vadd.f32 %v2538, %v2422
        %v2540 = vadd.f32 %v2539, %v2427
        %v2541 = vadd.f32 %v2540, %v2432
        %v2542 = vadd.f32 %v2541, %v2437
        %v2543 = vadd.f32 %v2542, %v2442
        %v2544 = vadd.f32 %v2543, %v2447
        %v2545 = vadd.f32 %v2544, %v2452
        %v2546 = vadd.f32 %v2545, %v2457
        %v2547 = vadd.f32 %v2546, %v2462
        %v2548 = vadd.f32 %v2547, %v2467
        %v2549 = vadd.f32 %v2548, %v2472
        %v2550 = vadd.f32 %v2549, %v2477
        %v2551 = vadd.f32 %v2550, %v2482
        %v2552 = vadd.f32 %v2551, %v2487
        %v2553 = vadd.f32 %v2552, %v2492
        %v2554 = vadd.f32 %v2553, %v2497
        %v2555 = vadd.f32 %v2554, %v2502
        %v2556 = vadd.f32 %v2555, %v2507
        %v2557 = vadd.f32 %v2556, %v2512
        %v2558 = vadd.f32 %v2557, %v2517
        %v2559 = vadd.f32 %v2558, %v2522
        %v2560 = vadd.f32 %v2559, %v2527
        %v2561 = vrot.slane %v2560, 4
        %v2562 = vadd.f32 %v2560, %v2561
        %v2563 = vrot.slane %v2562, 2
        %v2564 = vadd.f32 %v2562, %v2563
        %v2565 = vrot.slane %v2564, 1
        %v2566 = vadd.f32 %v2564, %v2565
        %v2567 = vmul.f32 %v2566, 0.00390625
        %v2568 = vmul.f32 %v2372, %v2372
        %v2569 = vmul.f32 %v2377, %v2377
        %v2570 = vmul.f32 %v2382, %v2382
        %v2571 = vmul.f32 %v2387, %v2387
        %v2572 = vmul.f32 %v2392, %v2392
        %v2573 = vmul.f32 %v2397, %v2397
        %v2574 = vmul.f32 %v2402, %v2402
        %v2575 = vmul.f32 %v2407, %v2407
        %v2576 = vmul.f32 %v2412, %v2412
        %v2577 = vmul.f32 %v2417, %v2417
        %v2578 = vmul.f32 %v2422, %v2422
        %v2579 = vmul.f32 %v2427, %v2427
        %v2580 = vmul.f32 %v2432, %v2432
        %v2581 = vmul.f32 %v2437, %v2437
        %v2582 = vmul.f32 %v2442, %v2442
        %v2583 = vmul.f32 %v2447, %v2447
        %v2584 = vmul.f32 %v2452, %v2452
        %v2585 = vmul.f32 %v2457, %v2457
        %v2586 = vmul.f32 %v2462, %v2462
        %v2587 = vmul.f32 %v2467, %v2467
        %v2588 = vmul.f32 %v2472, %v2472
        %v2589 = vmul.f32 %v2477, %v2477
        %v2590 = vmul.f32 %v2482, %v2482
        %v2591 = vmul.f32 %v2487, %v2487
        %v2592 = vmul.f32 %v2492, %v2492
        %v2593 = vmul.f32 %v2497, %v2497
        %v2594 = vmul.f32 %v2502, %v2502
        %v2595 = vmul.f32 %v2507, %v2507
        %v2596 = vmul.f32 %v2512, %v2512
        %v2597 = vmul.f32 %v2517, %v2517
        %v2598 = vmul.f32 %v2522, %v2522
        %v2599 = vmul.f32 %v2527, %v2527
        %v2600 = vadd.f32 %v2568, %v2569
        %v2601 = vadd.f32 %v2600, %v2570
        %v2602 = vadd.f32 %v2601, %v2571
        %v2603 = vadd.f32 %v2602, %v2572
        %v2604 = vadd.f32 %v2603, %v2573
        %v2605 = vadd.f32 %v2604, %v2574
        %v2606 = vadd.f32 %v2605, %v2575
        %v2607 = vadd.f32 %v2606, %v2576
        %v2608 = vadd.f32 %v2607, %v2577
        %v2609 = vadd.f32 %v2608, %v2578
        %v2610 = vadd.f32 %v2609, %v2579
        %v2611 = vadd.f32 %v2610, %v2580
        %v2612 = vadd.f32 %v2611, %v2581
        %v2613 = vadd.f32 %v2612, %v2582
        %v2614 = vadd.f32 %v2613, %v2583
        %v2615 = vadd.f32 %v2614, %v2584
        %v2616 = vadd.f32 %v2615, %v2585
        %v2617 = vadd.f32 %v2616, %v2586
        %v2618 = vadd.f32 %v2617, %v2587
        %v2619 = vadd.f32 %v2618, %v2588
        %v2620 = vadd.f32 %v2619, %v2589
        %v2621 = vadd.f32 %v2620, %v2590
        %v2622 = vadd.f32 %v2621, %v2591
        %v2623 = vadd.f32 %v2622, %v2592
        %v2624 = vadd.f32 %v2623, %v2593
        %v2625 = vadd.f32 %v2624, %v2594
        %v2626 = vadd.f32 %v2625, %v2595
        %v2627 = vadd.f32 %v2626, %v2596
        %v2628 = vadd.f32 %v2627, %v2597
        %v2629 = vadd.f32 %v2628, %v2598
        %v2630 = vadd.f32 %v2629, %v2599
        %v2631 = vrot.slane %v2630, 4
        %v2632 = vadd.f32 %v2630, %v2631
        %v2633 = vrot.slane %v2632, 2
        %v2634 = vadd.f32 %v2632, %v2633
        %v2635 = vrot.slane %v2634, 1
        %v2636 = vadd.f32 %v2634, %v2635
        %v2637 = vmul.f32 %v2636, 0.00390625
        %v2638 = vmul.f32 %v2567, %v2567
        %v2639 = vsub.f32 %v2637, %v2638
        %v2640 = vsub.f32 %v2372, %v2567
        %v2641 = vsub.f32 %v2377, %v2567
        %v2642 = vsub.f32 %v2382, %v2567
        %v2643 = vsub.f32 %v2387, %v2567
        %v2644 = vsub.f32 %v2392, %v2567
        %v2645 = vsub.f32 %v2397, %v2567
        %v2646 = vsub.f32 %v2402, %v2567
        %v2647 = vsub.f32 %v2407, %v2567
        %v2648 = vsub.f32 %v2412, %v2567
        %v2649 = vsub.f32 %v2417, %v2567
        %v2650 = vsub.f32 %v2422, %v2567
        %v2651 = vsub.f32 %v2427, %v2567
        %v2652 = vsub.f32 %v2432, %v2567
        %v2653 = vsub.f32 %v2437, %v2567
        %v2654 = vsub.f32 %v2442, %v2567
        %v2655 = vsub.f32 %v2447, %v2567
        %v2656 = vsub.f32 %v2452, %v2567
        %v2657 = vsub.f32 %v2457, %v2567
        %v2658 = vsub.f32 %v2462, %v2567
        %v2659 = vsub.f32 %v2467, %v2567
        %v2660 = vsub.f32 %v2472, %v2567
        %v2661 = vsub.f32 %v2477, %v2567
        %v2662 = vsub.f32 %v2482, %v2567
        %v2663 = vsub.f32 %v2487, %v2567
        %v2664 = vsub.f32 %v2492, %v2567
        %v2665 = vsub.f32 %v2497, %v2567
        %v2666 = vsub.f32 %v2502, %v2567
        %v2667 = vsub.f32 %v2507, %v2567
        %v2668 = vsub.f32 %v2512, %v2567
        %v2669 = vsub.f32 %v2517, %v2567
        %v2670 = vsub.f32 %v2522, %v2567
        %v2671 = vsub.f32 %v2527, %v2567
        %v2672 = vadd.f32 %v2639, 1e-05
        %v2673 = vrsqrt.pop %v2672
        %v2674 = vmul.f32 %v2640, %v2673
        %v2675 = vmul.f32 %v2641, %v2673
        %v2676 = vmul.f32 %v2642, %v2673
        %v2677 = vmul.f32 %v2643, %v2673
        %v2678 = vmul.f32 %v2644, %v2673
        %v2679 = vmul.f32 %v2645, %v2673
        %v2680 = vmul.f32 %v2646, %v2673
        %v2681 = vmul.f32 %v2647, %v2673
        %v2682 = vmul.f32 %v2648, %v2673
        %v2683 = vmul.f32 %v2649, %v2673
        %v2684 = vmul.f32 %v2650, %v2673
        %v2685 = vmul.f32 %v2651, %v2673
        %v2686 = vmul.f32 %v2652, %v2673
        %v2687 = vmul.f32 %v2653, %v2673
        %v2688 = vmul.f32 %v2654, %v2673
        %v2689 = vmul.f32 %v2655, %v2673
        %v2690 = vmul.f32 %v2656, %v2673
        %v2691 = vmul.f32 %v2657, %v2673
        %v2692 = vmul.f32 %v2658, %v2673
        %v2693 = vmul.f32 %v2659, %v2673
        %v2694 = vmul.f32 %v2660, %v2673
        %v2695 = vmul.f32 %v2661, %v2673
        %v2696 = vmul.f32 %v2662, %v2673
        %v2697 = vmul.f32 %v2663, %v2673
        %v2698 = vmul.f32 %v2664, %v2673
        %v2699 = vmul.f32 %v2665, %v2673
        %v2700 = vmul.f32 %v2666, %v2673
        %v2701 = vmul.f32 %v2667, %v2673
        %v2702 = vmul.f32 %v2668, %v2673
        %v2703 = vmul.f32 %v2669, %v2673
        %v2704 = vmul.f32 %v2670, %v2673
        %v2705 = vmul.f32 %v2671, %v2673
        %v2706 = vmax.f32 %v2674, 0.0
        %v2707 = vmax.f32 %v2675, 0.0
        %v2708 = vmax.f32 %v2676, 0.0
        %v2709 = vmax.f32 %v2677, 0.0
        %v2710 = vmax.f32 %v2678, 0.0
        %v2711 = vmax.f32 %v2679, 0.0
        %v2712 = vmax.f32 %v2680, 0.0
        %v2713 = vmax.f32 %v2681, 0.0
        %v2714 = vmax.f32 %v2682, 0.0
        %v2715 = vmax.f32 %v2683, 0.0
        %v2716 = vmax.f32 %v2684, 0.0
        %v2717 = vmax.f32 %v2685, 0.0
        %v2718 = vmax.f32 %v2686, 0.0
        %v2719 = vmax.f32 %v2687, 0.0
        %v2720 = vmax.f32 %v2688, 0.0
        %v2721 = vmax.f32 %v2689, 0.0
        %v2722 = vmax.f32 %v2690, 0.0
        %v2723 = vmax.f32 %v2691, 0.0
        %v2724 = vmax.f32 %v2692, 0.0
        %v2725 = vmax.f32 %v2693, 0.0
        %v2726 = vmax.f32 %v2694, 0.0
        %v2727 = vmax.f32 %v2695, 0.0
        %v2728 = vmax.f32 %v2696, 0.0
        %v2729 = vmax.f32 %v2697, 0.0
        %v2730 = vmax.f32 %v2698, 0.0
        %v2731 = vmax.f32 %v2699, 0.0
        %v2732 = vmax.f32 %v2700, 0.0
        %v2733 = vmax.f32 %v2701, 0.0
        %v2734 = vmax.f32 %v2702, 0.0
        %v2735 = vmax.f32 %v2703, 0.0
        %v2736 = vmax.f32 %v2704, 0.0
        %v2737 = vmax.f32 %v2705, 0.0
        %v2738 = vld [vmem:[#allocation7] sm:$0xff]
        %v2739 = vld [vmem:[#allocation7 + $0x8] sm:$0xff]
        %v2740 = vld [vmem:[#allocation7 + $0x10] sm:$0xff]
        %v2741 = vld [vmem:[#allocation7 + $0x18] sm:$0xff]
        %v2742 = vld [vmem:[#allocation7 + $0x20] sm:$0xff]
        %v2743 = vld [vmem:[#allocation7 + $0x28] sm:$0xff]
        %v2744 = vld [vmem:[#allocation7 + $0x30] sm:$0xff]
        %v2745 = vld [vmem:[#allocation7 + $0x38] sm:$0xff]
        %v2746 = vld [vmem:[#allocation7 + $0x40] sm:$0xff]
        %v2747 = vld [vmem:[#allocation7 + $0x48] sm:$0xff]
        %v2748 = vld [vmem:[#allocation7 + $0x50] sm:$0xff]
        %v2749 = vld [vmem:[#allocation7 + $0x58] sm:$0xff]
        %v2750 = vld [vmem:[#allocation7 + $0x60] sm:$0xff]
        %v2751 = vld [vmem:[#allocation7 + $0x68] sm:$0xff]
        %v2752 = vld [vmem:[#allocation7 + $0x70] sm:$0xff]
        %v2753 = vld [vmem:[#allocation7 + $0x78] sm:$0xff]
        %v2754 = vld [vmem:[#allocation7 + $0x80] sm:$0xff]
        %v2755 = vld [vmem:[#allocation7 + $0x88] sm:$0xff]
        %v2756 = vld [vmem:[#allocation7 + $0x90] sm:$0xff]
        %v2757 = vld [vmem:[#allocation7 + $0x98] sm:$0xff]
        %v2758 = vld [vmem:[#allocation7 + $0xa0] sm:$0xff]
        %v2759 = vld [vmem:[#allocation7 + $0xa8] sm:$0xff]
        %v2760 = vld [vmem:[#allocation7 + $0xb0] sm:$0xff]
        %v2761 = vld [vmem:[#allocation7 + $0xb8] sm:$0xff]
        %v2762 = vld [vmem:[#allocation7 + $0xc0] sm:$0xff]
        %v2763 = vld [vmem:[#allocation7 + $0xc8] sm:$0xff]
        %v2764 = vld [vmem:[#allocation7 + $0xd0] sm:$0xff]
        %v2765 = vld [vmem:[#allocation7 + $0xd8] sm:$0xff]
        %v2766 = vld [vmem:[#allocation7 + $0xe0] sm:$0xff]
        %v2767 = vld [vmem:[#allocation7 + $0xe8] sm:$0xff]
        %v2768 = vld [vmem:[#allocation7 + $0xf0] sm:$0xff]
        %v2769 = vld [vmem:[#allocation7 + $0xf8] sm:$0xff]
        %v2770 = vld [vmem:[#allocation7 + $0x100] sm:$0xff]
        %v2771 = vld [vmem:[#allocation7 + $0x108] sm:$0xff]
        %v2772 = vld [vmem:[#allocation7 + $0x110] sm:$0xff]
        %v2773 = vld [vmem:[#allocation7 + $0x118] sm:$0xff]
        %v2774 = vld [vmem:[#allocation7 + $0x120] sm:$0xff]
        %v2775 = vld [vmem:[#allocation7 + $0x128] sm:$0xff]
        %v2776 = vld [vmem:[#allocation7 + $0x130] sm:$0xff]
        %v2777 = vld [vmem:[#allocation7 + $0x138] sm:$0xff]
        %v2778 = vld [vmem:[#allocation7 + $0x140] sm:$0xff]
        %v2779 = vld [vmem:[#allocation7 + $0x148] sm:$0xff]
        %v2780 = vld [vmem:[#allocation7 + $0x150] sm:$0xff]
        %v2781 = vld [vmem:[#allocation7 + $0x158] sm:$0xff]
        %v2782 = vld [vmem:[#allocation7 + $0x160] sm:$0xff]
        %v2783 = vld [vmem:[#allocation7 + $0x168] sm:$0xff]
        %v2784 = vld [vmem:[#allocation7 + $0x170] sm:$0xff]
        %v2785 = vld [vmem:[#allocation7 + $0x178] sm:$0xff]
        %v2786 = vld [vmem:[#allocation7 + $0x180] sm:$0xff]
        %v2787 = vld [vmem:[#allocation7 + $0x188] sm:$0xff]
        %v2788 = vld [vmem:[#allocation7 + $0x190] sm:$0xff]
        %v2789 = vld [vmem:[#allocation7 + $0x198] sm:$0xff]
        %v2790 = vld [vmem:[#allocation7 + $0x1a0] sm:$0xff]
        %v2791 = vld [vmem:[#allocation7 + $0x1a8] sm:$0xff]
        %v2792 = vld [vmem:[#allocation7 + $0x1b0] sm:$0xff]
        %v2793 = vld [vmem:[#allocation7 + $0x1b8] sm:$0xff]
        %v2794 = vld [vmem:[#allocation7 + $0x1c0] sm:$0xff]
        %v2795 = vld [vmem:[#allocation7 + $0x1c8] sm:$0xff]
        %v2796 = vld [vmem:[#allocation7 + $0x1d0] sm:$0xff]
        %v2797 = vld [vmem:[#allocation7 + $0x1d8] sm:$0xff]
        %v2798 = vld [vmem:[#allocation7 + $0x1e0] sm:$0xff]
        %v2799 = vld [vmem:[#allocation7 + $0x1e8] sm:$0xff]
        %v2800 = vld [vmem:[#allocation7 + $0x1f0] sm:$0xff]
        %v2801 = vld [vmem:[#allocation7 + $0x1f8] sm:$0xff]
        %v2802 = vld [vmem:[#allocation7 + $0x200] sm:$0xff]
        %v2803 = vld [vmem:[#allocation7 + $0x208] sm:$0xff]
        %v2804 = vld [vmem:[#allocation7 + $0x210] sm:$0xff]
        %v2805 = vld [vmem:[#allocation7 + $0x218] sm:$0xff]
        %v2806 = vld [vmem:[#allocation7 + $0x220] sm:$0xff]
        %v2807 = vld [vmem:[#allocation7 + $0x228] sm:$0xff]
        %v2808 = vld [vmem:[#allocation7 + $0x230] sm:$0xff]
        %v2809 = vld [vmem:[#allocation7 + $0x238] sm:$0xff]
        %v2810 = vld [vmem:[#allocation7 + $0x240] sm:$0xff]
        %v2811 = vld [vmem:[#allocation7 + $0x248] sm:$0xff]
        %v2812 = vld [vmem:[#allocation7 + $0x250] sm:$0xff]
        %v2813 = vld [vmem:[#allocation7 + $0x258] sm:$0xff]
        %v2814 = vld [vmem:[#allocation7 + $0x260] sm:$0xff]
        %v2815 = vld [vmem:[#allocation7 + $0x268] sm:$0xff]
        %v2816 = vld [vmem:[#allocation7 + $0x270] sm:$0xff]
        %v2817 = vld [vmem:[#allocation7 + $0x278] sm:$0xff]
        %v2818 = vld [vmem:[#allocation7 + $0x280] sm:$0xff]
        %v2819 = vld [vmem:[#allocation7 + $0x288] sm:$0xff]
        %v2820 = vld [vmem:[#allocation7 + $0x290] sm:$0xff]
        %v2821 = vld [vmem:[#allocation7 + $0x298] sm:$0xff]
        %v2822 = vld [vmem:[#allocation7 + $0x2a0] sm:$0xff]
        %v2823 = vld [vmem:[#allocation7 + $0x2a8] sm:$0xff]
        %v2824 = vld [vmem:[#allocation7 + $0x2b0] sm:$0xff]
        %v2825 = vld [vmem:[#allocation7 + $0x2b8] sm:$0xff]
        %v2826 = vld [vmem:[#allocation7 + $0x2c0] sm:$0xff]
        %v2827 = vld [vmem:[#allocation7 + $0x2c8] sm:$0xff]
        %v2828 = vld [vmem:[#allocation7 + $0x2d0] sm:$0xff]
        %v2829 = vld [vmem:[#allocation7 + $0x2d8] sm:$0xff]
        %v2830 = vld [vmem:[#allocation7 + $0x2e0] sm:$0xff]
        %v2831 = vld [vmem:[#allocation7 + $0x2e8] sm:$0xff]
        %v2832 = vld [vmem:[#allocation7 + $0x2f0] sm:$0xff]
        %v2833 = vld [vmem:[#allocation7 + $0x2f8] sm:$0xff]
        %v2834 = vld [vmem:[#allocation7 + $0x300] sm:$0xff]
        %v2835 = vld [vmem:[#allocation7 + $0x308] sm:$0xff]
        %v2836 = vld [vmem:[#allocation7 + $0x310] sm:$0xff]
        %v2837 = vld [vmem:[#allocation7 + $0x318] sm:$0xff]
        %v2838 = vld [vmem:[#allocation7 + $0x320] sm:$0xff]
        %v2839 = vld [vmem:[#allocation7 + $0x328] sm:$0xff]
        %v2840 = vld [vmem:[#allocation7 + $0x330] sm:$0xff]
        %v2841 = vld [vmem:[#allocation7 + $0x338] sm:$0xff]
        %v2842 = vld [vmem:[#allocation7 + $0x340] sm:$0xff]
        %v2843 = vld [vmem:[#allocation7 + $0x348] sm:$0xff]
        %v2844 = vld [vmem:[#allocation7 + $0x350] sm:$0xff]
        %v2845 = vld [vmem:[#allocation7 + $0x358] sm:$0xff]
        %v2846 = vld [vmem:[#allocation7 + $0x360] sm:$0xff]
        %v2847 = vld [vmem:[#allocation7 + $0x368] sm:$0xff]
        %v2848 = vld [vmem:[#allocation7 + $0x370] sm:$0xff]
        %v2849 = vld [vmem:[#allocation7 + $0x378] sm:$0xff]
        %v2850 = vld [vmem:[#allocation7 + $0x380] sm:$0xff]
        %v2851 = vld [vmem:[#allocation7 + $0x388] sm:$0xff]
        %v2852 = vld [vmem:[#allocation7 + $0x390] sm:$0xff]
        %v2853 = vld [vmem:[#allocation7 + $0x398] sm:$0xff]
        %v2854 = vld [vmem:[#allocation7 + $0x3a0] sm:$0xff]
        %v2855 = vld [vmem:[#allocation7 + $0x3a8] sm:$0xff]
        %v2856 = vld [vmem:[#allocation7 + $0x3b0] sm:$0xff]
        %v2857 = vld [vmem:[#allocation7 + $0x3b8] sm:$0xff]
        %v2858 = vld [vmem:[#allocation7 + $0x3c0] sm:$0xff]
        %v2859 = vld [vmem:[#allocation7 + $0x3c8] sm:$0xff]
        %v2860 = vld [vmem:[#allocation7 + $0x3d0] sm:$0xff]
        %v2861 = vld [vmem:[#allocation7 + $0x3d8] sm:$0xff]
        %v2862 = vld [vmem:[#allocation7 + $0x3e0] sm:$0xff]
        %v2863 = vld [vmem:[#allocation7 + $0x3e8] sm:$0xff]
        %v2864 = vld [vmem:[#allocation7 + $0x3f0] sm:$0xff]
        %v2865 = vld [vmem:[#allocation7 + $0x3f8] sm:$0xff]
        %v2866 = vld [vmem:[#allocation7 + $0x400] sm:$0xff]
        %v2867 = vld [vmem:[#allocation7 + $0x408] sm:$0xff]
        %v2868 = vld [vmem:[#allocation7 + $0x410] sm:$0xff]
        %v2869 = vld [vmem:[#allocation7 + $0x418] sm:$0xff]
        %v2870 = vld [vmem:[#allocation7 + $0x420] sm:$0xff]
        %v2871 = vld [vmem:[#allocation7 + $0x428] sm:$0xff]
        %v2872 = vld [vmem:[#allocation7 + $0x430] sm:$0xff]
        %v2873 = vld [vmem:[#allocation7 + $0x438] sm:$0xff]
        %v2874 = vld [vmem:[#allocation7 + $0x440] sm:$0xff]
        %v2875 = vld [vmem:[#allocation7 + $0x448] sm:$0xff]
        %v2876 = vld [vmem:[#allocation7 + $0x450] sm:$0xff]
        %v2877 = vld [vmem:[#allocation7 + $0x458] sm:$0xff]
        %v2878 = vld [vmem:[#allocation7 + $0x460] sm:$0xff]
        %v2879 = vld [vmem:[#allocation7 + $0x468] sm:$0xff]
        %v2880 = vld [vmem:[#allocation7 + $0x470] sm:$0xff]
        %v2881 = vld [vmem:[#allocation7 + $0x478] sm:$0xff]
        %2882 = vst [vmem:[%s429 + $0x1] sm:$0xff] %v2706
        %2883 = vst [vmem:[%s429 + $0x9] sm:$0xff] %v2707
        %2884 = vst [vmem:[%s429 + $0x19] sm:$0xff] %v2708
        %2885 = vst [vmem:[%s429 + $0x21] sm:$0xff] %v2709
        %2886 = vst [vmem:[%s429 + $0x31] sm:$0xff] %v2710
        %2887 = vst [vmem:[%s429 + $0x39] sm:$0xff] %v2711
        %2888 = vst [vmem:[%s429 + $0x49] sm:$0xff] %v2712
        %2889 = vst [vmem:[%s429 + $0x51] sm:$0xff] %v2713
        %2890 = vst [vmem:[%s429 + $0x61] sm:$0xff] %v2714
        %2891 = vst [vmem:[%s429 + $0x69] sm:$0xff] %v2715
        %2892 = vst [vmem:[%s429 + $0x79] sm:$0xff] %v2716
        %2893 = vst [vmem:[%s429 + $0x81] sm:$0xff] %v2717
        %2894 = vst [vmem:[%s429 + $0x91] sm:$0xff] %v2718
        %2895 = vst [vmem:[%s429 + $0x99] sm:$0xff] %v2719
        %2896 = vst [vmem:[%s429 + $0xa9] sm:$0xff] %v2720
        %2897 = vst [vmem:[%s429 + $0xb1] sm:$0xff] %v2721
        %2898 = vst [vmem:[%s429 + $0xc1] sm:$0xff] %v2722
        %2899 = vst [vmem:[%s429 + $0xc9] sm:$0xff] %v2723
        %2900 = vst [vmem:[%s429 + $0xd9] sm:$0xff] %v2724
        %2901 = vst [vmem:[%s429 + $0xe1] sm:$0xff] %v2725
        %2902 = vst [vmem:[%s429 + $0xf1] sm:$0xff] %v2726
        %2903 = vst [vmem:[%s429 + $0xf9] sm:$0xff] %v2727
        %2904 = vst [vmem:[%s429 + $0x109] sm:$0xff] %v2728
        %2905 = vst [vmem:[%s429 + $0x111] sm:$0xff] %v2729
        %2906 = vst [vmem:[%s429 + $0x121] sm:$0xff] %v2730
        %2907 = vst [vmem:[%s429 + $0x129] sm:$0xff] %v2731
        %2908 = vst [vmem:[%s429 + $0x139] sm:$0xff] %v2732
        %2909 = vst [vmem:[%s429 + $0x141] sm:$0xff] %v2733
        %2910 = vst [vmem:[%s429 + $0x151] sm:$0xff] %v2734
        %2911 = vst [vmem:[%s429 + $0x159] sm:$0xff] %v2735
        %2912 = vst [vmem:[%s429 + $0x169] sm:$0xff] %v2736
        %2913 = vst [vmem:[%s429 + $0x171] sm:$0xff] %v2737
        %2914 = vst [vmem:[#allocation2 + $0x1] sm:$0xff] %v2708
        %2915 = vst [vmem:[#allocation2 + $0x9] sm:$0xff] %v2709
        %2916 = vst [vmem:[%s465 + $0x1] sm:$0xff] %v2734
        %2917 = vst [vmem:[%s465 + $0x9] sm:$0xff] %v2735
        %v2918 = vld [vmem:[#allocation2 + $0x2] sm:$0x1]
        %v2919 = vld [vmem:[#allocation2 + $0x1a] sm:$0x1]
        %v2920 = vld [vmem:[#allocation2 + $0x32] sm:$0x1]
        %v2921 = vld [vmem:[#allocation2 + $0x4a] sm:$0x1]
        %v2922 = vld [vmem:[#allocation2 + $0x62] sm:$0x1]
        %v2923 = vld [vmem:[#allocation2 + $0x7a] sm:$0x1]
        %v2924 = vld [vmem:[#allocation2 + $0x92] sm:$0x1]
        %v2925 = vld [vmem:[#allocation2 + $0xaa] sm:$0x1]
        %v2926 = vld [vmem:[#allocation2 + $0xc2] sm:$0x1]
        %v2927 = vld [vmem:[#allocation2 + $0xda] sm:$0x1]
        %v2928 = vld [vmem:[#allocation2 + $0xf2] sm:$0x1]
        %v2929 = vld [vmem:[#allocation2 + $0x10a] sm:$0x1]
        %v2930 = vld [vmem:[#allocation2 + $0x122] sm:$0x1]
        %v2931 = vld [vmem:[#allocation2 + $0x13a] sm:$0x1]
        %v2932 = vld [vmem:[#allocation2 + $0x152] sm:$0x1]
        %v2933 = vld [vmem:[#allocation2 + $0x16a] sm:$0x1]
        %v2934 = vld [vmem:[#allocation2 + $0x182] sm:$0x1]
        %v2935 = vld [vmem:[#allocation2 + $0x19a] sm:$0x1]
        %2936 = vst [vmem:[#allocation2] sm:$0x1] %v2918
        %2937 = vst [vmem:[#allocation2 + $0x18] sm:$0x1] %v2919
        %2938 = vst [vmem:[#allocation2 + $0x30] sm:$0x1] %v2920
        %2939 = vst [vmem:[#allocation2 + $0x48] sm:$0x1] %v2921
        %2940 = vst [vmem:[#allocation2 + $0x60] sm:$0x1] %v2922
        %2941 = vst [vmem:[#allocation2 + $0x78] sm:$0x1] %v2923
        %2942 = vst [vmem:[#allocation2 + $0x90] sm:$0x1] %v2924
        %2943 = vst [vmem:[#allocation2 + $0xa8] sm:$0x1] %v2925
        %2944 = vst [vmem:[#allocation2 + $0xc0] sm:$0x1] %v2926
        %2945 = vst [vmem:[#allocation2 + $0xd8] sm:$0x1] %v2927
        %2946 = vst [vmem:[#allocation2 + $0xf0] sm:$0x1] %v2928
        %2947 = vst [vmem:[#allocation2 + $0x108] sm:$0x1] %v2929
        %2948 = vst [vmem:[#allocation2 + $0x120] sm:$0x1] %v2930
        %2949 = vst [vmem:[#allocation2 + $0x138] sm:$0x1] %v2931
        %2950 = vst [vmem:[#allocation2 + $0x150] sm:$0x1] %v2932
        %2951 = vst [vmem:[#allocation2 + $0x168] sm:$0x1] %v2933
        %2952 = vst [vmem:[#allocation2 + $0x180] sm:$0x1] %v2934
        %2953 = vst [vmem:[#allocation2 + $0x198] sm:$0x1] %v2935
        %v2954 = vld [vmem:[#allocation2 + $0xf] sm:$0x1]
        %v2955 = vld [vmem:[#allocation2 + $0x27] sm:$0x1]
        %v2956 = vld [vmem:[#allocation2 + $0x3f] sm:$0x1]
        %v2957 = vld [vmem:[#allocation2 + $0x57] sm:$0x1]
        %v2958 = vld [vmem:[#allocation2 + $0x6f] sm:$0x1]
        %v2959 = vld [vmem:[#allocation2 + $0x87] sm:$0x1]
        %v2960 = vld [vmem:[#allocation2 + $0x9f] sm:$0x1]
        %v2961 = vld [vmem:[#allocation2 + $0xb7] sm:$0x1]
        %v2962 = vld [vmem:[#allocation2 + $0xcf] sm:$0x1]
        %v2963 = vld [vmem:[#allocation2 + $0xe7] sm:$0x1]
        %v2964 = vld [vmem:[#allocation2 + $0xff] sm:$0x1]
        %v2965 = vld [vmem:[#allocation2 + $0x117] sm:$0x1]
        %v2966 = vld [vmem:[#allocation2 + $0x12f] sm:$0x1]
        %v2967 = vld [vmem:[#allocation2 + $0x147] sm:$0x1]
        %v2968 = vld [vmem:[#allocation2 + $0x15f] sm:$0x1]
        %v2969 = vld [vmem:[#allocation2 + $0x177] sm:$0x1]
        %v2970 = vld [vmem:[#allocation2 + $0x18f] sm:$0x1]
        %v2971 = vld [vmem:[#allocation2 + $0x1a7] sm:$0x1]
        %2972 = vst [vmem:[#allocation2 + $0x11] sm:$0x1] %v2954
        %2973 = vst [vmem:[#allocation2 + $0x29] sm:$0x1] %v2955
        %2974 = vst [vmem:[#allocation2 + $0x41] sm:$0x1] %v2956
        %2975 = vst [vmem:[#allocation2 + $0x59] sm:$0x1] %v2957
        %2976 = vst [vmem:[#allocation2 + $0x71] sm:$0x1] %v2958
        %2977 = vst [vmem:[#allocation2 + $0x89] sm:$0x1] %v2959
        %2978 = vst [vmem:[#allocation2 + $0xa1] sm:$0x1] %v2960
        %2979 = vst [vmem:[#allocation2 + $0xb9] sm:$0x1] %v2961
        %2980 = vst [vmem:[#allocation2 + $0xd1] sm:$0x1] %v2962
        %2981 = vst [vmem:[#allocation2 + $0xe9] sm:$0x1] %v2963
        %2982 = vst [vmem:[#allocation2 + $0x101] sm:$0x1] %v2964
        %2983 = vst [vmem:[#allocation2 + $0x119] sm:$0x1] %v2965
        %2984 = vst [vmem:[#allocation2 + $0x131] sm:$0x1] %v2966
        %2985 = vst [vmem:[#allocation2 + $0x149] sm:$0x1] %v2967
        %2986 = vst [vmem:[#allocation2 + $0x161] sm:$0x1] %v2968
        %2987 = vst [vmem:[#allocation2 + $0x179] sm:$0x1] %v2969
        %2988 = vst [vmem:[#allocation2 + $0x191] sm:$0x1] %v2970
        %2989 = vst [vmem:[#allocation2 + $0x1a9] sm:$0x1] %v2971
        %v2990 = vld [vmem:[#allocation2] sm:$0xff]
        %v2991 = vld [vmem:[#allocation2 + $0x8] sm:$0xff]
        %v2992 = vld [vmem:[#allocation2 + $0x18] sm:$0xff]
        %v2993 = vld [vmem:[#allocation2 + $0x20] sm:$0xff]
        %v2994 = vld [vmem:[#allocation2 + $0x30] sm:$0xff]
        %v2995 = vld [vmem:[#allocation2 + $0x38] sm:$0xff]
        %v2996 = vld [vmem:[#allocation2 + $0x48] sm:$0xff]
        %v2997 = vld [vmem:[#allocation2 + $0x50] sm:$0xff]
        %v2998 = vld [vmem:[#allocation2 + $0x60] sm:$0xff]
        %v2999 = vld [vmem:[#allocation2 + $0x68] sm:$0xff]
        %v3000 = vld [vmem:[#allocation2 + $0x78] sm:$0xff]
        %v3001 = vld [vmem:[#allocation2 + $0x80] sm:$0xff]
        %v3002 = vld [vmem:[#allocation2 + $0x90] sm:$0xff]
        %v3003 = vld [vmem:[#allocation2 + $0x98] sm:$0xff]
        %v3004 = vld [vmem:[#allocation2 + $0xa8] sm:$0xff]
        %v3005 = vld [vmem:[#allocation2 + $0xb0] sm:$0xff]
        %v3006 = vld [vmem:[#allocation2 + $0xc0] sm:$0xff]
        %v3007 = vld [vmem:[#allocation2 + $0xc8] sm:$0xff]
        %v3008 = vld [vmem:[#allocation2 + $0xd8] sm:$0xff]
        %v3009 = vld [vmem:[#allocation2 + $0xe0] sm:$0xff]
        %v3010 = vld [vmem:[#allocation2 + $0xf0] sm:$0xff]
        %v3011 = vld [vmem:[#allocation2 + $0xf8] sm:$0xff]
        %v3012 = vld [vmem:[#allocation2 + $0x108] sm:$0xff]
        %v3013 = vld [vmem:[#allocation2 + $0x110] sm:$0xff]
        %v3014 = vld [vmem:[#allocation2 + $0x120] sm:$0xff]
        %v3015 = vld [vmem:[#allocation2 + $0x128] sm:$0xff]
        %v3016 = vld [vmem:[#allocation2 + $0x138] sm:$0xff]
        %v3017 = vld [vmem:[#allocation2 + $0x140] sm:$0xff]
        %v3018 = vld [vmem:[#allocation2 + $0x150] sm:$0xff]
        %v3019 = vld [vmem:[#allocation2 + $0x158] sm:$0xff]
        %v3020 = vld [vmem:[#allocation2 + $0x168] sm:$0xff]
        %v3021 = vld [vmem:[#allocation2 + $0x170] sm:$0xff]
        %3022 = vst [vmem:[#allocation3] sm:$0xff] %v2990
        %3023 = vst [vmem:[#allocation3 + $0x48] sm:$0xff] %v2991
        %3024 = vst [vmem:[#allocation3 + $0x90] sm:$0xff] %v2992
        %3025 = vst [vmem:[#allocation3 + $0xd8] sm:$0xff] %v2993
        %3026 = vst [vmem:[#allocation3 + $0x120] sm:$0xff] %v2994
        %3027 = vst [vmem:[#allocation3 + $0x168] sm:$0xff] %v2995
        %3028 = vst [vmem:[#allocation3 + $0x1b0] sm:$0xff] %v2996
        %3029 = vst [vmem:[#allocation3 + $0x1f8] sm:$0xff] %v2997
        %3030 = vst [vmem:[#allocation3 + $0x240] sm:$0xff] %v2998
        %3031 = vst [vmem:[#allocation3 + $0x288] sm:$0xff] %v2999
        %3032 = vst [vmem:[#allocation3 + $0x2d0] sm:$0xff] %v3000
        %3033 = vst [vmem:[#allocation3 + $0x318] sm:$0xff] %v3001
        %3034 = vst [vmem:[#allocation3 + $0x360] sm:$0xff] %v3002
        %3035 = vst [vmem:[#allocation3 + $0x3a8] sm:$0xff] %v3003
        %3036 = vst [vmem:[#allocation3 + $0x3f0] sm:$0xff] %v3004
        %3037 = vst [vmem:[#allocation3 + $0x438] sm:$0xff] %v3005
        %3038 = vst [vmem:[#allocation3 + $0x480] sm:$0xff] %v3006
        %3039 = vst [vmem:[#allocation3 + $0x4c8] sm:$0xff] %v3007
        %3040 = vst [vmem:[#allocation3 + $0x510] sm:$0xff] %v3008
        %3041 = vst [vmem:[#allocation3 + $0x558] sm:$0xff] %v3009
        %3042 = vst [vmem:[#allocation3 + $0x5a0] sm:$0xff] %v3010
        %3043 = vst [vmem:[#allocation3 + $0x5e8] sm:$0xff] %v3011
        %3044 = vst [vmem:[#allocation3 + $0x630] sm:$0xff] %v3012
        %3045 = vst [vmem:[#allocation3 + $0x678] sm:$0xff] %v3013
        %3046 = vst [vmem:[#allocation3 + $0x6c0] sm:$0xff] %v3014
        %3047 = vst [vmem:[#allocation3 + $0x708] sm:$0xff] %v3015
        %3048 = vst [vmem:[#allocation3 + $0x750] sm:$0xff] %v3016
        %3049 = vst [vmem:[#allocation3 + $0x798] sm:$0xff] %v3017
        %3050 = vst [vmem:[#allocation3 + $0x7e0] sm:$0xff] %v3018
        %3051 = vst [vmem:[#allocation3 + $0x828] sm:$0xff] %v3019
        %3052 = vst [vmem:[#allocation3 + $0x870] sm:$0xff] %v3020
        %3053 = vst [vmem:[#allocation3 + $0x8b8] sm:$0xff] %v3021
        %v3054 = vld [vmem:[#allocation2 + $0x1] sm:$0xff]
        %v3055 = vld [vmem:[#allocation2 + $0x9] sm:$0xff]
        %v3056 = vld [vmem:[#allocation2 + $0x19] sm:$0xff]
        %v3057 = vld [vmem:[#allocation2 + $0x21] sm:$0xff]
        %v3058 = vld [vmem:[#allocation2 + $0x31] sm:$0xff]
        %v3059 = vld [vmem:[#allocation2 + $0x39] sm:$0xff]
        %v3060 = vld [vmem:[#allocation2 + $0x49] sm:$0xff]
        %v3061 = vld [vmem:[#allocation2 + $0x51] sm:$0xff]
        %v3062 = vld [vmem:[#allocation2 + $0x61] sm:$0xff]
        %v3063 = vld [vmem:[#allocation2 + $0x69] sm:$0xff]
        %v3064 = vld [vmem:[#allocation2 + $0x79] sm:$0xff]
        %v3065 = vld [vmem:[#allocation2 + $0x81] sm:$0xff]
        %v3066 = vld [vmem:[#allocation2 + $0x91] sm:$0xff]
        %v3067 = vld [vmem:[#allocation2 + $0x99] sm:$0xff]
        %v3068 = vld [vmem:[#allocation2 + $0xa9] sm:$0xff]
        %v3069 = vld [vmem:[#allocation2 + $0xb1] sm:$0xff]
        %v3070 = vld [vmem:[#allocation2 + $0xc1] sm:$0xff]
        %v3071 = vld [vmem:[#allocation2 + $0xc9] sm:$0xff]
        %v3072 = vld [vmem:[#allocation2 + $0xd9] sm:$0xff]
        %v3073 = vld [vmem:[#allocation2 + $0xe1] sm:$0xff]
        %v3074 = vld [vmem:[#allocation2 + $0xf1] sm:$0xff]
        %v3075 = vld [vmem:[#allocation2 + $0xf9] sm:$0xff]
        %v3076 = vld [vmem:[#allocation2 + $0x109] sm:$0xff]
        %v3077 = vld [vmem:[#allocation2 + $0x111] sm:$0xff]
        %v3078 = vld [vmem:[#allocation2 + $0x121] sm:$0xff]
        %v3079 = vld [vmem:[#allocation2 + $0x129] sm:$0xff]
        %v3080 = vld [vmem:[#allocation2 + $0x139] sm:$0xff]
        %v3081 = vld [vmem:[#allocation2 + $0x141] sm:$0xff]
        %v3082 = vld [vmem:[#allocation2 + $0x151] sm:$0xff]
        %v3083 = vld [vmem:[#allocation2 + $0x159] sm:$0xff]
        %v3084 = vld [vmem:[#allocation2 + $0x169] sm:$0xff]
        %v3085 = vld [vmem:[#allocation2 + $0x171] sm:$0xff]
        %3086 = vst [vmem:[#allocation3 + $0x8] sm:$0xff] %v3054
        %3087 = vst [vmem:[#allocation3 + $0x50] sm:$0xff] %v3055
        %3088 = vst [vmem:[#allocation3 + $0x98] sm:$0xff] %v3056
        %3089 = vst [vmem:[#allocation3 + $0xe0] sm:$0xff] %v3057
        %3090 = vst [vmem:[#allocation3 + $0x128] sm:$0xff] %v3058
        %3091 = vst [vmem:[#allocation3 + $0x170] sm:$0xff] %v3059
        %3092 = vst [vmem:[#allocation3 + $0x1b8] sm:$0xff] %v3060
        %3093 = vst [vmem:[#allocation3 + $0x200] sm:$0xff] %v3061
        %3094 = vst [vmem:[#allocation3 + $0x248] sm:$0xff] %v3062
        %3095 = vst [vmem:[#allocation3 + $0x290] sm:$0xff] %v3063
        %3096 = vst [vmem:[#allocation3 + $0x2d8] sm:$0xff] %v3064
        %3097 = vst [vmem:[#allocation3 + $0x320] sm:$0xff] %v3065
        %3098 = vst [vmem:[#allocation3 + $0x368] sm:$0xff] %v3066
        %3099 = vst [vmem:[#allocation3 + $0x3b0] sm:$0xff] %v3067
        %3100 = vst [vmem:[#allocation3 + $0x3f8] sm:$0xff] %v3068
        %3101 = vst [vmem:[#allocation3 + $0x440] sm:$0xff] %v3069
        %3102 = vst [vmem:[#allocation3 + $0x488] sm:$0xff] %v3070
        %3103 = vst [vmem:[#allocation3 + $0x4d0] sm:$0xff] %v3071
        %3104 = vst [vmem:[#allocation3 + $0x518] sm:$0xff] %v3072
        %3105 = vst [vmem:[#allocation3 + $0x560] sm:$0xff] %v3073
        %3106 = vst [vmem:[#allocation3 + $0x5a8] sm:$0xff] %v3074
        %3107 = vst [vmem:[#allocation3 + $0x5f0] sm:$0xff] %v3075
        %3108 = vst [vmem:[#allocation3 + $0x638] sm:$0xff] %v3076
        %3109 = vst [vmem:[#allocation3 + $0x680] sm:$0xff] %v3077
        %3110 = vst [vmem:[#allocation3 + $0x6c8] sm:$0xff] %v3078
        %3111 = vst [vmem:[#allocation3 + $0x710] sm:$0xff] %v3079
        %3112 = vst [vmem:[#allocation3 + $0x758] sm:$0xff] %v3080
        %3113 = vst [vmem:[#allocation3 + $0x7a0] sm:$0xff] %v3081
        %3114 = vst [vmem:[#allocation3 + $0x7e8] sm:$0xff] %v3082
        %3115 = vst [vmem:[#allocation3 + $0x830] sm:$0xff] %v3083
        %3116 = vst [vmem:[#allocation3 + $0x878] sm:$0xff] %v3084
        %3117 = vst [vmem:[#allocation3 + $0x8c0] sm:$0xff] %v3085
        %v3118 = vld [vmem:[#allocation2 + $0x2] sm:$0xff]
        %v3119 = vld [vmem:[#allocation2 + $0xa] sm:$0xff]
        %v3120 = vld [vmem:[#allocation2 + $0x1a] sm:$0xff]
        %v3121 = vld [vmem:[#allocation2 + $0x22] sm:$0xff]
        %v3122 = vld [vmem:[#allocation2 + $0x32] sm:$0xff]
        %v3123 = vld [vmem:[#allocation2 + $0x3a] sm:$0xff]
        %v3124 = vld [vmem:[#allocation2 + $0x4a] sm:$0xff]
        %v3125 = vld [vmem:[#allocation2 + $0x52] sm:$0xff]
        %v3126 = vld [vmem:[#allocation2 + $0x62] sm:$0xff]
        %v3127 = vld [vmem:[#allocation2 + $0x6a] sm:$0xff]
        %v3128 = vld [vmem:[#allocation2 + $0x7a] sm:$0xff]
        %v3129 = vld [vmem:[#allocation2 + $0x82] sm:$0xff]
        %v3130 = vld [vmem:[#allocation2 + $0x92] sm:$0xff]
        %v3131 = vld [vmem:[#allocation2 + $0x9a] sm:$0xff]
        %v3132 = vld [vmem:[#allocation2 + $0xaa] sm:$0xff]
        %v3133 = vld [vmem:[#allocation2 + $0xb2] sm:$0xff]
        %v3134 = vld [vmem:[#allocation2 + $0xc2] sm:$0xff]
        %v3135 = vld [vmem:[#allocation2 + $0xca] sm:$0xff]
        %v3136 = vld [vmem:[#allocation2 + $0xda] sm:$0xff]
        %v3137 = vld [vmem:[#allocation2 + $0xe2] sm:$0xff]
        %v3138 = vld [vmem:[#allocation2 + $0xf2] sm:$0xff]
        %v3139 = vld [vmem:[#allocation2 + $0xfa] sm:$0xff]
        %v3140 = vld [vmem:[#allocation2 + $0x10a] sm:$0xff]
        %v3141 = vld [vmem:[#allocation2 + $0x112] sm:$0xff]
        %v3142 = vld [vmem:[#allocation2 + $0x122] sm:$0xff]
        %v3143 = vld [vmem:[#allocation2 + $0x12a] sm:$0xff]
        %v3144 = vld [vmem:[#allocation2 + $0x13a] sm:$0xff]
        %v3145 = vld [vmem:[#allocation2 + $0x142] sm:$0xff]
        %v3146 = vld [vmem:[#allocation2 + $0x152] sm:$0xff]
        %v3147 = vld [vmem:[#allocation2 + $0x15a] sm:$0xff]
        %v3148 = vld [vmem:[#allocation2 + $0x16a] sm:$0xff]
        %v3149 = vld [vmem:[#allocation2 + $0x172] sm:$0xff]
        %3150 = vst [vmem:[#allocation3 + $0x10] sm:$0xff] %v3118
        %3151 = vst [vmem:[#allocation3 + $0x58] sm:$0xff] %v3119
        %3152 = vst [vmem:[#allocation3 + $0xa0] sm:$0xff] %v3120
        %3153 = vst [vmem:[#allocation3 + $0xe8] sm:$0xff] %v3121
        %3154 = vst [vmem:[#allocation3 + $0x130] sm:$0xff] %v3122
        %3155 = vst [vmem:[#allocation3 + $0x178] sm:$0xff] %v3123
        %3156 = vst [vmem:[#allocation3 + $0x1c0] sm:$0xff] %v3124
        %3157 = vst [vmem:[#allocation3 + $0x208] sm:$0xff] %v3125
        %3158 = vst [vmem:[#allocation3 + $0x250] sm:$0xff] %v3126
        %3159 = vst [vmem:[#allocation3 + $0x298] sm:$0xff] %v3127
        %3160 = vst [vmem:[#allocation3 + $0x2e0] sm:$0xff] %v3128
        %3161 = vst [vmem:[#allocation3 + $0x328] sm:$0xff] %v3129
        %3162 = vst [vmem:[#allocation3 + $0x370] sm:$0xff] %v3130
        %3163 = vst [vmem:[#allocation3 + $0x3b8] sm:$0xff] %v3131
        %3164 = vst [vmem:[#allocation3 + $0x400] sm:$0xff] %v3132
        %3165 = vst [vmem:[#allocation3 + $0x448] sm:$0xff] %v3133
        %3166 = vst [vmem:[#allocation3 + $0x490] sm:$0xff] %v3134
        %3167 = vst [vmem:[#allocation3 + $0x4d8] sm:$0xff] %v3135
        %3168 = vst [vmem:[#allocation3 + $0x520] sm:$0xff] %v3136
        %3169 = vst [vmem:[#allocation3 + $0x568] sm:$0xff] %v3137
        %3170 = vst [vmem:[#allocation3 + $0x5b0] sm:$0xff] %v3138
        %3171 = vst [vmem:[#allocation3 + $0x5f8] sm:$0xff] %v3139
        %3172 = vst [vmem:[#allocation3 + $0x640] sm:$0xff] %v3140
        %3173 = vst [vmem:[#allocation3 + $0x688] sm:$0xff] %v3141
        %3174 = vst [vmem:[#allocation3 + $0x6d0] sm:$0xff] %v3142
        %3175 = vst [vmem:[#allocation3 + $0x718] sm:$0xff] %v3143
        %3176 = vst [vmem:[#allocation3 + $0x760] sm:$0xff] %v3144
        %3177 = vst [vmem:[#allocation3 + $0x7a8] sm:$0xff] %v3145
        %3178 = vst [vmem:[#allocation3 + $0x7f0] sm:$0xff] %v3146
        %3179 = vst [vmem:[#allocation3 + $0x838] sm:$0xff] %v3147
        %3180 = vst [vmem:[#allocation3 + $0x880] sm:$0xff] %v3148
        %3181 = vst [vmem:[#allocation3 + $0x8c8] sm:$0xff] %v3149
        %v3182 = vld [vmem:[%s429] sm:$0xff]
        %v3183 = vld [vmem:[%s429 + $0x8] sm:$0xff]
        %v3184 = vld [vmem:[%s429 + $0x18] sm:$0xff]
        %v3185 = vld [vmem:[%s429 + $0x20] sm:$0xff]
        %v3186 = vld [vmem:[%s429 + $0x30] sm:$0xff]
        %v3187 = vld [vmem:[%s429 + $0x38] sm:$0xff]
        %v3188 = vld [vmem:[%s429 + $0x48] sm:$0xff]
        %v3189 = vld [vmem:[%s429 + $0x50] sm:$0xff]
        %v3190 = vld [vmem:[%s429 + $0x60] sm:$0xff]
        %v3191 = vld [vmem:[%s429 + $0x68] sm:$0xff]
        %v3192 = vld [vmem:[%s429 + $0x78] sm:$0xff]
        %v3193 = vld [vmem:[%s429 + $0x80] sm:$0xff]
        %v3194 = vld [vmem:[%s429 + $0x90] sm:$0xff]
        %v3195 = vld [vmem:[%s429 + $0x98] sm:$0xff]
        %v3196 = vld [vmem:[%s429 + $0xa8] sm:$0xff]
        %v3197 = vld [vmem:[%s429 + $0xb0] sm:$0xff]
        %v3198 = vld [vmem:[%s429 + $0xc0] sm:$0xff]
        %v3199 = vld [vmem:[%s429 + $0xc8] sm:$0xff]
        %v3200 = vld [vmem:[%s429 + $0xd8] sm:$0xff]
        %v3201 = vld [vmem:[%s429 + $0xe0] sm:$0xff]
        %v3202 = vld [vmem:[%s429 + $0xf0] sm:$0xff]
        %v3203 = vld [vmem:[%s429 + $0xf8] sm:$0xff]
        %v3204 = vld [vmem:[%s429 + $0x108] sm:$0xff]
        %v3205 = vld [vmem:[%s429 + $0x110] sm:$0xff]
        %v3206 = vld [vmem:[%s429 + $0x120] sm:$0xff]
        %v3207 = vld [vmem:[%s429 + $0x128] sm:$0xff]
        %v3208 = vld [vmem:[%s429 + $0x138] sm:$0xff]
        %v3209 = vld [vmem:[%s429 + $0x140] sm:$0xff]
        %v3210 = vld [vmem:[%s429 + $0x150] sm:$0xff]
        %v3211 = vld [vmem:[%s429 + $0x158] sm:$0xff]
        %v3212 = vld [vmem:[%s429 + $0x168] sm:$0xff]
        %v3213 = vld [vmem:[%s429 + $0x170] sm:$0xff]
        %3214 = vst [vmem:[#allocation3 + $0x18] sm:$0xff] %v3182
        %3215 = vst [vmem:[#allocation3 + $0x60] sm:$0xff] %v3183
        %3216 = vst [vmem:[#allocation3 + $0xa8] sm:$0xff] %v3184
        %3217 = vst [vmem:[#allocation3 + $0xf0] sm:$0xff] %v3185
        %3218 = vst [vmem:[#allocation3 + $0x138] sm:$0xff] %v3186
        %3219 = vst [vmem:[#allocation3 + $0x180] sm:$0xff] %v3187
        %3220 = vst [vmem:[#allocation3 + $0x1c8] sm:$0xff] %v3188
        %3221 = vst [vmem:[#allocation3 + $0x210] sm:$0xff] %v3189
        %3222 = vst [vmem:[#allocation3 + $0x258] sm:$0xff] %v3190
        %3223 = vst [vmem:[#allocation3 + $0x2a0] sm:$0xff] %v3191
        %3224 = vst [vmem:[#allocation3 + $0x2e8] sm:$0xff] %v3192
        %3225 = vst [vmem:[#allocation3 + $0x330] sm:$0xff] %v3193
        %3226 = vst [vmem:[#allocation3 + $0x378] sm:$0xff] %v3194
        %3227 = vst [vmem:[#allocation3 + $0x3c0] sm:$0xff] %v3195
        %3228 = vst [vmem:[#allocation3 + $0x408] sm:$0xff] %v3196
        %3229 = vst [vmem:[#allocation3 + $0x450] sm:$0xff] %v3197
        %3230 = vst [vmem:[#allocation3 + $0x498] sm:$0xff] %v3198
        %3231 = vst [vmem:[#allocation3 + $0x4e0] sm:$0xff] %v3199
        %3232 = vst [vmem:[#allocation3 + $0x528] sm:$0xff] %v3200
        %3233 = vst [vmem:[#allocation3 + $0x570] sm:$0xff] %v3201
        %3234 = vst [vmem:[#allocation3 + $0x5b8] sm:$0xff] %v3202
        %3235 = vst [vmem:[#allocation3 + $0x600] sm:$0xff] %v3203
        %3236 = vst [vmem:[#allocation3 + $0x648] sm:$0xff] %v3204
        %3237 = vst [vmem:[#allocation3 + $0x690] sm:$0xff] %v3205
        %3238 = vst [vmem:[#allocation3 + $0x6d8] sm:$0xff] %v3206
        %3239 = vst [vmem:[#allocation3 + $0x720] sm:$0xff] %v3207
        %3240 = vst [vmem:[#allocation3 + $0x768] sm:$0xff] %v3208
        %3241 = vst [vmem:[#allocation3 + $0x7b0] sm:$0xff] %v3209
        %3242 = vst [vmem:[#allocation3 + $0x7f8] sm:$0xff] %v3210
        %3243 = vst [vmem:[#allocation3 + $0x840] sm:$0xff] %v3211
        %3244 = vst [vmem:[#allocation3 + $0x888] sm:$0xff] %v3212
        %3245 = vst [vmem:[#allocation3 + $0x8d0] sm:$0xff] %v3213
        %v3246 = vld [vmem:[%s429 + $0x1] sm:$0xff]
        %v3247 = vld [vmem:[%s429 + $0x9] sm:$0xff]
        %v3248 = vld [vmem:[%s429 + $0x19] sm:$0xff]
        %v3249 = vld [vmem:[%s429 + $0x21] sm:$0xff]
        %v3250 = vld [vmem:[%s429 + $0x31] sm:$0xff]
        %v3251 = vld [vmem:[%s429 + $0x39] sm:$0xff]
        %v3252 = vld [vmem:[%s429 + $0x49] sm:$0xff]
        %v3253 = vld [vmem:[%s429 + $0x51] sm:$0xff]
        %v3254 = vld [vmem:[%s429 + $0x61] sm:$0xff]
        %v3255 = vld [vmem:[%s429 + $0x69] sm:$0xff]
        %v3256 = vld [vmem:[%s429 + $0x79] sm:$0xff]
        %v3257 = vld [vmem:[%s429 + $0x81] sm:$0xff]
        %v3258 = vld [vmem:[%s429 + $0x91] sm:$0xff]
        %v3259 = vld [vmem:[%s429 + $0x99] sm:$0xff]
        %v3260 = vld [vmem:[%s429 + $0xa9] sm:$0xff]
        %v3261 = vld [vmem:[%s429 + $0xb1] sm:$0xff]
        %v3262 = vld [vmem:[%s429 + $0xc1] sm:$0xff]
        %v3263 = vld [vmem:[%s429 + $0xc9] sm:$0xff]
        %v3264 = vld [vmem:[%s429 + $0xd9] sm:$0xff]
        %v3265 = vld [vmem:[%s429 + $0xe1] sm:$0xff]
        %v3266 = vld [vmem:[%s429 + $0xf1] sm:$0xff]
        %v3267 = vld [vmem:[%s429 + $0xf9] sm:$0xff]
        %v3268 = vld [vmem:[%s429 + $0x109] sm:$0xff]
        %v3269 = vld [vmem:[%s429 + $0x111] sm:$0xff]
        %v3270 = vld [vmem:[%s429 + $0x121] sm:$0xff]
        %v3271 = vld [vmem:[%s429 + $0x129] sm:$0xff]
        %v3272 = vld [vmem:[%s429 + $0x139] sm:$0xff]
        %v3273 = vld [vmem:[%s429 + $0x141] sm:$0xff]
        %v3274 = vld [vmem:[%s429 + $0x151] sm:$0xff]
        %v3275 = vld [vmem:[%s429 + $0x159] sm:$0xff]
        %v3276 = vld [vmem:[%s429 + $0x169] sm:$0xff]
        %v3277 = vld [vmem:[%s429 + $0x171] sm:$0xff]
        %3278 = vst [vmem:[#allocation3 + $0x20] sm:$0xff] %v3246
        %3279 = vst [vmem:[#allocation3 + $0x68] sm:$0xff] %v3247
        %3280 = vst [vmem:[#allocation3 + $0xb0] sm:$0xff] %v3248
        %3281 = vst [vmem:[#allocation3 + $0xf8] sm:$0xff] %v3249
        %3282 = vst [vmem:[#allocation3 + $0x140] sm:$0xff] %v3250
        %3283 = vst [vmem:[#allocation3 + $0x188] sm:$0xff] %v3251
        %3284 = vst [vmem:[#allocation3 + $0x1d0] sm:$0xff] %v3252
        %3285 = vst [vmem:[#allocation3 + $0x218] sm:$0xff] %v3253
        %3286 = vst [vmem:[#allocation3 + $0x260] sm:$0xff] %v3254
        %3287 = vst [vmem:[#allocation3 + $0x2a8] sm:$0xff] %v3255
        %3288 = vst [vmem:[#allocation3 + $0x2f0] sm:$0xff] %v3256
        %3289 = vst [vmem:[#allocation3 + $0x338] sm:$0xff] %v3257
        %3290 = vst [vmem:[#allocation3 + $0x380] sm:$0xff] %v3258
        %3291 = vst [vmem:[#allocation3 + $0x3c8] sm:$0xff] %v3259
        %3292 = vst [vmem:[#allocation3 + $0x410] sm:$0xff] %v3260
        %3293 = vst [vmem:[#allocation3 + $0x458] sm:$0xff] %v3261
        %3294 = vst [vmem:[#allocation3 + $0x4a0] sm:$0xff] %v3262
        %3295 = vst [vmem:[#allocation3 + $0x4e8] sm:$0xff] %v3263
        %3296 = vst [vmem:[#allocation3 + $0x530] sm:$0xff] %v3264
        %3297 = vst [vmem:[#allocation3 + $0x578] sm:$0xff] %v3265
        %3298 = vst [vmem:[#allocation3 + $0x5c0] sm:$0xff] %v3266
        %3299 = vst [vmem:[#allocation3 + $0x608] sm:$0xff] %v3267
        %3300 = vst [vmem:[#allocation3 + $0x650] sm:$0xff] %v3268
        %3301 = vst [vmem:[#allocation3 + $0x698] sm:$0xff] %v3269
        %3302 = vst [vmem:[#allocation3 + $0x6e0] sm:$0xff] %v3270
        %3303 = vst [vmem:[#allocation3 + $0x728] sm:$0xff] %v3271
        %3304 = vst [vmem:[#allocation3 + $0x770] sm:$0xff] %v3272
        %3305 = vst [vmem:[#allocation3 + $0x7b8] sm:$0xff] %v3273
        %3306 = vst [vmem:[#allocation3 + $0x800] sm:$0xff] %v3274
        %3307 = vst [vmem:[#allocation3 + $0x848] sm:$0xff] %v3275
        %3308 = vst [vmem:[#allocation3 + $0x890] sm:$0xff] %v3276
        %3309 = vst [vmem:[#allocation3 + $0x8d8] sm:$0xff] %v3277
        %v3310 = vld [vmem:[%s429 + $0x2] sm:$0xff]
        %v3311 = vld [vmem:[%s429 + $0xa] sm:$0xff]
        %v3312 = vld [vmem:[%s429 + $0x1a] sm:$0xff]
        %v3313 = vld [vmem:[%s429 + $0x22] sm:$0xff]
        %v3314 = vld [vmem:[%s429 + $0x32] sm:$0xff]
        %v3315 = vld [vmem:[%s429 + $0x3a] sm:$0xff]
        %v3316 = vld [vmem:[%s429 + $0x4a] sm:$0xff]
        %v3317 = vld [vmem:[%s429 + $0x52] sm:$0xff]
        %v3318 = vld [vmem:[%s429 + $0x62] sm:$0xff]
        %v3319 = vld [vmem:[%s429 + $0x6a] sm:$0xff]
        %v3320 = vld [vmem:[%s429 + $0x7a] sm:$0xff]
        %v3321 = vld [vmem:[%s429 + $0x82] sm:$0xff]
        %v3322 = vld [vmem:[%s429 + $0x92] sm:$0xff]
        %v3323 = vld [vmem:[%s429 + $0x9a] sm:$0xff]
        %v3324 = vld [vmem:[%s429 + $0xaa] sm:$0xff]
        %v3325 = vld [vmem:[%s429 + $0xb2] sm:$0xff]
        %v3326 = vld [vmem:[%s429 + $0xc2] sm:$0xff]
        %v3327 = vld [vmem:[%s429 + $0xca] sm:$0xff]
        %v3328 = vld [vmem:[%s429 + $0xda] sm:$0xff]
        %v3329 = vld [vmem:[%s429 + $0xe2] sm:$0xff]
        %v3330 = vld [vmem:[%s429 + $0xf2] sm:$0xff]
        %v3331 = vld [vmem:[%s429 + $0xfa] sm:$0xff]
        %v3332 = vld [vmem:[%s429 + $0x10a] sm:$0xff]
        %v3333 = vld [vmem:[%s429 + $0x112] sm:$0xff]
        %v3334 = vld [vmem:[%s429 + $0x122] sm:$0xff]
        %v3335 = vld [vmem:[%s429 + $0x12a] sm:$0xff]
        %v3336 = vld [vmem:[%s429 + $0x13a] sm:$0xff]
        %v3337 = vld [vmem:[%s429 + $0x142] sm:$0xff]
        %v3338 = vld [vmem:[%s429 + $0x152] sm:$0xff]
        %v3339 = vld [vmem:[%s429 + $0x15a] sm:$0xff]
        %v3340 = vld [vmem:[%s429 + $0x16a] sm:$0xff]
        %v3341 = vld [vmem:[%s429 + $0x172] sm:$0xff]
        %3342 = vst [vmem:[#allocation3 + $0x28] sm:$0xff] %v3310
        %3343 = vst [vmem:[#allocation3 + $0x70] sm:$0xff] %v3311
        %3344 = vst [vmem:[#allocation3 + $0xb8] sm:$0xff] %v3312
        %3345 = vst [vmem:[#allocation3 + $0x100] sm:$0xff] %v3313
        %3346 = vst [vmem:[#allocation3 + $0x148] sm:$0xff] %v3314
        %3347 = vst [vmem:[#allocation3 + $0x190] sm:$0xff] %v3315
        %3348 = vst [vmem:[#allocation3 + $0x1d8] sm:$0xff] %v3316
        %3349 = vst [vmem:[#allocation3 + $0x220] sm:$0xff] %v3317
        %3350 = vst [vmem:[#allocation3 + $0x268] sm:$0xff] %v3318
        %3351 = vst [vmem:[#allocation3 + $0x2b0] sm:$0xff] %v3319
        %3352 = vst [vmem:[#allocation3 + $0x2f8] sm:$0xff] %v3320
        %3353 = vst [vmem:[#allocation3 + $0x340] sm:$0xff] %v3321
        %3354 = vst [vmem:[#allocation3 + $0x388] sm:$0xff] %v3322
        %3355 = vst [vmem:[#allocation3 + $0x3d0] sm:$0xff] %v3323
        %3356 = vst [vmem:[#allocation3 + $0x418] sm:$0xff] %v3324
        %3357 = vst [vmem:[#allocation3 + $0x460] sm:$0xff] %v3325
        %3358 = vst [vmem:[#allocation3 + $0x4a8] sm:$0xff] %v3326
        %3359 = vst [vmem:[#allocation3 + $0x4f0] sm:$0xff] %v3327
        %3360 = vst [vmem:[#allocation3 + $0x538] sm:$0xff] %v3328
        %3361 = vst [vmem:[#allocation3 + $0x580] sm:$0xff] %v3329
        %3362 = vst [vmem:[#allocation3 + $0x5c8] sm:$0xff] %v3330
        %3363 = vst [vmem:[#allocation3 + $0x610] sm:$0xff] %v3331
        %3364 = vst [vmem:[#allocation3 + $0x658] sm:$0xff] %v3332
        %3365 = vst [vmem:[#allocation3 + $0x6a0] sm:$0xff] %v3333
        %3366 = vst [vmem:[#allocation3 + $0x6e8] sm:$0xff] %v3334
        %3367 = vst [vmem:[#allocation3 + $0x730] sm:$0xff] %v3335
        %3368 = vst [vmem:[#allocation3 + $0x778] sm:$0xff] %v3336
        %3369 = vst [vmem:[#allocation3 + $0x7c0] sm:$0xff] %v3337
        %3370 = vst [vmem:[#allocation3 + $0x808] sm:$0xff] %v3338
        %3371 = vst [vmem:[#allocation3 + $0x850] sm:$0xff] %v3339
        %3372 = vst [vmem:[#allocation3 + $0x898] sm:$0xff] %v3340
        %3373 = vst [vmem:[#allocation3 + $0x8e0] sm:$0xff] %v3341
        %v3374 = vld [vmem:[%s924] sm:$0xff]
        %v3375 = vld [vmem:[%s924 + $0x8] sm:$0xff]
        %v3376 = vld [vmem:[%s924 + $0x18] sm:$0xff]
        %v3377 = vld [vmem:[%s924 + $0x20] sm:$0xff]
        %v3378 = vld [vmem:[%s924 + $0x30] sm:$0xff]
        %v3379 = vld [vmem:[%s924 + $0x38] sm:$0xff]
        %v3380 = vld [vmem:[%s924 + $0x48] sm:$0xff]
        %v3381 = vld [vmem:[%s924 + $0x50] sm:$0xff]
        %v3382 = vld [vmem:[%s924 + $0x60] sm:$0xff]
        %v3383 = vld [vmem:[%s924 + $0x68] sm:$0xff]
        %v3384 = vld [vmem:[%s924 + $0x78] sm:$0xff]
        %v3385 = vld [vmem:[%s924 + $0x80] sm:$0xff]
        %v3386 = vld [vmem:[%s924 + $0x90] sm:$0xff]
        %v3387 = vld [vmem:[%s924 + $0x98] sm:$0xff]
        %v3388 = vld [vmem:[%s924 + $0xa8] sm:$0xff]
        %v3389 = vld [vmem:[%s924 + $0xb0] sm:$0xff]
        %v3390 = vld [vmem:[%s924 + $0xc0] sm:$0xff]
        %v3391 = vld [vmem:[%s924 + $0xc8] sm:$0xff]
        %v3392 = vld [vmem:[%s924 + $0xd8] sm:$0xff]
        %v3393 = vld [vmem:[%s924 + $0xe0] sm:$0xff]
        %v3394 = vld [vmem:[%s924 + $0xf0] sm:$0xff]
        %v3395 = vld [vmem:[%s924 + $0xf8] sm:$0xff]
        %v3396 = vld [vmem:[%s924 + $0x108] sm:$0xff]
        %v3397 = vld [vmem:[%s924 + $0x110] sm:$0xff]
        %v3398 = vld [vmem:[%s924 + $0x120] sm:$0xff]
        %v3399 = vld [vmem:[%s924 + $0x128] sm:$0xff]
        %v3400 = vld [vmem:[%s924 + $0x138] sm:$0xff]
        %v3401 = vld [vmem:[%s924 + $0x140] sm:$0xff]
        %v3402 = vld [vmem:[%s924 + $0x150] sm:$0xff]
        %v3403 = vld [vmem:[%s924 + $0x158] sm:$0xff]
        %v3404 = vld [vmem:[%s924 + $0x168] sm:$0xff]
        %v3405 = vld [vmem:[%s924 + $0x170] sm:$0xff]
        %3406 = vst [vmem:[#allocation3 + $0x30] sm:$0xff] %v3374
        %3407 = vst [vmem:[#allocation3 + $0x78] sm:$0xff] %v3375
        %3408 = vst [vmem:[#allocation3 + $0xc0] sm:$0xff] %v3376
        %3409 = vst [vmem:[#allocation3 + $0x108] sm:$0xff] %v3377
        %3410 = vst [vmem:[#allocation3 + $0x150] sm:$0xff] %v3378
        %3411 = vst [vmem:[#allocation3 + $0x198] sm:$0xff] %v3379
        %3412 = vst [vmem:[#allocation3 + $0x1e0] sm:$0xff] %v3380
        %3413 = vst [vmem:[#allocation3 + $0x228] sm:$0xff] %v3381
        %3414 = vst [vmem:[#allocation3 + $0x270] sm:$0xff] %v3382
        %3415 = vst [vmem:[#allocation3 + $0x2b8] sm:$0xff] %v3383
        %3416 = vst [vmem:[#allocation3 + $0x300] sm:$0xff] %v3384
        %3417 = vst [vmem:[#allocation3 + $0x348] sm:$0xff] %v3385
        %3418 = vst [vmem:[#allocation3 + $0x390] sm:$0xff] %v3386
        %3419 = vst [vmem:[#allocation3 + $0x3d8] sm:$0xff] %v3387
        %3420 = vst [vmem:[#allocation3 + $0x420] sm:$0xff] %v3388
        %3421 = vst [vmem:[#allocation3 + $0x468] sm:$0xff] %v3389
        %3422 = vst [vmem:[#allocation3 + $0x4b0] sm:$0xff] %v3390
        %3423 = vst [vmem:[#allocation3 + $0x4f8] sm:$0xff] %v3391
        %3424 = vst [vmem:[#allocation3 + $0x540] sm:$0xff] %v3392
        %3425 = vst [vmem:[#allocation3 + $0x588] sm:$0xff] %v3393
        %3426 = vst [vmem:[#allocation3 + $0x5d0] sm:$0xff] %v3394
        %3427 = vst [vmem:[#allocation3 + $0x618] sm:$0xff] %v3395
        %3428 = vst [vmem:[#allocation3 + $0x660] sm:$0xff] %v3396
        %3429 = vst [vmem:[#allocation3 + $0x6a8] sm:$0xff] %v3397
        %3430 = vst [vmem:[#allocation3 + $0x6f0] sm:$0xff] %v3398
        %3431 = vst [vmem:[#allocation3 + $0x738] sm:$0xff] %v3399
        %3432 = vst [vmem:[#allocation3 + $0x780] sm:$0xff] %v3400
        %3433 = vst [vmem:[#allocation3 + $0x7c8] sm:$0xff] %v3401
        %3434 = vst [vmem:[#allocation3 + $0x810] sm:$0xff] %v3402
        %3435 = vst [vmem:[#allocation3 + $0x858] sm:$0xff] %v3403
        %3436 = vst [vmem:[#allocation3 + $0x8a0] sm:$0xff] %v3404
        %3437 = vst [vmem:[#allocation3 + $0x8e8] sm:$0xff] %v3405
        %v3438 = vld [vmem:[%s924 + $0x1] sm:$0xff]
        %v3439 = vld [vmem:[%s924 + $0x9] sm:$0xff]
        %v3440 = vld [vmem:[%s924 + $0x19] sm:$0xff]
        %v3441 = vld [vmem:[%s924 + $0x21] sm:$0xff]
        %v3442 = vld [vmem:[%s924 + $0x31] sm:$0xff]
        %v3443 = vld [vmem:[%s924 + $0x39] sm:$0xff]
        %v3444 = vld [vmem:[%s924 + $0x49] sm:$0xff]
        %v3445 = vld [vmem:[%s924 + $0x51] sm:$0xff]
        %v3446 = vld [vmem:[%s924 + $0x61] sm:$0xff]
        %v3447 = vld [vmem:[%s924 + $0x69] sm:$0xff]
        %v3448 = vld [vmem:[%s924 + $0x79] sm:$0xff]
        %v3449 = vld [vmem:[%s924 + $0x81] sm:$0xff]
        %v3450 = vld [vmem:[%s924 + $0x91] sm:$0xff]
        %v3451 = vld [vmem:[%s924 + $0x99] sm:$0xff]
        %v3452 = vld [vmem:[%s924 + $0xa9] sm:$0xff]
        %v3453 = vld [vmem:[%s924 + $0xb1] sm:$0xff]
        %v3454 = vld [vmem:[%s924 + $0xc1] sm:$0xff]
        %v3455 = vld [vmem:[%s924 + $0xc9] sm:$0xff]
        %v3456 = vld [vmem:[%s924 + $0xd9] sm:$0xff]
        %v3457 = vld [vmem:[%s924 + $0xe1] sm:$0xff]
        %v3458 = vld [vmem:[%s924 + $0xf1] sm:$0xff]
        %v3459 = vld [vmem:[%s924 + $0xf9] sm:$0xff]
        %v3460 = vld [vmem:[%s924 + $0x109] sm:$0xff]
        %v3461 = vld [vmem:[%s924 + $0x111] sm:$0xff]
        %v3462 = vld [vmem:[%s924 + $0x121] sm:$0xff]
        %v3463 = vld [vmem:[%s924 + $0x129] sm:$0xff]
        %v3464 = vld [vmem:[%s924 + $0x139] sm:$0xff]
        %v3465 = vld [vmem:[%s924 + $0x141] sm:$0xff]
        %v3466 = vld [vmem:[%s924 + $0x151] sm:$0xff]
        %v3467 = vld [vmem:[%s924 + $0x159] sm:$0xff]
        %v3468 = vld [vmem:[%s924 + $0x169] sm:$0xff]
        %v3469 = vld [vmem:[%s924 + $0x171] sm:$0xff]
        %3470 = vst [vmem:[#allocation3 + $0x38] sm:$0xff] %v3438
        %3471 = vst [vmem:[#allocation3 + $0x80] sm:$0xff] %v3439
        %3472 = vst [vmem:[#allocation3 + $0xc8] sm:$0xff] %v3440
        %3473 = vst [vmem:[#allocation3 + $0x110] sm:$0xff] %v3441
        %3474 = vst [vmem:[#allocation3 + $0x158] sm:$0xff] %v3442
        %3475 = vst [vmem:[#allocation3 + $0x1a0] sm:$0xff] %v3443
        %3476 = vst [vmem:[#allocation3 + $0x1e8] sm:$0xff] %v3444
        %3477 = vst [vmem:[#allocation3 + $0x230] sm:$0xff] %v3445
        %3478 = vst [vmem:[#allocation3 + $0x278] sm:$0xff] %v3446
        %3479 = vst [vmem:[#allocation3 + $0x2c0] sm:$0xff] %v3447
        %3480 = vst [vmem:[#allocation3 + $0x308] sm:$0xff] %v3448
        %3481 = vst [vmem:[#allocation3 + $0x350] sm:$0xff] %v3449
        %3482 = vst [vmem:[#allocation3 + $0x398] sm:$0xff] %v3450
        %3483 = vst [vmem:[#allocation3 + $0x3e0] sm:$0xff] %v3451
        %3484 = vst [vmem:[#allocation3 + $0x428] sm:$0xff] %v3452
        %3485 = vst [vmem:[#allocation3 + $0x470] sm:$0xff] %v3453
        %3486 = vst [vmem:[#allocation3 + $0x4b8] sm:$0xff] %v3454
        %3487 = vst [vmem:[#allocation3 + $0x500] sm:$0xff] %v3455
        %3488 = vst [vmem:[#allocation3 + $0x548] sm:$0xff] %v3456
        %3489 = vst [vmem:[#allocation3 + $0x590] sm:$0xff] %v3457
        %3490 = vst [vmem:[#allocation3 + $0x5d8] sm:$0xff] %v3458
        %3491 = vst [vmem:[#allocation3 + $0x620] sm:$0xff] %v3459
        %3492 = vst [vmem:[#allocation3 + $0x668] sm:$0xff] %v3460
        %3493 = vst [vmem:[#allocation3 + $0x6b0] sm:$0xff] %v3461
        %3494 = vst [vmem:[#allocation3 + $0x6f8] sm:$0xff] %v3462
        %3495 = vst [vmem:[#allocation3 + $0x740] sm:$0xff] %v3463
        %3496 = vst [vmem:[#allocation3 + $0x788] sm:$0xff] %v3464
        %3497 = vst [vmem:[#allocation3 + $0x7d0] sm:$0xff] %v3465
        %3498 = vst [vmem:[#allocation3 + $0x818] sm:$0xff] %v3466
        %3499 = vst [vmem:[#allocation3 + $0x860] sm:$0xff] %v3467
        %3500 = vst [vmem:[#allocation3 + $0x8a8] sm:$0xff] %v3468
        %3501 = vst [vmem:[#allocation3 + $0x8f0] sm:$0xff] %v3469
        %v3502 = vld [vmem:[%s924 + $0x2] sm:$0xff]
        %v3503 = vld [vmem:[%s924 + $0xa] sm:$0xff]
        %v3504 = vld [vmem:[%s924 + $0x1a] sm:$0xff]
        %v3505 = vld [vmem:[%s924 + $0x22] sm:$0xff]
        %v3506 = vld [vmem:[%s924 + $0x32] sm:$0xff]
        %v3507 = vld [vmem:[%s924 + $0x3a] sm:$0xff]
        %v3508 = vld [vmem:[%s924 + $0x4a] sm:$0xff]
        %v3509 = vld [vmem:[%s924 + $0x52] sm:$0xff]
        %v3510 = vld [vmem:[%s924 + $0x62] sm:$0xff]
        %v3511 = vld [vmem:[%s924 + $0x6a] sm:$0xff]
        %v3512 = vld [vmem:[%s924 + $0x7a] sm:$0xff]
        %v3513 = vld [vmem:[%s924 + $0x82] sm:$0xff]
        %v3514 = vld [vmem:[%s924 + $0x92] sm:$0xff]
        %v3515 = vld [vmem:[%s924 + $0x9a] sm:$0xff]
        %v3516 = vld [vmem:[%s924 + $0xaa] sm:$0xff]
        %v3517 = vld [vmem:[%s924 + $0xb2] sm:$0xff]
        %v3518 = vld [vmem:[%s924 + $0xc2] sm:$0xff]
        %v3519 = vld [vmem:[%s924 + $0xca] sm:$0xff]
        %v3520 = vld [vmem:[%s924 + $0xda] sm:$0xff]
        %v3521 = vld [vmem:[%s924 + $0xe2] sm:$0xff]
        %v3522 = vld [vmem:[%s924 + $0xf2] sm:$0xff]
        %v3523 = vld [vmem:[%s924 + $0xfa] sm:$0xff]
        %v3524 = vld [vmem:[%s924 + $0x10a] sm:$0xff]
        %v3525 = vld [vmem:[%s924 + $0x112] sm:$0xff]
        %v3526 = vld [vmem:[%s924 + $0x122] sm:$0xff]
        %v3527 = vld [vmem:[%s924 + $0x12a] sm:$0xff]
        %v3528 = vld [vmem:[%s924 + $0x13a] sm:$0xff]
        %v3529 = vld [vmem:[%s924 + $0x142] sm:$0xff]
        %v3530 = vld [vmem:[%s924 + $0x152] sm:$0xff]
        %v3531 = vld [vmem:[%s924 + $0x15a] sm:$0xff]
        %v3532 = vld [vmem:[%s924 + $0x16a] sm:$0xff]
        %v3533 = vld [vmem:[%s924 + $0x172] sm:$0xff]
        %3534 = vst [vmem:[#allocation3 + $0x40] sm:$0xff] %v3502
        %3535 = vst [vmem:[#allocation3 + $0x88] sm:$0xff] %v3503
        %3536 = vst [vmem:[#allocation3 + $0xd0] sm:$0xff] %v3504
        %3537 = vst [vmem:[#allocation3 + $0x118] sm:$0xff] %v3505
        %3538 = vst [vmem:[#allocation3 + $0x160] sm:$0xff] %v3506
        %3539 = vst [vmem:[#allocation3 + $0x1a8] sm:$0xff] %v3507
        %3540 = vst [vmem:[#allocation3 + $0x1f0] sm:$0xff] %v3508
        %3541 = vst [vmem:[#allocation3 + $0x238] sm:$0xff] %v3509
        %3542 = vst [vmem:[#allocation3 + $0x280] sm:$0xff] %v3510
        %3543 = vst [vmem:[#allocation3 + $0x2c8] sm:$0xff] %v3511
        %3544 = vst [vmem:[#allocation3 + $0x310] sm:$0xff] %v3512
        %3545 = vst [vmem:[#allocation3 + $0x358] sm:$0xff] %v3513
        %3546 = vst [vmem:[#allocation3 + $0x3a0] sm:$0xff] %v3514
        %3547 = vst [vmem:[#allocation3 + $0x3e8] sm:$0xff] %v3515
        %3548 = vst [vmem:[#allocation3 + $0x430] sm:$0xff] %v3516
        %3549 = vst [vmem:[#allocation3 + $0x478] sm:$0xff] %v3517
        %3550 = vst [vmem:[#allocation3 + $0x4c0] sm:$0xff] %v3518
        %3551 = vst [vmem:[#allocation3 + $0x508] sm:$0xff] %v3519
        %3552 = vst [vmem:[#allocation3 + $0x550] sm:$0xff] %v3520
        %3553 = vst [vmem:[#allocation3 + $0x598] sm:$0xff] %v3521
        %3554 = vst [vmem:[#allocation3 + $0x5e0] sm:$0xff] %v3522
        %3555 = vst [vmem:[#allocation3 + $0x628] sm:$0xff] %v3523
        %3556 = vst [vmem:[#allocation3 + $0x670] sm:$0xff] %v3524
        %3557 = vst [vmem:[#allocation3 + $0x6b8] sm:$0xff] %v3525
        %3558 = vst [vmem:[#allocation3 + $0x700] sm:$0xff] %v3526
        %3559 = vst [vmem:[#allocation3 + $0x748] sm:$0xff] %v3527
        %3560 = vst [vmem:[#allocation3 + $0x790] sm:$0xff] %v3528
        %3561 = vst [vmem:[#allocation3 + $0x7d8] sm:$0xff] %v3529
        %3562 = vst [vmem:[#allocation3 + $0x820] sm:$0xff] %v3530
        %3563 = vst [vmem:[#allocation3 + $0x868] sm:$0xff] %v3531
        %3564 = vst [vmem:[#allocation3 + $0x8b0] sm:$0xff] %v3532
        %3565 = vst [vmem:[#allocation3 + $0x8f8] sm:$0xff] %v3533
        %v3566 = vld [vmem:[#allocation3] sm:$0xff]
        %v3567 = vld [vmem:[#allocation3 + $0x8] sm:$0xff]
        %v3568 = vld [vmem:[#allocation3 + $0x10] sm:$0xff]
        %v3569 = vld [vmem:[#allocation3 + $0x18] sm:$0xff]
        %v3570 = vld [vmem:[#allocation3 + $0x20] sm:$0xff]
        %v3571 = vld [vmem:[#allocation3 + $0x28] sm:$0xff]
        %v3572 = vld [vmem:[#allocation3 + $0x30] sm:$0xff]
        %v3573 = vld [vmem:[#allocation3 + $0x38] sm:$0xff]
        %v3574 = vld [vmem:[#allocation3 + $0x40] sm:$0xff]
        %v3575 = vld [vmem:[#allocation3 + $0x48] sm:$0xff]
        %v3576 = vld [vmem:[#allocation3 + $0x50] sm:$0xff]
        %v3577 = vld [vmem:[#allocation3 + $0x58] sm:$0xff]
        %v3578 = vld [vmem:[#allocation3 + $0x60] sm:$0xff]
        %v3579 = vld [vmem:[#allocation3 + $0x68] sm:$0xff]
        %v3580 = vld [vmem:[#allocation3 + $0x70] sm:$0xff]
        %v3581 = vld [vmem:[#allocation3 + $0x78] sm:$0xff]
        %v3582 = vld [vmem:[#allocation3 + $0x80] sm:$0xff]
        %v3583 = vld [vmem:[#allocation3 + $0x88] sm:$0xff]
        %v3584 = vld [vmem:[#allocation3 + $0x90] sm:$0xff]
        %v3585 = vld [vmem:[#allocation3 + $0x98] sm:$0xff]
        %v3586 = vld [vmem:[#allocation3 + $0xa0] sm:$0xff]
        %v3587 = vld [vmem:[#allocation3 + $0xa8] sm:$0xff]
        %v3588 = vld [vmem:[#allocation3 + $0xb0] sm:$0xff]
        %v3589 = vld [vmem:[#allocation3 + $0xb8] sm:$0xff]
        %v3590 = vld [vmem:[#allocation3 + $0xc0] sm:$0xff]
        %v3591 = vld [vmem:[#allocation3 + $0xc8] sm:$0xff]
        %v3592 = vld [vmem:[#allocation3 + $0xd0] sm:$0xff]
        %v3593 = vld [vmem:[#allocation3 + $0xd8] sm:$0xff]
        %v3594 = vld [vmem:[#allocation3 + $0xe0] sm:$0xff]
        %v3595 = vld [vmem:[#allocation3 + $0xe8] sm:$0xff]
        %v3596 = vld [vmem:[#allocation3 + $0xf0] sm:$0xff]
        %v3597 = vld [vmem:[#allocation3 + $0xf8] sm:$0xff]
        %v3598 = vld [vmem:[#allocation3 + $0x100] sm:$0xff]
        %v3599 = vld [vmem:[#allocation3 + $0x108] sm:$0xff]
        %v3600 = vld [vmem:[#allocation3 + $0x110] sm:$0xff]
        %v3601 = vld [vmem:[#allocation3 + $0x118] sm:$0xff]
        %v3602 = vld [vmem:[#allocation3 + $0x120] sm:$0xff]
        %v3603 = vld [vmem:[#allocation3 + $0x128] sm:$0xff]
        %v3604 = vld [vmem:[#allocation3 + $0x130] sm:$0xff]
        %v3605 = vld [vmem:[#allocation3 + $0x138] sm:$0xff]
        %v3606 = vld [vmem:[#allocation3 + $0x140] sm:$0xff]
        %v3607 = vld [vmem:[#allocation3 + $0x148] sm:$0xff]
        %v3608 = vld [vmem:[#allocation3 + $0x150] sm:$0xff]
        %v3609 = vld [vmem:[#allocation3 + $0x158] sm:$0xff]
        %v3610 = vld [vmem:[#allocation3 + $0x160] sm:$0xff]
        %v3611 = vld [vmem:[#allocation3 + $0x168] sm:$0xff]
        %v3612 = vld [vmem:[#allocation3 + $0x170] sm:$0xff]
        %v3613 = vld [vmem:[#allocation3 + $0x178] sm:$0xff]
        %v3614 = vld [vmem:[#allocation3 + $0x180] sm:$0xff]
        %v3615 = vld [vmem:[#allocation3 + $0x188] sm:$0xff]
        %v3616 = vld [vmem:[#allocation3 + $0x190] sm:$0xff]
        %v3617 = vld [vmem:[#allocation3 + $0x198] sm:$0xff]
        %v3618 = vld [vmem:[#allocation3 + $0x1a0] sm:$0xff]
        %v3619 = vld [vmem:[#allocation3 + $0x1a8] sm:$0xff]
        %v3620 = vld [vmem:[#allocation3 + $0x1b0] sm:$0xff]
        %v3621 = vld [vmem:[#allocation3 + $0x1b8] sm:$0xff]
        %v3622 = vld [vmem:[#allocation3 + $0x1c0] sm:$0xff]
        %v3623 = vld [vmem:[#allocation3 + $0x1c8] sm:$0xff]
        %v3624 = vld [vmem:[#allocation3 + $0x1d0] sm:$0xff]
        %v3625 = vld [vmem:[#allocation3 + $0x1d8] sm:$0xff]
        %v3626 = vld [vmem:[#allocation3 + $0x1e0] sm:$0xff]
        %v3627 = vld [vmem:[#allocation3 + $0x1e8] sm:$0xff]
        %v3628 = vld [vmem:[#allocation3 + $0x1f0] sm:$0xff]
        %v3629 = vld [vmem:[#allocation3 + $0x1f8] sm:$0xff]
        %v3630 = vld [vmem:[#allocation3 + $0x200] sm:$0xff]
        %v3631 = vld [vmem:[#allocation3 + $0x208] sm:$0xff]
        %v3632 = vld [vmem:[#allocation3 + $0x210] sm:$0xff]
        %v3633 = vld [vmem:[#allocation3 + $0x218] sm:$0xff]
        %v3634 = vld [vmem:[#allocation3 + $0x220] sm:$0xff]
        %v3635 = vld [vmem:[#allocation3 + $0x228] sm:$0xff]
        %v3636 = vld [vmem:[#allocation3 + $0x230] sm:$0xff]
        %v3637 = vld [vmem:[#allocation3 + $0x238] sm:$0xff]
        %v3638 = vld [vmem:[#allocation3 + $0x240] sm:$0xff]
        %v3639 = vld [vmem:[#allocation3 + $0x248] sm:$0xff]
        %v3640 = vld [vmem:[#allocation3 + $0x250] sm:$0xff]
        %v3641 = vld [vmem:[#allocation3 + $0x258] sm:$0xff]
        %v3642 = vld [vmem:[#allocation3 + $0x260] sm:$0xff]
        %v3643 = vld [vmem:[#allocation3 + $0x268] sm:$0xff]
        %v3644 = vld [vmem:[#allocation3 + $0x270] sm:$0xff]
        %v3645 = vld [vmem:[#allocation3 + $0x278] sm:$0xff]
        %v3646 = vld [vmem:[#allocation3 + $0x280] sm:$0xff]
        %v3647 = vld [vmem:[#allocation3 + $0x288] sm:$0xff]
        %v3648 = vld [vmem:[#allocation3 + $0x290] sm:$0xff]
        %v3649 = vld [vmem:[#allocation3 + $0x298] sm:$0xff]
        %v3650 = vld [vmem:[#allocation3 + $0x2a0] sm:$0xff]
        %v3651 = vld [vmem:[#allocation3 + $0x2a8] sm:$0xff]
        %v3652 = vld [vmem:[#allocation3 + $0x2b0] sm:$0xff]
        %v3653 = vld [vmem:[#allocation3 + $0x2b8] sm:$0xff]
        %v3654 = vld [vmem:[#allocation3 + $0x2c0] sm:$0xff]
        %v3655 = vld [vmem:[#allocation3 + $0x2c8] sm:$0xff]
        %v3656 = vld [vmem:[#allocation3 + $0x2d0] sm:$0xff]
        %v3657 = vld [vmem:[#allocation3 + $0x2d8] sm:$0xff]
        %v3658 = vld [vmem:[#allocation3 + $0x2e0] sm:$0xff]
        %v3659 = vld [vmem:[#allocation3 + $0x2e8] sm:$0xff]
        %v3660 = vld [vmem:[#allocation3 + $0x2f0] sm:$0xff]
        %v3661 = vld [vmem:[#allocation3 + $0x2f8] sm:$0xff]
        %v3662 = vld [vmem:[#allocation3 + $0x300] sm:$0xff]
        %v3663 = vld [vmem:[#allocation3 + $0x308] sm:$0xff]
        %v3664 = vld [vmem:[#allocation3 + $0x310] sm:$0xff]
        %v3665 = vld [vmem:[#allocation3 + $0x318] sm:$0xff]
        %v3666 = vld [vmem:[#allocation3 + $0x320] sm:$0xff]
        %v3667 = vld [vmem:[#allocation3 + $0x328] sm:$0xff]
        %v3668 = vld [vmem:[#allocation3 + $0x330] sm:$0xff]
        %v3669 = vld [vmem:[#allocation3 + $0x338] sm:$0xff]
        %v3670 = vld [vmem:[#allocation3 + $0x340] sm:$0xff]
        %v3671 = vld [vmem:[#allocation3 + $0x348] sm:$0xff]
        %v3672 = vld [vmem:[#allocation3 + $0x350] sm:$0xff]
        %v3673 = vld [vmem:[#allocation3 + $0x358] sm:$0xff]
        %v3674 = vld [vmem:[#allocation3 + $0x360] sm:$0xff]
        %v3675 = vld [vmem:[#allocation3 + $0x368] sm:$0xff]
        %v3676 = vld [vmem:[#allocation3 + $0x370] sm:$0xff]
        %v3677 = vld [vmem:[#allocation3 + $0x378] sm:$0xff]
        %v3678 = vld [vmem:[#allocation3 + $0x380] sm:$0xff]
        %v3679 = vld [vmem:[#allocation3 + $0x388] sm:$0xff]
        %v3680 = vld [vmem:[#allocation3 + $0x390] sm:$0xff]
        %v3681 = vld [vmem:[#allocation3 + $0x398] sm:$0xff]
        %v3682 = vld [vmem:[#allocation3 + $0x3a0] sm:$0xff]
        %v3683 = vld [vmem:[#allocation3 + $0x3a8] sm:$0xff]
        %v3684 = vld [vmem:[#allocation3 + $0x3b0] sm:$0xff]
        %v3685 = vld [vmem:[#allocation3 + $0x3b8] sm:$0xff]
        %v3686 = vld [vmem:[#allocation3 + $0x3c0] sm:$0xff]
        %v3687 = vld [vmem:[#allocation3 + $0x3c8] sm:$0xff]
        %v3688 = vld [vmem:[#allocation3 + $0x3d0] sm:$0xff]
        %v3689 = vld [vmem:[#allocation3 + $0x3d8] sm:$0xff]
        %v3690 = vld [vmem:[#allocation3 + $0x3e0] sm:$0xff]
        %v3691 = vld [vmem:[#allocation3 + $0x3e8] sm:$0xff]
        %v3692 = vld [vmem:[#allocation3 + $0x3f0] sm:$0xff]
        %v3693 = vld [vmem:[#allocation3 + $0x3f8] sm:$0xff]
        %v3694 = vld [vmem:[#allocation3 + $0x400] sm:$0xff]
        %v3695 = vld [vmem:[#allocation3 + $0x408] sm:$0xff]
        %v3696 = vld [vmem:[#allocation3 + $0x410] sm:$0xff]
        %v3697 = vld [vmem:[#allocation3 + $0x418] sm:$0xff]
        %v3698 = vld [vmem:[#allocation3 + $0x420] sm:$0xff]
        %v3699 = vld [vmem:[#allocation3 + $0x428] sm:$0xff]
        %v3700 = vld [vmem:[#allocation3 + $0x430] sm:$0xff]
        %v3701 = vld [vmem:[#allocation3 + $0x438] sm:$0xff]
        %v3702 = vld [vmem:[#allocation3 + $0x440] sm:$0xff]
        %v3703 = vld [vmem:[#allocation3 + $0x448] sm:$0xff]
        %v3704 = vld [vmem:[#allocation3 + $0x450] sm:$0xff]
        %v3705 = vld [vmem:[#allocation3 + $0x458] sm:$0xff]
        %v3706 = vld [vmem:[#allocation3 + $0x460] sm:$0xff]
        %v3707 = vld [vmem:[#allocation3 + $0x468] sm:$0xff]
        %v3708 = vld [vmem:[#allocation3 + $0x470] sm:$0xff]
        %v3709 = vld [vmem:[#allocation3 + $0x478] sm:$0xff]
        %v3710 = vld [vmem:[#allocation3 + $0x480] sm:$0xff]
        %v3711 = vld [vmem:[#allocation3 + $0x488] sm:$0xff]
        %v3712 = vld [vmem:[#allocation3 + $0x490] sm:$0xff]
        %v3713 = vld [vmem:[#allocation3 + $0x498] sm:$0xff]
        %v3714 = vld [vmem:[#allocation3 + $0x4a0] sm:$0xff]
        %v3715 = vld [vmem:[#allocation3 + $0x4a8] sm:$0xff]
        %v3716 = vld [vmem:[#allocation3 + $0x4b0] sm:$0xff]
        %v3717 = vld [vmem:[#allocation3 + $0x4b8] sm:$0xff]
        %v3718 = vld [vmem:[#allocation3 + $0x4c0] sm:$0xff]
        %v3719 = vld [vmem:[#allocation3 + $0x4c8] sm:$0xff]
        %v3720 = vld [vmem:[#allocation3 + $0x4d0] sm:$0xff]
        %v3721 = vld [vmem:[#allocation3 + $0x4d8] sm:$0xff]
        %v3722 = vld [vmem:[#allocation3 + $0x4e0] sm:$0xff]
        %v3723 = vld [vmem:[#allocation3 + $0x4e8] sm:$0xff]
        %v3724 = vld [vmem:[#allocation3 + $0x4f0] sm:$0xff]
        %v3725 = vld [vmem:[#allocation3 + $0x4f8] sm:$0xff]
        %v3726 = vld [vmem:[#allocation3 + $0x500] sm:$0xff]
        %v3727 = vld [vmem:[#allocation3 + $0x508] sm:$0xff]
        %v3728 = vld [vmem:[#allocation3 + $0x510] sm:$0xff]
        %v3729 = vld [vmem:[#allocation3 + $0x518] sm:$0xff]
        %v3730 = vld [vmem:[#allocation3 + $0x520] sm:$0xff]
        %v3731 = vld [vmem:[#allocation3 + $0x528] sm:$0xff]
        %v3732 = vld [vmem:[#allocation3 + $0x530] sm:$0xff]
        %v3733 = vld [vmem:[#allocation3 + $0x538] sm:$0xff]
        %v3734 = vld [vmem:[#allocation3 + $0x540] sm:$0xff]
        %v3735 = vld [vmem:[#allocation3 + $0x548] sm:$0xff]
        %v3736 = vld [vmem:[#allocation3 + $0x550] sm:$0xff]
        %v3737 = vld [vmem:[#allocation3 + $0x558] sm:$0xff]
        %v3738 = vld [vmem:[#allocation3 + $0x560] sm:$0xff]
        %v3739 = vld [vmem:[#allocation3 + $0x568] sm:$0xff]
        %v3740 = vld [vmem:[#allocation3 + $0x570] sm:$0xff]
        %v3741 = vld [vmem:[#allocation3 + $0x578] sm:$0xff]
        %v3742 = vld [vmem:[#allocation3 + $0x580] sm:$0xff]
        %v3743 = vld [vmem:[#allocation3 + $0x588] sm:$0xff]
        %v3744 = vld [vmem:[#allocation3 + $0x590] sm:$0xff]
        %v3745 = vld [vmem:[#allocation3 + $0x598] sm:$0xff]
        %v3746 = vld [vmem:[#allocation3 + $0x5a0] sm:$0xff]
        %v3747 = vld [vmem:[#allocation3 + $0x5a8] sm:$0xff]
        %v3748 = vld [vmem:[#allocation3 + $0x5b0] sm:$0xff]
        %v3749 = vld [vmem:[#allocation3 + $0x5b8] sm:$0xff]
        %v3750 = vld [vmem:[#allocation3 + $0x5c0] sm:$0xff]
        %v3751 = vld [vmem:[#allocation3 + $0x5c8] sm:$0xff]
        %v3752 = vld [vmem:[#allocation3 + $0x5d0] sm:$0xff]
        %v3753 = vld [vmem:[#allocation3 + $0x5d8] sm:$0xff]
        %v3754 = vld [vmem:[#allocation3 + $0x5e0] sm:$0xff]
        %v3755 = vld [vmem:[#allocation3 + $0x5e8] sm:$0xff]
        %v3756 = vld [vmem:[#allocation3 + $0x5f0] sm:$0xff]
        %v3757 = vld [vmem:[#allocation3 + $0x5f8] sm:$0xff]
        %v3758 = vld [vmem:[#allocation3 + $0x600] sm:$0xff]
        %v3759 = vld [vmem:[#allocation3 + $0x608] sm:$0xff]
        %v3760 = vld [vmem:[#allocation3 + $0x610] sm:$0xff]
        %v3761 = vld [vmem:[#allocation3 + $0x618] sm:$0xff]
        %v3762 = vld [vmem:[#allocation3 + $0x620] sm:$0xff]
        %v3763 = vld [vmem:[#allocation3 + $0x628] sm:$0xff]
        %v3764 = vld [vmem:[#allocation3 + $0x630] sm:$0xff]
        %v3765 = vld [vmem:[#allocation3 + $0x638] sm:$0xff]
        %v3766 = vld [vmem:[#allocation3 + $0x640] sm:$0xff]
        %v3767 = vld [vmem:[#allocation3 + $0x648] sm:$0xff]
        %v3768 = vld [vmem:[#allocation3 + $0x650] sm:$0xff]
        %v3769 = vld [vmem:[#allocation3 + $0x658] sm:$0xff]
        %v3770 = vld [vmem:[#allocation3 + $0x660] sm:$0xff]
        %v3771 = vld [vmem:[#allocation3 + $0x668] sm:$0xff]
        %v3772 = vld [vmem:[#allocation3 + $0x670] sm:$0xff]
        %v3773 = vld [vmem:[#allocation3 + $0x678] sm:$0xff]
        %v3774 = vld [vmem:[#allocation3 + $0x680] sm:$0xff]
        %v3775 = vld [vmem:[#allocation3 + $0x688] sm:$0xff]
        %v3776 = vld [vmem:[#allocation3 + $0x690] sm:$0xff]
        %v3777 = vld [vmem:[#allocation3 + $0x698] sm:$0xff]
        %v3778 = vld [vmem:[#allocation3 + $0x6a0] sm:$0xff]
        %v3779 = vld [vmem:[#allocation3 + $0x6a8] sm:$0xff]
        %v3780 = vld [vmem:[#allocation3 + $0x6b0] sm:$0xff]
        %v3781 = vld [vmem:[#allocation3 + $0x6b8] sm:$0xff]
        %v3782 = vld [vmem:[#allocation3 + $0x6c0] sm:$0xff]
        %v3783 = vld [vmem:[#allocation3 + $0x6c8] sm:$0xff]
        %v3784 = vld [vmem:[#allocation3 + $0x6d0] sm:$0xff]
        %v3785 = vld [vmem:[#allocation3 + $0x6d8] sm:$0xff]
        %v3786 = vld [vmem:[#allocation3 + $0x6e0] sm:$0xff]
        %v3787 = vld [vmem:[#allocation3 + $0x6e8] sm:$0xff]
        %v3788 = vld [vmem:[#allocation3 + $0x6f0] sm:$0xff]
        %v3789 = vld [vmem:[#allocation3 + $0x6f8] sm:$0xff]
        %v3790 = vld [vmem:[#allocation3 + $0x700] sm:$0xff]
        %v3791 = vld [vmem:[#allocation3 + $0x708] sm:$0xff]
        %v3792 = vld [vmem:[#allocation3 + $0x710] sm:$0xff]
        %v3793 = vld [vmem:[#allocation3 + $0x718] sm:$0xff]
        %v3794 = vld [vmem:[#allocation3 + $0x720] sm:$0xff]
        %v3795 = vld [vmem:[#allocation3 + $0x728] sm:$0xff]
        %v3796 = vld [vmem:[#allocation3 + $0x730] sm:$0xff]
        %v3797 = vld [vmem:[#allocation3 + $0x738] sm:$0xff]
        %v3798 = vld [vmem:[#allocation3 + $0x740] sm:$0xff]
        %v3799 = vld [vmem:[#allocation3 + $0x748] sm:$0xff]
        %v3800 = vld [vmem:[#allocation3 + $0x750] sm:$0xff]
        %v3801 = vld [vmem:[#allocation3 + $0x758] sm:$0xff]
        %v3802 = vld [vmem:[#allocation3 + $0x760] sm:$0xff]
        %v3803 = vld [vmem:[#allocation3 + $0x768] sm:$0xff]
        %v3804 = vld [vmem:[#allocation3 + $0x770] sm:$0xff]
        %v3805 = vld [vmem:[#allocation3 + $0x778] sm:$0xff]
        %v3806 = vld [vmem:[#allocation3 + $0x780] sm:$0xff]
        %v3807 = vld [vmem:[#allocation3 + $0x788] sm:$0xff]
        %v3808 = vld [vmem:[#allocation3 + $0x790] sm:$0xff]
        %v3809 = vld [vmem:[#allocation3 + $0x798] sm:$0xff]
        %v3810 = vld [vmem:[#allocation3 + $0x7a0] sm:$0xff]
        %v3811 = vld [vmem:[#allocation3 + $0x7a8] sm:$0xff]
        %v3812 = vld [vmem:[#allocation3 + $0x7b0] sm:$0xff]
        %v3813 = vld [vmem:[#allocation3 + $0x7b8] sm:$0xff]
        %v3814 = vld [vmem:[#allocation3 + $0x7c0] sm:$0xff]
        %v3815 = vld [vmem:[#allocation3 + $0x7c8] sm:$0xff]
        %v3816 = vld [vmem:[#allocation3 + $0x7d0] sm:$0xff]
        %v3817 = vld [vmem:[#allocation3 + $0x7d8] sm:$0xff]
        %v3818 = vld [vmem:[#allocation3 + $0x7e0] sm:$0xff]
        %v3819 = vld [vmem:[#allocation3 + $0x7e8] sm:$0xff]
        %v3820 = vld [vmem:[#allocation3 + $0x7f0] sm:$0xff]
        %v3821 = vld [vmem:[#allocation3 + $0x7f8] sm:$0xff]
        %v3822 = vld [vmem:[#allocation3 + $0x800] sm:$0xff]
        %v3823 = vld [vmem:[#allocation3 + $0x808] sm:$0xff]
        %v3824 = vld [vmem:[#allocation3 + $0x810] sm:$0xff]
        %v3825 = vld [vmem:[#allocation3 + $0x818] sm:$0xff]
        %v3826 = vld [vmem:[#allocation3 + $0x820] sm:$0xff]
        %v3827 = vld [vmem:[#allocation3 + $0x828] sm:$0xff]
        %v3828 = vld [vmem:[#allocation3 + $0x830] sm:$0xff]
        %v3829 = vld [vmem:[#allocation3 + $0x838] sm:$0xff]
        %v3830 = vld [vmem:[#allocation3 + $0x840] sm:$0xff]
        %v3831 = vld [vmem:[#allocation3 + $0x848] sm:$0xff]
        %v3832 = vld [vmem:[#allocation3 + $0x850] sm:$0xff]
        %v3833 = vld [vmem:[#allocation3 + $0x858] sm:$0xff]
        %v3834 = vld [vmem:[#allocation3 + $0x860] sm:$0xff]
        %v3835 = vld [vmem:[#allocation3 + $0x868] sm:$0xff]
        %v3836 = vld [vmem:[#allocation3 + $0x870] sm:$0xff]
        %v3837 = vld [vmem:[#allocation3 + $0x878] sm:$0xff]
        %v3838 = vld [vmem:[#allocation3 + $0x880] sm:$0xff]
        %v3839 = vld [vmem:[#allocation3 + $0x888] sm:$0xff]
        %v3840 = vld [vmem:[#allocation3 + $0x890] sm:$0xff]
        %v3841 = vld [vmem:[#allocation3 + $0x898] sm:$0xff]
        %v3842 = vld [vmem:[#allocation3 + $0x8a0] sm:$0xff]
        %v3843 = vld [vmem:[#allocation3 + $0x8a8] sm:$0xff]
        %v3844 = vld [vmem:[#allocation3 + $0x8b0] sm:$0xff]
        %v3845 = vld [vmem:[#allocation3 + $0x8b8] sm:$0xff]
        %v3846 = vld [vmem:[#allocation3 + $0x8c0] sm:$0xff]
        %v3847 = vld [vmem:[#allocation3 + $0x8c8] sm:$0xff]
        %v3848 = vld [vmem:[#allocation3 + $0x8d0] sm:$0xff]
        %v3849 = vld [vmem:[#allocation3 + $0x8d8] sm:$0xff]
        %v3850 = vld [vmem:[#allocation3 + $0x8e0] sm:$0xff]
        %v3851 = vld [vmem:[#allocation3 + $0x8e8] sm:$0xff]
        %v3852 = vld [vmem:[#allocation3 + $0x8f0] sm:$0xff]
        %v3853 = vld [vmem:[#allocation3 + $0x8f8] sm:$0xff]
        %3854 = vmatprep.subr.mxu0 0.0
        %3855 = vmatpush1.msra.mxu0 %v2738
        %3856 = vmatprep.subr.mxu0 0.0
        %3857 = vmatpush1.msra.mxu0 %v2739
        %3858 = vmatprep.subr.mxu0 0.0
        %3859 = vmatpush1.msra.mxu0 %v2740
        %3860 = vmatprep.subr.mxu0 0.0
        %3861 = vmatpush1.msra.mxu0 %v2741
        %3862 = vmatprep.subr.mxu0 0.0
        %3863 = vmatpush1.msra.mxu0 %v2742
        %3864 = vmatprep.subr.mxu0 0.0
        %3865 = vmatpush1.msra.mxu0 %v2743
        %3866 = vmatprep.subr.mxu0 0.0
        %3867 = vmatpush1.msra.mxu0 %v2744
        %3868 = vmatprep.subr.mxu0 0.0
        %3869 = vmatpush1.msra.mxu0 %v2745
        %3870 = vmatprep.subr.mxu0 0.0
        %3871 = vmatpush1.msra.mxu0 %v2746
        %3872 = vmatprep.subr.mxu0 0.0
        %3873 = vmatpush1.msra.mxu0 %v2747
        %3874 = vmatprep.subr.mxu0 0.0
        %3875 = vmatpush1.msra.mxu0 %v2748
        %3876 = vmatprep.subr.mxu0 0.0
        %3877 = vmatpush1.msra.mxu0 %v2749
        %3878 = vmatprep.subr.mxu0 0.0
        %3879 = vmatpush1.msra.mxu0 %v2750
        %3880 = vmatprep.subr.mxu0 0.0
        %3881 = vmatpush1.msra.mxu0 %v2751
        %3882 = vmatprep.subr.mxu0 0.0
        %3883 = vmatpush1.msra.mxu0 %v2752
        %3884 = vmatprep.subr.mxu0 0.0
        %3885 = vmatpush1.msra.mxu0 %v2753
        %3886 = vmatprep.subr.mxu0 0.0
        %3887 = vmatpush1.msra.mxu0 %v2754
        %3888 = vmatprep.subr.mxu0 0.0
        %3889 = vmatpush1.msra.mxu0 %v2755
        %3890 = vmatprep.subr.mxu0 0.0
        %3891 = vmatpush1.msra.mxu0 %v2756
        %3892 = vmatprep.subr.mxu0 0.0
        %3893 = vmatpush1.msra.mxu0 %v2757
        %3894 = vmatprep.subr.mxu0 0.0
        %3895 = vmatpush1.msra.mxu0 %v2758
        %3896 = vmatprep.subr.mxu0 0.0
        %3897 = vmatpush1.msra.mxu0 %v2759
        %3898 = vmatprep.subr.mxu0 0.0
        %3899 = vmatpush1.msra.mxu0 %v2760
        %3900 = vmatprep.subr.mxu0 0.0
        %3901 = vmatpush1.msra.mxu0 %v2761
        %3902 = vmatprep.subr.mxu0 0.0
        %3903 = vmatpush1.msra.mxu0 %v2762
        %3904 = vmatprep.subr.mxu0 0.0
        %3905 = vmatpush1.msra.mxu0 %v2763
        %3906 = vmatprep.subr.mxu0 0.0
        %3907 = vmatpush1.msra.mxu0 %v2764
        %3908 = vmatprep.subr.mxu0 0.0
        %3909 = vmatpush1.msra.mxu0 %v2765
        %3910 = vmatprep.subr.mxu0 0.0
        %3911 = vmatpush1.msra.mxu0 %v2766
        %3912 = vmatprep.subr.mxu0 0.0
        %3913 = vmatpush1.msra.mxu0 %v2767
        %3914 = vmatprep.subr.mxu0 0.0
        %3915 = vmatpush1.msra.mxu0 %v2768
        %3916 = vmatprep.subr.mxu0 0.0
        %3917 = vmatpush1.msra.mxu0 %v2769
        %3918 = vmatprep.mubr.f32.mxu0 %v3567
        %3919 = vmatmul.mubr.f32.gmra.mrb[0].mxu0 %v3566
        %v3920 = vpop.f32.mrb[0].mxu0
        %v3921 = vadd.f32 0.0, %v3920
        %v3922 = vpop.f32.mrb[0].mxu0
        %3923 = vmatprep.mubr.f32.mxu0 %v3576
        %3924 = vmatmul.mubr.f32.gmra.mrb[0].mxu0 %v3575
        %v3925 = vpop.f32.mrb[0].mxu0
        %v3926 = vadd.f32 0.0, %v3925
        %v3927 = vpop.f32.mrb[0].mxu0
        %3928 = vmatprep.mubr.f32.mxu0 %v3585
        %3929 = vmatmul.mubr.f32.gmra.mrb[0].mxu0 %v3584
        %v3930 = vpop.f32.mrb[0].mxu0
        %v3931 = vadd.f32 0.0, %v3930
        %v3932 = vpop.f32.mrb[0].mxu0
        %3933 = vmatprep.mubr.f32.mxu0 %v3594
        %3934 = vmatmul.mubr.f32.gmra.mrb[0].mxu0 %v3593
        %v3935 = vpop.f32.mrb[0].mxu0
        %v3936 = vadd.f32 0.0, %v3935
        %v3937 = vpop.f32.mrb[0].mxu0
        %3938 = vmatprep.mubr.f32.mxu0 %v3603
        %3939 = vmatmul.mubr.f32.gmra.mrb[0].mxu0 %v3602
        %v3940 = vpop.f32.mrb[0].mxu0
        %v3941 = vadd.f32 0.0, %v3940
        %v3942 = vpop.f32.mrb[0].mxu0
        %3943 = vmatprep.mubr.f32.mxu0 %v3612
        %3944 = vmatmul.mubr.f32.gmra.mrb[0].mxu0 %v3611
        %v3945 = vpop.f32.mrb[0].mxu0
        %v3946 = vadd.f32 0.0, %v3945
        %v3947 = vpop.f32.mrb[0].mxu0
        %3948 = vmatprep.mubr.f32.mxu0 %v3621
        %3949 = vmatmul.mubr.f32.gmra.mrb[0].mxu0 %v3620
        %v3950 = vpop.f32.mrb[0].mxu0
        %v3951 = vadd.f32 0.0, %v3950
        %v3952 = vpop.f32.mrb[0].mxu0
        %3953 = vmatprep.mubr.f32.mxu0 %v3630
        %3954 = vmatmul.mubr.f32.gmra.mrb[0].mxu0 %v3629
        %v3955 = vpop.f32.mrb[0].mxu0
        %v3956 = vadd.f32 0.0, %v3955
        %v3957 = vpop.f32.mrb[0].mxu0
        %3958 = vmatprep.mubr.f32.mxu0 %v3639
        %3959 = vmatmul.mubr.f32.gmra.mrb[0].mxu0 %v3638
        %v3960 = vpop.f32.mrb[0].mxu0
        %v3961 = vadd.f32 0.0, %v3960
        %v3962 = vpop.f32.mrb[0].mxu0
        %3963 = vmatprep.mubr.f32.mxu0 %v3648
        %3964 = vmatmul.mubr.f32.gmra.mrb[0].mxu0 %v3647
        %v3965 = vpop.f32.mrb[0].mxu0
        %v3966 = vadd.f32 0.0, %v3965
        %v3967 = vpop.f32.mrb[0].mxu0
        %3968 = vmatprep.mubr.f32.mxu0 %v3657
        %3969 = vmatmul.mubr.f32.gmra.mrb[0].mxu0 %v3656
        %v3970 = vpop.f32.mrb[0].mxu0
        %v3971 = vadd.f32 0.0, %v3970
        %v3972 = vpop.f32.mrb[0].mxu0
        %3973 = vmatprep.mubr.f32.mxu0 %v3666
        %3974 = vmatmul.mubr.f32.gmra.mrb[0].mxu0 %v3665
        %v3975 = vpop.f32.mrb[0].mxu0
        %v3976 = vadd.f32 0.0, %v3975
        %v3977 = vpop.f32.mrb[0].mxu0
        %3978 = vmatprep.mubr.f32.mxu0 %v3675
        %3979 = vmatmul.mubr.f32.gmra.mrb[0].mxu0 %v3674
        %v3980 = vpop.f32.mrb[0].mxu0
        %v3981 = vadd.f32 0.0, %v3980
        %v3982 = vpop.f32.mrb[0].mxu0
        %3983 = vmatprep.mubr.f32.mxu0 %v3684
        %3984 = vmatmul.mubr.f32.gmra.mrb[0].mxu0 %v3683
        %v3985 = vpop.f32.mrb[0].mxu0
        %v3986 = vadd.f32 0.0, %v3985
        %v3987 = vpop.f32.mrb[0].mxu0
        %3988 = vmatprep.mubr.f32.mxu0 %v3693
        %3989 = vmatmul.mubr.f32.gmra.mrb[0].mxu0 %v3692
        %v3990 = vpop.f32.mrb[0].mxu0
        %v3991 = vadd.f32 0.0, %v3990
        %v3992 = vpop.f32.mrb[0].mxu0
        %3993 = vmatprep.mubr.f32.mxu0 %v3702
        %3994 = vmatmul.mubr.f32.gmra.mrb[0].mxu0 %v3701
        %v3995 = vpop.f32.mrb[0].mxu0
        %v3996 = vadd.f32 0.0, %v3995
        %v3997 = vpop.f32.mrb[0].mxu0
        %3998 = vmatprep.mubr.f32.mxu0 %v3711
        %3999 = vmatmul.mubr.f32.gmra.mrb[0].mxu0 %v3710
        %v4000 = vpop.f32.mrb[0].mxu0
        %v4001 = vadd.f32 0.0, %v4000
        %v4002 = vpop.f32.mrb[0].mxu0
        %4003 = vmatprep.mubr.f32.mxu0 %v3720
        %4004 = vmatmul.mubr.f32.gmra.mrb[0].mxu0 %v3719
        %v4005 = vpop.f32.mrb[0].mxu0
        %v4006 = vadd.f32 0.0, %v4005
        %v4007 = vpop.f32.mrb[0].mxu0
        %4008 = vmatprep.mubr.f32.mxu0 %v3729
        %4009 = vmatmul.mubr.f32.gmra.mrb[0].mxu0 %v3728
        %v4010 = vpop.f32.mrb[0].mxu0
        %v4011 = vadd.f32 0.0, %v4010
        %v4012 = vpop.f32.mrb[0].mxu0
        %4013 = vmatprep.mubr.f32.mxu0 %v3738
        %4014 = vmatmul.mubr.f32.gmra.mrb[0].mxu0 %v3737
        %v4015 = vpop.f32.mrb[0].mxu0
        %v4016 = vadd.f32 0.0, %v4015
        %v4017 = vpop.f32.mrb[0].mxu0
        %4018 = vmatprep.mubr.f32.mxu0 %v3747
        %4019 = vmatmul.mubr.f32.gmra.mrb[0].mxu0 %v3746
        %v4020 = vpop.f32.mrb[0].mxu0
        %v4021 = vadd.f32 0.0, %v4020
        %v4022 = vpop.f32.mrb[0].mxu0
        %4023 = vmatprep.mubr.f32.mxu0 %v3756
        %4024 = vmatmul.mubr.f32.gmra.mrb[0].mxu0 %v3755
        %v4025 = vpop.f32.mrb[0].mxu0
        %v4026 = vadd.f32 0.0, %v4025
        %v4027 = vpop.f32.mrb[0].mxu0
        %4028 = vmatprep.mubr.f32.mxu0 %v3765
        %4029 = vmatmul.mubr.f32.gmra.mrb[0].mxu0 %v3764
        %v4030 = vpop.f32.mrb[0].mxu0
        %v4031 = vadd.f32 0.0, %v4030
        %v4032 = vpop.f32.mrb[0].mxu0
        %4033 = vmatprep.mubr.f32.mxu0 %v3774
        %4034 = vmatmul.mubr.f32.gmra.mrb[0].mxu0 %v3773
        %v4035 = vpop.f32.mrb[0].mxu0
        %v4036 = vadd.f32 0.0, %v4035
        %v4037 = vpop.f32.mrb[0].mxu0
        %4038 = vmatprep.mubr.f32.mxu0 %v3783
        %4039 = vmatmul.mubr.f32.gmra.mrb[0].mxu0 %v3782
        %v4040 = vpop.f32.mrb[0].mxu0
        %v4041 = vadd.f32 0.0, %v4040
        %v4042 = vpop.f32.mrb[0].mxu0
        %4043 = vmatprep.mubr.f32.mxu0 %v3792
        %4044 = vmatmul.mubr.f32.gmra.mrb[0].mxu0 %v3791
        %v4045 = vpop.f32.mrb[0].mxu0
        %v4046 = vadd.f32 0.0, %v4045
        %v4047 = vpop.f32.mrb[0].mxu0
        %4048 = vmatprep.mubr.f32.mxu0 %v3801
        %4049 = vmatmul.mubr.f32.gmra.mrb[0].mxu0 %v3800
        %v4050 = vpop.f32.mrb[0].mxu0
        %v4051 = vadd.f32 0.0, %v4050
        %v4052 = vpop.f32.mrb[0].mxu0
        %4053 = vmatprep.mubr.f32.mxu0 %v3810
        %4054 = vmatmul.mubr.f32.gmra.mrb[0].mxu0 %v3809
        %v4055 = vpop.f32.mrb[0].mxu0
        %v4056 = vadd.f32 0.0, %v4055
        %v4057 = vpop.f32.mrb[0].mxu0
        %4058 = vmatprep.mubr.f32.mxu0 %v3819
        %4059 = vmatmul.mubr.f32.gmra.mrb[0].mxu0 %v3818
        %v4060 = vpop.f32.mrb[0].mxu0
        %v4061 = vadd.f32 0.0, %v4060
        %v4062 = vpop.f32.mrb[0].mxu0
        %4063 = vmatprep.mubr.f32.mxu0 %v3828
        %4064 = vmatmul.mubr.f32.gmra.mrb[0].mxu0 %v3827
        %v4065 = vpop.f32.mrb[0].mxu0
        %v4066 = vadd.f32 0.0, %v4065
        %v4067 = vpop.f32.mrb[0].mxu0
        %4068 = vmatprep.mubr.f32.mxu0 %v3837
        %4069 = vmatmul.mubr.f32.gmra.mrb[0].mxu0 %v3836
        %v4070 = vpop.f32.mrb[0].mxu0
        %v4071 = vadd.f32 0.0, %v4070
        %v4072 = vpop.f32.mrb[0].mxu0
        %4073 = vmatprep.mubr.f32.mxu0 %v3846
        %4074 = vmatmul.mubr.f32.gmra.mrb[0].mxu0 %v3845
        %v4075 = vpop.f32.mrb[0].mxu0
        %v4076 = vadd.f32 0.0, %v4075
        %v4077 = vpop.f32.mrb[0].mxu0
        %4078 = vdwg.mxu0
        %4079 = vmatprep.subr.mxu0 0.0
        %4080 = vmatpush1.msra.mxu0 %v2770
        %4081 = vmatprep.subr.mxu0 0.0
        %4082 = vmatpush1.msra.mxu0 %v2771
        %4083 = vmatprep.subr.mxu0 0.0
        %4084 = vmatpush1.msra.mxu0 %v2772
        %4085 = vmatprep.subr.mxu0 0.0
        %4086 = vmatpush1.msra.mxu0 %v2773
        %4087 = vmatprep.subr.mxu0 0.0
        %4088 = vmatpush1.msra.mxu0 %v2774
        %4089 = vmatprep.subr.mxu0 0.0
        %4090 = vmatpush1.msra.mxu0 %v2775
        %4091 = vmatprep.subr.mxu0 0.0
        %4092 = vmatpush1.msra.mxu0 %v2776
        %4093 = vmatprep.subr.mxu0 0.0
        %4094 = vmatpush1.msra.mxu0 %v2777
        %4095 = vmatprep.subr.mxu0 0.0
        %4096 = vmatpush1.msra.mxu0 %v2778
        %4097 = vmatprep.subr.mxu0 0.0
        %4098 = vmatpush1.msra.mxu0 %v2779
        %4099 = vmatprep.subr.mxu0 0.0
        %4100 = vmatpush1.msra.mxu0 %v2780
        %4101 = vmatprep.subr.mxu0 0.0
        %4102 = vmatpush1.msra.mxu0 %v2781
        %4103 = vmatprep.subr.mxu0 0.0
        %4104 = vmatpush1.msra.mxu0 %v2782
        %4105 = vmatprep.subr.mxu0 0.0
        %4106 = vmatpush1.msra.mxu0 %v2783
        %4107 = vmatprep.subr.mxu0 0.0
        %4108 = vmatpush1.msra.mxu0 %v2784
        %4109 = vmatprep.subr.mxu0 0.0
        %4110 = vmatpush1.msra.mxu0 %v2785
        %4111 = vmatprep.subr.mxu0 0.0
        %4112 = vmatpush1.msra.mxu0 %v2786
        %4113 = vmatprep.subr.mxu0 0.0
        %4114 = vmatpush1.msra.mxu0 %v2787
        %4115 = vmatprep.subr.mxu0 0.0
        %4116 = vmatpush1.msra.mxu0 %v2788
        %4117 = vmatprep.subr.mxu0 0.0
        %4118 = vmatpush1.msra.mxu0 %v2789
        %4119 = vmatprep.subr.mxu0 0.0
        %4120 = vmatpush1.msra.mxu0 %v2790
        %4121 = vmatprep.subr.mxu0 0.0
        %4122 = vmatpush1.msra.mxu0 %v2791
        %4123 = vmatprep.subr.mxu0 0.0
        %4124 = vmatpush1.msra.mxu0 %v2792
        %4125 = vmatprep.subr.mxu0 0.0
        %4126 = vmatpush1.msra.mxu0 %v2793
        %4127 = vmatprep.subr.mxu0 0.0
        %4128 = vmatpush1.msra.mxu0 %v2794
        %4129 = vmatprep.subr.mxu0 0.0
        %4130 = vmatpush1.msra.mxu0 %v2795
        %4131 = vmatprep.subr.mxu0 0.0
        %4132 = vmatpush1.msra.mxu0 %v2796
        %4133 = vmatprep.subr.mxu0 0.0
        %4134 = vmatpush1.msra.mxu0 %v2797
        %4135 = vmatprep.subr.mxu0 0.0
        %4136 = vmatpush1.msra.mxu0 %v2798
        %4137 = vmatprep.subr.mxu0 0.0
        %4138 = vmatpush1.msra.mxu0 %v2799
        %4139 = vmatprep.subr.mxu0 0.0
        %4140 = vmatpush1.msra.mxu0 %v2800
        %4141 = vmatprep.subr.mxu0 0.0
        %4142 = vmatpush1.msra.mxu0 %v2801
        %4143 = vmatprep.mubr.f32.mxu0 %v3569
        %4144 = vmatmul.mubr.f32.gmra.mrb[0].mxu0 %v3568
        %v4145 = vpop.f32.mrb[0].mxu0
        %v4146 = vadd.f32 %v3921, %v4145
        %v4147 = vpop.f32.mrb[0].mxu0
        %4148 = vmatprep.mubr.f32.mxu0 %v3578
        %4149 = vmatmul.mubr.f32.gmra.mrb[0].mxu0 %v3577
        %v4150 = vpop.f32.mrb[0].mxu0
        %v4151 = vadd.f32 %v3926, %v4150
        %v4152 = vpop.f32.mrb[0].mxu0
        %4153 = vmatprep.mubr.f32.mxu0 %v3587
        %4154 = vmatmul.mubr.f32.gmra.mrb[0].mxu0 %v3586
        %v4155 = vpop.f32.mrb[0].mxu0
        %v4156 = vadd.f32 %v3931, %v4155
        %v4157 = vpop.f32.mrb[0].mxu0
        %4158 = vmatprep.mubr.f32.mxu0 %v3596
        %4159 = vmatmul.mubr.f32.gmra.mrb[0].mxu0 %v3595
        %v4160 = vpop.f32.mrb[0].mxu0
        %v4161 = vadd.f32 %v3936, %v4160
        %v4162 = vpop.f32.mrb[0].mxu0
        %4163 = vmatprep.mubr.f32.mxu0 %v3605
        %4164 = vmatmul.mubr.f32.gmra.mrb[0].mxu0 %v3604
        %v4165 = vpop.f32.mrb[0].mxu0
        %v4166 = vadd.f32 %v3941, %v4165
        %v4167 = vpop.f32.mrb[0].mxu0
        %4168 = vmatprep.mubr.f32.mxu0 %v3614
        %4169 = vmatmul.mubr.f32.gmra.mrb[0].mxu0 %v3613
        %v4170 = vpop.f32.mrb[0].mxu0
        %v4171 = vadd.f32 %v3946, %v4170
        %v4172 = vpop.f32.mrb[0].mxu0
        %4173 = vmatprep.mubr.f32.mxu0 %v3623
        %4174 = vmatmul.mubr.f32.gmra.mrb[0].mxu0 %v3622
        %v4175 = vpop.f32.mrb[0].mxu0
        %v4176 = vadd.f32 %v3951, %v4175
        %v4177 = vpop.f32.mrb[0].mxu0
        %4178 = vmatprep.mubr.f32.mxu0 %v3632
        %4179 = vmatmul.mubr.f32.gmra.mrb[0].mxu0 %v3631
        %v4180 = vpop.f32.mrb[0].mxu0
        %v4181 = vadd.f32 %v3956, %v4180
        %v4182 = vpop.f32.mrb[0].mxu0
        %4183 = vmatprep.mubr.f32.mxu0 %v3641
        %4184 = vmatmul.mubr.f32.gmra.mrb[0].mxu0 %v3640
        %v4185 = vpop.f32.mrb[0].mxu0
        %v4186 = vadd.f32 %v3961, %v4185
        %v4187 = vpop.f32.mrb[0].mxu0
        %4188 = vmatprep.mubr.f32.mxu0 %v3650
        %4189 = vmatmul.mubr.f32.gmra.mrb[0].mxu0 %v3649
        %v4190 = vpop.f32.mrb[0].mxu0
        %v4191 = vadd.f32 %v3966, %v4190
        %v4192 = vpop.f32.mrb[0].mxu0
        %4193 = vmatprep.mubr.f32.mxu0 %v3659
        %4194 = vmatmul.mubr.f32.gmra.mrb[0].mxu0 %v3658
        %v4195 = vpop.f32.mrb[0].mxu0
        %v4196 = vadd.f32 %v3971, %v4195
        %v4197 = vpop.f32.mrb[0].mxu0
        %4198 = vmatprep.mubr.f32.mxu0 %v3668
        %4199 = vmatmul.mubr.f32.gmra.mrb[0].mxu0 %v3667
        %v4200 = vpop.f32.mrb[0].mxu0
        %v4201 = vadd.f32 %v3976, %v4200
        %v4202 = vpop.f32.mrb[0].mxu0
        %4203 = vmatprep.mubr.f32.mxu0 %v3677
        %4204 = vmatmul.mubr.f32.gmra.mrb[0].mxu0 %v3676
        %v4205 = vpop.f32.mrb[0].mxu0
        %v4206 = vadd.f32 %v3981, %v4205
        %v4207 = vpop.f32.mrb[0].mxu0
        %4208 = vmatprep.mubr.f32.mxu0 %v3686
        %4209 = vmatmul.mubr.f32.gmra.mrb[0].mxu0 %v3685
        %v4210 = vpop.f32.mrb[0].mxu0
        %v4211 = vadd.f32 %v3986, %v4210
        %v4212 = vpop.f32.mrb[0].mxu0
        %4213 = vmatprep.mubr.f32.mxu0 %v3695
        %4214 = vmatmul.mubr.f32.gmra.mrb[0].mxu0 %v3694
        %v4215 = vpop.f32.mrb[0].mxu0
        %v4216 = vadd.f32 %v3991, %v4215
        %v4217 = vpop.f32.mrb[0].mxu0
        %4218 = vmatprep.mubr.f32.mxu0 %v3704
        %4219 = vmatmul.mubr.f32.gmra.mrb[0].mxu0 %v3703
        %v4220 = vpop.f32.mrb[0].mxu0
        %v4221 = vadd.f32 %v3996, %v4220
        %v4222 = vpop.f32.mrb[0].mxu0
        %4223 = vmatprep.mubr.f32.mxu0 %v3713
        %4224 = vmatmul.mubr.f32.gmra.mrb[0].mxu0 %v3712
        %v4225 = vpop.f32.mrb[0].mxu0
        %v4226 = vadd.f32 %v4001, %v4225
        %v4227 = vpop.f32.mrb[0].mxu0
        %4228 = vmatprep.mubr.f32.mxu0 %v3722
        %4229 = vmatmul.mubr.f32.gmra.mrb[0].mxu0 %v3721
        %v4230 = vpop.f32.mrb[0].mxu0
        %v4231 = vadd.f32 %v4006, %v4230
        %v4232 = vpop.f32.mrb[0].mxu0
        %4233 = vmatprep.mubr.f32.mxu0 %v3731
        %4234 = vmatmul.mubr.f32.gmra.mrb[0].mxu0 %v3730
        %v4235 = vpop.f32.mrb[0].mxu0
        %v4236 = vadd.f32 %v4011, %v4235
        %v4237 = vpop.f32.mrb[0].mxu0
        %4238 = vmatprep.mubr.f32.mxu0 %v3740
        %4239 = vmatmul.mubr.f32.gmra.mrb[0].mxu0 %v3739
        %v4240 = vpop.f32.mrb[0].mxu0
        %v4241 = vadd.f32 %v4016, %v4240
        %v4242 = vpop.f32.mrb[0].mxu0
        %4243 = vmatprep.mubr.f32.mxu0 %v3749
        %4244 = vmatmul.mubr.f32.gmra.mrb[0].mxu0 %v3748
        %v4245 = vpop.f32.mrb[0].mxu0
        %v4246 = vadd.f32 %v4021, %v4245
        %v4247 = vpop.f32.mrb[0].mxu0
        %4248 = vmatprep.mubr.f32.mxu0 %v3758
        %4249 = vmatmul.mubr.f32.gmra.mrb[0].mxu0 %v3757
        %v4250 = vpop.f32.mrb[0].mxu0
        %v4251 = vadd.f32 %v4026, %v4250
        %v4252 = vpop.f32.mrb[0].mxu0
        %4253 = vmatprep.mubr.f32.mxu0 %v3767
        %4254 = vmatmul.mubr.f32.gmra.mrb[0].mxu0 %v3766
        %v4255 = vpop.f32.mrb[0].mxu0
        %v4256 = vadd.f32 %v4031, %v4255
        %v4257 = vpop.f32.mrb[0].mxu0
        %4258 = vmatprep.mubr.f32.mxu0 %v3776
        %4259 = vmatmul.mubr.f32.gmra.mrb[0].mxu0 %v3775
        %v4260 = vpop.f32.mrb[0].mxu0
        %v4261 = vadd.f32 %v4036, %v4260
        %v4262 = vpop.f32.mrb[0].mxu0
        %4263 = vmatprep.mubr.f32.mxu0 %v3785
        %4264 = vmatmul.mubr.f32.gmra.mrb[0].mxu0 %v3784
        %v4265 = vpop.f32.mrb[0].mxu0
        %v4266 = vadd.f32 %v4041, %v4265
        %v4267 = vpop.f32.mrb[0].mxu0
        %4268 = vmatprep.mubr.f32.mxu0 %v3794
        %4269 = vmatmul.mubr.f32.gmra.mrb[0].mxu0 %v3793
        %v4270 = vpop.f32.mrb[0].mxu0
        %v4271 = vadd.f32 %v4046, %v4270
        %v4272 = vpop.f32.mrb[0].mxu0
        %4273 = vmatprep.mubr.f32.mxu0 %v3803
        %4274 = vmatmul.mubr.f32.gmra.mrb[0].mxu0 %v3802
        %v4275 = vpop.f32.mrb[0].mxu0
        %v4276 = vadd.f32 %v4051, %v4275
        %v4277 = vpop.f32.mrb[0].mxu0
        %4278 = vmatprep.mubr.f32.mxu0 %v3812
        %4279 = vmatmul.mubr.f32.gmra.mrb[0].mxu0 %v3811
        %v4280 = vpop.f32.mrb[0].mxu0
        %v4281 = vadd.f32 %v4056, %v4280
        %v4282 = vpop.f32.mrb[0].mxu0
        %4283 = vmatprep.mubr.f32.mxu0 %v3821
        %4284 = vmatmul.mubr.f32.gmra.mrb[0].mxu0 %v3820
        %v4285 = vpop.f32.mrb[0].mxu0
        %v4286 = vadd.f32 %v4061, %v4285
        %v4287 = vpop.f32.mrb[0].mxu0
        %4288 = vmatprep.mubr.f32.mxu0 %v3830
        %4289 = vmatmul.mubr.f32.gmra.mrb[0].mxu0 %v3829
        %v4290 = vpop.f32.mrb[0].mxu0
        %v4291 = vadd.f32 %v4066, %v4290
        %v4292 = vpop.f32.mrb[0].mxu0
        %4293 = vmatprep.mubr.f32.mxu0 %v3839
        %4294 = vmatmul.mubr.f32.gmra.mrb[0].mxu0 %v3838
        %v4295 = vpop.f32.mrb[0].mxu0
        %v4296 = vadd.f32 %v4071, %v4295
        %v4297 = vpop.f32.mrb[0].mxu0
        %4298 = vmatprep.mubr.f32.mxu0 %v3848
        %4299 = vmatmul.mubr.f32.gmra.mrb[0].mxu0 %v3847
        %v4300 = vpop.f32.mrb[0].mxu0
        %v4301 = vadd.f32 %v4076, %v4300
        %v4302 = vpop.f32.mrb[0].mxu0
        %4303 = vdwg.mxu0
        %4304 = vmatprep.subr.mxu0 0.0
        %4305 = vmatpush1.msra.mxu0 %v2802
        %4306 = vmatprep.subr.mxu0 0.0
        %4307 = vmatpush1.msra.mxu0 %v2803
        %4308 = vmatprep.subr.mxu0 0.0
        %4309 = vmatpush1.msra.mxu0 %v2804
        %4310 = vmatprep.subr.mxu0 0.0
        %4311 = vmatpush1.msra.mxu0 %v2805
        %4312 = vmatprep.subr.mxu0 0.0
        %4313 = vmatpush1.msra.mxu0 %v2806
        %4314 = vmatprep.subr.mxu0 0.0
        %4315 = vmatpush1.msra.mxu0 %v2807
        %4316 = vmatprep.subr.mxu0 0.0
        %4317 = vmatpush1.msra.mxu0 %v2808
        %4318 = vmatprep.subr.mxu0 0.0
        %4319 = vmatpush1.msra.mxu0 %v2809
        %4320 = vmatprep.subr.mxu0 0.0
        %4321 = vmatpush1.msra.mxu0 %v2810
        %4322 = vmatprep.subr.mxu0 0.0
        %4323 = vmatpush1.msra.mxu0 %v2811
        %4324 = vmatprep.subr.mxu0 0.0
        %4325 = vmatpush1.msra.mxu0 %v2812
        %4326 = vmatprep.subr.mxu0 0.0
        %4327 = vmatpush1.msra.mxu0 %v2813
        %4328 = vmatprep.subr.mxu0 0.0
        %4329 = vmatpush1.msra.mxu0 %v2814
        %4330 = vmatprep.subr.mxu0 0.0
        %4331 = vmatpush1.msra.mxu0 %v2815
        %4332 = vmatprep.subr.mxu0 0.0
        %4333 = vmatpush1.msra.mxu0 %v2816
        %4334 = vmatprep.subr.mxu0 0.0
        %4335 = vmatpush1.msra.mxu0 %v2817
        %4336 = vmatprep.subr.mxu0 0.0
        %4337 = vmatpush1.msra.mxu0 %v2818
        %4338 = vmatprep.subr.mxu0 0.0
        %4339 = vmatpush1.msra.mxu0 %v2819
        %4340 = vmatprep.subr.mxu0 0.0
        %4341 = vmatpush1.msra.mxu0 %v2820
        %4342 = vmatprep.subr.mxu0 0.0
        %4343 = vmatpush1.msra.mxu0 %v2821
        %4344 = vmatprep.subr.mxu0 0.0
        %4345 = vmatpush1.msra.mxu0 %v2822
        %4346 = vmatprep.subr.mxu0 0.0
        %4347 = vmatpush1.msra.mxu0 %v2823
        %4348 = vmatprep.subr.mxu0 0.0
        %4349 = vmatpush1.msra.mxu0 %v2824
        %4350 = vmatprep.subr.mxu0 0.0
        %4351 = vmatpush1.msra.mxu0 %v2825
        %4352 = vmatprep.subr.mxu0 0.0
        %4353 = vmatpush1.msra.mxu0 %v2826
        %4354 = vmatprep.subr.mxu0 0.0
        %4355 = vmatpush1.msra.mxu0 %v2827
        %4356 = vmatprep.subr.mxu0 0.0
        %4357 = vmatpush1.msra.mxu0 %v2828
        %4358 = vmatprep.subr.mxu0 0.0
        %4359 = vmatpush1.msra.mxu0 %v2829
        %4360 = vmatprep.subr.mxu0 0.0
        %4361 = vmatpush1.msra.mxu0 %v2830
        %4362 = vmatprep.subr.mxu0 0.0
        %4363 = vmatpush1.msra.mxu0 %v2831
        %4364 = vmatprep.subr.mxu0 0.0
        %4365 = vmatpush1.msra.mxu0 %v2832
        %4366 = vmatprep.subr.mxu0 0.0
        %4367 = vmatpush1.msra.mxu0 %v2833
        %4368 = vmatprep.mubr.f32.mxu0 %v3571
        %4369 = vmatmul.mubr.f32.gmra.mrb[0].mxu0 %v3570
        %v4370 = vpop.f32.mrb[0].mxu0
        %v4371 = vadd.f32 %v4146, %v4370
        %v4372 = vpop.f32.mrb[0].mxu0
        %4373 = vmatprep.mubr.f32.mxu0 %v3580
        %4374 = vmatmul.mubr.f32.gmra.mrb[0].mxu0 %v3579
        %v4375 = vpop.f32.mrb[0].mxu0
        %v4376 = vadd.f32 %v4151, %v4375
        %v4377 = vpop.f32.mrb[0].mxu0
        %4378 = vmatprep.mubr.f32.mxu0 %v3589
        %4379 = vmatmul.mubr.f32.gmra.mrb[0].mxu0 %v3588
        %v4380 = vpop.f32.mrb[0].mxu0
        %v4381 = vadd.f32 %v4156, %v4380
        %v4382 = vpop.f32.mrb[0].mxu0
        %4383 = vmatprep.mubr.f32.mxu0 %v3598
        %4384 = vmatmul.mubr.f32.gmra.mrb[0].mxu0 %v3597
        %v4385 = vpop.f32.mrb[0].mxu0
        %v4386 = vadd.f32 %v4161, %v4385
        %v4387 = vpop.f32.mrb[0].mxu0
        %4388 = vmatprep.mubr.f32.mxu0 %v3607
        %4389 = vmatmul.mubr.f32.gmra.mrb[0].mxu0 %v3606
        %v4390 = vpop.f32.mrb[0].mxu0
        %v4391 = vadd.f32 %v4166, %v4390
        %v4392 = vpop.f32.mrb[0].mxu0
        %4393 = vmatprep.mubr.f32.mxu0 %v3616
        %4394 = vmatmul.mubr.f32.gmra.mrb[0].mxu0 %v3615
        %v4395 = vpop.f32.mrb[0].mxu0
        %v4396 = vadd.f32 %v4171, %v4395
        %v4397 = vpop.f32.mrb[0].mxu0
        %4398 = vmatprep.mubr.f32.mxu0 %v3625
        %4399 = vmatmul.mubr.f32.gmra.mrb[0].mxu0 %v3624
        %v4400 = vpop.f32.mrb[0].mxu0
        %v4401 = vadd.f32 %v4176, %v4400
        %v4402 = vpop.f32.mrb[0].mxu0
        %4403 = vmatprep.mubr.f32.mxu0 %v3634
        %4404 = vmatmul.mubr.f32.gmra.mrb[0].mxu0 %v3633
        %v4405 = vpop.f32.mrb[0].mxu0
        %v4406 = vadd.f32 %v4181, %v4405
        %v4407 = vpop.f32.mrb[0].mxu0
        %4408 = vmatprep.mubr.f32.mxu0 %v3643
        %4409 = vmatmul.mubr.f32.gmra.mrb[0].mxu0 %v3642
        %v4410 = vpop.f32.mrb[0].mxu0
        %v4411 = vadd.f32 %v4186, %v4410
        %v4412 = vpop.f32.mrb[0].mxu0
        %4413 = vmatprep.mubr.f32.mxu0 %v3652
        %4414 = vmatmul.mubr.f32.gmra.mrb[0].mxu0 %v3651
        %v4415 = vpop.f32.mrb[0].mxu0
        %v4416 = vadd.f32 %v4191, %v4415
        %v4417 = vpop.f32.mrb[0].mxu0
        %4418 = vmatprep.mubr.f32.mxu0 %v3661
        %4419 = vmatmul.mubr.f32.gmra.mrb[0].mxu0 %v3660
        %v4420 = vpop.f32.mrb[0].mxu0
        %v4421 = vadd.f32 %v4196, %v4420
        %v4422 = vpop.f32.mrb[0].mxu0
        %4423 = vmatprep.mubr.f32.mxu0 %v3670
        %4424 = vmatmul.mubr.f32.gmra.mrb[0].mxu0 %v3669
        %v4425 = vpop.f32.mrb[0].mxu0
        %v4426 = vadd.f32 %v4201, %v4425
        %v4427 = vpop.f32.mrb[0].mxu0
        %4428 = vmatprep.mubr.f32.mxu0 %v3679
        %4429 = vmatmul.mubr.f32.gmra.mrb[0].mxu0 %v3678
        %v4430 = vpop.f32.mrb[0].mxu0
        %v4431 = vadd.f32 %v4206, %v4430
        %v4432 = vpop.f32.mrb[0].mxu0
        %4433 = vmatprep.mubr.f32.mxu0 %v3688
        %4434 = vmatmul.mubr.f32.gmra.mrb[0].mxu0 %v3687
        %v4435 = vpop.f32.mrb[0].mxu0
        %v4436 = vadd.f32 %v4211, %v4435
        %v4437 = vpop.f32.mrb[0].mxu0
        %4438 = vmatprep.mubr.f32.mxu0 %v3697
        %4439 = vmatmul.mubr.f32.gmra.mrb[0].mxu0 %v3696
        %v4440 = vpop.f32.mrb[0].mxu0
        %v4441 = vadd.f32 %v4216, %v4440
        %v4442 = vpop.f32.mrb[0].mxu0
        %4443 = vmatprep.mubr.f32.mxu0 %v3706
        %4444 = vmatmul.mubr.f32.gmra.mrb[0].mxu0 %v3705
        %v4445 = vpop.f32.mrb[0].mxu0
        %v4446 = vadd.f32 %v4221, %v4445
        %v4447 = vpop.f32.mrb[0].mxu0
        %4448 = vmatprep.mubr.f32.mxu0 %v3715
        %4449 = vmatmul.mubr.f32.gmra.mrb[0].mxu0 %v3714
        %v4450 = vpop.f32.mrb[0].mxu0
        %v4451 = vadd.f32 %v4226, %v4450
        %v4452 = vpop.f32.mrb[0].mxu0
        %4453 = vmatprep.mubr.f32.mxu0 %v3724
        %4454 = vmatmul.mubr.f32.gmra.mrb[0].mxu0 %v3723
        %v4455 = vpop.f32.mrb[0].mxu0
        %v4456 = vadd.f32 %v4231, %v4455
        %v4457 = vpop.f32.mrb[0].mxu0
        %4458 = vmatprep.mubr.f32.mxu0 %v3733
        %4459 = vmatmul.mubr.f32.gmra.mrb[0].mxu0 %v3732
        %v4460 = vpop.f32.mrb[0].mxu0
        %v4461 = vadd.f32 %v4236, %v4460
        %v4462 = vpop.f32.mrb[0].mxu0
        %4463 = vmatprep.mubr.f32.mxu0 %v3742
        %4464 = vmatmul.mubr.f32.gmra.mrb[0].mxu0 %v3741
        %v4465 = vpop.f32.mrb[0].mxu0
        %v4466 = vadd.f32 %v4241, %v4465
        %v4467 = vpop.f32.mrb[0].mxu0
        %4468 = vmatprep.mubr.f32.mxu0 %v3751
        %4469 = vmatmul.mubr.f32.gmra.mrb[0].mxu0 %v3750
        %v4470 = vpop.f32.mrb[0].mxu0
        %v4471 = vadd.f32 %v4246, %v4470
        %v4472 = vpop.f32.mrb[0].mxu0
        %4473 = vmatprep.mubr.f32.mxu0 %v3760
        %4474 = vmatmul.mubr.f32.gmra.mrb[0].mxu0 %v3759
        %v4475 = vpop.f32.mrb[0].mxu0
        %v4476 = vadd.f32 %v4251, %v4475
        %v4477 = vpop.f32.mrb[0].mxu0
        %4478 = vmatprep.mubr.f32.mxu0 %v3769
        %4479 = vmatmul.mubr.f32.gmra.mrb[0].mxu0 %v3768
        %v4480 = vpop.f32.mrb[0].mxu0
        %v4481 = vadd.f32 %v4256, %v4480
        %v4482 = vpop.f32.mrb[0].mxu0
        %4483 = vmatprep.mubr.f32.mxu0 %v3778
        %4484 = vmatmul.mubr.f32.gmra.mrb[0].mxu0 %v3777
        %v4485 = vpop.f32.mrb[0].mxu0
        %v4486 = vadd.f32 %v4261, %v4485
        %v4487 = vpop.f32.mrb[0].mxu0
        %4488 = vmatprep.mubr.f32.mxu0 %v3787
        %4489 = vmatmul.mubr.f32.gmra.mrb[0].mxu0 %v3786
        %v4490 = vpop.f32.mrb[0].mxu0
        %v4491 = vadd.f32 %v4266, %v4490
        %v4492 = vpop.f32.mrb[0].mxu0
        %4493 = vmatprep.mubr.f32.mxu0 %v3796
        %4494 = vmatmul.mubr.f32.gmra.mrb[0].mxu0 %v3795
        %v4495 = vpop.f32.mrb[0].mxu0
        %v4496 = vadd.f32 %v4271, %v4495
        %v4497 = vpop.f32.mrb[0].mxu0
        %4498 = vmatprep.mubr.f32.mxu0 %v3805
        %4499 = vmatmul.mubr.f32.gmra.mrb[0].mxu0 %v3804
        %v4500 = vpop.f32.mrb[0].mxu0
        %v4501 = vadd.f32 %v4276, %v4500
        %v4502 = vpop.f32.mrb[0].mxu0
        %4503 = vmatprep.mubr.f32.mxu0 %v3814
        %4504 = vmatmul.mubr.f32.gmra.mrb[0].mxu0 %v3813
        %v4505 = vpop.f32.mrb[0].mxu0
        %v4506 = vadd.f32 %v4281, %v4505
        %v4507 = vpop.f32.mrb[0].mxu0
        %4508 = vmatprep.mubr.f32.mxu0 %v3823
        %4509 = vmatmul.mubr.f32.gmra.mrb[0].mxu0 %v3822
        %v4510 = vpop.f32.mrb[0].mxu0
        %v4511 = vadd.f32 %v4286, %v4510
        %v4512 = vpop.f32.mrb[0].mxu0
        %4513 = vmatprep.mubr.f32.mxu0 %v3832
        %4514 = vmatmul.mubr.f32.gmra.mrb[0].mxu0 %v3831
        %v4515 = vpop.f32.mrb[0].mxu0
        %v4516 = vadd.f32 %v4291, %v4515
        %v4517 = vpop.f32.mrb[0].mxu0
        %4518 = vmatprep.mubr.f32.mxu0 %v3841
        %4519 = vmatmul.mubr.f32.gmra.mrb[0].mxu0 %v3840
        %v4520 = vpop.f32.mrb[0].mxu0
        %v4521 = vadd.f32 %v4296, %v4520
        %v4522 = vpop.f32.mrb[0].mxu0
        %4523 = vmatprep.mubr.f32.mxu0 %v3850
        %4524 = vmatmul.mubr.f32.gmra.mrb[0].mxu0 %v3849
        %v4525 = vpop.f32.mrb[0].mxu0
        %v4526 = vadd.f32 %v4301, %v4525
        %v4527 = vpop.f32.mrb[0].mxu0
        %4528 = vdwg.mxu0
        %4529 = vmatprep.subr.mxu0 0.0
        %4530 = vmatpush1.msra.mxu0 %v2834
        %4531 = vmatprep.subr.mxu0 0.0
        %4532 = vmatpush1.msra.mxu0 %v2835
        %4533 = vmatprep.subr.mxu0 0.0
        %4534 = vmatpush1.msra.mxu0 %v2836
        %4535 = vmatprep.subr.mxu0 0.0
        %4536 = vmatpush1.msra.mxu0 %v2837
        %4537 = vmatprep.subr.mxu0 0.0
        %4538 = vmatpush1.msra.mxu0 %v2838
        %4539 = vmatprep.subr.mxu0 0.0
        %4540 = vmatpush1.msra.mxu0 %v2839
        %4541 = vmatprep.subr.mxu0 0.0
        %4542 = vmatpush1.msra.mxu0 %v2840
        %4543 = vmatprep.subr.mxu0 0.0
        %4544 = vmatpush1.msra.mxu0 %v2841
        %4545 = vmatprep.subr.mxu0 0.0
        %4546 = vmatpush1.msra.mxu0 %v2842
        %4547 = vmatprep.subr.mxu0 0.0
        %4548 = vmatpush1.msra.mxu0 %v2843
        %4549 = vmatprep.subr.mxu0 0.0
        %4550 = vmatpush1.msra.mxu0 %v2844
        %4551 = vmatprep.subr.mxu0 0.0
        %4552 = vmatpush1.msra.mxu0 %v2845
        %4553 = vmatprep.subr.mxu0 0.0
        %4554 = vmatpush1.msra.mxu0 %v2846
        %4555 = vmatprep.subr.mxu0 0.0
        %4556 = vmatpush1.msra.mxu0 %v2847
        %4557 = vmatprep.subr.mxu0 0.0
        %4558 = vmatpush1.msra.mxu0 %v2848
        %4559 = vmatprep.subr.mxu0 0.0
        %4560 = vmatpush1.msra.mxu0 %v2849
        %4561 = vmatprep.subr.mxu0 0.0
        %4562 = vmatpush1.msra.mxu0 %v2850
        %4563 = vmatprep.subr.mxu0 0.0
        %4564 = vmatpush1.msra.mxu0 %v2851
        %4565 = vmatprep.subr.mxu0 0.0
        %4566 = vmatpush1.msra.mxu0 %v2852
        %4567 = vmatprep.subr.mxu0 0.0
        %4568 = vmatpush1.msra.mxu0 %v2853
        %4569 = vmatprep.subr.mxu0 0.0
        %4570 = vmatpush1.msra.mxu0 %v2854
        %4571 = vmatprep.subr.mxu0 0.0
        %4572 = vmatpush1.msra.mxu0 %v2855
        %4573 = vmatprep.subr.mxu0 0.0
        %4574 = vmatpush1.msra.mxu0 %v2856
        %4575 = vmatprep.subr.mxu0 0.0
        %4576 = vmatpush1.msra.mxu0 %v2857
        %4577 = vmatprep.subr.mxu0 0.0
        %4578 = vmatpush1.msra.mxu0 %v2858
        %4579 = vmatprep.subr.mxu0 0.0
        %4580 = vmatpush1.msra.mxu0 %v2859
        %4581 = vmatprep.subr.mxu0 0.0
        %4582 = vmatpush1.msra.mxu0 %v2860
        %4583 = vmatprep.subr.mxu0 0.0
        %4584 = vmatpush1.msra.mxu0 %v2861
        %4585 = vmatprep.subr.mxu0 0.0
        %4586 = vmatpush1.msra.mxu0 %v2862
        %4587 = vmatprep.subr.mxu0 0.0
        %4588 = vmatpush1.msra.mxu0 %v2863
        %4589 = vmatprep.subr.mxu0 0.0
        %4590 = vmatpush1.msra.mxu0 %v2864
        %4591 = vmatprep.subr.mxu0 0.0
        %4592 = vmatpush1.msra.mxu0 %v2865
        %4593 = vmatprep.mubr.f32.mxu0 %v3573
        %4594 = vmatmul.mubr.f32.gmra.mrb[0].mxu0 %v3572
        %v4595 = vpop.f32.mrb[0].mxu0
        %v4596 = vadd.f32 %v4371, %v4595
        %v4597 = vpop.f32.mrb[0].mxu0
        %4598 = vmatprep.mubr.f32.mxu0 %v3582
        %4599 = vmatmul.mubr.f32.gmra.mrb[0].mxu0 %v3581
        %v4600 = vpop.f32.mrb[0].mxu0
        %v4601 = vadd.f32 %v4376, %v4600
        %v4602 = vpop.f32.mrb[0].mxu0
        %4603 = vmatprep.mubr.f32.mxu0 %v3591
        %4604 = vmatmul.mubr.f32.gmra.mrb[0].mxu0 %v3590
        %v4605 = vpop.f32.mrb[0].mxu0
        %v4606 = vadd.f32 %v4381, %v4605
        %v4607 = vpop.f32.mrb[0].mxu0
        %4608 = vmatprep.mubr.f32.mxu0 %v3600
        %4609 = vmatmul.mubr.f32.gmra.mrb[0].mxu0 %v3599
        %v4610 = vpop.f32.mrb[0].mxu0
        %v4611 = vadd.f32 %v4386, %v4610
        %v4612 = vpop.f32.mrb[0].mxu0
        %4613 = vmatprep.mubr.f32.mxu0 %v3609
        %4614 = vmatmul.mubr.f32.gmra.mrb[0].mxu0 %v3608
        %v4615 = vpop.f32.mrb[0].mxu0
        %v4616 = vadd.f32 %v4391, %v4615
        %v4617 = vpop.f32.mrb[0].mxu0
        %4618 = vmatprep.mubr.f32.mxu0 %v3618
        %4619 = vmatmul.mubr.f32.gmra.mrb[0].mxu0 %v3617
        %v4620 = vpop.f32.mrb[0].mxu0
        %v4621 = vadd.f32 %v4396, %v4620
        %v4622 = vpop.f32.mrb[0].mxu0
        %4623 = vmatprep.mubr.f32.mxu0 %v3627
        %4624 = vmatmul.mubr.f32.gmra.mrb[0].mxu0 %v3626
        %v4625 = vpop.f32.mrb[0].mxu0
        %v4626 = vadd.f32 %v4401, %v4625
        %v4627 = vpop.f32.mrb[0].mxu0
        %4628 = vmatprep.mubr.f32.mxu0 %v3636
        %4629 = vmatmul.mubr.f32.gmra.mrb[0].mxu0 %v3635
        %v4630 = vpop.f32.mrb[0].mxu0
        %v4631 = vadd.f32 %v4406, %v4630
        %v4632 = vpop.f32.mrb[0].mxu0
        %4633 = vmatprep.mubr.f32.mxu0 %v3645
        %4634 = vmatmul.mubr.f32.gmra.mrb[0].mxu0 %v3644
        %v4635 = vpop.f32.mrb[0].mxu0
        %v4636 = vadd.f32 %v4411, %v4635
        %v4637 = vpop.f32.mrb[0].mxu0
        %4638 = vmatprep.mubr.f32.mxu0 %v3654
        %4639 = vmatmul.mubr.f32.gmra.mrb[0].mxu0 %v3653
        %v4640 = vpop.f32.mrb[0].mxu0
        %v4641 = vadd.f32 %v4416, %v4640
        %v4642 = vpop.f32.mrb[0].mxu0
        %4643 = vmatprep.mubr.f32.mxu0 %v3663
        %4644 = vmatmul.mubr.f32.gmra.mrb[0].mxu0 %v3662
        %v4645 = vpop.f32.mrb[0].mxu0
        %v4646 = vadd.f32 %v4421, %v4645
        %v4647 = vpop.f32.mrb[0].mxu0
        %4648 = vmatprep.mubr.f32.mxu0 %v3672
        %4649 = vmatmul.mubr.f32.gmra.mrb[0].mxu0 %v3671
        %v4650 = vpop.f32.mrb[0].mxu0
        %v4651 = vadd.f32 %v4426, %v4650
        %v4652 = vpop.f32.mrb[0].mxu0
        %4653 = vmatprep.mubr.f32.mxu0 %v3681
        %4654 = vmatmul.mubr.f32.gmra.mrb[0].mxu0 %v3680
        %v4655 = vpop.f32.mrb[0].mxu0
        %v4656 = vadd.f32 %v4431, %v4655
        %v4657 = vpop.f32.mrb[0].mxu0
        %4658 = vmatprep.mubr.f32.mxu0 %v3690
        %4659 = vmatmul.mubr.f32.gmra.mrb[0].mxu0 %v3689
        %v4660 = vpop.f32.mrb[0].mxu0
        %v4661 = vadd.f32 %v4436, %v4660
        %v4662 = vpop.f32.mrb[0].mxu0
        %4663 = vmatprep.mubr.f32.mxu0 %v3699
        %4664 = vmatmul.mubr.f32.gmra.mrb[0].mxu0 %v3698
        %v4665 = vpop.f32.mrb[0].mxu0
        %v4666 = vadd.f32 %v4441, %v4665
        %v4667 = vpop.f32.mrb[0].mxu0
        %4668 = vmatprep.mubr.f32.mxu0 %v3708
        %4669 = vmatmul.mubr.f32.gmra.mrb[0].mxu0 %v3707
        %v4670 = vpop.f32.mrb[0].mxu0
        %v4671 = vadd.f32 %v4446, %v4670
        %v4672 = vpop.f32.mrb[0].mxu0
        %4673 = vmatprep.mubr.f32.mxu0 %v3717
        %4674 = vmatmul.mubr.f32.gmra.mrb[0].mxu0 %v3716
        %v4675 = vpop.f32.mrb[0].mxu0
        %v4676 = vadd.f32 %v4451, %v4675
        %v4677 = vpop.f32.mrb[0].mxu0
        %4678 = vmatprep.mubr.f32.mxu0 %v3726
        %4679 = vmatmul.mubr.f32.gmra.mrb[0].mxu0 %v3725
        %v4680 = vpop.f32.mrb[0].mxu0
        %v4681 = vadd.f32 %v4456, %v4680
        %v4682 = vpop.f32.mrb[0].mxu0
        %4683 = vmatprep.mubr.f32.mxu0 %v3735
        %4684 = vmatmul.mubr.f32.gmra.mrb[0].mxu0 %v3734
        %v4685 = vpop.f32.mrb[0].mxu0
        %v4686 = vadd.f32 %v4461, %v4685
        %v4687 = vpop.f32.mrb[0].mxu0
        %4688 = vmatprep.mubr.f32.mxu0 %v3744
        %4689 = vmatmul.mubr.f32.gmra.mrb[0].mxu0 %v3743
        %v4690 = vpop.f32.mrb[0].mxu0
        %v4691 = vadd.f32 %v4466, %v4690
        %v4692 = vpop.f32.mrb[0].mxu0
        %4693 = vmatprep.mubr.f32.mxu0 %v3753
        %4694 = vmatmul.mubr.f32.gmra.mrb[0].mxu0 %v3752
        %v4695 = vpop.f32.mrb[0].mxu0
        %v4696 = vadd.f32 %v4471, %v4695
        %v4697 = vpop.f32.mrb[0].mxu0
        %4698 = vmatprep.mubr.f32.mxu0 %v3762
        %4699 = vmatmul.mubr.f32.gmra.mrb[0].mxu0 %v3761
        %v4700 = vpop.f32.mrb[0].mxu0
        %v4701 = vadd.f32 %v4476, %v4700
        %v4702 = vpop.f32.mrb[0].mxu0
        %4703 = vmatprep.mubr.f32.mxu0 %v3771
        %4704 = vmatmul.mubr.f32.gmra.mrb[0].mxu0 %v3770
        %v4705 = vpop.f32.mrb[0].mxu0
        %v4706 = vadd.f32 %v4481, %v4705
        %v4707 = vpop.f32.mrb[0].mxu0
        %4708 = vmatprep.mubr.f32.mxu0 %v3780
        %4709 = vmatmul.mubr.f32.gmra.mrb[0].mxu0 %v3779
        %v4710 = vpop.f32.mrb[0].mxu0
        %v4711 = vadd.f32 %v4486, %v4710
        %v4712 = vpop.f32.mrb[0].mxu0
        %4713 = vmatprep.mubr.f32.mxu0 %v3789
        %4714 = vmatmul.mubr.f32.gmra.mrb[0].mxu0 %v3788
        %v4715 = vpop.f32.mrb[0].mxu0
        %v4716 = vadd.f32 %v4491, %v4715
        %v4717 = vpop.f32.mrb[0].mxu0
        %4718 = vmatprep.mubr.f32.mxu0 %v3798
        %4719 = vmatmul.mubr.f32.gmra.mrb[0].mxu0 %v3797
        %v4720 = vpop.f32.mrb[0].mxu0
        %v4721 = vadd.f32 %v4496, %v4720
        %v4722 = vpop.f32.mrb[0].mxu0
        %4723 = vmatprep.mubr.f32.mxu0 %v3807
        %4724 = vmatmul.mubr.f32.gmra.mrb[0].mxu0 %v3806
        %v4725 = vpop.f32.mrb[0].mxu0
        %v4726 = vadd.f32 %v4501, %v4725
        %v4727 = vpop.f32.mrb[0].mxu0
        %4728 = vmatprep.mubr.f32.mxu0 %v3816
        %4729 = vmatmul.mubr.f32.gmra.mrb[0].mxu0 %v3815
        %v4730 = vpop.f32.mrb[0].mxu0
        %v4731 = vadd.f32 %v4506, %v4730
        %v4732 = vpop.f32.mrb[0].mxu0
        %4733 = vmatprep.mubr.f32.mxu0 %v3825
        %4734 = vmatmul.mubr.f32.gmra.mrb[0].mxu0 %v3824
        %v4735 = vpop.f32.mrb[0].mxu0
        %v4736 = vadd.f32 %v4511, %v4735
        %v4737 = vpop.f32.mrb[0].mxu0
        %4738 = vmatprep.mubr.f32.mxu0 %v3834
        %4739 = vmatmul.mubr.f32.gmra.mrb[0].mxu0 %v3833
        %v4740 = vpop.f32.mrb[0].mxu0
        %v4741 = vadd.f32 %v4516, %v4740
        %v4742 = vpop.f32.mrb[0].mxu0
        %4743 = vmatprep.mubr.f32.mxu0 %v3843
        %4744 = vmatmul.mubr.f32.gmra.mrb[0].mxu0 %v3842
        %v4745 = vpop.f32.mrb[0].mxu0
        %v4746 = vadd.f32 %v4521, %v4745
        %v4747 = vpop.f32.mrb[0].mxu0
        %4748 = vmatprep.mubr.f32.mxu0 %v3852
        %4749 = vmatmul.mubr.f32.gmra.mrb[0].mxu0 %v3851
        %v4750 = vpop.f32.mrb[0].mxu0
        %v4751 = vadd.f32 %v4526, %v4750
        %v4752 = vpop.f32.mrb[0].mxu0
        %4753 = vdwg.mxu0
        %4754 = vmatprep.subr.mxu0 0.0
        %4755 = vmatpush1.msra.mxu0 %v2866
        %4756 = vmatprep.subr.mxu0 0.0
        %4757 = vmatpush1.msra.mxu0 %v2867
        %4758 = vmatprep.subr.mxu0 0.0
        %4759 = vmatpush1.msra.mxu0 %v2868
        %4760 = vmatprep.subr.mxu0 0.0
        %4761 = vmatpush1.msra.mxu0 %v2869
        %4762 = vmatprep.subr.mxu0 0.0
        %4763 = vmatpush1.msra.mxu0 %v2870
        %4764 = vmatprep.subr.mxu0 0.0
        %4765 = vmatpush1.msra.mxu0 %v2871
        %4766 = vmatprep.subr.mxu0 0.0
        %4767 = vmatpush1.msra.mxu0 %v2872
        %4768 = vmatprep.subr.mxu0 0.0
        %4769 = vmatpush1.msra.mxu0 %v2873
        %4770 = vmatprep.subr.mxu0 0.0
        %4771 = vmatpush1.msra.mxu0 %v2874
        %4772 = vmatprep.subr.mxu0 0.0
        %4773 = vmatpush1.msra.mxu0 %v2875
        %4774 = vmatprep.subr.mxu0 0.0
        %4775 = vmatpush1.msra.mxu0 %v2876
        %4776 = vmatprep.subr.mxu0 0.0
        %4777 = vmatpush1.msra.mxu0 %v2877
        %4778 = vmatprep.subr.mxu0 0.0
        %4779 = vmatpush1.msra.mxu0 %v2878
        %4780 = vmatprep.subr.mxu0 0.0
        %4781 = vmatpush1.msra.mxu0 %v2879
        %4782 = vmatprep.subr.mxu0 0.0
        %4783 = vmatpush1.msra.mxu0 %v2880
        %4784 = vmatprep.subr.mxu0 0.0
        %4785 = vmatpush1.msra.mxu0 %v2881
        %4786 = vmatprep.subr.mxu0 0.0
        %4787 = vmatpush1.msra.mxu0 0.0
        %4788 = vmatprep.subr.mxu0 0.0
        %4789 = vmatpush1.msra.mxu0 0.0
        %4790 = vmatprep.subr.mxu0 0.0
        %4791 = vmatpush1.msra.mxu0 0.0
        %4792 = vmatprep.subr.mxu0 0.0
        %4793 = vmatpush1.msra.mxu0 0.0
        %4794 = vmatprep.subr.mxu0 0.0
        %4795 = vmatpush1.msra.mxu0 0.0
        %4796 = vmatprep.subr.mxu0 0.0
        %4797 = vmatpush1.msra.mxu0 0.0
        %4798 = vmatprep.subr.mxu0 0.0
        %4799 = vmatpush1.msra.mxu0 0.0
        %4800 = vmatprep.subr.mxu0 0.0
        %4801 = vmatpush1.msra.mxu0 0.0
        %4802 = vmatprep.subr.mxu0 0.0
        %4803 = vmatpush1.msra.mxu0 0.0
        %4804 = vmatprep.subr.mxu0 0.0
        %4805 = vmatpush1.msra.mxu0 0.0
        %4806 = vmatprep.subr.mxu0 0.0
        %4807 = vmatpush1.msra.mxu0 0.0
        %4808 = vmatprep.subr.mxu0 0.0
        %4809 = vmatpush1.msra.mxu0 0.0
        %4810 = vmatprep.subr.mxu0 0.0
        %4811 = vmatpush1.msra.mxu0 0.0
        %4812 = vmatprep.subr.mxu0 0.0
        %4813 = vmatpush1.msra.mxu0 0.0
        %4814 = vmatprep.subr.mxu0 0.0
        %4815 = vmatpush1.msra.mxu0 0.0
        %4816 = vmatprep.subr.mxu0 0.0
        %4817 = vmatpush1.msra.mxu0 0.0
        %4818 = vmatprep.mubr.f32.mxu0 0.0
        %4819 = vmatmul.mubr.f32.gmra.mrb[0].mxu0 %v3574
        %v4820 = vpop.f32.mrb[0].mxu0
        %v4821 = vadd.f32 %v4596, %v4820
        %v4822 = vpop.f32.mrb[0].mxu0
        %4823 = vmatprep.mubr.f32.mxu0 0.0
        %4824 = vmatmul.mubr.f32.gmra.mrb[0].mxu0 %v3583
        %v4825 = vpop.f32.mrb[0].mxu0
        %v4826 = vadd.f32 %v4601, %v4825
        %v4827 = vpop.f32.mrb[0].mxu0
        %4828 = vmatprep.mubr.f32.mxu0 0.0
        %4829 = vmatmul.mubr.f32.gmra.mrb[0].mxu0 %v3592
        %v4830 = vpop.f32.mrb[0].mxu0
        %v4831 = vadd.f32 %v4606, %v4830
        %v4832 = vpop.f32.mrb[0].mxu0
        %4833 = vmatprep.mubr.f32.mxu0 0.0
        %4834 = vmatmul.mubr.f32.gmra.mrb[0].mxu0 %v3601
        %v4835 = vpop.f32.mrb[0].mxu0
        %v4836 = vadd.f32 %v4611, %v4835
        %v4837 = vpop.f32.mrb[0].mxu0
        %4838 = vmatprep.mubr.f32.mxu0 0.0
        %4839 = vmatmul.mubr.f32.gmra.mrb[0].mxu0 %v3610
        %v4840 = vpop.f32.mrb[0].mxu0
        %v4841 = vadd.f32 %v4616, %v4840
        %v4842 = vpop.f32.mrb[0].mxu0
        %4843 = vmatprep.mubr.f32.mxu0 0.0
        %4844 = vmatmul.mubr.f32.gmra.mrb[0].mxu0 %v3619
        %v4845 = vpop.f32.mrb[0].mxu0
        %v4846 = vadd.f32 %v4621, %v4845
        %v4847 = vpop.f32.mrb[0].mxu0
        %4848 = vmatprep.mubr.f32.mxu0 0.0
        %4849 = vmatmul.mubr.f32.gmra.mrb[0].mxu0 %v3628
        %v4850 = vpop.f32.mrb[0].mxu0
        %v4851 = vadd.f32 %v4626, %v4850
        %v4852 = vpop.f32.mrb[0].mxu0
        %4853 = vmatprep.mubr.f32.mxu0 0.0
        %4854 = vmatmul.mubr.f32.gmra.mrb[0].mxu0 %v3637
        %v4855 = vpop.f32.mrb[0].mxu0
        %v4856 = vadd.f32 %v4631, %v4855
        %v4857 = vpop.f32.mrb[0].mxu0
        %4858 = vmatprep.mubr.f32.mxu0 0.0
        %4859 = vmatmul.mubr.f32.gmra.mrb[0].mxu0 %v3646
        %v4860 = vpop.f32.mrb[0].mxu0
        %v4861 = vadd.f32 %v4636, %v4860
        %v4862 = vpop.f32.mrb[0].mxu0
        %4863 = vmatprep.mubr.f32.mxu0 0.0
        %4864 = vmatmul.mubr.f32.gmra.mrb[0].mxu0 %v3655
        %v4865 = vpop.f32.mrb[0].mxu0
        %v4866 = vadd.f32 %v4641, %v4865
        %v4867 = vpop.f32.mrb[0].mxu0
        %4868 = vmatprep.mubr.f32.mxu0 0.0
        %4869 = vmatmul.mubr.f32.gmra.mrb[0].mxu0 %v3664
        %v4870 = vpop.f32.mrb[0].mxu0
        %v4871 = vadd.f32 %v4646, %v4870
        %v4872 = vpop.f32.mrb[0].mxu0
        %4873 = vmatprep.mubr.f32.mxu0 0.0
        %4874 = vmatmul.mubr.f32.gmra.mrb[0].mxu0 %v3673
        %v4875 = vpop.f32.mrb[0].mxu0
        %v4876 = vadd.f32 %v4651, %v4875
        %v4877 = vpop.f32.mrb[0].mxu0
        %4878 = vmatprep.mubr.f32.mxu0 0.0
        %4879 = vmatmul.mubr.f32.gmra.mrb[0].mxu0 %v3682
        %v4880 = vpop.f32.mrb[0].mxu0
        %v4881 = vadd.f32 %v4656, %v4880
        %v4882 = vpop.f32.mrb[0].mxu0
        %4883 = vmatprep.mubr.f32.mxu0 0.0
        %4884 = vmatmul.mubr.f32.gmra.mrb[0].mxu0 %v3691
        %v4885 = vpop.f32.mrb[0].mxu0
        %v4886 = vadd.f32 %v4661, %v4885
        %v4887 = vpop.f32.mrb[0].mxu0
        %4888 = vmatprep.mubr.f32.mxu0 0.0
        %4889 = vmatmul.mubr.f32.gmra.mrb[0].mxu0 %v3700
        %v4890 = vpop.f32.mrb[0].mxu0
        %v4891 = vadd.f32 %v4666, %v4890
        %v4892 = vpop.f32.mrb[0].mxu0
        %4893 = vmatprep.mubr.f32.mxu0 0.0
        %4894 = vmatmul.mubr.f32.gmra.mrb[0].mxu0 %v3709
        %v4895 = vpop.f32.mrb[0].mxu0
        %v4896 = vadd.f32 %v4671, %v4895
        %v4897 = vpop.f32.mrb[0].mxu0
        %4898 = vmatprep.mubr.f32.mxu0 0.0
        %4899 = vmatmul.mubr.f32.gmra.mrb[0].mxu0 %v3718
        %v4900 = vpop.f32.mrb[0].mxu0
        %v4901 = vadd.f32 %v4676, %v4900
        %v4902 = vpop.f32.mrb[0].mxu0
        %4903 = vmatprep.mubr.f32.mxu0 0.0
        %4904 = vmatmul.mubr.f32.gmra.mrb[0].mxu0 %v3727
        %v4905 = vpop.f32.mrb[0].mxu0
        %v4906 = vadd.f32 %v4681, %v4905
        %v4907 = vpop.f32.mrb[0].mxu0
        %4908 = vmatprep.mubr.f32.mxu0 0.0
        %4909 = vmatmul.mubr.f32.gmra.mrb[0].mxu0 %v3736
        %v4910 = vpop.f32.mrb[0].mxu0
        %v4911 = vadd.f32 %v4686, %v4910
        %v4912 = vpop.f32.mrb[0].mxu0
        %4913 = vmatprep.mubr.f32.mxu0 0.0
        %4914 = vmatmul.mubr.f32.gmra.mrb[0].mxu0 %v3745
        %v4915 = vpop.f32.mrb[0].mxu0
        %v4916 = vadd.f32 %v4691, %v4915
        %v4917 = vpop.f32.mrb[0].mxu0
        %4918 = vmatprep.mubr.f32.mxu0 0.0
        %4919 = vmatmul.mubr.f32.gmra.mrb[0].mxu0 %v3754
        %v4920 = vpop.f32.mrb[0].mxu0
        %v4921 = vadd.f32 %v4696, %v4920
        %v4922 = vpop.f32.mrb[0].mxu0
        %4923 = vmatprep.mubr.f32.mxu0 0.0
        %4924 = vmatmul.mubr.f32.gmra.mrb[0].mxu0 %v3763
        %v4925 = vpop.f32.mrb[0].mxu0
        %v4926 = vadd.f32 %v4701, %v4925
        %v4927 = vpop.f32.mrb[0].mxu0
        %4928 = vmatprep.mubr.f32.mxu0 0.0
        %4929 = vmatmul.mubr.f32.gmra.mrb[0].mxu0 %v3772
        %v4930 = vpop.f32.mrb[0].mxu0
        %v4931 = vadd.f32 %v4706, %v4930
        %v4932 = vpop.f32.mrb[0].mxu0
        %4933 = vmatprep.mubr.f32.mxu0 0.0
        %4934 = vmatmul.mubr.f32.gmra.mrb[0].mxu0 %v3781
        %v4935 = vpop.f32.mrb[0].mxu0
        %v4936 = vadd.f32 %v4711, %v4935
        %v4937 = vpop.f32.mrb[0].mxu0
        %4938 = vmatprep.mubr.f32.mxu0 0.0
        %4939 = vmatmul.mubr.f32.gmra.mrb[0].mxu0 %v3790
        %v4940 = vpop.f32.mrb[0].mxu0
        %v4941 = vadd.f32 %v4716, %v4940
        %v4942 = vpop.f32.mrb[0].mxu0
        %4943 = vmatprep.mubr.f32.mxu0 0.0
        %4944 = vmatmul.mubr.f32.gmra.mrb[0].mxu0 %v3799
        %v4945 = vpop.f32.mrb[0].mxu0
        %v4946 = vadd.f32 %v4721, %v4945
        %v4947 = vpop.f32.mrb[0].mxu0
        %4948 = vmatprep.mubr.f32.mxu0 0.0
        %4949 = vmatmul.mubr.f32.gmra.mrb[0].mxu0 %v3808
        %v4950 = vpop.f32.mrb[0].mxu0
        %v4951 = vadd.f32 %v4726, %v4950
        %v4952 = vpop.f32.mrb[0].mxu0
        %4953 = vmatprep.mubr.f32.mxu0 0.0
        %4954 = vmatmul.mubr.f32.gmra.mrb[0].mxu0 %v3817
        %v4955 = vpop.f32.mrb[0].mxu0
        %v4956 = vadd.f32 %v4731, %v4955
        %v4957 = vpop.f32.mrb[0].mxu0
        %4958 = vmatprep.mubr.f32.mxu0 0.0
        %4959 = vmatmul.mubr.f32.gmra.mrb[0].mxu0 %v3826
        %v4960 = vpop.f32.mrb[0].mxu0
        %v4961 = vadd.f32 %v4736, %v4960
        %v4962 = vpop.f32.mrb[0].mxu0
        %4963 = vmatprep.mubr.f32.mxu0 0.0
        %4964 = vmatmul.mubr.f32.gmra.mrb[0].mxu0 %v3835
        %v4965 = vpop.f32.mrb[0].mxu0
        %v4966 = vadd.f32 %v4741, %v4965
        %v4967 = vpop.f32.mrb[0].mxu0
        %4968 = vmatprep.mubr.f32.mxu0 0.0
        %4969 = vmatmul.mubr.f32.gmra.mrb[0].mxu0 %v3844
        %v4970 = vpop.f32.mrb[0].mxu0
        %v4971 = vadd.f32 %v4746, %v4970
        %v4972 = vpop.f32.mrb[0].mxu0
        %4973 = vmatprep.mubr.f32.mxu0 0.0
        %4974 = vmatmul.mubr.f32.gmra.mrb[0].mxu0 %v3853
        %v4975 = vpop.f32.mrb[0].mxu0
        %v4976 = vadd.f32 %v4751, %v4975
        %v4977 = vpop.f32.mrb[0].mxu0
        %4978 = vdwg.mxu0
        %v4979 = vadd.f32 %v4821, %v4826
        %v4980 = vadd.f32 %v4979, %v4831
        %v4981 = vadd.f32 %v4980, %v4836
        %v4982 = vadd.f32 %v4981, %v4841
        %v4983 = vadd.f32 %v4982, %v4846
        %v4984 = vadd.f32 %v4983, %v4851
        %v4985 = vadd.f32 %v4984, %v4856
        %v4986 = vadd.f32 %v4985, %v4861
        %v4987 = vadd.f32 %v4986, %v4866
        %v4988 = vadd.f32 %v4987, %v4871
        %v4989 = vadd.f32 %v4988, %v4876
        %v4990 = vadd.f32 %v4989, %v4881
        %v4991 = vadd.f32 %v4990, %v4886
        %v4992 = vadd.f32 %v4991, %v4891
        %v4993 = vadd.f32 %v4992, %v4896
        %v4994 = vadd.f32 %v4993, %v4901
        %v4995 = vadd.f32 %v4994, %v4906
        %v4996 = vadd.f32 %v4995, %v4911
        %v4997 = vadd.f32 %v4996, %v4916
        %v4998 = vadd.f32 %v4997, %v4921
        %v4999 = vadd.f32 %v4998, %v4926
        %v5000 = vadd.f32 %v4999, %v4931
        %v5001 = vadd.f32 %v5000, %v4936
        %v5002 = vadd.f32 %v5001, %v4941
        %v5003 = vadd.f32 %v5002, %v4946
        %v5004 = vadd.f32 %v5003, %v4951
        %v5005 = vadd.f32 %v5004, %v4956
        %v5006 = vadd.f32 %v5005, %v4961
        %v5007 = vadd.f32 %v5006, %v4966
        %v5008 = vadd.f32 %v5007, %v4971
        %v5009 = vadd.f32 %v5008, %v4976
        %v5010 = vrot.slane %v5009, 4
        %v5011 = vadd.f32 %v5009, %v5010
        %v5012 = vrot.slane %v5011, 2
        %v5013 = vadd.f32 %v5011, %v5012
        %v5014 = vrot.slane %v5013, 1
        %v5015 = vadd.f32 %v5013, %v5014
        %v5016 = vmul.f32 %v5015, 0.00390625
        %v5017 = vmul.f32 %v4821, %v4821
        %v5018 = vmul.f32 %v4826, %v4826
        %v5019 = vmul.f32 %v4831, %v4831
        %v5020 = vmul.f32 %v4836, %v4836
        %v5021 = vmul.f32 %v4841, %v4841
        %v5022 = vmul.f32 %v4846, %v4846
        %v5023 = vmul.f32 %v4851, %v4851
        %v5024 = vmul.f32 %v4856, %v4856
        %v5025 = vmul.f32 %v4861, %v4861
        %v5026 = vmul.f32 %v4866, %v4866
        %v5027 = vmul.f32 %v4871, %v4871
        %v5028 = vmul.f32 %v4876, %v4876
        %v5029 = vmul.f32 %v4881, %v4881
        %v5030 = vmul.f32 %v4886, %v4886
        %v5031 = vmul.f32 %v4891, %v4891
        %v5032 = vmul.f32 %v4896, %v4896
        %v5033 = vmul.f32 %v4901, %v4901
        %v5034 = vmul.f32 %v4906, %v4906
        %v5035 = vmul.f32 %v4911, %v4911
        %v5036 = vmul.f32 %v4916, %v4916
        %v5037 = vmul.f32 %v4921, %v4921
        %v5038 = vmul.f32 %v4926, %v4926
        %v5039 = vmul.f32 %v4931, %v4931
        %v5040 = vmul.f32 %v4936, %v4936
        %v5041 = vmul.f32 %v4941, %v4941
        %v5042 = vmul.f32 %v4946, %v4946
        %v5043 = vmul.f32 %v4951, %v4951
        %v5044 = vmul.f32 %v4956, %v4956
        %v5045 = vmul.f32 %v4961, %v4961
        %v5046 = vmul.f32 %v4966, %v4966
        %v5047 = vmul.f32 %v4971, %v4971
        %v5048 = vmul.f32 %v4976, %v4976
        %v5049 = vadd.f32 %v5017, %v5018
        %v5050 = vadd.f32 %v5049, %v5019
        %v5051 = vadd.f32 %v5050, %v5020
        %v5052 = vadd.f32 %v5051, %v5021
        %v5053 = vadd.f32 %v5052, %v5022
        %v5054 = vadd.f32 %v5053, %v5023
        %v5055 = vadd.f32 %v5054, %v5024
        %v5056 = vadd.f32 %v5055, %v5025
        %v5057 = vadd.f32 %v5056, %v5026
        %v5058 = vadd.f32 %v5057, %v5027
        %v5059 = vadd.f32 %v5058, %v5028
        %v5060 = vadd.f32 %v5059, %v5029
        %v5061 = vadd.f32 %v5060, %v5030
        %v5062 = vadd.f32 %v5061, %v5031
        %v5063 = vadd.f32 %v5062, %v5032
        %v5064 = vadd.f32 %v5063, %v5033
        %v5065 = vadd.f32 %v5064, %v5034
        %v5066 = vadd.f32 %v5065, %v5035
        %v5067 = vadd.f32 %v5066, %v5036
        %v5068 = vadd.f32 %v5067, %v5037
        %v5069 = vadd.f32 %v5068, %v5038
        %v5070 = vadd.f32 %v5069, %v5039
        %v5071 = vadd.f32 %v5070, %v5040
        %v5072 = vadd.f32 %v5071, %v5041
        %v5073 = vadd.f32 %v5072, %v5042
        %v5074 = vadd.f32 %v5073, %v5043
        %v5075 = vadd.f32 %v5074, %v5044
        %v5076 = vadd.f32 %v5075, %v5045
        %v5077 = vadd.f32 %v5076, %v5046
        %v5078 = vadd.f32 %v5077, %v5047
        %v5079 = vadd.f32 %v5078, %v5048
        %v5080 = vrot.slane %v5079, 4
        %v5081 = vadd.f32 %v5079, %v5080
        %v5082 = vrot.slane %v5081, 2
        %v5083 = vadd.f32 %v5081, %v5082
        %v5084 = vrot.slane %v5083, 1
        %v5085 = vadd.f32 %v5083, %v5084
        %v5086 = vmul.f32 %v5085, 0.00390625
        %v5087 = vmul.f32 %v5016, %v5016
        %v5088 = vsub.f32 %v5086, %v5087
        %v5089 = vsub.f32 %v4821, %v5016
        %v5090 = vsub.f32 %v4826, %v5016
        %v5091 = vsub.f32 %v4831, %v5016
        %v5092 = vsub.f32 %v4836, %v5016
        %v5093 = vsub.f32 %v4841, %v5016
        %v5094 = vsub.f32 %v4846, %v5016
        %v5095 = vsub.f32 %v4851, %v5016
        %v5096 = vsub.f32 %v4856, %v5016
        %v5097 = vsub.f32 %v4861, %v5016
        %v5098 = vsub.f32 %v4866, %v5016
        %v5099 = vsub.f32 %v4871, %v5016
        %v5100 = vsub.f32 %v4876, %v5016
        %v5101 = vsub.f32 %v4881, %v5016
        %v5102 = vsub.f32 %v4886, %v5016
        %v5103 = vsub.f32 %v4891, %v5016
        %v5104 = vsub.f32 %v4896, %v5016
        %v5105 = vsub.f32 %v4901, %v5016
        %v5106 = vsub.f32 %v4906, %v5016
        %v5107 = vsub.f32 %v4911, %v5016
        %v5108 = vsub.f32 %v4916, %v5016
        %v5109 = vsub.f32 %v4921, %v5016
        %v5110 = vsub.f32 %v4926, %v5016
        %v5111 = vsub.f32 %v4931, %v5016
        %v5112 = vsub.f32 %v4936, %v5016
        %v5113 = vsub.f32 %v4941, %v5016
        %v5114 = vsub.f32 %v4946, %v5016
        %v5115 = vsub.f32 %v4951, %v5016
        %v5116 = vsub.f32 %v4956, %v5016
        %v5117 = vsub.f32 %v4961, %v5016
        %v5118 = vsub.f32 %v4966, %v5016
        %v5119 = vsub.f32 %v4971, %v5016
        %v5120 = vsub.f32 %v4976, %v5016
        %v5121 = vadd.f32 %v5088, 1e-05
        %v5122 = vrsqrt.pop %v5121
        %v5123 = vmul.f32 %v5089, %v5122
        %v5124 = vmul.f32 %v5090, %v5122
        %v5125 = vmul.f32 %v5091, %v5122
        %v5126 = vmul.f32 %v5092, %v5122
        %v5127 = vmul.f32 %v5093, %v5122
        %v5128 = vmul.f32 %v5094, %v5122
        %v5129 = vmul.f32 %v5095, %v5122
        %v5130 = vmul.f32 %v5096, %v5122
        %v5131 = vmul.f32 %v5097, %v5122
        %v5132 = vmul.f32 %v5098, %v5122
        %v5133 = vmul.f32 %v5099, %v5122
        %v5134 = vmul.f32 %v5100, %v5122
        %v5135 = vmul.f32 %v5101, %v5122
        %v5136 = vmul.f32 %v5102, %v5122
        %v5137 = vmul.f32 %v5103, %v5122
        %v5138 = vmul.f32 %v5104, %v5122
        %v5139 = vmul.f32 %v5105, %v5122
        %v5140 = vmul.f32 %v5106, %v5122
        %v5141 = vmul.f32 %v5107, %v5122
        %v5142 = vmul.f32 %v5108, %v5122
        %v5143 = vmul.f32 %v5109, %v5122
        %v5144 = vmul.f32 %v5110, %v5122
        %v5145 = vmul.f32 %v5111, %v5122
        %v5146 = vmul.f32 %v5112, %v5122
        %v5147 = vmul.f32 %v5113, %v5122
        %v5148 = vmul.f32 %v5114, %v5122
        %v5149 = vmul.f32 %v5115, %v5122
        %v5150 = vmul.f32 %v5116, %v5122
        %v5151 = vmul.f32 %v5117, %v5122
        %v5152 = vmul.f32 %v5118, %v5122
        %v5153 = vmul.f32 %v5119, %v5122
        %v5154 = vmul.f32 %v5120, %v5122
        %5155 = vxpose.xlu0.b32.start [1/16] %v5123, 128
        %5156 = vxpose.xlu0.b32.cont [2/16] %v5124, 128
        %5157 = vxpose.xlu0.b32.cont [3/16] %v5125, 128
        %5158 = vxpose.xlu0.b32.cont [4/16] %v5126, 128
        %5159 = vxpose.xlu0.b32.cont [5/16] %v5127, 128
        %5160 = vxpose.xlu0.b32.cont [6/16] %v5128, 128
        %5161 = vxpose.xlu0.b32.cont [7/16] %v5129, 128
        %5162 = vxpose.xlu0.b32.cont [8/16] %v5130, 128
        %5163 = vxpose.xlu0.b32.cont [9/16] %v5131, 128
        %5164 = vxpose.xlu0.b32.cont [10/16] %v5132, 128
        %5165 = vxpose.xlu0.b32.cont [11/16] %v5133, 128
        %5166 = vxpose.xlu0.b32.cont [12/16] %v5134, 128
        %5167 = vxpose.xlu0.b32.cont [13/16] %v5135, 128
        %5168 = vxpose.xlu0.b32.cont [14/16] %v5136, 128
        %5169 = vxpose.xlu0.b32.cont [15/16] %v5137, 128
        %5170 = vxpose.xlu0.b32.end [16/16] %v5138, 128
        %v5171 = vpop.trf.xlu0
        %v5172 = vpop.trf.xlu0
        %v5173 = vpop.trf.xlu0
        %v5174 = vpop.trf.xlu0
        %v5175 = vpop.trf.xlu0
        %v5176 = vpop.trf.xlu0
        %v5177 = vpop.trf.xlu0
        %v5178 = vpop.trf.xlu0
        %v5179 = vpop.trf.xlu0
        %v5180 = vpop.trf.xlu0
        %v5181 = vpop.trf.xlu0
        %v5182 = vpop.trf.xlu0
        %v5183 = vpop.trf.xlu0
        %v5184 = vpop.trf.xlu0
        %v5185 = vpop.trf.xlu0
        %v5186 = vpop.trf.xlu0
        %5187 = vxpose.xlu0.b32.start [1/16] %v5139, 128
        %5188 = vxpose.xlu0.b32.cont [2/16] %v5140, 128
        %5189 = vxpose.xlu0.b32.cont [3/16] %v5141, 128
        %5190 = vxpose.xlu0.b32.cont [4/16] %v5142, 128
        %5191 = vxpose.xlu0.b32.cont [5/16] %v5143, 128
        %5192 = vxpose.xlu0.b32.cont [6/16] %v5144, 128
        %5193 = vxpose.xlu0.b32.cont [7/16] %v5145, 128
        %5194 = vxpose.xlu0.b32.cont [8/16] %v5146, 128
        %5195 = vxpose.xlu0.b32.cont [9/16] %v5147, 128
        %5196 = vxpose.xlu0.b32.cont [10/16] %v5148, 128
        %5197 = vxpose.xlu0.b32.cont [11/16] %v5149, 128
        %5198 = vxpose.xlu0.b32.cont [12/16] %v5150, 128
        %5199 = vxpose.xlu0.b32.cont [13/16] %v5151, 128
        %5200 = vxpose.xlu0.b32.cont [14/16] %v5152, 128
        %5201 = vxpose.xlu0.b32.cont [15/16] %v5153, 128
        %5202 = vxpose.xlu0.b32.end [16/16] %v5154, 128
        %v5203 = vpop.trf.xlu0
        %v5204 = vpop.trf.xlu0
        %v5205 = vpop.trf.xlu0
        %v5206 = vpop.trf.xlu0
        %v5207 = vpop.trf.xlu0
        %v5208 = vpop.trf.xlu0
        %v5209 = vpop.trf.xlu0
        %v5210 = vpop.trf.xlu0
        %v5211 = vpop.trf.xlu0
        %v5212 = vpop.trf.xlu0
        %v5213 = vpop.trf.xlu0
        %v5214 = vpop.trf.xlu0
        %v5215 = vpop.trf.xlu0
        %v5216 = vpop.trf.xlu0
        %v5217 = vpop.trf.xlu0
        %v5218 = vpop.trf.xlu0
        %v5221 = vcombine.low %v5171, %v5203
        %5223 = vst [vmem:[%s193] sm:$0xff] %v5221
        %s5224 = sand.u32 %s95, 1
        %s5225 = scalar_lea.sflag [#allocation6], %s5224
        %s5226 = sand.u32 %s95, 1
        %s5227 = smul.addr %s5226, 8
        %s5228 = scalar_lea.vmem [#allocation9], %s5227
        // Predicated region
        $region41: #{tpu_custom_call.1} parent=31 // pred_check
          %p5229 = pneg %p105
        $region42: #{tpu_custom_call.1} parent=31 // pred_check_branch
          %5231 = sbr.rel (%p5229) target = $region44
        $region43: #{tpu_custom_call.1} parent=31 // pred_region
          %s5233 = ssub.s32 128, 128
          %5234 = vsyncadd %s5225, %s5233
          %s5235 = smul.addr %s19, 2
          %s5236 = smul.addr %s5235, 64
          %s5237 = scalar_lea.hbm %s3, %s5236
          %s5239 = sshll.u32 %s5228, 4
          %s5240 = int_to_ptr.vmem [resolvable:$true] %s5239
          %5242 = dma.vmem_to_hbm [thread:$0]  %s5240, 128, %s5237, %s5225
        $region44: #{tpu_custom_call.1} parent=31 // pred_fallthru
          _
      $region32: #{tpu_custom_call.1} parent=5 // pred_fallthru
        _
      %p5243 = scmp.le.s32.totalorder 2, %s14
      // Predicated region
      $region45: #{tpu_custom_call.1} parent=5 // pred_check
        %p5244 = pneg %p5243
      $region46: #{tpu_custom_call.1} parent=5 // pred_check_branch
        %5246 = sbr.rel (%p5244) target = $region48
      $region47: #{tpu_custom_call.1} parent=5 // pred_region
        %s5247 = ssub.s32 %s14, 2
        // Predicated region
        $region49: #{tpu_custom_call.1} parent=47 // pred_check
          %p5248 = pneg %p111
        $region50: #{tpu_custom_call.1} parent=47 // pred_check_branch
          %5250 = sbr.rel (%p5248) target = $region52
        $region51: #{tpu_custom_call.1} parent=47 // pred_region
          %s5251 = sand.u32 %s96, 1
          %s5252 = scalar_lea.sflag [#allocation6], %s5251
          %s5253 = sand.u32 %s96, 1
          %s5254 = smul.addr %s5253, 8
          %s5255 = scalar_lea.vmem [#allocation9], %s5254
          %5256 = dma.done %s5252, 128
        $region52: #{tpu_custom_call.1} parent=47 // pred_fallthru
          _
      $region48: #{tpu_custom_call.1} parent=5 // pred_fallthru
        _
    $region6: #{tpu_custom_call.1} parent=1 // loop_footer
      %s18 = sadd.s32 1, %s14
    $region7: #{tpu_custom_call.1} parent=1 // loop_footer_branch
      %13 = sbr.rel target = $region3
    $region8: #{tpu_custom_call.1} parent=1 // loop_exit
      _
    %5257 = vsyncpa [#allocation5], 1
    %s5258 = scalar_lea.sflag [#allocation5], 1
    %5259 = vsyncpa %s5258, 1
    %5260 = vsyncpa [#allocation8], 1
    %5261 = vsyncpa [#allocation6], 1
    %s5262 = scalar_lea.sflag [#allocation6], 1
    %5263 = vsyncpa %s5262, 1

</llo_original>
